<compile_context>
chip_gen: v7x
topology: tpu7x:2x2x1
jax: 0.10.0
libtpu: 0.0.40
codegen_flags: <defaults>
</compile_context>

<pallas_src>
import functools

import jax
import jax.numpy as jnp
from jax.experimental import pallas as pl
from jax.experimental.pallas import tpu as pltpu

_VMEM_LIMIT_BYTES = 32 * 1024 * 1024


def _round_up(x, m):
    return (x + m - 1) // m * m


# --------------------- kernel A: K-tiled layer-0 projection --------------------- #
def _input_proj_kernel(x_ref, w_ref, out_ref):
    """(S*Bp, tk) @ (tk, 4*Hp), accumulated in f32 into the resident out block."""
    @pl.when(pl.program_id(0) == 0)
    def _():
        out_ref[...] = jnp.zeros_like(out_ref)

    out_ref[...] += jnp.dot(x_ref[...], w_ref[...],
                            preferred_element_type=jnp.float32)


# ----------------- kernel B: stacked LSTM recurrence + Linear head ----------------- #
def _lstm_stack_kernel(xp0_ref, wih_ref, whh_ref, bias_ref, wout_ref, bout_ref,
                       out_ref, hN_ref, cN_ref,
                       seq0_sc, seq1_sc, xproj_sc,
                       *, num_layers, hidden_pad, seq_len, batch_pad, matmul_dtype):
    L, Hp, S, Bp = num_layers, hidden_pad, seq_len, batch_pad
    l = pl.program_id(0)

    # ---- per-layer input projection, hoisted out of the recurrence ----
    @pl.when(l == 0)
    def _():
        # Layer 0: projection precomputed by the K-tiled kernel; add bias here.
        xproj_sc[...] = xp0_ref[...] + bias_ref[...]

    def _project(prev_sc):
        prev = prev_sc[...].reshape(S * Bp, Hp).astype(matmul_dtype)
        xp = jnp.dot(prev, wih_ref[0], preferred_element_type=jnp.float32)
        xproj_sc[...] = xp.reshape(S, Bp, 4 * Hp) + bias_ref[...]

    @pl.when(jnp.logical_and(l > 0, l % 2 == 1))
    def _():
        _project(seq0_sc)           # previous (even) layer wrote seq0

    @pl.when(jnp.logical_and(l > 0, l % 2 == 0))
    def _():
        _project(seq1_sc)           # previous (odd) layer wrote seq1

    # ---- serial recurrence: only h @ W_hh remains on the per-step path ----
    def _recurrence(out_sc):
        whh = whh_ref[0]            # (Hp, 4Hp), already in matmul dtype

        def step(t, carry):
            h, c = carry
            gates = xproj_sc[t] + jnp.dot(h.astype(matmul_dtype), whh,
                                          preferred_element_type=jnp.float32)
            i_g = jax.nn.sigmoid(gates[:, 0 * Hp:1 * Hp])   # 128-aligned slices
            f_g = jax.nn.sigmoid(gates[:, 1 * Hp:2 * Hp])
            g_g = jnp.tanh(gates[:, 2 * Hp:3 * Hp])
            o_g = jax.nn.sigmoid(gates[:, 3 * Hp:4 * Hp])
            c = f_g * c + i_g * g_g
            h = o_g * jnp.tanh(c)
            out_sc[t] = h                                   # stays in VMEM
            return h, c

        h0 = jnp.zeros((Bp, Hp), jnp.float32)
        c0 = jnp.zeros((Bp, Hp), jnp.float32)
        h, c = jax.lax.fori_loop(0, S, step, (h0, c0), unroll=True)
        hN_ref[0] = h
        cN_ref[0] = c

    @pl.when(l % 2 == 0)
    def _():
        _recurrence(seq0_sc)

    @pl.when(l % 2 == 1)
    def _():
        _recurrence(seq1_sc)

    # ---- fused Linear head at the last layer (lane-dense padded output) ----
    @pl.when(l == L - 1)
    def _():
        last_sc = seq0_sc if (L - 1) % 2 == 0 else seq1_sc
        seq2d = last_sc[...].reshape(S * Bp, Hp).astype(matmul_dtype)
        out_ref[...] = (jnp.dot(seq2d, wout_ref[...],
                                preferred_element_type=jnp.float32)
                        + bout_ref[...])


# ------------------------------- parameter packing ------------------------------- #
def init_params(key, input_size, hidden_size, output_size, num_layers):
    """PyTorch-layout params, uniform(-1/sqrt(H), 1/sqrt(H)) like reset_parameters."""
    H = hidden_size
    bound = 1.0 / float(H) ** 0.5
    layers = []
    for layer in range(num_layers):
        d_in = input_size if layer == 0 else H
        key, k1, k2, k3, k4 = jax.random.split(key, 5)
        w_ih = jax.random.uniform(k1, (4 * H, d_in), jnp.float32, -bound, bound)
        w_hh = jax.random.uniform(k2, (4 * H, H), jnp.float32, -bound, bound)
        b_ih = jax.random.uniform(k3, (4 * H,), jnp.float32, -bound, bound)
        b_hh = jax.random.uniform(k4, (4 * H,), jnp.float32, -bound, bound)
        layers.append((w_ih, w_hh, b_ih, b_hh))
    key, k5, k6 = jax.random.split(key, 3)
    w_out = jax.random.uniform(k5, (output_size, H), jnp.float32, -bound, bound)
    b_out = jax.random.uniform(k6, (output_size,), jnp.float32, -bound, bound)
    return {"input_size": input_size, "hidden_size": H, "output_size": output_size,
            "num_layers": num_layers, "layers": layers, "w_out": w_out, "b_out": b_out}


def pack_params(params, matmul_dtype=jnp.float32):
    """Pad/transpose/gate-block/stack the weights into the kernel layout."""
    D = params["input_size"]
    H = params["hidden_size"]
    O = params["output_size"]
    L = params["num_layers"]
    Hp = _round_up(H, 128)
    Op = _round_up(max(O, 1), 128)
    # Layer-0 K tiling: tk multiple of 128, <= 2048.
    if _round_up(D, 128) <= 2048:
        Dp = _round_up(D, 128)
        tk = Dp
    else:
        tk = 2048
        Dp = _round_up(D, tk)

    def gate_block_T(w, d_in, d_pad):
        # (4H, d_in) -> (d_pad, 4*Hp) transposed, each gate in its own 128-aligned block.
        out = jnp.zeros((d_pad, 4 * Hp), jnp.float32)
        for g in range(4):
            out = out.at[:d_in, g * Hp:g * Hp + H].set(w[g * H:(g + 1) * H, :].T)
        return out

    def gate_block_bias(b):
        out = jnp.zeros((4 * Hp,), jnp.float32)
        for g in range(4):
            out = out.at[g * Hp:g * Hp + H].set(b[g * H:(g + 1) * H])
        return out

    layers = params["layers"]
    w_ih0 = gate_block_T(layers[0][0], D, Dp).astype(matmul_dtype)     # (Dp, 4Hp)

    wih_all = [jnp.zeros((Hp, 4 * Hp), jnp.float32)]   # dummy slot for layer 0
    whh_all, bias_all = [], []
    for li, (w_ih, w_hh, b_ih, b_hh) in enumerate(layers):
        if li > 0:
            wih_all.append(gate_block_T(w_ih, H, Hp))
        whh_all.append(gate_block_T(w_hh, H, Hp))
        bias_all.append(gate_block_bias(b_ih + b_hh)[None, :])
    wih_all = jnp.stack(wih_all).astype(matmul_dtype)                  # (L, Hp, 4Hp)
    whh_all = jnp.stack(whh_all).astype(matmul_dtype)                  # (L, Hp, 4Hp)
    bias_all = jnp.stack(bias_all)                                     # (L, 1, 4Hp) f32

    w_out = (jnp.zeros((Hp, Op), jnp.float32)
             .at[:H, :O].set(params["w_out"].T)).astype(matmul_dtype)  # (Hp, Op)
    b_out = jnp.zeros((1, Op), jnp.float32).at[:, :O].set(params["b_out"])

    return {"H": H, "Hp": Hp, "O": O, "Op": Op, "L": L, "D": D, "Dp": Dp, "tk": tk,
            "matmul_dtype": matmul_dtype, "w_ih0": w_ih0, "wih_all": wih_all,
            "whh_all": whh_all, "bias_all": bias_all, "w_out": w_out, "b_out": b_out}


# --------------------------------- forward wrapper --------------------------------- #
def channel_lstm_forward(x, kp):
    """x: (B, S, input_size), batch_first.  Returns (output, (h_n, c_n))."""
    B, S, D = x.shape
    H, Hp, O, Op, L = kp["H"], kp["Hp"], kp["O"], kp["Op"], kp["L"]
    Dp, tk = kp["Dp"], kp["tk"]
    mdt = kp["matmul_dtype"]
    Bp = _round_up(max(B, 1), 8)

    # Time-major, batch- and feature-padded input: (S*Bp, Dp).
    x_tm = jnp.transpose(x, (1, 0, 2)).astype(jnp.float32)             # (S, B, D)
    x_tm = jnp.pad(x_tm, ((0, 0), (0, Bp - B), (0, Dp - D)))
    x_tm = x_tm.reshape(S * Bp, Dp).astype(mdt)

    # ---- kernel A: K-tiled layer-0 input projection ----
    nk = Dp // tk
    xp0 = pl.pallas_call(
        _input_proj_kernel,
        out_shape=jax.ShapeDtypeStruct((S * Bp, 4 * Hp), jnp.float32),
        grid_spec=pltpu.PrefetchScalarGridSpec(
            num_scalar_prefetch=0,
            grid=(nk,),
            in_specs=[pl.BlockSpec((S * Bp, tk), lambda k: (0, k)),
                      pl.BlockSpec((tk, 4 * Hp), lambda k: (k, 0))],
            out_specs=pl.BlockSpec((S * Bp, 4 * Hp), lambda k: (0, 0))),
        compiler_params=pltpu.CompilerParams(
            dimension_semantics=("arbitrary",),
            vmem_limit_bytes=_VMEM_LIMIT_BYTES),
    )(x_tm, kp["w_ih0"])
    xp0 = xp0.reshape(S, Bp, 4 * Hp)

    # ---- kernel B: all LSTM layers (grid over layers) + Linear head ----
    kernel = functools.partial(_lstm_stack_kernel, num_layers=L, hidden_pad=Hp,
                               seq_len=S, batch_pad=Bp, matmul_dtype=mdt)
    out2d, h_n, c_n = pl.pallas_call(
        kernel,
        out_shape=(jax.ShapeDtypeStruct((S * Bp, Op), jnp.float32),
                   jax.ShapeDtypeStruct((L, Bp, Hp), jnp.float32),
                   jax.ShapeDtypeStruct((L, Bp, Hp), jnp.float32)),
        grid_spec=pltpu.PrefetchScalarGridSpec(
            num_scalar_prefetch=0,
            grid=(L,),
            in_specs=[pl.BlockSpec((S, Bp, 4 * Hp), lambda l: (0, 0, 0)),   # xproj0
                      pl.BlockSpec((1, Hp, 4 * Hp), lambda l: (l, 0, 0)),   # W_ih (l>=1)
                      pl.BlockSpec((1, Hp, 4 * Hp), lambda l: (l, 0, 0)),   # W_hh
                      pl.BlockSpec((1, 1, 4 * Hp), lambda l: (l, 0, 0)),    # bias
                      pl.BlockSpec((Hp, Op), lambda l: (0, 0)),             # W_out
                      pl.BlockSpec((1, Op), lambda l: (0, 0))],             # b_out
            out_specs=[pl.BlockSpec((S * Bp, Op), lambda l: (0, 0)),
                       pl.BlockSpec((1, Bp, Hp), lambda l: (l, 0, 0)),
                       pl.BlockSpec((1, Bp, Hp), lambda l: (l, 0, 0))],
            scratch_shapes=[pltpu.VMEM((S, Bp, Hp), jnp.float32),        # seq ping
                            pltpu.VMEM((S, Bp, Hp), jnp.float32),        # seq pong
                            pltpu.VMEM((S, Bp, 4 * Hp), jnp.float32)]),  # xproj
        compiler_params=pltpu.CompilerParams(
            dimension_semantics=("arbitrary",),
            vmem_limit_bytes=_VMEM_LIMIT_BYTES),
    )(xp0, kp["wih_all"], kp["whh_all"], kp["bias_all"], kp["w_out"], kp["b_out"])

    out_seq = out2d.reshape(S, Bp, Op)[:, :B, :O]        # (S, B, O)
    out_seq = jnp.transpose(out_seq, (1, 0, 2))          # (B, S, O)
    # PyTorch: output.squeeze(1) — drops the seq axis only when S == 1.
    out = out_seq[:, 0, :] if S == 1 else out_seq
    return out, (h_n[:, :B, :H], c_n[:, :B, :H])


# ----------------------------------- reference ----------------------------------- #
def reference_forward(x, params):
    """Pure-JAX (f32) reference mirroring nn.LSTM + nn.Linear inference."""
    B, S, _ = x.shape
    H = params["hidden_size"]
    seq = jnp.transpose(x, (1, 0, 2)).astype(jnp.float32)
    h_ns, c_ns = [], []
    for (w_ih, w_hh, b_ih, b_hh) in params["layers"]:
        wih_t, whh_t, bias = w_ih.T, w_hh.T, (b_ih + b_hh)[None, :]

        def step(carry, x_t, wih_t=wih_t, whh_t=whh_t, bias=bias):
            h, c = carry
            gates = x_t @ wih_t + bias + h @ whh_t
            i_g, f_g, g_g, o_g = jnp.split(gates, 4, axis=-1)
            c_new = jax.nn.sigmoid(f_g) * c + jax.nn.sigmoid(i_g) * jnp.tanh(g_g)
            h_new = jax.nn.sigmoid(o_g) * jnp.tanh(c_new)
            return (h_new, c_new), h_new

        init = (jnp.zeros((B, H), jnp.float32), jnp.zeros((B, H), jnp.float32))
        (hT, cT), seq = jax.lax.scan(step, init, seq)
        h_ns.append(hT)
        c_ns.append(cT)
    out_seq = jnp.transpose(seq, (1, 0, 2))
    out = out_seq @ params["w_out"].T + params["b_out"][None, None, :]
    if S == 1:
        out = out[:, 0, :]
    return out, (jnp.stack(h_ns), jnp.stack(c_ns))


# -------------------------------------- main -------------------------------------- #
if __name__ == "__main__":
    # Small shapes consistent with the module's forward (scaled down from
    # input_size=69505 / hidden=52 / layers=16 / output=5952).
    B, S = 2, 8
    INPUT_SIZE, HIDDEN_SIZE, OUTPUT_SIZE, NUM_LAYERS = 16, 32, 8, 3

    key = jax.random.PRNGKey(0)
    key, pkey, xkey = jax.random.split(key, 3)
    params = init_params(pkey, INPUT_SIZE, HIDDEN_SIZE, OUTPUT_SIZE, NUM_LAYERS)
    x = jax.random.normal(xkey, (B, S, INPUT_SIZE), jnp.float32)

    ref_out, (ref_h, ref_c) = reference_forward(x, params)

    # --- f32 matmul path: strict semantic check ---
    kp32 = pack_params(params, jnp.float32)
    fwd32 = jax.jit(lambda inp: channel_lstm_forward(inp, kp32))
    out, (h_n, c_n) = jax.block_until_ready(fwd32(x))
    assert out.shape == (B, S, OUTPUT_SIZE)
    assert h_n.shape == (NUM_LAYERS, B, HIDDEN_SIZE)
    assert c_n.shape == (NUM_LAYERS, B, HIDDEN_SIZE)
    assert jnp.allclose(out, ref_out, atol=1e-4, rtol=1e-4)
    assert jnp.allclose(h_n, ref_h, atol=1e-4, rtol=1e-4)
    assert jnp.allclose(c_n, ref_c, atol=1e-4, rtol=1e-4)

    # --- bf16 matmul-operand path (production setting): loose check ---
    kp16 = pack_params(params, jnp.bfloat16)
    fwd16 = jax.jit(lambda inp: channel_lstm_forward(inp, kp16))
    out16, (h16, c16) = jax.block_until_ready(fwd16(x))
    assert jnp.allclose(out16, ref_out, atol=5e-2, rtol=5e-2)
    assert jnp.allclose(h16, ref_h, atol=5e-2, rtol=5e-2)
    assert jnp.allclose(c16, ref_c, atol=5e-2, rtol=5e-2)

    print("KERNEL_OK")
</pallas_src>

<mosaic_0001>
module attributes {stable_mosaic.version = 11 : i64} {
  func.func @_input_proj_kernel(%arg0: i32, %arg1: memref<64x128xf32, #tpu.memory_space<vmem>>, %arg2: memref<128x512xf32, #tpu.memory_space<vmem>>, %arg3: memref<64x512xf32, #tpu.memory_space<vmem>>) attributes {dimension_semantics = [#tpu.dimension_semantics<arbitrary>], iteration_bounds = array<i64: 1>, scalar_prefetch = 0 : i64, scratch_operands = 0 : i64, tpu.core_type = #tpu.core_type<tc>, window_params = [{transform_indices = @transform_0, window_bounds = array<i64: 64, 128>}, {transform_indices = @transform_1, window_bounds = array<i64: 128, 512>}, {pipeline_mode = #tpu.pipeline_mode<synchronous>, transform_indices = @transform_2, window_bounds = array<i64: 64, 512>}]} {
    %c0_i32 = arith.constant 0 : i32
    %0 = arith.cmpi eq, %arg0, %c0_i32 : i32
    %1 = arith.extui %0 : i1 to i32
    %c0_i32_0 = arith.constant 0 : i32
    %2 = arith.cmpi ne, %1, %c0_i32_0 : i32
    scf.if %2 {
      %cst_8 = arith.constant 0.000000e+00 : f32
      %9 = vector.broadcast %cst_8 : f32 to vector<64x512xf32>
      %c0_9 = arith.constant 0 : index
      %c0_10 = arith.constant 0 : index
      %10 = vector.load %arg3[%c0_9, %c0_10] : memref<64x512xf32, #tpu.memory_space<vmem>>, vector<64x512xf32>
      tpu.vector_store %arg3[%c0_9, %c0_10], %9 {strides = array<i32>} : memref<64x512xf32, #tpu.memory_space<vmem>>, vector<64x512xf32>,
    } else {
    }
    %c0 = arith.constant 0 : index
    %c0_1 = arith.constant 0 : index
    %3 = vector.load %arg3[%c0, %c0_1] : memref<64x512xf32, #tpu.memory_space<vmem>>, vector<64x512xf32>
    %c0_2 = arith.constant 0 : index
    %c0_3 = arith.constant 0 : index
    %4 = vector.load %arg1[%c0_2, %c0_3] : memref<64x128xf32, #tpu.memory_space<vmem>>, vector<64x128xf32>
    %c0_4 = arith.constant 0 : index
    %c0_5 = arith.constant 0 : index
    %5 = vector.load %arg2[%c0_4, %c0_5] : memref<128x512xf32, #tpu.memory_space<vmem>>, vector<128x512xf32>
    %cst = arith.constant dense<0.000000e+00> : vector<64x512xf32>
    %6 = tpu.matmul %4, %5, %cst {dimension_numbers = #tpu.dot_dimension_numbers<[1], [0], [0], [1], [0, 0, 1, 1], [], []>} : vector<64x128xf32>, vector<128x512xf32>, vector<64x512xf32> -> vector<64x512xf32>
    %7 = arith.addf %3, %6 : vector<64x512xf32>
    %c0_6 = arith.constant 0 : index
    %c0_7 = arith.constant 0 : index
    %8 = vector.load %arg3[%c0_6, %c0_7] : memref<64x512xf32, #tpu.memory_space<vmem>>, vector<64x512xf32>
    tpu.vector_store %arg3[%c0_6, %c0_7], %7 {strides = array<i32>} : memref<64x512xf32, #tpu.memory_space<vmem>>, vector<64x512xf32>,
    return
  }
  func.func @transform_0(%arg0: i32) -> (i32, i32) {
    %c0_i32 = arith.constant 0 : i32
    %c0_i32_0 = arith.constant 0 : i32
    return %c0_i32, %arg0 : i32, i32
  }
  func.func @transform_1(%arg0: i32) -> (i32, i32) {
    %c0_i32 = arith.constant 0 : i32
    %c0_i32_0 = arith.constant 0 : i32
    return %arg0, %c0_i32 : i32, i32
  }
  func.func @transform_2(%arg0: i32) -> (i32, i32) {
    %c0_i32 = arith.constant 0 : i32
    %c0_i32_0 = arith.constant 0 : i32
    %c0_i32_1 = arith.constant 0 : i32
    return %c0_i32, %c0_i32_0 : i32, i32
  }
}

module attributes {stable_mosaic.version = 11 : i64} {
  func.func @_lstm_stack_kernel(%arg0: i32, %arg1: memref<8x8x512xf32, #tpu.memory_space<vmem>>, %arg2: memref<1x128x512xf32, #tpu.memory_space<vmem>>, %arg3: memref<1x128x512xf32, #tpu.memory_space<vmem>>, %arg4: memref<1x1x512xf32, #tpu.memory_space<vmem>>, %arg5: memref<128x128xf32, #tpu.memory_space<vmem>>, %arg6: memref<1x128xf32, #tpu.memory_space<vmem>>, %arg7: memref<64x128xf32, #tpu.memory_space<vmem>>, %arg8: memref<1x8x128xf32, #tpu.memory_space<vmem>>, %arg9: memref<1x8x128xf32, #tpu.memory_space<vmem>>, %arg10: memref<8x8x128xf32, #tpu.memory_space<vmem>>, %arg11: memref<8x8x128xf32, #tpu.memory_space<vmem>>, %arg12: memref<8x8x512xf32, #tpu.memory_space<vmem>>) attributes {dimension_semantics = [#tpu.dimension_semantics<arbitrary>], iteration_bounds = array<i64: 3>, scalar_prefetch = 0 : i64, scratch_operands = 3 : i64, tpu.core_type = #tpu.core_type<tc>, window_params = [{pipeline_mode = #tpu.pipeline_mode<synchronous>, transform_indices = @transform_0, window_bounds = array<i64: 8, 8, 512>}, {transform_indices = @transform_1, window_bounds = array<i64: 1, 128, 512>}, {transform_indices = @transform_2, window_bounds = array<i64: 1, 128, 512>}, {transform_indices = @transform_3, window_bounds = array<i64: 1, 1, 512>}, {pipeline_mode = #tpu.pipeline_mode<synchronous>, transform_indices = @transform_4, window_bounds = array<i64: 128, 128>}, {pipeline_mode = #tpu.pipeline_mode<synchronous>, transform_indices = @transform_5, window_bounds = array<i64: 1, 128>}, {pipeline_mode = #tpu.pipeline_mode<synchronous>, transform_indices = @transform_6, window_bounds = array<i64: 64, 128>}, {transform_indices = @transform_7, window_bounds = array<i64: 1, 8, 128>}, {transform_indices = @transform_8, window_bounds = array<i64: 1, 8, 128>}]} {
    %c0_i32 = arith.constant 0 : i32
    %0 = arith.cmpi eq, %arg0, %c0_i32 : i32
    %1 = arith.extui %0 : i1 to i32
    %c0_i32_0 = arith.constant 0 : i32
    %2 = arith.cmpi ne, %1, %c0_i32_0 : i32
    scf.if %2 {
      %c0 = arith.constant 0 : index
      %c0_35 = arith.constant 0 : index
      %c0_36 = arith.constant 0 : index
      %62 = vector.load %arg1[%c0, %c0_35, %c0_36] : memref<8x8x512xf32, #tpu.memory_space<vmem>>, vector<8x8x512xf32>
      %c0_37 = arith.constant 0 : index
      %c0_38 = arith.constant 0 : index
      %c0_39 = arith.constant 0 : index
      %63 = vector.load %arg4[%c0_37, %c0_38, %c0_39] : memref<1x1x512xf32, #tpu.memory_space<vmem>>, vector<1x1x512xf32>
      %64 = vector.broadcast %63 : vector<1x1x512xf32> to vector<8x8x512xf32>
      %65 = arith.addf %62, %64 : vector<8x8x512xf32>
      %c0_40 = arith.constant 0 : index
      %c0_41 = arith.constant 0 : index
      %c0_42 = arith.constant 0 : index
      %66 = vector.load %arg12[%c0_40, %c0_41, %c0_42] : memref<8x8x512xf32, #tpu.memory_space<vmem>>, vector<8x8x512xf32>
      tpu.vector_store %arg12[%c0_40, %c0_41, %c0_42], %65 {strides = array<i32>} : memref<8x8x512xf32, #tpu.memory_space<vmem>>, vector<8x8x512xf32>,
    } else {
    }
    %c0_i32_1 = arith.constant 0 : i32
    %3 = arith.cmpi sgt, %arg0, %c0_i32_1 : i32
    %c2_i32 = arith.constant 2 : i32
    %c0_i32_2 = arith.constant 0 : i32
    %4 = arith.cmpi eq, %c2_i32, %c0_i32_2 : i32
    %c1_i32 = arith.constant 1 : i32
    %5 = arith.select %4, %c1_i32, %c2_i32 : i32
    %6 = arith.remsi %arg0, %5 : i32
    %c0_i32_3 = arith.constant 0 : i32
    %7 = arith.cmpi ne, %6, %c0_i32_3 : i32
    %c0_i32_4 = arith.constant 0 : i32
    %8 = arith.cmpi slt, %6, %c0_i32_4 : i32
    %c0_i32_5 = arith.constant 0 : i32
    %9 = arith.cmpi slt, %5, %c0_i32_5 : i32
    %10 = arith.xori %8, %9 : i1
    %11 = arith.andi %10, %7 : i1
    %12 = arith.addi %6, %5 : i32
    %13 = arith.select %11, %12, %6 : i32
    %c1_i32_6 = arith.constant 1 : i32
    %14 = arith.cmpi eq, %13, %c1_i32_6 : i32
    %15 = arith.andi %3, %14 : i1
    %16 = arith.extui %15 : i1 to i32
    %c0_i32_7 = arith.constant 0 : i32
    %17 = arith.cmpi ne, %16, %c0_i32_7 : i32
    scf.if %17 {
      %c0 = arith.constant 0 : index
      %c0_35 = arith.constant 0 : index
      %c0_36 = arith.constant 0 : index
      %62 = vector.load %arg10[%c0, %c0_35, %c0_36] : memref<8x8x128xf32, #tpu.memory_space<vmem>>, vector<8x8x128xf32>
      %63 = vector.shape_cast %62 : vector<8x8x128xf32> to vector<64x128xf32>
      %c0_37 = arith.constant 0 : index
      %c0_38 = arith.constant 0 : index
      %c0_39 = arith.constant 0 : index
      %64 = vector.load %arg2[%c0_37, %c0_38, %c0_39] : memref<1x128x512xf32, #tpu.memory_space<vmem>>, vector<1x128x512xf32>
      %65 = vector.shape_cast %64 : vector<1x128x512xf32> to vector<128x512xf32>
      %cst = arith.constant dense<0.000000e+00> : vector<64x512xf32>
      %66 = tpu.matmul %63, %65, %cst {dimension_numbers = #tpu.dot_dimension_numbers<[1], [0], [0], [1], [0, 0, 1, 1], [], []>} : vector<64x128xf32>, vector<128x512xf32>, vector<64x512xf32> -> vector<64x512xf32>
      %67 = vector.shape_cast %66 : vector<64x512xf32> to vector<8x8x512xf32>
      %c0_40 = arith.constant 0 : index
      %c0_41 = arith.constant 0 : index
      %c0_42 = arith.constant 0 : index
      %68 = vector.load %arg4[%c0_40, %c0_41, %c0_42] : memref<1x1x512xf32, #tpu.memory_space<vmem>>, vector<1x1x512xf32>
      %69 = vector.broadcast %68 : vector<1x1x512xf32> to vector<8x8x512xf32>
      %70 = arith.addf %67, %69 : vector<8x8x512xf32>
      %c0_43 = arith.constant 0 : index
      %c0_44 = arith.constant 0 : index
      %c0_45 = arith.constant 0 : index
      %71 = vector.load %arg12[%c0_43, %c0_44, %c0_45] : memref<8x8x512xf32, #tpu.memory_space<vmem>>, vector<8x8x512xf32>
      tpu.vector_store %arg12[%c0_43, %c0_44, %c0_45], %70 {strides = array<i32>} : memref<8x8x512xf32, #tpu.memory_space<vmem>>, vector<8x8x512xf32>,
    } else {
    }
    %c0_i32_8 = arith.constant 0 : i32
    %18 = arith.cmpi sgt, %arg0, %c0_i32_8 : i32
    %c2_i32_9 = arith.constant 2 : i32
    %c0_i32_10 = arith.constant 0 : i32
    %19 = arith.cmpi eq, %c2_i32_9, %c0_i32_10 : i32
    %c1_i32_11 = arith.constant 1 : i32
    %20 = arith.select %19, %c1_i32_11, %c2_i32_9 : i32
    %21 = arith.remsi %arg0, %20 : i32
    %c0_i32_12 = arith.constant 0 : i32
    %22 = arith.cmpi ne, %21, %c0_i32_12 : i32
    %c0_i32_13 = arith.constant 0 : i32
    %23 = arith.cmpi slt, %21, %c0_i32_13 : i32
    %c0_i32_14 = arith.constant 0 : i32
    %24 = arith.cmpi slt, %20, %c0_i32_14 : i32
    %25 = arith.xori %23, %24 : i1
    %26 = arith.andi %25, %22 : i1
    %27 = arith.addi %21, %20 : i32
    %28 = arith.select %26, %27, %21 : i32
    %c0_i32_15 = arith.constant 0 : i32
    %29 = arith.cmpi eq, %28, %c0_i32_15 : i32
    %30 = arith.andi %18, %29 : i1
    %31 = arith.extui %30 : i1 to i32
    %c0_i32_16 = arith.constant 0 : i32
    %32 = arith.cmpi ne, %31, %c0_i32_16 : i32
    scf.if %32 {
      %c0 = arith.constant 0 : index
      %c0_35 = arith.constant 0 : index
      %c0_36 = arith.constant 0 : index
      %62 = vector.load %arg11[%c0, %c0_35, %c0_36] : memref<8x8x128xf32, #tpu.memory_space<vmem>>, vector<8x8x128xf32>
      %63 = vector.shape_cast %62 : vector<8x8x128xf32> to vector<64x128xf32>
      %c0_37 = arith.constant 0 : index
      %c0_38 = arith.constant 0 : index
      %c0_39 = arith.constant 0 : index
      %64 = vector.load %arg2[%c0_37, %c0_38, %c0_39] : memref<1x128x512xf32, #tpu.memory_space<vmem>>, vector<1x128x512xf32>
      %65 = vector.shape_cast %64 : vector<1x128x512xf32> to vector<128x512xf32>
      %cst = arith.constant dense<0.000000e+00> : vector<64x512xf32>
      %66 = tpu.matmul %63, %65, %cst {dimension_numbers = #tpu.dot_dimension_numbers<[1], [0], [0], [1], [0, 0, 1, 1], [], []>} : vector<64x128xf32>, vector<128x512xf32>, vector<64x512xf32> -> vector<64x512xf32>
      %67 = vector.shape_cast %66 : vector<64x512xf32> to vector<8x8x512xf32>
      %c0_40 = arith.constant 0 : index
      %c0_41 = arith.constant 0 : index
      %c0_42 = arith.constant 0 : index
      %68 = vector.load %arg4[%c0_40, %c0_41, %c0_42] : memref<1x1x512xf32, #tpu.memory_space<vmem>>, vector<1x1x512xf32>
      %69 = vector.broadcast %68 : vector<1x1x512xf32> to vector<8x8x512xf32>
      %70 = arith.addf %67, %69 : vector<8x8x512xf32>
      %c0_43 = arith.constant 0 : index
      %c0_44 = arith.constant 0 : index
      %c0_45 = arith.constant 0 : index
      %71 = vector.load %arg12[%c0_43, %c0_44, %c0_45] : memref<8x8x512xf32, #tpu.memory_space<vmem>>, vector<8x8x512xf32>
      tpu.vector_store %arg12[%c0_43, %c0_44, %c0_45], %70 {strides = array<i32>} : memref<8x8x512xf32, #tpu.memory_space<vmem>>, vector<8x8x512xf32>,
    } else {
    }
    %c2_i32_17 = arith.constant 2 : i32
    %c0_i32_18 = arith.constant 0 : i32
    %33 = arith.cmpi eq, %c2_i32_17, %c0_i32_18 : i32
    %c1_i32_19 = arith.constant 1 : i32
    %34 = arith.select %33, %c1_i32_19, %c2_i32_17 : i32
    %35 = arith.remsi %arg0, %34 : i32
    %c0_i32_20 = arith.constant 0 : i32
    %36 = arith.cmpi ne, %35, %c0_i32_20 : i32
    %c0_i32_21 = arith.constant 0 : i32
    %37 = arith.cmpi slt, %35, %c0_i32_21 : i32
    %c0_i32_22 = arith.constant 0 : i32
    %38 = arith.cmpi slt, %34, %c0_i32_22 : i32
    %39 = arith.xori %37, %38 : i1
    %40 = arith.andi %39, %36 : i1
    %41 = arith.addi %35, %34 : i32
    %42 = arith.select %40, %41, %35 : i32
    %c0_i32_23 = arith.constant 0 : i32
    %43 = arith.cmpi eq, %42, %c0_i32_23 : i32
    %44 = arith.extui %43 : i1 to i32
    %c0_i32_24 = arith.constant 0 : i32
    %45 = arith.cmpi ne, %44, %c0_i32_24 : i32
    scf.if %45 {
      %c0 = arith.constant 0 : index
      %c0_35 = arith.constant 0 : index
      %c0_36 = arith.constant 0 : index
      %62 = vector.load %arg3[%c0, %c0_35, %c0_36] : memref<1x128x512xf32, #tpu.memory_space<vmem>>, vector<1x128x512xf32>
      %63 = vector.shape_cast %62 : vector<1x128x512xf32> to vector<128x512xf32>
      %cst = arith.constant 0.000000e+00 : f32
      %64 = vector.broadcast %cst : f32 to vector<8x128xf32>
      %cst_37 = arith.constant 0.000000e+00 : f32
      %65 = vector.broadcast %cst_37 : f32 to vector<8x128xf32>
      %c0_i32_38 = arith.constant 0 : i32
      %66 = arith.index_cast %c0_i32_38 : i32 to index
      %c0_39 = arith.constant 0 : index
      %c0_40 = arith.constant 0 : index
      %67 = vector.load %arg12[%66, %c0_39, %c0_40] : memref<8x8x512xf32, #tpu.memory_space<vmem>>, vector<1x8x512xf32>
      %68 = vector.shape_cast %67 : vector<1x8x512xf32> to vector<8x512xf32>
      %cst_41 = arith.constant dense<0.000000e+00> : vector<8x512xf32>
      %69 = tpu.matmul %64, %63, %cst_41 {dimension_numbers = #tpu.dot_dimension_numbers<[1], [0], [0], [1], [0, 0, 1, 1], [], []>} : vector<8x128xf32>, vector<128x512xf32>, vector<8x512xf32> -> vector<8x512xf32>
      %70 = arith.addf %68, %69 : vector<8x512xf32>
      %71 = vector.extract_strided_slice %70 {offsets = [0, 0], sizes = [8, 128], strides = [1, 1]} : vector<8x512xf32> to vector<8x128xf32>
      %72 = arith.negf %71 : vector<8x128xf32>
      %73 = math.exp %72 : vector<8x128xf32>
      %cst_42 = arith.constant 1.000000e+00 : f32
      %74 = vector.broadcast %cst_42 : f32 to vector<8x128xf32>
      %75 = arith.addf %74, %73 : vector<8x128xf32>
      %76 = arith.divf %74, %75 : vector<8x128xf32>
      %77 = vector.extract_strided_slice %70 {offsets = [0, 128], sizes = [8, 128], strides = [1, 1]} : vector<8x512xf32> to vector<8x128xf32>
      %78 = arith.negf %77 : vector<8x128xf32>
      %79 = math.exp %78 : vector<8x128xf32>
      %cst_43 = arith.constant 1.000000e+00 : f32
      %80 = vector.broadcast %cst_43 : f32 to vector<8x128xf32>
      %81 = arith.addf %80, %79 : vector<8x128xf32>
      %82 = arith.divf %80, %81 : vector<8x128xf32>
      %83 = vector.extract_strided_slice %70 {offsets = [0, 256], sizes = [8, 128], strides = [1, 1]} : vector<8x512xf32> to vector<8x128xf32>
      %84 = math.tanh %83 : vector<8x128xf32>
      %85 = vector.extract_strided_slice %70 {offsets = [0, 384], sizes = [8, 128], strides = [1, 1]} : vector<8x512xf32> to vector<8x128xf32>
      %86 = arith.negf %85 : vector<8x128xf32>
      %87 = math.exp %86 : vector<8x128xf32>
      %cst_44 = arith.constant 1.000000e+00 : f32
      %88 = vector.broadcast %cst_44 : f32 to vector<8x128xf32>
      %89 = arith.addf %88, %87 : vector<8x128xf32>
      %90 = arith.divf %88, %89 : vector<8x128xf32>
      %91 = arith.mulf %82, %65 : vector<8x128xf32>
      %92 = arith.mulf %76, %84 : vector<8x128xf32>
      %93 = arith.addf %91, %92 : vector<8x128xf32>
      %94 = math.tanh %93 : vector<8x128xf32>
      %95 = arith.mulf %90, %94 : vector<8x128xf32>
      %96 = arith.index_cast %c0_i32_38 : i32 to index
      %c0_45 = arith.constant 0 : index
      %c0_46 = arith.constant 0 : index
      %97 = vector.load %arg10[%96, %c0_45, %c0_46] : memref<8x8x128xf32, #tpu.memory_space<vmem>>, vector<1x8x128xf32>
      %98 = vector.shape_cast %97 : vector<1x8x128xf32> to vector<8x128xf32>
      %99 = vector.shape_cast %95 : vector<8x128xf32> to vector<1x8x128xf32>
      tpu.vector_store %arg10[%96, %c0_45, %c0_46], %99 {strides = array<i32>} : memref<8x8x128xf32, #tpu.memory_space<vmem>>, vector<1x8x128xf32>,
      %c1_i32_47 = arith.constant 1 : i32
      %100 = arith.index_cast %c1_i32_47 : i32 to index
      %c0_48 = arith.constant 0 : index
      %c0_49 = arith.constant 0 : index
      %101 = vector.load %arg12[%100, %c0_48, %c0_49] : memref<8x8x512xf32, #tpu.memory_space<vmem>>, vector<1x8x512xf32>
      %102 = vector.shape_cast %101 : vector<1x8x512xf32> to vector<8x512xf32>
      %cst_50 = arith.constant dense<0.000000e+00> : vector<8x512xf32>
      %103 = tpu.matmul %95, %63, %cst_50 {dimension_numbers = #tpu.dot_dimension_numbers<[1], [0], [0], [1], [0, 0, 1, 1], [], []>} : vector<8x128xf32>, vector<128x512xf32>, vector<8x512xf32> -> vector<8x512xf32>
      %104 = arith.addf %102, %103 : vector<8x512xf32>
      %105 = vector.extract_strided_slice %104 {offsets = [0, 0], sizes = [8, 128], strides = [1, 1]} : vector<8x512xf32> to vector<8x128xf32>
      %106 = arith.negf %105 : vector<8x128xf32>
      %107 = math.exp %106 : vector<8x128xf32>
      %cst_51 = arith.constant 1.000000e+00 : f32
      %108 = vector.broadcast %cst_51 : f32 to vector<8x128xf32>
      %109 = arith.addf %108, %107 : vector<8x128xf32>
      %110 = arith.divf %108, %109 : vector<8x128xf32>
      %111 = vector.extract_strided_slice %104 {offsets = [0, 128], sizes = [8, 128], strides = [1, 1]} : vector<8x512xf32> to vector<8x128xf32>
      %112 = arith.negf %111 : vector<8x128xf32>
      %113 = math.exp %112 : vector<8x128xf32>
      %cst_52 = arith.constant 1.000000e+00 : f32
      %114 = vector.broadcast %cst_52 : f32 to vector<8x128xf32>
      %115 = arith.addf %114, %113 : vector<8x128xf32>
      %116 = arith.divf %114, %115 : vector<8x128xf32>
      %117 = vector.extract_strided_slice %104 {offsets = [0, 256], sizes = [8, 128], strides = [1, 1]} : vector<8x512xf32> to vector<8x128xf32>
      %118 = math.tanh %117 : vector<8x128xf32>
      %119 = vector.extract_strided_slice %104 {offsets = [0, 384], sizes = [8, 128], strides = [1, 1]} : vector<8x512xf32> to vector<8x128xf32>
      %120 = arith.negf %119 : vector<8x128xf32>
      %121 = math.exp %120 : vector<8x128xf32>
      %cst_53 = arith.constant 1.000000e+00 : f32
      %122 = vector.broadcast %cst_53 : f32 to vector<8x128xf32>
      %123 = arith.addf %122, %121 : vector<8x128xf32>
      %124 = arith.divf %122, %123 : vector<8x128xf32>
      %125 = arith.mulf %116, %93 : vector<8x128xf32>
      %126 = arith.mulf %110, %118 : vector<8x128xf32>
      %127 = arith.addf %125, %126 : vector<8x128xf32>
      %128 = math.tanh %127 : vector<8x128xf32>
      %129 = arith.mulf %124, %128 : vector<8x128xf32>
      %130 = arith.index_cast %c1_i32_47 : i32 to index
      %c0_54 = arith.constant 0 : index
      %c0_55 = arith.constant 0 : index
      %131 = vector.load %arg10[%130, %c0_54, %c0_55] : memref<8x8x128xf32, #tpu.memory_space<vmem>>, vector<1x8x128xf32>
      %132 = vector.shape_cast %131 : vector<1x8x128xf32> to vector<8x128xf32>
      %133 = vector.shape_cast %129 : vector<8x128xf32> to vector<1x8x128xf32>
      tpu.vector_store %arg10[%130, %c0_54, %c0_55], %133 {strides = array<i32>} : memref<8x8x128xf32, #tpu.memory_space<vmem>>, vector<1x8x128xf32>,
      %c2_i32_56 = arith.constant 2 : i32
      %134 = arith.index_cast %c2_i32_56 : i32 to index
      %c0_57 = arith.constant 0 : index
      %c0_58 = arith.constant 0 : index
      %135 = vector.load %arg12[%134, %c0_57, %c0_58] : memref<8x8x512xf32, #tpu.memory_space<vmem>>, vector<1x8x512xf32>
      %136 = vector.shape_cast %135 : vector<1x8x512xf32> to vector<8x512xf32>
      %cst_59 = arith.constant dense<0.000000e+00> : vector<8x512xf32>
      %137 = tpu.matmul %129, %63, %cst_59 {dimension_numbers = #tpu.dot_dimension_numbers<[1], [0], [0], [1], [0, 0, 1, 1], [], []>} : vector<8x128xf32>, vector<128x512xf32>, vector<8x512xf32> -> vector<8x512xf32>
      %138 = arith.addf %136, %137 : vector<8x512xf32>
      %139 = vector.extract_strided_slice %138 {offsets = [0, 0], sizes = [8, 128], strides = [1, 1]} : vector<8x512xf32> to vector<8x128xf32>
      %140 = arith.negf %139 : vector<8x128xf32>
      %141 = math.exp %140 : vector<8x128xf32>
      %cst_60 = arith.constant 1.000000e+00 : f32
      %142 = vector.broadcast %cst_60 : f32 to vector<8x128xf32>
      %143 = arith.addf %142, %141 : vector<8x128xf32>
      %144 = arith.divf %142, %143 : vector<8x128xf32>
      %145 = vector.extract_strided_slice %138 {offsets = [0, 128], sizes = [8, 128], strides = [1, 1]} : vector<8x512xf32> to vector<8x128xf32>
      %146 = arith.negf %145 : vector<8x128xf32>
      %147 = math.exp %146 : vector<8x128xf32>
      %cst_61 = arith.constant 1.000000e+00 : f32
      %148 = vector.broadcast %cst_61 : f32 to vector<8x128xf32>
      %149 = arith.addf %148, %147 : vector<8x128xf32>
      %150 = arith.divf %148, %149 : vector<8x128xf32>
      %151 = vector.extract_strided_slice %138 {offsets = [0, 256], sizes = [8, 128], strides = [1, 1]} : vector<8x512xf32> to vector<8x128xf32>
      %152 = math.tanh %151 : vector<8x128xf32>
      %153 = vector.extract_strided_slice %138 {offsets = [0, 384], sizes = [8, 128], strides = [1, 1]} : vector<8x512xf32> to vector<8x128xf32>
      %154 = arith.negf %153 : vector<8x128xf32>
      %155 = math.exp %154 : vector<8x128xf32>
      %cst_62 = arith.constant 1.000000e+00 : f32
      %156 = vector.broadcast %cst_62 : f32 to vector<8x128xf32>
      %157 = arith.addf %156, %155 : vector<8x128xf32>
      %158 = arith.divf %156, %157 : vector<8x128xf32>
      %159 = arith.mulf %150, %127 : vector<8x128xf32>
      %160 = arith.mulf %144, %152 : vector<8x128xf32>
      %161 = arith.addf %159, %160 : vector<8x128xf32>
      %162 = math.tanh %161 : vector<8x128xf32>
      %163 = arith.mulf %158, %162 : vector<8x128xf32>
      %164 = arith.index_cast %c2_i32_56 : i32 to index
      %c0_63 = arith.constant 0 : index
      %c0_64 = arith.constant 0 : index
      %165 = vector.load %arg10[%164, %c0_63, %c0_64] : memref<8x8x128xf32, #tpu.memory_space<vmem>>, vector<1x8x128xf32>
      %166 = vector.shape_cast %165 : vector<1x8x128xf32> to vector<8x128xf32>
      %167 = vector.shape_cast %163 : vector<8x128xf32> to vector<1x8x128xf32>
      tpu.vector_store %arg10[%164, %c0_63, %c0_64], %167 {strides = array<i32>} : memref<8x8x128xf32, #tpu.memory_space<vmem>>, vector<1x8x128xf32>,
      %c3_i32 = arith.constant 3 : i32
      %168 = arith.index_cast %c3_i32 : i32 to index
      %c0_65 = arith.constant 0 : index
      %c0_66 = arith.constant 0 : index
      %169 = vector.load %arg12[%168, %c0_65, %c0_66] : memref<8x8x512xf32, #tpu.memory_space<vmem>>, vector<1x8x512xf32>
      %170 = vector.shape_cast %169 : vector<1x8x512xf32> to vector<8x512xf32>
      %cst_67 = arith.constant dense<0.000000e+00> : vector<8x512xf32>
      %171 = tpu.matmul %163, %63, %cst_67 {dimension_numbers = #tpu.dot_dimension_numbers<[1], [0], [0], [1], [0, 0, 1, 1], [], []>} : vector<8x128xf32>, vector<128x512xf32>, vector<8x512xf32> -> vector<8x512xf32>
      %172 = arith.addf %170, %171 : vector<8x512xf32>
      %173 = vector.extract_strided_slice %172 {offsets = [0, 0], sizes = [8, 128], strides = [1, 1]} : vector<8x512xf32> to vector<8x128xf32>
      %174 = arith.negf %173 : vector<8x128xf32>
      %175 = math.exp %174 : vector<8x128xf32>
      %cst_68 = arith.constant 1.000000e+00 : f32
      %176 = vector.broadcast %cst_68 : f32 to vector<8x128xf32>
      %177 = arith.addf %176, %175 : vector<8x128xf32>
      %178 = arith.divf %176, %177 : vector<8x128xf32>
      %179 = vector.extract_strided_slice %172 {offsets = [0, 128], sizes = [8, 128], strides = [1, 1]} : vector<8x512xf32> to vector<8x128xf32>
      %180 = arith.negf %179 : vector<8x128xf32>
      %181 = math.exp %180 : vector<8x128xf32>
      %cst_69 = arith.constant 1.000000e+00 : f32
      %182 = vector.broadcast %cst_69 : f32 to vector<8x128xf32>
      %183 = arith.addf %182, %181 : vector<8x128xf32>
      %184 = arith.divf %182, %183 : vector<8x128xf32>
      %185 = vector.extract_strided_slice %172 {offsets = [0, 256], sizes = [8, 128], strides = [1, 1]} : vector<8x512xf32> to vector<8x128xf32>
      %186 = math.tanh %185 : vector<8x128xf32>
      %187 = vector.extract_strided_slice %172 {offsets = [0, 384], sizes = [8, 128], strides = [1, 1]} : vector<8x512xf32> to vector<8x128xf32>
      %188 = arith.negf %187 : vector<8x128xf32>
      %189 = math.exp %188 : vector<8x128xf32>
      %cst_70 = arith.constant 1.000000e+00 : f32
      %190 = vector.broadcast %cst_70 : f32 to vector<8x128xf32>
      %191 = arith.addf %190, %189 : vector<8x128xf32>
      %192 = arith.divf %190, %191 : vector<8x128xf32>
      %193 = arith.mulf %184, %161 : vector<8x128xf32>
      %194 = arith.mulf %178, %186 : vector<8x128xf32>
      %195 = arith.addf %193, %194 : vector<8x128xf32>
      %196 = math.tanh %195 : vector<8x128xf32>
      %197 = arith.mulf %192, %196 : vector<8x128xf32>
      %198 = arith.index_cast %c3_i32 : i32 to index
      %c0_71 = arith.constant 0 : index
      %c0_72 = arith.constant 0 : index
      %199 = vector.load %arg10[%198, %c0_71, %c0_72] : memref<8x8x128xf32, #tpu.memory_space<vmem>>, vector<1x8x128xf32>
      %200 = vector.shape_cast %199 : vector<1x8x128xf32> to vector<8x128xf32>
      %201 = vector.shape_cast %197 : vector<8x128xf32> to vector<1x8x128xf32>
      tpu.vector_store %arg10[%198, %c0_71, %c0_72], %201 {strides = array<i32>} : memref<8x8x128xf32, #tpu.memory_space<vmem>>, vector<1x8x128xf32>,
      %c4_i32 = arith.constant 4 : i32
      %202 = arith.index_cast %c4_i32 : i32 to index
      %c0_73 = arith.constant 0 : index
      %c0_74 = arith.constant 0 : index
      %203 = vector.load %arg12[%202, %c0_73, %c0_74] : memref<8x8x512xf32, #tpu.memory_space<vmem>>, vector<1x8x512xf32>
      %204 = vector.shape_cast %203 : vector<1x8x512xf32> to vector<8x512xf32>
      %cst_75 = arith.constant dense<0.000000e+00> : vector<8x512xf32>
      %205 = tpu.matmul %197, %63, %cst_75 {dimension_numbers = #tpu.dot_dimension_numbers<[1], [0], [0], [1], [0, 0, 1, 1], [], []>} : vector<8x128xf32>, vector<128x512xf32>, vector<8x512xf32> -> vector<8x512xf32>
      %206 = arith.addf %204, %205 : vector<8x512xf32>
      %207 = vector.extract_strided_slice %206 {offsets = [0, 0], sizes = [8, 128], strides = [1, 1]} : vector<8x512xf32> to vector<8x128xf32>
      %208 = arith.negf %207 : vector<8x128xf32>
      %209 = math.exp %208 : vector<8x128xf32>
      %cst_76 = arith.constant 1.000000e+00 : f32
      %210 = vector.broadcast %cst_76 : f32 to vector<8x128xf32>
      %211 = arith.addf %210, %209 : vector<8x128xf32>
      %212 = arith.divf %210, %211 : vector<8x128xf32>
      %213 = vector.extract_strided_slice %206 {offsets = [0, 128], sizes = [8, 128], strides = [1, 1]} : vector<8x512xf32> to vector<8x128xf32>
      %214 = arith.negf %213 : vector<8x128xf32>
      %215 = math.exp %214 : vector<8x128xf32>
      %cst_77 = arith.constant 1.000000e+00 : f32
      %216 = vector.broadcast %cst_77 : f32 to vector<8x128xf32>
      %217 = arith.addf %216, %215 : vector<8x128xf32>
      %218 = arith.divf %216, %217 : vector<8x128xf32>
      %219 = vector.extract_strided_slice %206 {offsets = [0, 256], sizes = [8, 128], strides = [1, 1]} : vector<8x512xf32> to vector<8x128xf32>
      %220 = math.tanh %219 : vector<8x128xf32>
      %221 = vector.extract_strided_slice %206 {offsets = [0, 384], sizes = [8, 128], strides = [1, 1]} : vector<8x512xf32> to vector<8x128xf32>
      %222 = arith.negf %221 : vector<8x128xf32>
      %223 = math.exp %222 : vector<8x128xf32>
      %cst_78 = arith.constant 1.000000e+00 : f32
      %224 = vector.broadcast %cst_78 : f32 to vector<8x128xf32>
      %225 = arith.addf %224, %223 : vector<8x128xf32>
      %226 = arith.divf %224, %225 : vector<8x128xf32>
      %227 = arith.mulf %218, %195 : vector<8x128xf32>
      %228 = arith.mulf %212, %220 : vector<8x128xf32>
      %229 = arith.addf %227, %228 : vector<8x128xf32>
      %230 = math.tanh %229 : vector<8x128xf32>
      %231 = arith.mulf %226, %230 : vector<8x128xf32>
      %232 = arith.index_cast %c4_i32 : i32 to index
      %c0_79 = arith.constant 0 : index
      %c0_80 = arith.constant 0 : index
      %233 = vector.load %arg10[%232, %c0_79, %c0_80] : memref<8x8x128xf32, #tpu.memory_space<vmem>>, vector<1x8x128xf32>
      %234 = vector.shape_cast %233 : vector<1x8x128xf32> to vector<8x128xf32>
      %235 = vector.shape_cast %231 : vector<8x128xf32> to vector<1x8x128xf32>
      tpu.vector_store %arg10[%232, %c0_79, %c0_80], %235 {strides = array<i32>} : memref<8x8x128xf32, #tpu.memory_space<vmem>>, vector<1x8x128xf32>,
      %c5_i32 = arith.constant 5 : i32
      %236 = arith.index_cast %c5_i32 : i32 to index
      %c0_81 = arith.constant 0 : index
      %c0_82 = arith.constant 0 : index
      %237 = vector.load %arg12[%236, %c0_81, %c0_82] : memref<8x8x512xf32, #tpu.memory_space<vmem>>, vector<1x8x512xf32>
      %238 = vector.shape_cast %237 : vector<1x8x512xf32> to vector<8x512xf32>
      %cst_83 = arith.constant dense<0.000000e+00> : vector<8x512xf32>
      %239 = tpu.matmul %231, %63, %cst_83 {dimension_numbers = #tpu.dot_dimension_numbers<[1], [0], [0], [1], [0, 0, 1, 1], [], []>} : vector<8x128xf32>, vector<128x512xf32>, vector<8x512xf32> -> vector<8x512xf32>
      %240 = arith.addf %238, %239 : vector<8x512xf32>
      %241 = vector.extract_strided_slice %240 {offsets = [0, 0], sizes = [8, 128], strides = [1, 1]} : vector<8x512xf32> to vector<8x128xf32>
      %242 = arith.negf %241 : vector<8x128xf32>
      %243 = math.exp %242 : vector<8x128xf32>
      %cst_84 = arith.constant 1.000000e+00 : f32
      %244 = vector.broadcast %cst_84 : f32 to vector<8x128xf32>
      %245 = arith.addf %244, %243 : vector<8x128xf32>
      %246 = arith.divf %244, %245 : vector<8x128xf32>
      %247 = vector.extract_strided_slice %240 {offsets = [0, 128], sizes = [8, 128], strides = [1, 1]} : vector<8x512xf32> to vector<8x128xf32>
      %248 = arith.negf %247 : vector<8x128xf32>
      %249 = math.exp %248 : vector<8x128xf32>
      %cst_85 = arith.constant 1.000000e+00 : f32
      %250 = vector.broadcast %cst_85 : f32 to vector<8x128xf32>
      %251 = arith.addf %250, %249 : vector<8x128xf32>
      %252 = arith.divf %250, %251 : vector<8x128xf32>
      %253 = vector.extract_strided_slice %240 {offsets = [0, 256], sizes = [8, 128], strides = [1, 1]} : vector<8x512xf32> to vector<8x128xf32>
      %254 = math.tanh %253 : vector<8x128xf32>
      %255 = vector.extract_strided_slice %240 {offsets = [0, 384], sizes = [8, 128], strides = [1, 1]} : vector<8x512xf32> to vector<8x128xf32>
      %256 = arith.negf %255 : vector<8x128xf32>
      %257 = math.exp %256 : vector<8x128xf32>
      %cst_86 = arith.constant 1.000000e+00 : f32
      %258 = vector.broadcast %cst_86 : f32 to vector<8x128xf32>
      %259 = arith.addf %258, %257 : vector<8x128xf32>
      %260 = arith.divf %258, %259 : vector<8x128xf32>
      %261 = arith.mulf %252, %229 : vector<8x128xf32>
      %262 = arith.mulf %246, %254 : vector<8x128xf32>
      %263 = arith.addf %261, %262 : vector<8x128xf32>
      %264 = math.tanh %263 : vector<8x128xf32>
      %265 = arith.mulf %260, %264 : vector<8x128xf32>
      %266 = arith.index_cast %c5_i32 : i32 to index
      %c0_87 = arith.constant 0 : index
      %c0_88 = arith.constant 0 : index
      %267 = vector.load %arg10[%266, %c0_87, %c0_88] : memref<8x8x128xf32, #tpu.memory_space<vmem>>, vector<1x8x128xf32>
      %268 = vector.shape_cast %267 : vector<1x8x128xf32> to vector<8x128xf32>
      %269 = vector.shape_cast %265 : vector<8x128xf32> to vector<1x8x128xf32>
      tpu.vector_store %arg10[%266, %c0_87, %c0_88], %269 {strides = array<i32>} : memref<8x8x128xf32, #tpu.memory_space<vmem>>, vector<1x8x128xf32>,
      %c6_i32 = arith.constant 6 : i32
      %270 = arith.index_cast %c6_i32 : i32 to index
      %c0_89 = arith.constant 0 : index
      %c0_90 = arith.constant 0 : index
      %271 = vector.load %arg12[%270, %c0_89, %c0_90] : memref<8x8x512xf32, #tpu.memory_space<vmem>>, vector<1x8x512xf32>
      %272 = vector.shape_cast %271 : vector<1x8x512xf32> to vector<8x512xf32>
      %cst_91 = arith.constant dense<0.000000e+00> : vector<8x512xf32>
      %273 = tpu.matmul %265, %63, %cst_91 {dimension_numbers = #tpu.dot_dimension_numbers<[1], [0], [0], [1], [0, 0, 1, 1], [], []>} : vector<8x128xf32>, vector<128x512xf32>, vector<8x512xf32> -> vector<8x512xf32>
      %274 = arith.addf %272, %273 : vector<8x512xf32>
      %275 = vector.extract_strided_slice %274 {offsets = [0, 0], sizes = [8, 128], strides = [1, 1]} : vector<8x512xf32> to vector<8x128xf32>
      %276 = arith.negf %275 : vector<8x128xf32>
      %277 = math.exp %276 : vector<8x128xf32>
      %cst_92 = arith.constant 1.000000e+00 : f32
      %278 = vector.broadcast %cst_92 : f32 to vector<8x128xf32>
      %279 = arith.addf %278, %277 : vector<8x128xf32>
      %280 = arith.divf %278, %279 : vector<8x128xf32>
      %281 = vector.extract_strided_slice %274 {offsets = [0, 128], sizes = [8, 128], strides = [1, 1]} : vector<8x512xf32> to vector<8x128xf32>
      %282 = arith.negf %281 : vector<8x128xf32>
      %283 = math.exp %282 : vector<8x128xf32>
      %cst_93 = arith.constant 1.000000e+00 : f32
      %284 = vector.broadcast %cst_93 : f32 to vector<8x128xf32>
      %285 = arith.addf %284, %283 : vector<8x128xf32>
      %286 = arith.divf %284, %285 : vector<8x128xf32>
      %287 = vector.extract_strided_slice %274 {offsets = [0, 256], sizes = [8, 128], strides = [1, 1]} : vector<8x512xf32> to vector<8x128xf32>
      %288 = math.tanh %287 : vector<8x128xf32>
      %289 = vector.extract_strided_slice %274 {offsets = [0, 384], sizes = [8, 128], strides = [1, 1]} : vector<8x512xf32> to vector<8x128xf32>
      %290 = arith.negf %289 : vector<8x128xf32>
      %291 = math.exp %290 : vector<8x128xf32>
      %cst_94 = arith.constant 1.000000e+00 : f32
      %292 = vector.broadcast %cst_94 : f32 to vector<8x128xf32>
      %293 = arith.addf %292, %291 : vector<8x128xf32>
      %294 = arith.divf %292, %293 : vector<8x128xf32>
      %295 = arith.mulf %286, %263 : vector<8x128xf32>
      %296 = arith.mulf %280, %288 : vector<8x128xf32>
      %297 = arith.addf %295, %296 : vector<8x128xf32>
      %298 = math.tanh %297 : vector<8x128xf32>
      %299 = arith.mulf %294, %298 : vector<8x128xf32>
      %300 = arith.index_cast %c6_i32 : i32 to index
      %c0_95 = arith.constant 0 : index
      %c0_96 = arith.constant 0 : index
      %301 = vector.load %arg10[%300, %c0_95, %c0_96] : memref<8x8x128xf32, #tpu.memory_space<vmem>>, vector<1x8x128xf32>
      %302 = vector.shape_cast %301 : vector<1x8x128xf32> to vector<8x128xf32>
      %303 = vector.shape_cast %299 : vector<8x128xf32> to vector<1x8x128xf32>
      tpu.vector_store %arg10[%300, %c0_95, %c0_96], %303 {strides = array<i32>} : memref<8x8x128xf32, #tpu.memory_space<vmem>>, vector<1x8x128xf32>,
      %c7_i32 = arith.constant 7 : i32
      %304 = arith.index_cast %c7_i32 : i32 to index
      %c0_97 = arith.constant 0 : index
      %c0_98 = arith.constant 0 : index
      %305 = vector.load %arg12[%304, %c0_97, %c0_98] : memref<8x8x512xf32, #tpu.memory_space<vmem>>, vector<1x8x512xf32>
      %306 = vector.shape_cast %305 : vector<1x8x512xf32> to vector<8x512xf32>
      %cst_99 = arith.constant dense<0.000000e+00> : vector<8x512xf32>
      %307 = tpu.matmul %299, %63, %cst_99 {dimension_numbers = #tpu.dot_dimension_numbers<[1], [0], [0], [1], [0, 0, 1, 1], [], []>} : vector<8x128xf32>, vector<128x512xf32>, vector<8x512xf32> -> vector<8x512xf32>
      %308 = arith.addf %306, %307 : vector<8x512xf32>
      %309 = vector.extract_strided_slice %308 {offsets = [0, 0], sizes = [8, 128], strides = [1, 1]} : vector<8x512xf32> to vector<8x128xf32>
      %310 = arith.negf %309 : vector<8x128xf32>
      %311 = math.exp %310 : vector<8x128xf32>
      %cst_100 = arith.constant 1.000000e+00 : f32
      %312 = vector.broadcast %cst_100 : f32 to vector<8x128xf32>
      %313 = arith.addf %312, %311 : vector<8x128xf32>
      %314 = arith.divf %312, %313 : vector<8x128xf32>
      %315 = vector.extract_strided_slice %308 {offsets = [0, 128], sizes = [8, 128], strides = [1, 1]} : vector<8x512xf32> to vector<8x128xf32>
      %316 = arith.negf %315 : vector<8x128xf32>
      %317 = math.exp %316 : vector<8x128xf32>
      %cst_101 = arith.constant 1.000000e+00 : f32
      %318 = vector.broadcast %cst_101 : f32 to vector<8x128xf32>
      %319 = arith.addf %318, %317 : vector<8x128xf32>
      %320 = arith.divf %318, %319 : vector<8x128xf32>
      %321 = vector.extract_strided_slice %308 {offsets = [0, 256], sizes = [8, 128], strides = [1, 1]} : vector<8x512xf32> to vector<8x128xf32>
      %322 = math.tanh %321 : vector<8x128xf32>
      %323 = vector.extract_strided_slice %308 {offsets = [0, 384], sizes = [8, 128], strides = [1, 1]} : vector<8x512xf32> to vector<8x128xf32>
      %324 = arith.negf %323 : vector<8x128xf32>
      %325 = math.exp %324 : vector<8x128xf32>
      %cst_102 = arith.constant 1.000000e+00 : f32
      %326 = vector.broadcast %cst_102 : f32 to vector<8x128xf32>
      %327 = arith.addf %326, %325 : vector<8x128xf32>
      %328 = arith.divf %326, %327 : vector<8x128xf32>
      %329 = arith.mulf %320, %297 : vector<8x128xf32>
      %330 = arith.mulf %314, %322 : vector<8x128xf32>
      %331 = arith.addf %329, %330 : vector<8x128xf32>
      %332 = math.tanh %331 : vector<8x128xf32>
      %333 = arith.mulf %328, %332 : vector<8x128xf32>
      %334 = arith.index_cast %c7_i32 : i32 to index
      %c0_103 = arith.constant 0 : index
      %c0_104 = arith.constant 0 : index
      %335 = vector.load %arg10[%334, %c0_103, %c0_104] : memref<8x8x128xf32, #tpu.memory_space<vmem>>, vector<1x8x128xf32>
      %336 = vector.shape_cast %335 : vector<1x8x128xf32> to vector<8x128xf32>
      %337 = vector.shape_cast %333 : vector<8x128xf32> to vector<1x8x128xf32>
      tpu.vector_store %arg10[%334, %c0_103, %c0_104], %337 {strides = array<i32>} : memref<8x8x128xf32, #tpu.memory_space<vmem>>, vector<1x8x128xf32>,
      %c8_i32 = arith.constant 8 : i32
      %c0_105 = arith.constant 0 : index
      %c0_106 = arith.constant 0 : index
      %c0_107 = arith.constant 0 : index
      %338 = vector.load %arg8[%c0_105, %c0_106, %c0_107] : memref<1x8x128xf32, #tpu.memory_space<vmem>>, vector<1x8x128xf32>
      %339 = vector.shape_cast %338 : vector<1x8x128xf32> to vector<8x128xf32>
      %340 = vector.shape_cast %333 : vector<8x128xf32> to vector<1x8x128xf32>
      tpu.vector_store %arg8[%c0_105, %c0_106, %c0_107], %340 {strides = array<i32>} : memref<1x8x128xf32, #tpu.memory_space<vmem>>, vector<1x8x128xf32>,
      %c0_108 = arith.constant 0 : index
      %c0_109 = arith.constant 0 : index
      %c0_110 = arith.constant 0 : index
      %341 = vector.load %arg9[%c0_108, %c0_109, %c0_110] : memref<1x8x128xf32, #tpu.memory_space<vmem>>, vector<1x8x128xf32>
      %342 = vector.shape_cast %341 : vector<1x8x128xf32> to vector<8x128xf32>
      %343 = vector.shape_cast %331 : vector<8x128xf32> to vector<1x8x128xf32>
      tpu.vector_store %arg9[%c0_108, %c0_109, %c0_110], %343 {strides = array<i32>} : memref<1x8x128xf32, #tpu.memory_space<vmem>>, vector<1x8x128xf32>,
    } else {
    }
    %c2_i32_25 = arith.constant 2 : i32
    %c0_i32_26 = arith.constant 0 : i32
    %46 = arith.cmpi eq, %c2_i32_25, %c0_i32_26 : i32
    %c1_i32_27 = arith.constant 1 : i32
    %47 = arith.select %46, %c1_i32_27, %c2_i32_25 : i32
    %48 = arith.remsi %arg0, %47 : i32
    %c0_i32_28 = arith.constant 0 : i32
    %49 = arith.cmpi ne, %48, %c0_i32_28 : i32
    %c0_i32_29 = arith.constant 0 : i32
    %50 = arith.cmpi slt, %48, %c0_i32_29 : i32
    %c0_i32_30 = arith.constant 0 : i32
    %51 = arith.cmpi slt, %47, %c0_i32_30 : i32
    %52 = arith.xori %50, %51 : i1
    %53 = arith.andi %52, %49 : i1
    %54 = arith.addi %48, %47 : i32
    %55 = arith.select %53, %54, %48 : i32
    %c1_i32_31 = arith.constant 1 : i32
    %56 = arith.cmpi eq, %55, %c1_i32_31 : i32
    %57 = arith.extui %56 : i1 to i32
    %c0_i32_32 = arith.constant 0 : i32
    %58 = arith.cmpi ne, %57, %c0_i32_32 : i32
    scf.if %58 {
      %c0 = arith.constant 0 : index
      %c0_35 = arith.constant 0 : index
      %c0_36 = arith.constant 0 : index
      %62 = vector.load %arg3[%c0, %c0_35, %c0_36] : memref<1x128x512xf32, #tpu.memory_space<vmem>>, vector<1x128x512xf32>
      %63 = vector.shape_cast %62 : vector<1x128x512xf32> to vector<128x512xf32>
      %cst = arith.constant 0.000000e+00 : f32
      %64 = vector.broadcast %cst : f32 to vector<8x128xf32>
      %cst_37 = arith.constant 0.000000e+00 : f32
      %65 = vector.broadcast %cst_37 : f32 to vector<8x128xf32>
      %c0_i32_38 = arith.constant 0 : i32
      %66 = arith.index_cast %c0_i32_38 : i32 to index
      %c0_39 = arith.constant 0 : index
      %c0_40 = arith.constant 0 : index
      %67 = vector.load %arg12[%66, %c0_39, %c0_40] : memref<8x8x512xf32, #tpu.memory_space<vmem>>, vector<1x8x512xf32>
      %68 = vector.shape_cast %67 : vector<1x8x512xf32> to vector<8x512xf32>
      %cst_41 = arith.constant dense<0.000000e+00> : vector<8x512xf32>
      %69 = tpu.matmul %64, %63, %cst_41 {dimension_numbers = #tpu.dot_dimension_numbers<[1], [0], [0], [1], [0, 0, 1, 1], [], []>} : vector<8x128xf32>, vector<128x512xf32>, vector<8x512xf32> -> vector<8x512xf32>
      %70 = arith.addf %68, %69 : vector<8x512xf32>
      %71 = vector.extract_strided_slice %70 {offsets = [0, 0], sizes = [8, 128], strides = [1, 1]} : vector<8x512xf32> to vector<8x128xf32>
      %72 = arith.negf %71 : vector<8x128xf32>
      %73 = math.exp %72 : vector<8x128xf32>
      %cst_42 = arith.constant 1.000000e+00 : f32
      %74 = vector.broadcast %cst_42 : f32 to vector<8x128xf32>
      %75 = arith.addf %74, %73 : vector<8x128xf32>
      %76 = arith.divf %74, %75 : vector<8x128xf32>
      %77 = vector.extract_strided_slice %70 {offsets = [0, 128], sizes = [8, 128], strides = [1, 1]} : vector<8x512xf32> to vector<8x128xf32>
      %78 = arith.negf %77 : vector<8x128xf32>
      %79 = math.exp %78 : vector<8x128xf32>
      %cst_43 = arith.constant 1.000000e+00 : f32
      %80 = vector.broadcast %cst_43 : f32 to vector<8x128xf32>
      %81 = arith.addf %80, %79 : vector<8x128xf32>
      %82 = arith.divf %80, %81 : vector<8x128xf32>
      %83 = vector.extract_strided_slice %70 {offsets = [0, 256], sizes = [8, 128], strides = [1, 1]} : vector<8x512xf32> to vector<8x128xf32>
      %84 = math.tanh %83 : vector<8x128xf32>
      %85 = vector.extract_strided_slice %70 {offsets = [0, 384], sizes = [8, 128], strides = [1, 1]} : vector<8x512xf32> to vector<8x128xf32>
      %86 = arith.negf %85 : vector<8x128xf32>
      %87 = math.exp %86 : vector<8x128xf32>
      %cst_44 = arith.constant 1.000000e+00 : f32
      %88 = vector.broadcast %cst_44 : f32 to vector<8x128xf32>
      %89 = arith.addf %88, %87 : vector<8x128xf32>
      %90 = arith.divf %88, %89 : vector<8x128xf32>
      %91 = arith.mulf %82, %65 : vector<8x128xf32>
      %92 = arith.mulf %76, %84 : vector<8x128xf32>
      %93 = arith.addf %91, %92 : vector<8x128xf32>
      %94 = math.tanh %93 : vector<8x128xf32>
      %95 = arith.mulf %90, %94 : vector<8x128xf32>
      %96 = arith.index_cast %c0_i32_38 : i32 to index
      %c0_45 = arith.constant 0 : index
      %c0_46 = arith.constant 0 : index
      %97 = vector.load %arg11[%96, %c0_45, %c0_46] : memref<8x8x128xf32, #tpu.memory_space<vmem>>, vector<1x8x128xf32>
      %98 = vector.shape_cast %97 : vector<1x8x128xf32> to vector<8x128xf32>
      %99 = vector.shape_cast %95 : vector<8x128xf32> to vector<1x8x128xf32>
      tpu.vector_store %arg11[%96, %c0_45, %c0_46], %99 {strides = array<i32>} : memref<8x8x128xf32, #tpu.memory_space<vmem>>, vector<1x8x128xf32>,
      %c1_i32_47 = arith.constant 1 : i32
      %100 = arith.index_cast %c1_i32_47 : i32 to index
      %c0_48 = arith.constant 0 : index
      %c0_49 = arith.constant 0 : index
      %101 = vector.load %arg12[%100, %c0_48, %c0_49] : memref<8x8x512xf32, #tpu.memory_space<vmem>>, vector<1x8x512xf32>
      %102 = vector.shape_cast %101 : vector<1x8x512xf32> to vector<8x512xf32>
      %cst_50 = arith.constant dense<0.000000e+00> : vector<8x512xf32>
      %103 = tpu.matmul %95, %63, %cst_50 {dimension_numbers = #tpu.dot_dimension_numbers<[1], [0], [0], [1], [0, 0, 1, 1], [], []>} : vector<8x128xf32>, vector<128x512xf32>, vector<8x512xf32> -> vector<8x512xf32>
      %104 = arith.addf %102, %103 : vector<8x512xf32>
      %105 = vector.extract_strided_slice %104 {offsets = [0, 0], sizes = [8, 128], strides = [1, 1]} : vector<8x512xf32> to vector<8x128xf32>
      %106 = arith.negf %105 : vector<8x128xf32>
      %107 = math.exp %106 : vector<8x128xf32>
      %cst_51 = arith.constant 1.000000e+00 : f32
      %108 = vector.broadcast %cst_51 : f32 to vector<8x128xf32>
      %109 = arith.addf %108, %107 : vector<8x128xf32>
      %110 = arith.divf %108, %109 : vector<8x128xf32>
      %111 = vector.extract_strided_slice %104 {offsets = [0, 128], sizes = [8, 128], strides = [1, 1]} : vector<8x512xf32> to vector<8x128xf32>
      %112 = arith.negf %111 : vector<8x128xf32>
      %113 = math.exp %112 : vector<8x128xf32>
      %cst_52 = arith.constant 1.000000e+00 : f32
      %114 = vector.broadcast %cst_52 : f32 to vector<8x128xf32>
      %115 = arith.addf %114, %113 : vector<8x128xf32>
      %116 = arith.divf %114, %115 : vector<8x128xf32>
      %117 = vector.extract_strided_slice %104 {offsets = [0, 256], sizes = [8, 128], strides = [1, 1]} : vector<8x512xf32> to vector<8x128xf32>
      %118 = math.tanh %117 : vector<8x128xf32>
      %119 = vector.extract_strided_slice %104 {offsets = [0, 384], sizes = [8, 128], strides = [1, 1]} : vector<8x512xf32> to vector<8x128xf32>
      %120 = arith.negf %119 : vector<8x128xf32>
      %121 = math.exp %120 : vector<8x128xf32>
      %cst_53 = arith.constant 1.000000e+00 : f32
      %122 = vector.broadcast %cst_53 : f32 to vector<8x128xf32>
      %123 = arith.addf %122, %121 : vector<8x128xf32>
      %124 = arith.divf %122, %123 : vector<8x128xf32>
      %125 = arith.mulf %116, %93 : vector<8x128xf32>
      %126 = arith.mulf %110, %118 : vector<8x128xf32>
      %127 = arith.addf %125, %126 : vector<8x128xf32>
      %128 = math.tanh %127 : vector<8x128xf32>
      %129 = arith.mulf %124, %128 : vector<8x128xf32>
      %130 = arith.index_cast %c1_i32_47 : i32 to index
      %c0_54 = arith.constant 0 : index
      %c0_55 = arith.constant 0 : index
      %131 = vector.load %arg11[%130, %c0_54, %c0_55] : memref<8x8x128xf32, #tpu.memory_space<vmem>>, vector<1x8x128xf32>
      %132 = vector.shape_cast %131 : vector<1x8x128xf32> to vector<8x128xf32>
      %133 = vector.shape_cast %129 : vector<8x128xf32> to vector<1x8x128xf32>
      tpu.vector_store %arg11[%130, %c0_54, %c0_55], %133 {strides = array<i32>} : memref<8x8x128xf32, #tpu.memory_space<vmem>>, vector<1x8x128xf32>,
      %c2_i32_56 = arith.constant 2 : i32
      %134 = arith.index_cast %c2_i32_56 : i32 to index
      %c0_57 = arith.constant 0 : index
      %c0_58 = arith.constant 0 : index
      %135 = vector.load %arg12[%134, %c0_57, %c0_58] : memref<8x8x512xf32, #tpu.memory_space<vmem>>, vector<1x8x512xf32>
      %136 = vector.shape_cast %135 : vector<1x8x512xf32> to vector<8x512xf32>
      %cst_59 = arith.constant dense<0.000000e+00> : vector<8x512xf32>
      %137 = tpu.matmul %129, %63, %cst_59 {dimension_numbers = #tpu.dot_dimension_numbers<[1], [0], [0], [1], [0, 0, 1, 1], [], []>} : vector<8x128xf32>, vector<128x512xf32>, vector<8x512xf32> -> vector<8x512xf32>
      %138 = arith.addf %136, %137 : vector<8x512xf32>
      %139 = vector.extract_strided_slice %138 {offsets = [0, 0], sizes = [8, 128], strides = [1, 1]} : vector<8x512xf32> to vector<8x128xf32>
      %140 = arith.negf %139 : vector<8x128xf32>
      %141 = math.exp %140 : vector<8x128xf32>
      %cst_60 = arith.constant 1.000000e+00 : f32
      %142 = vector.broadcast %cst_60 : f32 to vector<8x128xf32>
      %143 = arith.addf %142, %141 : vector<8x128xf32>
      %144 = arith.divf %142, %143 : vector<8x128xf32>
      %145 = vector.extract_strided_slice %138 {offsets = [0, 128], sizes = [8, 128], strides = [1, 1]} : vector<8x512xf32> to vector<8x128xf32>
      %146 = arith.negf %145 : vector<8x128xf32>
      %147 = math.exp %146 : vector<8x128xf32>
      %cst_61 = arith.constant 1.000000e+00 : f32
      %148 = vector.broadcast %cst_61 : f32 to vector<8x128xf32>
      %149 = arith.addf %148, %147 : vector<8x128xf32>
      %150 = arith.divf %148, %149 : vector<8x128xf32>
      %151 = vector.extract_strided_slice %138 {offsets = [0, 256], sizes = [8, 128], strides = [1, 1]} : vector<8x512xf32> to vector<8x128xf32>
      %152 = math.tanh %151 : vector<8x128xf32>
      %153 = vector.extract_strided_slice %138 {offsets = [0, 384], sizes = [8, 128], strides = [1, 1]} : vector<8x512xf32> to vector<8x128xf32>
      %154 = arith.negf %153 : vector<8x128xf32>
      %155 = math.exp %154 : vector<8x128xf32>
      %cst_62 = arith.constant 1.000000e+00 : f32
      %156 = vector.broadcast %cst_62 : f32 to vector<8x128xf32>
      %157 = arith.addf %156, %155 : vector<8x128xf32>
      %158 = arith.divf %156, %157 : vector<8x128xf32>
      %159 = arith.mulf %150, %127 : vector<8x128xf32>
      %160 = arith.mulf %144, %152 : vector<8x128xf32>
      %161 = arith.addf %159, %160 : vector<8x128xf32>
      %162 = math.tanh %161 : vector<8x128xf32>
      %163 = arith.mulf %158, %162 : vector<8x128xf32>
      %164 = arith.index_cast %c2_i32_56 : i32 to index
      %c0_63 = arith.constant 0 : index
      %c0_64 = arith.constant 0 : index
      %165 = vector.load %arg11[%164, %c0_63, %c0_64] : memref<8x8x128xf32, #tpu.memory_space<vmem>>, vector<1x8x128xf32>
      %166 = vector.shape_cast %165 : vector<1x8x128xf32> to vector<8x128xf32>
      %167 = vector.shape_cast %163 : vector<8x128xf32> to vector<1x8x128xf32>
      tpu.vector_store %arg11[%164, %c0_63, %c0_64], %167 {strides = array<i32>} : memref<8x8x128xf32, #tpu.memory_space<vmem>>, vector<1x8x128xf32>,
      %c3_i32 = arith.constant 3 : i32
      %168 = arith.index_cast %c3_i32 : i32 to index
      %c0_65 = arith.constant 0 : index
      %c0_66 = arith.constant 0 : index
      %169 = vector.load %arg12[%168, %c0_65, %c0_66] : memref<8x8x512xf32, #tpu.memory_space<vmem>>, vector<1x8x512xf32>
      %170 = vector.shape_cast %169 : vector<1x8x512xf32> to vector<8x512xf32>
      %cst_67 = arith.constant dense<0.000000e+00> : vector<8x512xf32>
      %171 = tpu.matmul %163, %63, %cst_67 {dimension_numbers = #tpu.dot_dimension_numbers<[1], [0], [0], [1], [0, 0, 1, 1], [], []>} : vector<8x128xf32>, vector<128x512xf32>, vector<8x512xf32> -> vector<8x512xf32>
      %172 = arith.addf %170, %171 : vector<8x512xf32>
      %173 = vector.extract_strided_slice %172 {offsets = [0, 0], sizes = [8, 128], strides = [1, 1]} : vector<8x512xf32> to vector<8x128xf32>
      %174 = arith.negf %173 : vector<8x128xf32>
      %175 = math.exp %174 : vector<8x128xf32>
      %cst_68 = arith.constant 1.000000e+00 : f32
      %176 = vector.broadcast %cst_68 : f32 to vector<8x128xf32>
      %177 = arith.addf %176, %175 : vector<8x128xf32>
      %178 = arith.divf %176, %177 : vector<8x128xf32>
      %179 = vector.extract_strided_slice %172 {offsets = [0, 128], sizes = [8, 128], strides = [1, 1]} : vector<8x512xf32> to vector<8x128xf32>
      %180 = arith.negf %179 : vector<8x128xf32>
      %181 = math.exp %180 : vector<8x128xf32>
      %cst_69 = arith.constant 1.000000e+00 : f32
      %182 = vector.broadcast %cst_69 : f32 to vector<8x128xf32>
      %183 = arith.addf %182, %181 : vector<8x128xf32>
      %184 = arith.divf %182, %183 : vector<8x128xf32>
      %185 = vector.extract_strided_slice %172 {offsets = [0, 256], sizes = [8, 128], strides = [1, 1]} : vector<8x512xf32> to vector<8x128xf32>
      %186 = math.tanh %185 : vector<8x128xf32>
      %187 = vector.extract_strided_slice %172 {offsets = [0, 384], sizes = [8, 128], strides = [1, 1]} : vector<8x512xf32> to vector<8x128xf32>
      %188 = arith.negf %187 : vector<8x128xf32>
      %189 = math.exp %188 : vector<8x128xf32>
      %cst_70 = arith.constant 1.000000e+00 : f32
      %190 = vector.broadcast %cst_70 : f32 to vector<8x128xf32>
      %191 = arith.addf %190, %189 : vector<8x128xf32>
      %192 = arith.divf %190, %191 : vector<8x128xf32>
      %193 = arith.mulf %184, %161 : vector<8x128xf32>
      %194 = arith.mulf %178, %186 : vector<8x128xf32>
      %195 = arith.addf %193, %194 : vector<8x128xf32>
      %196 = math.tanh %195 : vector<8x128xf32>
      %197 = arith.mulf %192, %196 : vector<8x128xf32>
      %198 = arith.index_cast %c3_i32 : i32 to index
      %c0_71 = arith.constant 0 : index
      %c0_72 = arith.constant 0 : index
      %199 = vector.load %arg11[%198, %c0_71, %c0_72] : memref<8x8x128xf32, #tpu.memory_space<vmem>>, vector<1x8x128xf32>
      %200 = vector.shape_cast %199 : vector<1x8x128xf32> to vector<8x128xf32>
      %201 = vector.shape_cast %197 : vector<8x128xf32> to vector<1x8x128xf32>
      tpu.vector_store %arg11[%198, %c0_71, %c0_72], %201 {strides = array<i32>} : memref<8x8x128xf32, #tpu.memory_space<vmem>>, vector<1x8x128xf32>,
      %c4_i32 = arith.constant 4 : i32
      %202 = arith.index_cast %c4_i32 : i32 to index
      %c0_73 = arith.constant 0 : index
      %c0_74 = arith.constant 0 : index
      %203 = vector.load %arg12[%202, %c0_73, %c0_74] : memref<8x8x512xf32, #tpu.memory_space<vmem>>, vector<1x8x512xf32>
      %204 = vector.shape_cast %203 : vector<1x8x512xf32> to vector<8x512xf32>
      %cst_75 = arith.constant dense<0.000000e+00> : vector<8x512xf32>
      %205 = tpu.matmul %197, %63, %cst_75 {dimension_numbers = #tpu.dot_dimension_numbers<[1], [0], [0], [1], [0, 0, 1, 1], [], []>} : vector<8x128xf32>, vector<128x512xf32>, vector<8x512xf32> -> vector<8x512xf32>
      %206 = arith.addf %204, %205 : vector<8x512xf32>
      %207 = vector.extract_strided_slice %206 {offsets = [0, 0], sizes = [8, 128], strides = [1, 1]} : vector<8x512xf32> to vector<8x128xf32>
      %208 = arith.negf %207 : vector<8x128xf32>
      %209 = math.exp %208 : vector<8x128xf32>
      %cst_76 = arith.constant 1.000000e+00 : f32
      %210 = vector.broadcast %cst_76 : f32 to vector<8x128xf32>
      %211 = arith.addf %210, %209 : vector<8x128xf32>
      %212 = arith.divf %210, %211 : vector<8x128xf32>
      %213 = vector.extract_strided_slice %206 {offsets = [0, 128], sizes = [8, 128], strides = [1, 1]} : vector<8x512xf32> to vector<8x128xf32>
      %214 = arith.negf %213 : vector<8x128xf32>
      %215 = math.exp %214 : vector<8x128xf32>
      %cst_77 = arith.constant 1.000000e+00 : f32
      %216 = vector.broadcast %cst_77 : f32 to vector<8x128xf32>
      %217 = arith.addf %216, %215 : vector<8x128xf32>
      %218 = arith.divf %216, %217 : vector<8x128xf32>
      %219 = vector.extract_strided_slice %206 {offsets = [0, 256], sizes = [8, 128], strides = [1, 1]} : vector<8x512xf32> to vector<8x128xf32>
      %220 = math.tanh %219 : vector<8x128xf32>
      %221 = vector.extract_strided_slice %206 {offsets = [0, 384], sizes = [8, 128], strides = [1, 1]} : vector<8x512xf32> to vector<8x128xf32>
      %222 = arith.negf %221 : vector<8x128xf32>
      %223 = math.exp %222 : vector<8x128xf32>
      %cst_78 = arith.constant 1.000000e+00 : f32
      %224 = vector.broadcast %cst_78 : f32 to vector<8x128xf32>
      %225 = arith.addf %224, %223 : vector<8x128xf32>
      %226 = arith.divf %224, %225 : vector<8x128xf32>
      %227 = arith.mulf %218, %195 : vector<8x128xf32>
      %228 = arith.mulf %212, %220 : vector<8x128xf32>
      %229 = arith.addf %227, %228 : vector<8x128xf32>
      %230 = math.tanh %229 : vector<8x128xf32>
      %231 = arith.mulf %226, %230 : vector<8x128xf32>
      %232 = arith.index_cast %c4_i32 : i32 to index
      %c0_79 = arith.constant 0 : index
      %c0_80 = arith.constant 0 : index
      %233 = vector.load %arg11[%232, %c0_79, %c0_80] : memref<8x8x128xf32, #tpu.memory_space<vmem>>, vector<1x8x128xf32>
      %234 = vector.shape_cast %233 : vector<1x8x128xf32> to vector<8x128xf32>
      %235 = vector.shape_cast %231 : vector<8x128xf32> to vector<1x8x128xf32>
      tpu.vector_store %arg11[%232, %c0_79, %c0_80], %235 {strides = array<i32>} : memref<8x8x128xf32, #tpu.memory_space<vmem>>, vector<1x8x128xf32>,
      %c5_i32 = arith.constant 5 : i32
      %236 = arith.index_cast %c5_i32 : i32 to index
      %c0_81 = arith.constant 0 : index
      %c0_82 = arith.constant 0 : index
      %237 = vector.load %arg12[%236, %c0_81, %c0_82] : memref<8x8x512xf32, #tpu.memory_space<vmem>>, vector<1x8x512xf32>
      %238 = vector.shape_cast %237 : vector<1x8x512xf32> to vector<8x512xf32>
      %cst_83 = arith.constant dense<0.000000e+00> : vector<8x512xf32>
      %239 = tpu.matmul %231, %63, %cst_83 {dimension_numbers = #tpu.dot_dimension_numbers<[1], [0], [0], [1], [0, 0, 1, 1], [], []>} : vector<8x128xf32>, vector<128x512xf32>, vector<8x512xf32> -> vector<8x512xf32>
      %240 = arith.addf %238, %239 : vector<8x512xf32>
      %241 = vector.extract_strided_slice %240 {offsets = [0, 0], sizes = [8, 128], strides = [1, 1]} : vector<8x512xf32> to vector<8x128xf32>
      %242 = arith.negf %241 : vector<8x128xf32>
      %243 = math.exp %242 : vector<8x128xf32>
      %cst_84 = arith.constant 1.000000e+00 : f32
      %244 = vector.broadcast %cst_84 : f32 to vector<8x128xf32>
      %245 = arith.addf %244, %243 : vector<8x128xf32>
      %246 = arith.divf %244, %245 : vector<8x128xf32>
      %247 = vector.extract_strided_slice %240 {offsets = [0, 128], sizes = [8, 128], strides = [1, 1]} : vector<8x512xf32> to vector<8x128xf32>
      %248 = arith.negf %247 : vector<8x128xf32>
      %249 = math.exp %248 : vector<8x128xf32>
      %cst_85 = arith.constant 1.000000e+00 : f32
      %250 = vector.broadcast %cst_85 : f32 to vector<8x128xf32>
      %251 = arith.addf %250, %249 : vector<8x128xf32>
      %252 = arith.divf %250, %251 : vector<8x128xf32>
      %253 = vector.extract_strided_slice %240 {offsets = [0, 256], sizes = [8, 128], strides = [1, 1]} : vector<8x512xf32> to vector<8x128xf32>
      %254 = math.tanh %253 : vector<8x128xf32>
      %255 = vector.extract_strided_slice %240 {offsets = [0, 384], sizes = [8, 128], strides = [1, 1]} : vector<8x512xf32> to vector<8x128xf32>
      %256 = arith.negf %255 : vector<8x128xf32>
      %257 = math.exp %256 : vector<8x128xf32>
      %cst_86 = arith.constant 1.000000e+00 : f32
      %258 = vector.broadcast %cst_86 : f32 to vector<8x128xf32>
      %259 = arith.addf %258, %257 : vector<8x128xf32>
      %260 = arith.divf %258, %259 : vector<8x128xf32>
      %261 = arith.mulf %252, %229 : vector<8x128xf32>
      %262 = arith.mulf %246, %254 : vector<8x128xf32>
      %263 = arith.addf %261, %262 : vector<8x128xf32>
      %264 = math.tanh %263 : vector<8x128xf32>
      %265 = arith.mulf %260, %264 : vector<8x128xf32>
      %266 = arith.index_cast %c5_i32 : i32 to index
      %c0_87 = arith.constant 0 : index
      %c0_88 = arith.constant 0 : index
      %267 = vector.load %arg11[%266, %c0_87, %c0_88] : memref<8x8x128xf32, #tpu.memory_space<vmem>>, vector<1x8x128xf32>
      %268 = vector.shape_cast %267 : vector<1x8x128xf32> to vector<8x128xf32>
      %269 = vector.shape_cast %265 : vector<8x128xf32> to vector<1x8x128xf32>
      tpu.vector_store %arg11[%266, %c0_87, %c0_88], %269 {strides = array<i32>} : memref<8x8x128xf32, #tpu.memory_space<vmem>>, vector<1x8x128xf32>,
      %c6_i32 = arith.constant 6 : i32
      %270 = arith.index_cast %c6_i32 : i32 to index
      %c0_89 = arith.constant 0 : index
      %c0_90 = arith.constant 0 : index
      %271 = vector.load %arg12[%270, %c0_89, %c0_90] : memref<8x8x512xf32, #tpu.memory_space<vmem>>, vector<1x8x512xf32>
      %272 = vector.shape_cast %271 : vector<1x8x512xf32> to vector<8x512xf32>
      %cst_91 = arith.constant dense<0.000000e+00> : vector<8x512xf32>
      %273 = tpu.matmul %265, %63, %cst_91 {dimension_numbers = #tpu.dot_dimension_numbers<[1], [0], [0], [1], [0, 0, 1, 1], [], []>} : vector<8x128xf32>, vector<128x512xf32>, vector<8x512xf32> -> vector<8x512xf32>
      %274 = arith.addf %272, %273 : vector<8x512xf32>
      %275 = vector.extract_strided_slice %274 {offsets = [0, 0], sizes = [8, 128], strides = [1, 1]} : vector<8x512xf32> to vector<8x128xf32>
      %276 = arith.negf %275 : vector<8x128xf32>
      %277 = math.exp %276 : vector<8x128xf32>
      %cst_92 = arith.constant 1.000000e+00 : f32
      %278 = vector.broadcast %cst_92 : f32 to vector<8x128xf32>
      %279 = arith.addf %278, %277 : vector<8x128xf32>
      %280 = arith.divf %278, %279 : vector<8x128xf32>
      %281 = vector.extract_strided_slice %274 {offsets = [0, 128], sizes = [8, 128], strides = [1, 1]} : vector<8x512xf32> to vector<8x128xf32>
      %282 = arith.negf %281 : vector<8x128xf32>
      %283 = math.exp %282 : vector<8x128xf32>
      %cst_93 = arith.constant 1.000000e+00 : f32
      %284 = vector.broadcast %cst_93 : f32 to vector<8x128xf32>
      %285 = arith.addf %284, %283 : vector<8x128xf32>
      %286 = arith.divf %284, %285 : vector<8x128xf32>
      %287 = vector.extract_strided_slice %274 {offsets = [0, 256], sizes = [8, 128], strides = [1, 1]} : vector<8x512xf32> to vector<8x128xf32>
      %288 = math.tanh %287 : vector<8x128xf32>
      %289 = vector.extract_strided_slice %274 {offsets = [0, 384], sizes = [8, 128], strides = [1, 1]} : vector<8x512xf32> to vector<8x128xf32>
      %290 = arith.negf %289 : vector<8x128xf32>
      %291 = math.exp %290 : vector<8x128xf32>
      %cst_94 = arith.constant 1.000000e+00 : f32
      %292 = vector.broadcast %cst_94 : f32 to vector<8x128xf32>
      %293 = arith.addf %292, %291 : vector<8x128xf32>
      %294 = arith.divf %292, %293 : vector<8x128xf32>
      %295 = arith.mulf %286, %263 : vector<8x128xf32>
      %296 = arith.mulf %280, %288 : vector<8x128xf32>
      %297 = arith.addf %295, %296 : vector<8x128xf32>
      %298 = math.tanh %297 : vector<8x128xf32>
      %299 = arith.mulf %294, %298 : vector<8x128xf32>
      %300 = arith.index_cast %c6_i32 : i32 to index
      %c0_95 = arith.constant 0 : index
      %c0_96 = arith.constant 0 : index
      %301 = vector.load %arg11[%300, %c0_95, %c0_96] : memref<8x8x128xf32, #tpu.memory_space<vmem>>, vector<1x8x128xf32>
      %302 = vector.shape_cast %301 : vector<1x8x128xf32> to vector<8x128xf32>
      %303 = vector.shape_cast %299 : vector<8x128xf32> to vector<1x8x128xf32>
      tpu.vector_store %arg11[%300, %c0_95, %c0_96], %303 {strides = array<i32>} : memref<8x8x128xf32, #tpu.memory_space<vmem>>, vector<1x8x128xf32>,
      %c7_i32 = arith.constant 7 : i32
      %304 = arith.index_cast %c7_i32 : i32 to index
      %c0_97 = arith.constant 0 : index
      %c0_98 = arith.constant 0 : index
      %305 = vector.load %arg12[%304, %c0_97, %c0_98] : memref<8x8x512xf32, #tpu.memory_space<vmem>>, vector<1x8x512xf32>
      %306 = vector.shape_cast %305 : vector<1x8x512xf32> to vector<8x512xf32>
      %cst_99 = arith.constant dense<0.000000e+00> : vector<8x512xf32>
      %307 = tpu.matmul %299, %63, %cst_99 {dimension_numbers = #tpu.dot_dimension_numbers<[1], [0], [0], [1], [0, 0, 1, 1], [], []>} : vector<8x128xf32>, vector<128x512xf32>, vector<8x512xf32> -> vector<8x512xf32>
      %308 = arith.addf %306, %307 : vector<8x512xf32>
      %309 = vector.extract_strided_slice %308 {offsets = [0, 0], sizes = [8, 128], strides = [1, 1]} : vector<8x512xf32> to vector<8x128xf32>
      %310 = arith.negf %309 : vector<8x128xf32>
      %311 = math.exp %310 : vector<8x128xf32>
      %cst_100 = arith.constant 1.000000e+00 : f32
      %312 = vector.broadcast %cst_100 : f32 to vector<8x128xf32>
      %313 = arith.addf %312, %311 : vector<8x128xf32>
      %314 = arith.divf %312, %313 : vector<8x128xf32>
      %315 = vector.extract_strided_slice %308 {offsets = [0, 128], sizes = [8, 128], strides = [1, 1]} : vector<8x512xf32> to vector<8x128xf32>
      %316 = arith.negf %315 : vector<8x128xf32>
      %317 = math.exp %316 : vector<8x128xf32>
      %cst_101 = arith.constant 1.000000e+00 : f32
      %318 = vector.broadcast %cst_101 : f32 to vector<8x128xf32>
      %319 = arith.addf %318, %317 : vector<8x128xf32>
      %320 = arith.divf %318, %319 : vector<8x128xf32>
      %321 = vector.extract_strided_slice %308 {offsets = [0, 256], sizes = [8, 128], strides = [1, 1]} : vector<8x512xf32> to vector<8x128xf32>
      %322 = math.tanh %321 : vector<8x128xf32>
      %323 = vector.extract_strided_slice %308 {offsets = [0, 384], sizes = [8, 128], strides = [1, 1]} : vector<8x512xf32> to vector<8x128xf32>
      %324 = arith.negf %323 : vector<8x128xf32>
      %325 = math.exp %324 : vector<8x128xf32>
      %cst_102 = arith.constant 1.000000e+00 : f32
      %326 = vector.broadcast %cst_102 : f32 to vector<8x128xf32>
      %327 = arith.addf %326, %325 : vector<8x128xf32>
      %328 = arith.divf %326, %327 : vector<8x128xf32>
      %329 = arith.mulf %320, %297 : vector<8x128xf32>
      %330 = arith.mulf %314, %322 : vector<8x128xf32>
      %331 = arith.addf %329, %330 : vector<8x128xf32>
      %332 = math.tanh %331 : vector<8x128xf32>
      %333 = arith.mulf %328, %332 : vector<8x128xf32>
      %334 = arith.index_cast %c7_i32 : i32 to index
      %c0_103 = arith.constant 0 : index
      %c0_104 = arith.constant 0 : index
      %335 = vector.load %arg11[%334, %c0_103, %c0_104] : memref<8x8x128xf32, #tpu.memory_space<vmem>>, vector<1x8x128xf32>
      %336 = vector.shape_cast %335 : vector<1x8x128xf32> to vector<8x128xf32>
      %337 = vector.shape_cast %333 : vector<8x128xf32> to vector<1x8x128xf32>
      tpu.vector_store %arg11[%334, %c0_103, %c0_104], %337 {strides = array<i32>} : memref<8x8x128xf32, #tpu.memory_space<vmem>>, vector<1x8x128xf32>,
      %c8_i32 = arith.constant 8 : i32
      %c0_105 = arith.constant 0 : index
      %c0_106 = arith.constant 0 : index
      %c0_107 = arith.constant 0 : index
      %338 = vector.load %arg8[%c0_105, %c0_106, %c0_107] : memref<1x8x128xf32, #tpu.memory_space<vmem>>, vector<1x8x128xf32>
      %339 = vector.shape_cast %338 : vector<1x8x128xf32> to vector<8x128xf32>
      %340 = vector.shape_cast %333 : vector<8x128xf32> to vector<1x8x128xf32>
      tpu.vector_store %arg8[%c0_105, %c0_106, %c0_107], %340 {strides = array<i32>} : memref<1x8x128xf32, #tpu.memory_space<vmem>>, vector<1x8x128xf32>,
      %c0_108 = arith.constant 0 : index
      %c0_109 = arith.constant 0 : index
      %c0_110 = arith.constant 0 : index
      %341 = vector.load %arg9[%c0_108, %c0_109, %c0_110] : memref<1x8x128xf32, #tpu.memory_space<vmem>>, vector<1x8x128xf32>
      %342 = vector.shape_cast %341 : vector<1x8x128xf32> to vector<8x128xf32>
      %343 = vector.shape_cast %331 : vector<8x128xf32> to vector<1x8x128xf32>
      tpu.vector_store %arg9[%c0_108, %c0_109, %c0_110], %343 {strides = array<i32>} : memref<1x8x128xf32, #tpu.memory_space<vmem>>, vector<1x8x128xf32>,
    } else {
    }
    %c2_i32_33 = arith.constant 2 : i32
    %59 = arith.cmpi eq, %arg0, %c2_i32_33 : i32
    %60 = arith.extui %59 : i1 to i32
    %c0_i32_34 = arith.constant 0 : i32
    %61 = arith.cmpi ne, %60, %c0_i32_34 : i32
    scf.if %61 {
      %c0 = arith.constant 0 : index
      %c0_35 = arith.constant 0 : index
      %c0_36 = arith.constant 0 : index
      %62 = vector.load %arg10[%c0, %c0_35, %c0_36] : memref<8x8x128xf32, #tpu.memory_space<vmem>>, vector<8x8x128xf32>
      %63 = vector.shape_cast %62 : vector<8x8x128xf32> to vector<64x128xf32>
      %c0_37 = arith.constant 0 : index
      %c0_38 = arith.constant 0 : index
      %64 = vector.load %arg5[%c0_37, %c0_38] : memref<128x128xf32, #tpu.memory_space<vmem>>, vector<128x128xf32>
      %cst = arith.constant dense<0.000000e+00> : vector<64x128xf32>
      %65 = tpu.matmul %63, %64, %cst {dimension_numbers = #tpu.dot_dimension_numbers<[1], [0], [0], [1], [0, 0, 1, 1], [], []>} : vector<64x128xf32>, vector<128x128xf32>, vector<64x128xf32> -> vector<64x128xf32>
      %c0_39 = arith.constant 0 : index
      %c0_40 = arith.constant 0 : index
      %66 = vector.load %arg6[%c0_39, %c0_40] : memref<1x128xf32, #tpu.memory_space<vmem>>, vector<1x128xf32>
      %67 = vector.broadcast %66 : vector<1x128xf32> to vector<64x128xf32>
      %68 = arith.addf %65, %67 : vector<64x128xf32>
      %c0_41 = arith.constant 0 : index
      %c0_42 = arith.constant 0 : index
      %69 = vector.load %arg7[%c0_41, %c0_42] : memref<64x128xf32, #tpu.memory_space<vmem>>, vector<64x128xf32>
      tpu.vector_store %arg7[%c0_41, %c0_42], %68 {strides = array<i32>} : memref<64x128xf32, #tpu.memory_space<vmem>>, vector<64x128xf32>,
    } else {
    }
    return
  }
  func.func @transform_0(%arg0: i32) -> (i32, i32, i32) {
    %c0_i32 = arith.constant 0 : i32
    %c0_i32_0 = arith.constant 0 : i32
    %c0_i32_1 = arith.constant 0 : i32
    %c0_i32_2 = arith.constant 0 : i32
    return %c0_i32, %c0_i32_0, %c0_i32_1 : i32, i32, i32
  }
  func.func @transform_1(%arg0: i32) -> (i32, i32, i32) {
    %c0_i32 = arith.constant 0 : i32
    %c0_i32_0 = arith.constant 0 : i32
    %c0_i32_1 = arith.constant 0 : i32
    return %arg0, %c0_i32, %c0_i32_0 : i32, i32, i32
  }
  func.func @transform_2(%arg0: i32) -> (i32, i32, i32) {
    %c0_i32 = arith.constant 0 : i32
    %c0_i32_0 = arith.constant 0 : i32
    %c0_i32_1 = arith.constant 0 : i32
    return %arg0, %c0_i32, %c0_i32_0 : i32, i32, i32
  }
  func.func @transform_3(%arg0: i32) -> (i32, i32, i32) {
    %c0_i32 = arith.constant 0 : i32
    %c0_i32_0 = arith.constant 0 : i32
    %c0_i32_1 = arith.constant 0 : i32
    return %arg0, %c0_i32, %c0_i32_0 : i32, i32, i32
  }
  func.func @transform_4(%arg0: i32) -> (i32, i32) {
    %c0_i32 = arith.constant 0 : i32
    %c0_i32_0 = arith.constant 0 : i32
    %c0_i32_1 = arith.constant 0 : i32
    return %c0_i32, %c0_i32_0 : i32, i32
  }
  func.func @transform_5(%arg0: i32) -> (i32, i32) {
    %c0_i32 = arith.constant 0 : i32
    %c0_i32_0 = arith.constant 0 : i32
    %c0_i32_1 = arith.constant 0 : i32
    return %c0_i32, %c0_i32_0 : i32, i32
  }
  func.func @transform_6(%arg0: i32) -> (i32, i32) {
    %c0_i32 = arith.constant 0 : i32
    %c0_i32_0 = arith.constant 0 : i32
    %c0_i32_1 = arith.constant 0 : i32
    return %c0_i32, %c0_i32_0 : i32, i32
  }
  func.func @transform_7(%arg0: i32) -> (i32, i32, i32) {
    %c0_i32 = arith.constant 0 : i32
    %c0_i32_0 = arith.constant 0 : i32
    %c0_i32_1 = arith.constant 0 : i32
    return %arg0, %c0_i32, %c0_i32_0 : i32, i32, i32
  }
  func.func @transform_8(%arg0: i32) -> (i32, i32, i32) {
    %c0_i32 = arith.constant 0 : i32
    %c0_i32_0 = arith.constant 0 : i32
    %c0_i32_1 = arith.constant 0 : i32
    return %arg0, %c0_i32, %c0_i32_0 : i32, i32, i32
  }
}

</mosaic_0001>

<llo_original>
// kernel: _lambda_.2
$region0: #{_lambda_.2}
  #allocation0 [shape = 'u32[]', space=smem, size = 0x4, offset = 0x4, fixed_abs, tag = 'smem constant byte address 0x4 - core index']
  #allocation1 [shape = 'u32[144,128]{1,0:T(1,128)}', space=vmem, size = 0x12000, scoped, tag = 'internal scratch']
  %s0 = inlined_call_operand.vmem [shape: f32[64,128], index: 0, kind: input, shape index: {}]
  %s1 = inlined_call_operand.hbm [shape: f32[128,512], index: 1, kind: input, shape index: {}]
  %s2 = inlined_call_operand.vmem [shape: f32[64,512], index: 2, kind: output, shape index: {}]
  %s3 = sld [smem:[#allocation0]]
  $region26: #{_lambda_.2} parent=0
    _
  %s5 = ssub.s32 1, %s3
  %s6 = scalar_select 0, %s5, %s3
  $region1: #{_lambda_.2} parent=0
    #allocation2 [shape = 'u8[262144]{0}', space=vmem, size = 0x40000, scoped, tag = 'input window, operand 1, single buffered']
    #allocation3 [shape = 's32[1]{0}', space=sflag, size = 0x4, scoped, tag = 'scoped memory for _lambda_.2']
    %7 = vsyncpa [#allocation3], 0
    // Predicated region
    $region2: #{_lambda_.2} parent=1 // pred_check
      _
    $region3: #{_lambda_.2} parent=1 // pred_check_branch
      %9 = sbr.rel (0) target = $region5
    $region4: #{_lambda_.2} parent=1 // pred_region
      _
    $region5: #{_lambda_.2} parent=1 // pred_fallthru
      _
    // Predicated region
    $region6: #{_lambda_.2} parent=1 // pred_check
      _
    $region7: #{_lambda_.2} parent=1 // pred_check_branch
      %11 = sbr.rel (0) target = $region9
    $region8: #{_lambda_.2} parent=1 // pred_region
      %s13 = ssub.s32 8192, 8192
      %14 = vsyncadd [#allocation3], %s13
      %s15 = sshll.u32 [#allocation2], 4
      %s16 = int_to_ptr.vmem [resolvable:$true] %s15
      %21 = dma.hbm_to_vmem [thread:$0]  %s1, 8192, %s16, [#allocation3], 512, 512, 32
    $region9: #{_lambda_.2} parent=1 // pred_fallthru
      _
    // Predicated region
    $region10: #{_lambda_.2} parent=1 // pred_check
      _
    $region11: #{_lambda_.2} parent=1 // pred_check_branch
      %23 = sbr.rel (0) target = $region13
    $region12: #{_lambda_.2} parent=1 // pred_region
      %24 = dma.done [#allocation3], 8192
    $region13: #{_lambda_.2} parent=1 // pred_fallthru
      _
    %p25 = scmp.eq.s32.totalorder 0, 0
    // Predicated region
    $region14: #{_lambda_.2} parent=1 // pred_check
      %p26 = pneg %p25
    $region15: #{_lambda_.2} parent=1 // pred_check_branch
      %28 = sbr.rel (%p26) target = $region17
    $region16: #{_lambda_.2} parent=1 // pred_region
      %29 = vst [vmem:[%s2] sm:$0xff] 0.0
      %30 = vst [vmem:[%s2 + $0x8] sm:$0xff] 0.0
      %31 = vst [vmem:[%s2 + $0x10] sm:$0xff] 0.0
      %32 = vst [vmem:[%s2 + $0x18] sm:$0xff] 0.0
      %33 = vst [vmem:[%s2 + $0x20] sm:$0xff] 0.0
      %34 = vst [vmem:[%s2 + $0x28] sm:$0xff] 0.0
      %35 = vst [vmem:[%s2 + $0x30] sm:$0xff] 0.0
      %36 = vst [vmem:[%s2 + $0x38] sm:$0xff] 0.0
      %37 = vst [vmem:[%s2 + $0x40] sm:$0xff] 0.0
      %38 = vst [vmem:[%s2 + $0x48] sm:$0xff] 0.0
      %39 = vst [vmem:[%s2 + $0x50] sm:$0xff] 0.0
      %40 = vst [vmem:[%s2 + $0x58] sm:$0xff] 0.0
      %41 = vst [vmem:[%s2 + $0x60] sm:$0xff] 0.0
      %42 = vst [vmem:[%s2 + $0x68] sm:$0xff] 0.0
      %43 = vst [vmem:[%s2 + $0x70] sm:$0xff] 0.0
      %44 = vst [vmem:[%s2 + $0x78] sm:$0xff] 0.0
      %45 = vst [vmem:[%s2 + $0x80] sm:$0xff] 0.0
      %46 = vst [vmem:[%s2 + $0x88] sm:$0xff] 0.0
      %47 = vst [vmem:[%s2 + $0x90] sm:$0xff] 0.0
      %48 = vst [vmem:[%s2 + $0x98] sm:$0xff] 0.0
      %49 = vst [vmem:[%s2 + $0xa0] sm:$0xff] 0.0
      %50 = vst [vmem:[%s2 + $0xa8] sm:$0xff] 0.0
      %51 = vst [vmem:[%s2 + $0xb0] sm:$0xff] 0.0
      %52 = vst [vmem:[%s2 + $0xb8] sm:$0xff] 0.0
      %53 = vst [vmem:[%s2 + $0xc0] sm:$0xff] 0.0
      %54 = vst [vmem:[%s2 + $0xc8] sm:$0xff] 0.0
      %55 = vst [vmem:[%s2 + $0xd0] sm:$0xff] 0.0
      %56 = vst [vmem:[%s2 + $0xd8] sm:$0xff] 0.0
      %57 = vst [vmem:[%s2 + $0xe0] sm:$0xff] 0.0
      %58 = vst [vmem:[%s2 + $0xe8] sm:$0xff] 0.0
      %59 = vst [vmem:[%s2 + $0xf0] sm:$0xff] 0.0
      %60 = vst [vmem:[%s2 + $0xf8] sm:$0xff] 0.0
    $region17: #{_lambda_.2} parent=1 // pred_fallthru
      _
    %v61 = vld [vmem:[%s2] sm:$0xff]
    %v62 = vld [vmem:[%s2 + $0x8] sm:$0xff]
    %v63 = vld [vmem:[%s2 + $0x10] sm:$0xff]
    %v64 = vld [vmem:[%s2 + $0x18] sm:$0xff]
    %v65 = vld [vmem:[%s2 + $0x20] sm:$0xff]
    %v66 = vld [vmem:[%s2 + $0x28] sm:$0xff]
    %v67 = vld [vmem:[%s2 + $0x30] sm:$0xff]
    %v68 = vld [vmem:[%s2 + $0x38] sm:$0xff]
    %v69 = vld [vmem:[%s2 + $0x40] sm:$0xff]
    %v70 = vld [vmem:[%s2 + $0x48] sm:$0xff]
    %v71 = vld [vmem:[%s2 + $0x50] sm:$0xff]
    %v72 = vld [vmem:[%s2 + $0x58] sm:$0xff]
    %v73 = vld [vmem:[%s2 + $0x60] sm:$0xff]
    %v74 = vld [vmem:[%s2 + $0x68] sm:$0xff]
    %v75 = vld [vmem:[%s2 + $0x70] sm:$0xff]
    %v76 = vld [vmem:[%s2 + $0x78] sm:$0xff]
    %v77 = vld [vmem:[%s2 + $0x80] sm:$0xff]
    %v78 = vld [vmem:[%s2 + $0x88] sm:$0xff]
    %v79 = vld [vmem:[%s2 + $0x90] sm:$0xff]
    %v80 = vld [vmem:[%s2 + $0x98] sm:$0xff]
    %v81 = vld [vmem:[%s2 + $0xa0] sm:$0xff]
    %v82 = vld [vmem:[%s2 + $0xa8] sm:$0xff]
    %v83 = vld [vmem:[%s2 + $0xb0] sm:$0xff]
    %v84 = vld [vmem:[%s2 + $0xb8] sm:$0xff]
    %v85 = vld [vmem:[%s2 + $0xc0] sm:$0xff]
    %v86 = vld [vmem:[%s2 + $0xc8] sm:$0xff]
    %v87 = vld [vmem:[%s2 + $0xd0] sm:$0xff]
    %v88 = vld [vmem:[%s2 + $0xd8] sm:$0xff]
    %v89 = vld [vmem:[%s2 + $0xe0] sm:$0xff]
    %v90 = vld [vmem:[%s2 + $0xe8] sm:$0xff]
    %v91 = vld [vmem:[%s2 + $0xf0] sm:$0xff]
    %v92 = vld [vmem:[%s2 + $0xf8] sm:$0xff]
    %v93 = vld [vmem:[%s0] sm:$0xff]
    %v94 = vld [vmem:[%s0 + $0x8] sm:$0xff]
    %v95 = vld [vmem:[%s0 + $0x10] sm:$0xff]
    %v96 = vld [vmem:[%s0 + $0x18] sm:$0xff]
    %v97 = vld [vmem:[%s0 + $0x20] sm:$0xff]
    %v98 = vld [vmem:[%s0 + $0x28] sm:$0xff]
    %v99 = vld [vmem:[%s0 + $0x30] sm:$0xff]
    %v100 = vld [vmem:[%s0 + $0x38] sm:$0xff]
    %v101 = vld [vmem:[#allocation2] sm:$0xff]
    %v102 = vld [vmem:[#allocation2 + $0x8] sm:$0xff]
    %v103 = vld [vmem:[#allocation2 + $0x10] sm:$0xff]
    %v104 = vld [vmem:[#allocation2 + $0x18] sm:$0xff]
    %v105 = vld [vmem:[#allocation2 + $0x20] sm:$0xff]
    %v106 = vld [vmem:[#allocation2 + $0x28] sm:$0xff]
    %v107 = vld [vmem:[#allocation2 + $0x30] sm:$0xff]
    %v108 = vld [vmem:[#allocation2 + $0x38] sm:$0xff]
    %v109 = vld [vmem:[#allocation2 + $0x40] sm:$0xff]
    %v110 = vld [vmem:[#allocation2 + $0x48] sm:$0xff]
    %v111 = vld [vmem:[#allocation2 + $0x50] sm:$0xff]
    %v112 = vld [vmem:[#allocation2 + $0x58] sm:$0xff]
    %v113 = vld [vmem:[#allocation2 + $0x60] sm:$0xff]
    %v114 = vld [vmem:[#allocation2 + $0x68] sm:$0xff]
    %v115 = vld [vmem:[#allocation2 + $0x70] sm:$0xff]
    %v116 = vld [vmem:[#allocation2 + $0x78] sm:$0xff]
    %v117 = vld [vmem:[#allocation2 + $0x80] sm:$0xff]
    %v118 = vld [vmem:[#allocation2 + $0x88] sm:$0xff]
    %v119 = vld [vmem:[#allocation2 + $0x90] sm:$0xff]
    %v120 = vld [vmem:[#allocation2 + $0x98] sm:$0xff]
    %v121 = vld [vmem:[#allocation2 + $0xa0] sm:$0xff]
    %v122 = vld [vmem:[#allocation2 + $0xa8] sm:$0xff]
    %v123 = vld [vmem:[#allocation2 + $0xb0] sm:$0xff]
    %v124 = vld [vmem:[#allocation2 + $0xb8] sm:$0xff]
    %v125 = vld [vmem:[#allocation2 + $0xc0] sm:$0xff]
    %v126 = vld [vmem:[#allocation2 + $0xc8] sm:$0xff]
    %v127 = vld [vmem:[#allocation2 + $0xd0] sm:$0xff]
    %v128 = vld [vmem:[#allocation2 + $0xd8] sm:$0xff]
    %v129 = vld [vmem:[#allocation2 + $0xe0] sm:$0xff]
    %v130 = vld [vmem:[#allocation2 + $0xe8] sm:$0xff]
    %v131 = vld [vmem:[#allocation2 + $0xf0] sm:$0xff]
    %v132 = vld [vmem:[#allocation2 + $0xf8] sm:$0xff]
    %v133 = vld [vmem:[#allocation2 + $0x100] sm:$0xff]
    %v134 = vld [vmem:[#allocation2 + $0x108] sm:$0xff]
    %v135 = vld [vmem:[#allocation2 + $0x110] sm:$0xff]
    %v136 = vld [vmem:[#allocation2 + $0x118] sm:$0xff]
    %v137 = vld [vmem:[#allocation2 + $0x120] sm:$0xff]
    %v138 = vld [vmem:[#allocation2 + $0x128] sm:$0xff]
    %v139 = vld [vmem:[#allocation2 + $0x130] sm:$0xff]
    %v140 = vld [vmem:[#allocation2 + $0x138] sm:$0xff]
    %v141 = vld [vmem:[#allocation2 + $0x140] sm:$0xff]
    %v142 = vld [vmem:[#allocation2 + $0x148] sm:$0xff]
    %v143 = vld [vmem:[#allocation2 + $0x150] sm:$0xff]
    %v144 = vld [vmem:[#allocation2 + $0x158] sm:$0xff]
    %v145 = vld [vmem:[#allocation2 + $0x160] sm:$0xff]
    %v146 = vld [vmem:[#allocation2 + $0x168] sm:$0xff]
    %v147 = vld [vmem:[#allocation2 + $0x170] sm:$0xff]
    %v148 = vld [vmem:[#allocation2 + $0x178] sm:$0xff]
    %v149 = vld [vmem:[#allocation2 + $0x180] sm:$0xff]
    %v150 = vld [vmem:[#allocation2 + $0x188] sm:$0xff]
    %v151 = vld [vmem:[#allocation2 + $0x190] sm:$0xff]
    %v152 = vld [vmem:[#allocation2 + $0x198] sm:$0xff]
    %v153 = vld [vmem:[#allocation2 + $0x1a0] sm:$0xff]
    %v154 = vld [vmem:[#allocation2 + $0x1a8] sm:$0xff]
    %v155 = vld [vmem:[#allocation2 + $0x1b0] sm:$0xff]
    %v156 = vld [vmem:[#allocation2 + $0x1b8] sm:$0xff]
    %v157 = vld [vmem:[#allocation2 + $0x1c0] sm:$0xff]
    %v158 = vld [vmem:[#allocation2 + $0x1c8] sm:$0xff]
    %v159 = vld [vmem:[#allocation2 + $0x1d0] sm:$0xff]
    %v160 = vld [vmem:[#allocation2 + $0x1d8] sm:$0xff]
    %v161 = vld [vmem:[#allocation2 + $0x1e0] sm:$0xff]
    %v162 = vld [vmem:[#allocation2 + $0x1e8] sm:$0xff]
    %v163 = vld [vmem:[#allocation2 + $0x1f0] sm:$0xff]
    %v164 = vld [vmem:[#allocation2 + $0x1f8] sm:$0xff]
    %165 = vmatprep.subr.mxu0 %v102
    %166 = vmatpush1.msra.mxu0 %v101
    %167 = vmatprep.subr.mxu0 %v106
    %168 = vmatpush1.msra.mxu0 %v105
    %169 = vmatprep.subr.mxu0 %v110
    %170 = vmatpush1.msra.mxu0 %v109
    %171 = vmatprep.subr.mxu0 %v114
    %172 = vmatpush1.msra.mxu0 %v113
    %173 = vmatprep.subr.mxu0 %v118
    %174 = vmatpush1.msra.mxu0 %v117
    %175 = vmatprep.subr.mxu0 %v122
    %176 = vmatpush1.msra.mxu0 %v121
    %177 = vmatprep.subr.mxu0 %v126
    %178 = vmatpush1.msra.mxu0 %v125
    %179 = vmatprep.subr.mxu0 %v130
    %180 = vmatpush1.msra.mxu0 %v129
    %181 = vmatprep.subr.mxu0 %v134
    %182 = vmatpush1.msra.mxu0 %v133
    %183 = vmatprep.subr.mxu0 %v138
    %184 = vmatpush1.msra.mxu0 %v137
    %185 = vmatprep.subr.mxu0 %v142
    %186 = vmatpush1.msra.mxu0 %v141
    %187 = vmatprep.subr.mxu0 %v146
    %188 = vmatpush1.msra.mxu0 %v145
    %189 = vmatprep.subr.mxu0 %v150
    %190 = vmatpush1.msra.mxu0 %v149
    %191 = vmatprep.subr.mxu0 %v154
    %192 = vmatpush1.msra.mxu0 %v153
    %193 = vmatprep.subr.mxu0 %v158
    %194 = vmatpush1.msra.mxu0 %v157
    %195 = vmatprep.subr.mxu0 %v162
    %196 = vmatpush1.msra.mxu0 %v161
    %197 = vmatprep.subr.mxu0 0.0
    %198 = vmatpush1.msra.mxu0 0.0
    %199 = vmatprep.subr.mxu0 0.0
    %200 = vmatpush1.msra.mxu0 0.0
    %201 = vmatprep.subr.mxu0 0.0
    %202 = vmatpush1.msra.mxu0 0.0
    %203 = vmatprep.subr.mxu0 0.0
    %204 = vmatpush1.msra.mxu0 0.0
    %205 = vmatprep.subr.mxu0 0.0
    %206 = vmatpush1.msra.mxu0 0.0
    %207 = vmatprep.subr.mxu0 0.0
    %208 = vmatpush1.msra.mxu0 0.0
    %209 = vmatprep.subr.mxu0 0.0
    %210 = vmatpush1.msra.mxu0 0.0
    %211 = vmatprep.subr.mxu0 0.0
    %212 = vmatpush1.msra.mxu0 0.0
    %213 = vmatprep.subr.mxu0 0.0
    %214 = vmatpush1.msra.mxu0 0.0
    %215 = vmatprep.subr.mxu0 0.0
    %216 = vmatpush1.msra.mxu0 0.0
    %217 = vmatprep.subr.mxu0 0.0
    %218 = vmatpush1.msra.mxu0 0.0
    %219 = vmatprep.subr.mxu0 0.0
    %220 = vmatpush1.msra.mxu0 0.0
    %221 = vmatprep.subr.mxu0 0.0
    %222 = vmatpush1.msra.mxu0 0.0
    %223 = vmatprep.subr.mxu0 0.0
    %224 = vmatpush1.msra.mxu0 0.0
    %225 = vmatprep.subr.mxu0 0.0
    %226 = vmatpush1.msra.mxu0 0.0
    %227 = vmatprep.subr.mxu0 0.0
    %228 = vmatpush1.msra.mxu0 0.0
    %229 = vmatprep.mubr.f32.mxu0 0.0
    %230 = vmatmul.mubr.f32.gmra.mrb[0].mxu0 %v93
    %v231 = vpop.f32.mrb[0].mxu0
    %v232 = vadd.f32 0.0, %v231
    %v233 = vpop.f32.mrb[0].mxu0
    %v234 = vadd.f32 0.0, %v233
    %235 = vmatprep.mubr.f32.mxu0 0.0
    %236 = vmatmul.mubr.f32.gmra.mrb[0].mxu0 %v94
    %v237 = vpop.f32.mrb[0].mxu0
    %v238 = vadd.f32 0.0, %v237
    %v239 = vpop.f32.mrb[0].mxu0
    %v240 = vadd.f32 0.0, %v239
    %241 = vmatprep.mubr.f32.mxu0 0.0
    %242 = vmatmul.mubr.f32.gmra.mrb[0].mxu0 %v95
    %v243 = vpop.f32.mrb[0].mxu0
    %v244 = vadd.f32 0.0, %v243
    %v245 = vpop.f32.mrb[0].mxu0
    %v246 = vadd.f32 0.0, %v245
    %247 = vmatprep.mubr.f32.mxu0 0.0
    %248 = vmatmul.mubr.f32.gmra.mrb[0].mxu0 %v96
    %v249 = vpop.f32.mrb[0].mxu0
    %v250 = vadd.f32 0.0, %v249
    %v251 = vpop.f32.mrb[0].mxu0
    %v252 = vadd.f32 0.0, %v251
    %253 = vmatprep.mubr.f32.mxu0 0.0
    %254 = vmatmul.mubr.f32.gmra.mrb[0].mxu0 %v97
    %v255 = vpop.f32.mrb[0].mxu0
    %v256 = vadd.f32 0.0, %v255
    %v257 = vpop.f32.mrb[0].mxu0
    %v258 = vadd.f32 0.0, %v257
    %259 = vmatprep.mubr.f32.mxu0 0.0
    %260 = vmatmul.mubr.f32.gmra.mrb[0].mxu0 %v98
    %v261 = vpop.f32.mrb[0].mxu0
    %v262 = vadd.f32 0.0, %v261
    %v263 = vpop.f32.mrb[0].mxu0
    %v264 = vadd.f32 0.0, %v263
    %265 = vmatprep.mubr.f32.mxu0 0.0
    %266 = vmatmul.mubr.f32.gmra.mrb[0].mxu0 %v99
    %v267 = vpop.f32.mrb[0].mxu0
    %v268 = vadd.f32 0.0, %v267
    %v269 = vpop.f32.mrb[0].mxu0
    %v270 = vadd.f32 0.0, %v269
    %271 = vmatprep.mubr.f32.mxu0 0.0
    %272 = vmatmul.mubr.f32.gmra.mrb[0].mxu0 %v100
    %v273 = vpop.f32.mrb[0].mxu0
    %v274 = vadd.f32 0.0, %v273
    %v275 = vpop.f32.mrb[0].mxu0
    %v276 = vadd.f32 0.0, %v275
    %277 = vdwg.mxu0
    %278 = vmatprep.subr.mxu0 %v104
    %279 = vmatpush1.msra.mxu0 %v103
    %280 = vmatprep.subr.mxu0 %v108
    %281 = vmatpush1.msra.mxu0 %v107
    %282 = vmatprep.subr.mxu0 %v112
    %283 = vmatpush1.msra.mxu0 %v111
    %284 = vmatprep.subr.mxu0 %v116
    %285 = vmatpush1.msra.mxu0 %v115
    %286 = vmatprep.subr.mxu0 %v120
    %287 = vmatpush1.msra.mxu0 %v119
    %288 = vmatprep.subr.mxu0 %v124
    %289 = vmatpush1.msra.mxu0 %v123
    %290 = vmatprep.subr.mxu0 %v128
    %291 = vmatpush1.msra.mxu0 %v127
    %292 = vmatprep.subr.mxu0 %v132
    %293 = vmatpush1.msra.mxu0 %v131
    %294 = vmatprep.subr.mxu0 %v136
    %295 = vmatpush1.msra.mxu0 %v135
    %296 = vmatprep.subr.mxu0 %v140
    %297 = vmatpush1.msra.mxu0 %v139
    %298 = vmatprep.subr.mxu0 %v144
    %299 = vmatpush1.msra.mxu0 %v143
    %300 = vmatprep.subr.mxu0 %v148
    %301 = vmatpush1.msra.mxu0 %v147
    %302 = vmatprep.subr.mxu0 %v152
    %303 = vmatpush1.msra.mxu0 %v151
    %304 = vmatprep.subr.mxu0 %v156
    %305 = vmatpush1.msra.mxu0 %v155
    %306 = vmatprep.subr.mxu0 %v160
    %307 = vmatpush1.msra.mxu0 %v159
    %308 = vmatprep.subr.mxu0 %v164
    %309 = vmatpush1.msra.mxu0 %v163
    %310 = vmatprep.subr.mxu0 0.0
    %311 = vmatpush1.msra.mxu0 0.0
    %312 = vmatprep.subr.mxu0 0.0
    %313 = vmatpush1.msra.mxu0 0.0
    %314 = vmatprep.subr.mxu0 0.0
    %315 = vmatpush1.msra.mxu0 0.0
    %316 = vmatprep.subr.mxu0 0.0
    %317 = vmatpush1.msra.mxu0 0.0
    %318 = vmatprep.subr.mxu0 0.0
    %319 = vmatpush1.msra.mxu0 0.0
    %320 = vmatprep.subr.mxu0 0.0
    %321 = vmatpush1.msra.mxu0 0.0
    %322 = vmatprep.subr.mxu0 0.0
    %323 = vmatpush1.msra.mxu0 0.0
    %324 = vmatprep.subr.mxu0 0.0
    %325 = vmatpush1.msra.mxu0 0.0
    %326 = vmatprep.subr.mxu0 0.0
    %327 = vmatpush1.msra.mxu0 0.0
    %328 = vmatprep.subr.mxu0 0.0
    %329 = vmatpush1.msra.mxu0 0.0
    %330 = vmatprep.subr.mxu0 0.0
    %331 = vmatpush1.msra.mxu0 0.0
    %332 = vmatprep.subr.mxu0 0.0
    %333 = vmatpush1.msra.mxu0 0.0
    %334 = vmatprep.subr.mxu0 0.0
    %335 = vmatpush1.msra.mxu0 0.0
    %336 = vmatprep.subr.mxu0 0.0
    %337 = vmatpush1.msra.mxu0 0.0
    %338 = vmatprep.subr.mxu0 0.0
    %339 = vmatpush1.msra.mxu0 0.0
    %340 = vmatprep.subr.mxu0 0.0
    %341 = vmatpush1.msra.mxu0 0.0
    %342 = vmatprep.mubr.f32.mxu0 0.0
    %343 = vmatmul.mubr.f32.gmra.mrb[0].mxu0 %v93
    %v344 = vpop.f32.mrb[0].mxu0
    %v345 = vadd.f32 0.0, %v344
    %v346 = vpop.f32.mrb[0].mxu0
    %v347 = vadd.f32 0.0, %v346
    %348 = vmatprep.mubr.f32.mxu0 0.0
    %349 = vmatmul.mubr.f32.gmra.mrb[0].mxu0 %v94
    %v350 = vpop.f32.mrb[0].mxu0
    %v351 = vadd.f32 0.0, %v350
    %v352 = vpop.f32.mrb[0].mxu0
    %v353 = vadd.f32 0.0, %v352
    %354 = vmatprep.mubr.f32.mxu0 0.0
    %355 = vmatmul.mubr.f32.gmra.mrb[0].mxu0 %v95
    %v356 = vpop.f32.mrb[0].mxu0
    %v357 = vadd.f32 0.0, %v356
    %v358 = vpop.f32.mrb[0].mxu0
    %v359 = vadd.f32 0.0, %v358
    %360 = vmatprep.mubr.f32.mxu0 0.0
    %361 = vmatmul.mubr.f32.gmra.mrb[0].mxu0 %v96
    %v362 = vpop.f32.mrb[0].mxu0
    %v363 = vadd.f32 0.0, %v362
    %v364 = vpop.f32.mrb[0].mxu0
    %v365 = vadd.f32 0.0, %v364
    %366 = vmatprep.mubr.f32.mxu0 0.0
    %367 = vmatmul.mubr.f32.gmra.mrb[0].mxu0 %v97
    %v368 = vpop.f32.mrb[0].mxu0
    %v369 = vadd.f32 0.0, %v368
    %v370 = vpop.f32.mrb[0].mxu0
    %v371 = vadd.f32 0.0, %v370
    %372 = vmatprep.mubr.f32.mxu0 0.0
    %373 = vmatmul.mubr.f32.gmra.mrb[0].mxu0 %v98
    %v374 = vpop.f32.mrb[0].mxu0
    %v375 = vadd.f32 0.0, %v374
    %v376 = vpop.f32.mrb[0].mxu0
    %v377 = vadd.f32 0.0, %v376
    %378 = vmatprep.mubr.f32.mxu0 0.0
    %379 = vmatmul.mubr.f32.gmra.mrb[0].mxu0 %v99
    %v380 = vpop.f32.mrb[0].mxu0
    %v381 = vadd.f32 0.0, %v380
    %v382 = vpop.f32.mrb[0].mxu0
    %v383 = vadd.f32 0.0, %v382
    %384 = vmatprep.mubr.f32.mxu0 0.0
    %385 = vmatmul.mubr.f32.gmra.mrb[0].mxu0 %v100
    %v386 = vpop.f32.mrb[0].mxu0
    %v387 = vadd.f32 0.0, %v386
    %v388 = vpop.f32.mrb[0].mxu0
    %v389 = vadd.f32 0.0, %v388
    %390 = vdwg.mxu0
    %v391 = vadd.f32 %v61, %v232
    %v392 = vadd.f32 %v62, %v234
    %v393 = vadd.f32 %v63, %v345
    %v394 = vadd.f32 %v64, %v347
    %v395 = vadd.f32 %v65, %v238
    %v396 = vadd.f32 %v66, %v240
    %v397 = vadd.f32 %v67, %v351
    %v398 = vadd.f32 %v68, %v353
    %v399 = vadd.f32 %v69, %v244
    %v400 = vadd.f32 %v70, %v246
    %v401 = vadd.f32 %v71, %v357
    %v402 = vadd.f32 %v72, %v359
    %v403 = vadd.f32 %v73, %v250
    %v404 = vadd.f32 %v74, %v252
    %v405 = vadd.f32 %v75, %v363
    %v406 = vadd.f32 %v76, %v365
    %v407 = vadd.f32 %v77, %v256
    %v408 = vadd.f32 %v78, %v258
    %v409 = vadd.f32 %v79, %v369
    %v410 = vadd.f32 %v80, %v371
    %v411 = vadd.f32 %v81, %v262
    %v412 = vadd.f32 %v82, %v264
    %v413 = vadd.f32 %v83, %v375
    %v414 = vadd.f32 %v84, %v377
    %v415 = vadd.f32 %v85, %v268
    %v416 = vadd.f32 %v86, %v270
    %v417 = vadd.f32 %v87, %v381
    %v418 = vadd.f32 %v88, %v383
    %v419 = vadd.f32 %v89, %v274
    %v420 = vadd.f32 %v90, %v276
    %v421 = vadd.f32 %v91, %v387
    %v422 = vadd.f32 %v92, %v389
    %423 = vst [vmem:[%s2] sm:$0xff] %v391
    %424 = vst [vmem:[%s2 + $0x8] sm:$0xff] %v392
    %425 = vst [vmem:[%s2 + $0x10] sm:$0xff] %v393
    %426 = vst [vmem:[%s2 + $0x18] sm:$0xff] %v394
    %427 = vst [vmem:[%s2 + $0x20] sm:$0xff] %v395
    %428 = vst [vmem:[%s2 + $0x28] sm:$0xff] %v396
    %429 = vst [vmem:[%s2 + $0x30] sm:$0xff] %v397
    %430 = vst [vmem:[%s2 + $0x38] sm:$0xff] %v398
    %431 = vst [vmem:[%s2 + $0x40] sm:$0xff] %v399
    %432 = vst [vmem:[%s2 + $0x48] sm:$0xff] %v400
    %433 = vst [vmem:[%s2 + $0x50] sm:$0xff] %v401
    %434 = vst [vmem:[%s2 + $0x58] sm:$0xff] %v402
    %435 = vst [vmem:[%s2 + $0x60] sm:$0xff] %v403
    %436 = vst [vmem:[%s2 + $0x68] sm:$0xff] %v404
    %437 = vst [vmem:[%s2 + $0x70] sm:$0xff] %v405
    %438 = vst [vmem:[%s2 + $0x78] sm:$0xff] %v406
    %439 = vst [vmem:[%s2 + $0x80] sm:$0xff] %v407
    %440 = vst [vmem:[%s2 + $0x88] sm:$0xff] %v408
    %441 = vst [vmem:[%s2 + $0x90] sm:$0xff] %v409
    %442 = vst [vmem:[%s2 + $0x98] sm:$0xff] %v410
    %443 = vst [vmem:[%s2 + $0xa0] sm:$0xff] %v411
    %444 = vst [vmem:[%s2 + $0xa8] sm:$0xff] %v412
    %445 = vst [vmem:[%s2 + $0xb0] sm:$0xff] %v413
    %446 = vst [vmem:[%s2 + $0xb8] sm:$0xff] %v414
    %447 = vst [vmem:[%s2 + $0xc0] sm:$0xff] %v415
    %448 = vst [vmem:[%s2 + $0xc8] sm:$0xff] %v416
    %449 = vst [vmem:[%s2 + $0xd0] sm:$0xff] %v417
    %450 = vst [vmem:[%s2 + $0xd8] sm:$0xff] %v418
    %451 = vst [vmem:[%s2 + $0xe0] sm:$0xff] %v419
    %452 = vst [vmem:[%s2 + $0xe8] sm:$0xff] %v420
    %453 = vst [vmem:[%s2 + $0xf0] sm:$0xff] %v421
    %454 = vst [vmem:[%s2 + $0xf8] sm:$0xff] %v422
    // Predicated region
    $region18: #{_lambda_.2} parent=1 // pred_check
      _
    $region19: #{_lambda_.2} parent=1 // pred_check_branch
      %456 = sbr.rel (0) target = $region21
    $region20: #{_lambda_.2} parent=1 // pred_region
      _
    $region21: #{_lambda_.2} parent=1 // pred_fallthru
      _
    // Predicated region
    $region22: #{_lambda_.2} parent=1 // pred_check
      _
    $region23: #{_lambda_.2} parent=1 // pred_check_branch
      %458 = sbr.rel (0) target = $region25
    $region24: #{_lambda_.2} parent=1 // pred_region
      _
    $region25: #{_lambda_.2} parent=1 // pred_fallthru
      _
    %459 = vsyncpa [#allocation3], 1

// kernel: _lambda_.3
$region0: #{_lambda_.3}
  #allocation0 [shape = 'u32[]', space=smem, size = 0x4, offset = 0x4, fixed_abs, tag = 'smem constant byte address 0x4 - core index']
  #allocation1 [shape = 'u32[144,128]{1,0:T(1,128)}', space=vmem, size = 0x12000, scoped, tag = 'internal scratch']
  #allocation2 [shape = 'f32[8,8,128]{2,1,0:T(8,128)}', space=vmem, size = 0x8000, scoped, tag = 'scratch operand']
  #allocation3 [shape = 'f32[8,8,128]{2,1,0:T(8,128)}', space=vmem, size = 0x8000, scoped, tag = 'scratch operand']
  #allocation4 [shape = 'f32[8,8,512]{2,1,0:T(8,128)}', space=vmem, size = 0x20000, scoped, tag = 'scratch operand']
  %s0 = inlined_call_operand.vmem [shape: f32[8,8,512], index: 0, kind: input, shape index: {}]
  %s1 = inlined_call_operand.hbm [shape: f32[3,128,512], index: 1, kind: input, shape index: {}]
  %s2 = inlined_call_operand.hbm [shape: f32[3,128,512], index: 2, kind: input, shape index: {}]
  %s3 = inlined_call_operand.vmem [shape: f32[3,1,512], index: 3, kind: input, shape index: {}]
  %s4 = inlined_call_operand.vmem [shape: f32[128,128], index: 4, kind: input, shape index: {}]
  %s5 = inlined_call_operand.vmem [shape: f32[1,128], index: 5, kind: input, shape index: {}]
  %s6 = inlined_call_operand.vmem [shape: f32[64,128], index: 6, kind: output, shape index: {0}]
  %s7 = inlined_call_operand.vmem [shape: f32[3,8,128], index: 7, kind: output, shape index: {1}]
  %s8 = inlined_call_operand.vmem [shape: f32[3,8,128], index: 8, kind: output, shape index: {2}]
  %9 = xla_tuple %s6, %s7, %s8
  %s10 = sld [smem:[#allocation0]]
  $region105: #{_lambda_.3} parent=0
    _
  %s12 = ssub.s32 1, %s10
  %s13 = scalar_select 0, %s12, %s10
  $region1: #{_lambda_.3} parent=0
    #allocation5 [shape = 'u8[524288]{0}', space=vmem, size = 0x80000, scoped, tag = 'input window, operand 1']
    #allocation6 [shape = 's32[2]{0}', space=sflag, size = 0x8, scoped, tag = 'scoped memory for _lambda_.3']
    #allocation7 [shape = 'u8[524288]{0}', space=vmem, size = 0x80000, scoped, tag = 'input window, operand 2']
    #allocation8 [shape = 's32[2]{0}', space=sflag, size = 0x8, scoped, tag = 'scoped memory for _lambda_.3']
    %14 = vsyncpa [#allocation6], 0
    %s15 = scalar_lea.sflag [#allocation6], 1
    %16 = vsyncpa %s15, 0
    %17 = vsyncpa [#allocation8], 0
    %s18 = scalar_lea.sflag [#allocation8], 1
    %19 = vsyncpa %s18, 0
    loop: start=0, step=1, limit=5
    $region2: #{_lambda_.3} parent=1 // loop_pre_header
      _
    $region3: #{_lambda_.3} parent=1 // loop_header
      %s21 = sphi 0, %s25
      %p22 = scmp.ge.s32.totalorder %s21, 5
      %s29 = sphi 0, %s29
      %s31 = sphi 0, %s29
      %s32 = sphi 0, %s31
      %s46 = sphi 0, %s32
      %s52 = sphi 0, %s54
      %s55 = sphi 0, %s52
      %s56 = sphi 0, %s55
      %s72 = sphi 0, %s56
      %s78 = sphi 0, %s80
      %s81 = sphi 0, %s78
      %s82 = sphi 0, %s81
      %s98 = sphi 0, %s82
      %s104 = sphi 0, %s106
      %s107 = sphi 0, %s104
      %s108 = sphi 0, %s107
      %s124 = sphi 0, %s108
      %s128 = sphi 0, %s128
      %s130 = sphi 0, %s128
      %s131 = sphi 0, %s130
      %s145 = sphi 0, %s131
      %s149 = sphi 0, %s149
      %s151 = sphi 0, %s149
      %s152 = sphi 0, %s151
      %s166 = sphi 0, %s152
      %s170 = sphi 0, %s170
      %s172 = sphi 0, %s170
      %s173 = sphi 0, %s172
      %s187 = sphi 0, %s173
      %s193 = sphi 0, %s195
      %s196 = sphi 0, %s193
      %s197 = sphi 0, %s196
      %s213 = sphi 0, %s197
      %s219 = sphi 0, %s221
      %s222 = sphi 0, %s219
      %s223 = sphi 0, %s222
      %s239 = sphi 0, %s223
    $region4: #{_lambda_.3} parent=1 // loop_header_branch
      %24 = sbr.rel (%p22) target = $region8
    $region5: #{_lambda_.3} parent=1 // loop_body
      %s26 = ssub.s32 %s21, 1
      %s27 = ssub.s32 %s21, 2
      %s28 = sadd.s32 %s21, 1
      %s30 = sadd.s32 %s29, 1
      %p33 = scmp.eq.s32.totalorder %s21, 2
      %p34 = scmp.ne.s32.totalorder %s29, %s31
      %p35 = scmp.eq.s32.totalorder %s21, 0
      %p36 = por %p34, %p35
      %p37 = scmp.ne.s32.totalorder %s29, %s31
      %p38 = scmp.eq.s32.totalorder %s26, 2
      %p39 = por %p37, %p38
      %p40 = scmp.ne.s32.totalorder %s31, %s32
      %p41 = scmp.eq.s32.totalorder %s26, 0
      %p42 = por %p40, %p41
      %p43 = scmp.ne.s32.totalorder %s31, %s32
      %p44 = scmp.eq.s32.totalorder %s27, 2
      %p45 = por %p43, %p44
      %p47 = scmp.ne.s32.totalorder %s32, %s46
      %p48 = scmp.eq.s32.totalorder %s27, 0
      %p49 = por %p47, %p48
      %s50 = ssub.s32 %s21, %s28
      %p51 = scmp.eq.s32.totalorder %s50, 0
      %s53 = sadd.s32 %s52, 1
      %s54 = scalar_select %p51, %s52, %s53
      %p57 = pneg %p51
      %p58 = scmp.eq.s32.totalorder %s21, 2
      %p59 = por %p57, %p58
      %p60 = scmp.ne.s32.totalorder %s52, %s55
      %p61 = scmp.eq.s32.totalorder %s21, 0
      %p62 = por %p60, %p61
      %p63 = scmp.ne.s32.totalorder %s52, %s55
      %p64 = scmp.eq.s32.totalorder %s26, 2
      %p65 = por %p63, %p64
      %p66 = scmp.ne.s32.totalorder %s55, %s56
      %p67 = scmp.eq.s32.totalorder %s26, 0
      %p68 = por %p66, %p67
      %p69 = scmp.ne.s32.totalorder %s55, %s56
      %p70 = scmp.eq.s32.totalorder %s27, 2
      %p71 = por %p69, %p70
      %p73 = scmp.ne.s32.totalorder %s56, %s72
      %p74 = scmp.eq.s32.totalorder %s27, 0
      %p75 = por %p73, %p74
      %s76 = ssub.s32 %s21, %s28
      %p77 = scmp.eq.s32.totalorder %s76, 0
      %s79 = sadd.s32 %s78, 1
      %s80 = scalar_select %p77, %s78, %s79
      %p83 = pneg %p77
      %p84 = scmp.eq.s32.totalorder %s21, 2
      %p85 = por %p83, %p84
      %p86 = scmp.ne.s32.totalorder %s78, %s81
      %p87 = scmp.eq.s32.totalorder %s21, 0
      %p88 = por %p86, %p87
      %p89 = scmp.ne.s32.totalorder %s78, %s81
      %p90 = scmp.eq.s32.totalorder %s26, 2
      %p91 = por %p89, %p90
      %p92 = scmp.ne.s32.totalorder %s81, %s82
      %p93 = scmp.eq.s32.totalorder %s26, 0
      %p94 = por %p92, %p93
      %p95 = scmp.ne.s32.totalorder %s81, %s82
      %p96 = scmp.eq.s32.totalorder %s27, 2
      %p97 = por %p95, %p96
      %p99 = scmp.ne.s32.totalorder %s82, %s98
      %p100 = scmp.eq.s32.totalorder %s27, 0
      %p101 = por %p99, %p100
      %s102 = ssub.s32 %s21, %s28
      %p103 = scmp.eq.s32.totalorder %s102, 0
      %s105 = sadd.s32 %s104, 1
      %s106 = scalar_select %p103, %s104, %s105
      %p109 = pneg %p103
      %p110 = scmp.eq.s32.totalorder %s21, 2
      %p111 = por %p109, %p110
      %p112 = scmp.ne.s32.totalorder %s104, %s107
      %p113 = scmp.eq.s32.totalorder %s21, 0
      %p114 = por %p112, %p113
      %p115 = scmp.ne.s32.totalorder %s104, %s107
      %p116 = scmp.eq.s32.totalorder %s26, 2
      %p117 = por %p115, %p116
      %p118 = scmp.ne.s32.totalorder %s107, %s108
      %p119 = scmp.eq.s32.totalorder %s26, 0
      %p120 = por %p118, %p119
      %p121 = scmp.ne.s32.totalorder %s107, %s108
      %p122 = scmp.eq.s32.totalorder %s27, 2
      %p123 = por %p121, %p122
      %p125 = scmp.ne.s32.totalorder %s108, %s124
      %p126 = scmp.eq.s32.totalorder %s27, 0
      %p127 = por %p125, %p126
      %s129 = sadd.s32 %s128, 1
      %p132 = scmp.eq.s32.totalorder %s21, 2
      %p133 = scmp.ne.s32.totalorder %s128, %s130
      %p134 = scmp.eq.s32.totalorder %s21, 0
      %p135 = por %p133, %p134
      %p136 = scmp.ne.s32.totalorder %s128, %s130
      %p137 = scmp.eq.s32.totalorder %s26, 2
      %p138 = por %p136, %p137
      %p139 = scmp.ne.s32.totalorder %s130, %s131
      %p140 = scmp.eq.s32.totalorder %s26, 0
      %p141 = por %p139, %p140
      %p142 = scmp.ne.s32.totalorder %s130, %s131
      %p143 = scmp.eq.s32.totalorder %s27, 2
      %p144 = por %p142, %p143
      %p146 = scmp.ne.s32.totalorder %s131, %s145
      %p147 = scmp.eq.s32.totalorder %s27, 0
      %p148 = por %p146, %p147
      %s150 = sadd.s32 %s149, 1
      %p153 = scmp.eq.s32.totalorder %s21, 2
      %p154 = scmp.ne.s32.totalorder %s149, %s151
      %p155 = scmp.eq.s32.totalorder %s21, 0
      %p156 = por %p154, %p155
      %p157 = scmp.ne.s32.totalorder %s149, %s151
      %p158 = scmp.eq.s32.totalorder %s26, 2
      %p159 = por %p157, %p158
      %p160 = scmp.ne.s32.totalorder %s151, %s152
      %p161 = scmp.eq.s32.totalorder %s26, 0
      %p162 = por %p160, %p161
      %p163 = scmp.ne.s32.totalorder %s151, %s152
      %p164 = scmp.eq.s32.totalorder %s27, 2
      %p165 = por %p163, %p164
      %p167 = scmp.ne.s32.totalorder %s152, %s166
      %p168 = scmp.eq.s32.totalorder %s27, 0
      %p169 = por %p167, %p168
      %s171 = sadd.s32 %s170, 1
      %p174 = scmp.eq.s32.totalorder %s21, 2
      %p175 = scmp.ne.s32.totalorder %s170, %s172
      %p176 = scmp.eq.s32.totalorder %s21, 0
      %p177 = por %p175, %p176
      %p178 = scmp.ne.s32.totalorder %s170, %s172
      %p179 = scmp.eq.s32.totalorder %s26, 2
      %p180 = por %p178, %p179
      %p181 = scmp.ne.s32.totalorder %s172, %s173
      %p182 = scmp.eq.s32.totalorder %s26, 0
      %p183 = por %p181, %p182
      %p184 = scmp.ne.s32.totalorder %s172, %s173
      %p185 = scmp.eq.s32.totalorder %s27, 2
      %p186 = por %p184, %p185
      %p188 = scmp.ne.s32.totalorder %s173, %s187
      %p189 = scmp.eq.s32.totalorder %s27, 0
      %p190 = por %p188, %p189
      %s191 = ssub.s32 %s21, %s28
      %p192 = scmp.eq.s32.totalorder %s191, 0
      %s194 = sadd.s32 %s193, 1
      %s195 = scalar_select %p192, %s193, %s194
      %p198 = pneg %p192
      %p199 = scmp.eq.s32.totalorder %s21, 2
      %p200 = por %p198, %p199
      %p201 = scmp.ne.s32.totalorder %s193, %s196
      %p202 = scmp.eq.s32.totalorder %s21, 0
      %p203 = por %p201, %p202
      %p204 = scmp.ne.s32.totalorder %s193, %s196
      %p205 = scmp.eq.s32.totalorder %s26, 2
      %p206 = por %p204, %p205
      %p207 = scmp.ne.s32.totalorder %s196, %s197
      %p208 = scmp.eq.s32.totalorder %s26, 0
      %p209 = por %p207, %p208
      %p210 = scmp.ne.s32.totalorder %s196, %s197
      %p211 = scmp.eq.s32.totalorder %s27, 2
      %p212 = por %p210, %p211
      %p214 = scmp.ne.s32.totalorder %s197, %s213
      %p215 = scmp.eq.s32.totalorder %s27, 0
      %p216 = por %p214, %p215
      %s217 = ssub.s32 %s21, %s28
      %p218 = scmp.eq.s32.totalorder %s217, 0
      %s220 = sadd.s32 %s219, 1
      %s221 = scalar_select %p218, %s219, %s220
      %p224 = pneg %p218
      %p225 = scmp.eq.s32.totalorder %s21, 2
      %p226 = por %p224, %p225
      %p227 = scmp.ne.s32.totalorder %s219, %s222
      %p228 = scmp.eq.s32.totalorder %s21, 0
      %p229 = por %p227, %p228
      %p230 = scmp.ne.s32.totalorder %s219, %s222
      %p231 = scmp.eq.s32.totalorder %s26, 2
      %p232 = por %p230, %p231
      %p233 = scmp.ne.s32.totalorder %s222, %s223
      %p234 = scmp.eq.s32.totalorder %s26, 0
      %p235 = por %p233, %p234
      %p236 = scmp.ne.s32.totalorder %s222, %s223
      %p237 = scmp.eq.s32.totalorder %s27, 2
      %p238 = por %p236, %p237
      %p240 = scmp.ne.s32.totalorder %s223, %s239
      %p241 = scmp.eq.s32.totalorder %s27, 0
      %p242 = por %p240, %p241
      %p243 = scmp.le.s32.totalorder 1, %s21
      %p244 = scmp.lt.s32.totalorder %s21, 4
      %p245 = pnand %p243, %p244
      %p246 = pneg %p245
      // Predicated region
      $region9: #{_lambda_.3} parent=5 // pred_check
        _
      $region10: #{_lambda_.3} parent=5 // pred_check_branch
        %248 = sbr.rel (%p245) target = $region12
      $region11: #{_lambda_.3} parent=5 // pred_region
        %s249 = ssub.s32 %s21, 1
        // Predicated region
        $region13: #{_lambda_.3} parent=11 // pred_check
          %p250 = pneg %p42
        $region14: #{_lambda_.3} parent=11 // pred_check_branch
          %252 = sbr.rel (%p250) target = $region16
        $region15: #{_lambda_.3} parent=11 // pred_region
          _
        $region16: #{_lambda_.3} parent=11 // pred_fallthru
          _
        // Predicated region
        $region17: #{_lambda_.3} parent=11 // pred_check
          %p253 = pneg %p141
        $region18: #{_lambda_.3} parent=11 // pred_check_branch
          %255 = sbr.rel (%p253) target = $region20
        $region19: #{_lambda_.3} parent=11 // pred_region
          _
        $region20: #{_lambda_.3} parent=11 // pred_fallthru
          _
        // Predicated region
        $region21: #{_lambda_.3} parent=11 // pred_check
          %p256 = pneg %p162
        $region22: #{_lambda_.3} parent=11 // pred_check_branch
          %258 = sbr.rel (%p256) target = $region24
        $region23: #{_lambda_.3} parent=11 // pred_region
          _
        $region24: #{_lambda_.3} parent=11 // pred_fallthru
          _
      $region12: #{_lambda_.3} parent=5 // pred_fallthru
        _
      %p259 = scmp.lt.s32.totalorder %s21, 3
      // Predicated region
      $region25: #{_lambda_.3} parent=5 // pred_check
        %p260 = pneg %p259
      $region26: #{_lambda_.3} parent=5 // pred_check_branch
        %262 = sbr.rel (%p260) target = $region28
      $region27: #{_lambda_.3} parent=5 // pred_region
        // Predicated region
        $region29: #{_lambda_.3} parent=27 // pred_check
          %p263 = pneg %p62
        $region30: #{_lambda_.3} parent=27 // pred_check_branch
          %265 = sbr.rel (%p263) target = $region32
        $region31: #{_lambda_.3} parent=27 // pred_region
          %s266 = sand.u32 %s52, 1
          %s267 = scalar_lea.sflag [#allocation6], %s266
          %s268 = sand.u32 %s52, 1
          %s269 = smul.addr %s268, 512
          %s270 = scalar_lea.vmem [#allocation5], %s269
          %s272 = ssub.s32 8192, 8192
          %273 = vsyncadd %s267, %s272
          %s274 = smul.addr %s21, 64
          %s275 = smul.addr %s274, 128
          %s276 = scalar_lea.hbm %s1, %s275
          %s277 = sshll.u32 %s270, 4
          %s278 = int_to_ptr.vmem [resolvable:$true] %s277
          %283 = dma.hbm_to_vmem [thread:$0]  %s276, 8192, %s278, %s267, 512, 512, 32
        $region32: #{_lambda_.3} parent=27 // pred_fallthru
          _
        // Predicated region
        $region33: #{_lambda_.3} parent=27 // pred_check
          %p284 = pneg %p88
        $region34: #{_lambda_.3} parent=27 // pred_check_branch
          %286 = sbr.rel (%p284) target = $region36
        $region35: #{_lambda_.3} parent=27 // pred_region
          %s287 = sand.u32 %s78, 1
          %s288 = scalar_lea.sflag [#allocation8], %s287
          %s289 = sand.u32 %s78, 1
          %s290 = smul.addr %s289, 512
          %s291 = scalar_lea.vmem [#allocation7], %s290
          %s293 = ssub.s32 8192, 8192
          %294 = vsyncadd %s288, %s293
          %s295 = smul.addr %s21, 64
          %s296 = smul.addr %s295, 128
          %s297 = scalar_lea.hbm %s2, %s296
          %s298 = sshll.u32 %s291, 4
          %s299 = int_to_ptr.vmem [resolvable:$true] %s298
          %304 = dma.hbm_to_vmem [thread:$0]  %s297, 8192, %s299, %s288, 512, 512, 32
        $region36: #{_lambda_.3} parent=27 // pred_fallthru
          _
        // Predicated region
        $region37: #{_lambda_.3} parent=27 // pred_check
          %p305 = pneg %p114
        $region38: #{_lambda_.3} parent=27 // pred_check_branch
          %307 = sbr.rel (%p305) target = $region40
        $region39: #{_lambda_.3} parent=27 // pred_region
          %p308 = scmp.lt.s32.totalorder %s21, 2
          %s309 = scalar_select %p308, %s21, 2
          %s310 = smul.addr %s309, 4
          %s311 = scalar_lea.vmem %s3, %s310
        $region40: #{_lambda_.3} parent=27 // pred_fallthru
          _
      $region28: #{_lambda_.3} parent=5 // pred_fallthru
        _
      %p312 = scmp.le.s32.totalorder 1, %s21
      %p313 = scmp.lt.s32.totalorder %s21, 4
      %p314 = pnand %p312, %p313
      %p315 = pneg %p314
      // Predicated region
      $region41: #{_lambda_.3} parent=5 // pred_check
        _
      $region42: #{_lambda_.3} parent=5 // pred_check_branch
        %317 = sbr.rel (%p314) target = $region44
      $region43: #{_lambda_.3} parent=5 // pred_region
        %s318 = ssub.s32 %s21, 1
        %s319 = sand.u32 %s55, 1
        %s320 = scalar_lea.sflag [#allocation6], %s319
        %s321 = sand.u32 %s55, 1
        %s322 = smul.addr %s321, 512
        %s323 = scalar_lea.vmem [#allocation5], %s322
        // Predicated region
        $region45: #{_lambda_.3} parent=43 // pred_check
          %p324 = pneg %p68
        $region46: #{_lambda_.3} parent=43 // pred_check_branch
          %326 = sbr.rel (%p324) target = $region48
        $region47: #{_lambda_.3} parent=43 // pred_region
          %327 = dma.done %s320, 8192
        $region48: #{_lambda_.3} parent=43 // pred_fallthru
          _
        %s328 = sand.u32 %s81, 1
        %s329 = scalar_lea.sflag [#allocation8], %s328
        %s330 = sand.u32 %s81, 1
        %s331 = smul.addr %s330, 512
        %s332 = scalar_lea.vmem [#allocation7], %s331
        // Predicated region
        $region49: #{_lambda_.3} parent=43 // pred_check
          %p333 = pneg %p94
        $region50: #{_lambda_.3} parent=43 // pred_check_branch
          %335 = sbr.rel (%p333) target = $region52
        $region51: #{_lambda_.3} parent=43 // pred_region
          %336 = dma.done %s329, 8192
        $region52: #{_lambda_.3} parent=43 // pred_fallthru
          _
        %p337 = pneg %p42
        %p338 = pneg %p39
        %s339 = sand.u32 %s55, 1
        %s340 = scalar_lea.sflag [#allocation6], %s339
        %s341 = sand.u32 %s55, 1
        %s342 = smul.addr %s341, 512
        %s343 = scalar_lea.vmem [#allocation5], %s342
        %p344 = pneg %p68
        %p345 = pneg %p65
        %s346 = sand.u32 %s81, 1
        %s347 = scalar_lea.sflag [#allocation8], %s346
        %s348 = sand.u32 %s81, 1
        %s349 = smul.addr %s348, 512
        %s350 = scalar_lea.vmem [#allocation7], %s349
        %p351 = pneg %p94
        %p352 = pneg %p91
        %p353 = scmp.lt.s32.totalorder %s26, 2
        %s354 = scalar_select %p353, %s26, 2
        %s355 = smul.addr %s354, 4
        %s356 = scalar_lea.vmem %s3, %s355
        %p357 = pneg %p120
        %p358 = pneg %p117
        %p359 = pneg %p141
        %p360 = pneg %p138
        %p361 = pneg %p162
        %p362 = pneg %p159
        %p363 = pneg %p183
        %p364 = pneg %p180
        %p365 = pneg %p209
        %p366 = pneg %p206
        %p367 = scmp.lt.s32.totalorder %s26, 2
        %s368 = scalar_select %p367, %s26, 2
        %s369 = smul.addr %s368, 8
        %s370 = scalar_lea.vmem %s7, %s369
        %p371 = pneg %p235
        %p372 = pneg %p232
        %p373 = scmp.lt.s32.totalorder %s26, 2
        %s374 = scalar_select %p373, %s26, 2
        %s375 = smul.addr %s374, 8
        %s376 = scalar_lea.vmem %s8, %s375
        %p377 = scmp.lt.s32.totalorder %s26, 2
        %s378 = scalar_select %p377, %s26, 2
        %s379 = smul.addr %s378, 4
        %s380 = scalar_lea.vmem %s3, %s379
        %p381 = scmp.lt.s32.totalorder %s26, 2
        %s382 = scalar_select %p381, %s26, 2
        %s383 = smul.addr %s382, 8
        %s384 = scalar_lea.vmem %s7, %s383
        %p385 = scmp.lt.s32.totalorder %s26, 2
        %s386 = scalar_select %p385, %s26, 2
        %s387 = smul.addr %s386, 8
        %s388 = scalar_lea.vmem %s8, %s387
        %p389 = scmp.eq.s32.totalorder %s26, 0
        // Predicated region
        $region53: #{_lambda_.3} parent=43 // pred_check
          %p390 = pneg %p389
        $region54: #{_lambda_.3} parent=43 // pred_check_branch
          %392 = sbr.rel (%p390) target = $region56
        $region55: #{_lambda_.3} parent=43 // pred_region
          %v393 = vld [vmem:[%s0] sm:$0xff]
          %v394 = vld [vmem:[%s0 + $0x8] sm:$0xff]
          %v395 = vld [vmem:[%s0 + $0x10] sm:$0xff]
          %v396 = vld [vmem:[%s0 + $0x18] sm:$0xff]
          %v397 = vld [vmem:[%s0 + $0x20] sm:$0xff]
          %v398 = vld [vmem:[%s0 + $0x28] sm:$0xff]
          %v399 = vld [vmem:[%s0 + $0x30] sm:$0xff]
          %v400 = vld [vmem:[%s0 + $0x38] sm:$0xff]
          %v401 = vld [vmem:[%s0 + $0x40] sm:$0xff]
          %v402 = vld [vmem:[%s0 + $0x48] sm:$0xff]
          %v403 = vld [vmem:[%s0 + $0x50] sm:$0xff]
          %v404 = vld [vmem:[%s0 + $0x58] sm:$0xff]
          %v405 = vld [vmem:[%s0 + $0x60] sm:$0xff]
          %v406 = vld [vmem:[%s0 + $0x68] sm:$0xff]
          %v407 = vld [vmem:[%s0 + $0x70] sm:$0xff]
          %v408 = vld [vmem:[%s0 + $0x78] sm:$0xff]
          %v409 = vld [vmem:[%s0 + $0x80] sm:$0xff]
          %v410 = vld [vmem:[%s0 + $0x88] sm:$0xff]
          %v411 = vld [vmem:[%s0 + $0x90] sm:$0xff]
          %v412 = vld [vmem:[%s0 + $0x98] sm:$0xff]
          %v413 = vld [vmem:[%s0 + $0xa0] sm:$0xff]
          %v414 = vld [vmem:[%s0 + $0xa8] sm:$0xff]
          %v415 = vld [vmem:[%s0 + $0xb0] sm:$0xff]
          %v416 = vld [vmem:[%s0 + $0xb8] sm:$0xff]
          %v417 = vld [vmem:[%s0 + $0xc0] sm:$0xff]
          %v418 = vld [vmem:[%s0 + $0xc8] sm:$0xff]
          %v419 = vld [vmem:[%s0 + $0xd0] sm:$0xff]
          %v420 = vld [vmem:[%s0 + $0xd8] sm:$0xff]
          %v421 = vld [vmem:[%s0 + $0xe0] sm:$0xff]
          %v422 = vld [vmem:[%s0 + $0xe8] sm:$0xff]
          %v423 = vld [vmem:[%s0 + $0xf0] sm:$0xff]
          %v424 = vld [vmem:[%s0 + $0xf8] sm:$0xff]
          %v425 = vld [vmem:[%s380] sm:$0xf]
          %v427 = vlaneseq
          %v428 = vshrl.u32 %v427, 7
          %v429 = vsub.s32 0, %v428
          %v430 = vrot.slane %v425, %v429
          %v431 = vlaneseq
          %v432 = vshrl.u32 %v431, 7
          %v433 = vsub.s32 1, %v432
          %v434 = vrot.slane %v425, %v433
          %v435 = vlaneseq
          %v436 = vshrl.u32 %v435, 7
          %v437 = vsub.s32 2, %v436
          %v438 = vrot.slane %v425, %v437
          %v439 = vlaneseq
          %v440 = vshrl.u32 %v439, 7
          %v441 = vsub.s32 3, %v440
          %v442 = vrot.slane %v425, %v441
          %v447 = vadd.f32 %v393, %v430
          %v448 = vadd.f32 %v394, %v434
          %v449 = vadd.f32 %v395, %v438
          %v450 = vadd.f32 %v396, %v442
          %v451 = vadd.f32 %v397, %v430
          %v452 = vadd.f32 %v398, %v434
          %v453 = vadd.f32 %v399, %v438
          %v454 = vadd.f32 %v400, %v442
          %v455 = vadd.f32 %v401, %v430
          %v456 = vadd.f32 %v402, %v434
          %v457 = vadd.f32 %v403, %v438
          %v458 = vadd.f32 %v404, %v442
          %v459 = vadd.f32 %v405, %v430
          %v460 = vadd.f32 %v406, %v434
          %v461 = vadd.f32 %v407, %v438
          %v462 = vadd.f32 %v408, %v442
          %v463 = vadd.f32 %v409, %v430
          %v464 = vadd.f32 %v410, %v434
          %v465 = vadd.f32 %v411, %v438
          %v466 = vadd.f32 %v412, %v442
          %v467 = vadd.f32 %v413, %v430
          %v468 = vadd.f32 %v414, %v434
          %v469 = vadd.f32 %v415, %v438
          %v470 = vadd.f32 %v416, %v442
          %v471 = vadd.f32 %v417, %v430
          %v472 = vadd.f32 %v418, %v434
          %v473 = vadd.f32 %v419, %v438
          %v474 = vadd.f32 %v420, %v442
          %v475 = vadd.f32 %v421, %v430
          %v476 = vadd.f32 %v422, %v434
          %v477 = vadd.f32 %v423, %v438
          %v478 = vadd.f32 %v424, %v442
          %479 = vst [vmem:[#allocation4] sm:$0xff] %v447
          %480 = vst [vmem:[#allocation4 + $0x8] sm:$0xff] %v448
          %481 = vst [vmem:[#allocation4 + $0x10] sm:$0xff] %v449
          %482 = vst [vmem:[#allocation4 + $0x18] sm:$0xff] %v450
          %483 = vst [vmem:[#allocation4 + $0x20] sm:$0xff] %v451
          %484 = vst [vmem:[#allocation4 + $0x28] sm:$0xff] %v452
          %485 = vst [vmem:[#allocation4 + $0x30] sm:$0xff] %v453
          %486 = vst [vmem:[#allocation4 + $0x38] sm:$0xff] %v454
          %487 = vst [vmem:[#allocation4 + $0x40] sm:$0xff] %v455
          %488 = vst [vmem:[#allocation4 + $0x48] sm:$0xff] %v456
          %489 = vst [vmem:[#allocation4 + $0x50] sm:$0xff] %v457
          %490 = vst [vmem:[#allocation4 + $0x58] sm:$0xff] %v458
          %491 = vst [vmem:[#allocation4 + $0x60] sm:$0xff] %v459
          %492 = vst [vmem:[#allocation4 + $0x68] sm:$0xff] %v460
          %493 = vst [vmem:[#allocation4 + $0x70] sm:$0xff] %v461
          %494 = vst [vmem:[#allocation4 + $0x78] sm:$0xff] %v462
          %495 = vst [vmem:[#allocation4 + $0x80] sm:$0xff] %v463
          %496 = vst [vmem:[#allocation4 + $0x88] sm:$0xff] %v464
          %497 = vst [vmem:[#allocation4 + $0x90] sm:$0xff] %v465
          %498 = vst [vmem:[#allocation4 + $0x98] sm:$0xff] %v466
          %499 = vst [vmem:[#allocation4 + $0xa0] sm:$0xff] %v467
          %500 = vst [vmem:[#allocation4 + $0xa8] sm:$0xff] %v468
          %501 = vst [vmem:[#allocation4 + $0xb0] sm:$0xff] %v469
          %502 = vst [vmem:[#allocation4 + $0xb8] sm:$0xff] %v470
          %503 = vst [vmem:[#allocation4 + $0xc0] sm:$0xff] %v471
          %504 = vst [vmem:[#allocation4 + $0xc8] sm:$0xff] %v472
          %505 = vst [vmem:[#allocation4 + $0xd0] sm:$0xff] %v473
          %506 = vst [vmem:[#allocation4 + $0xd8] sm:$0xff] %v474
          %507 = vst [vmem:[#allocation4 + $0xe0] sm:$0xff] %v475
          %508 = vst [vmem:[#allocation4 + $0xe8] sm:$0xff] %v476
          %509 = vst [vmem:[#allocation4 + $0xf0] sm:$0xff] %v477
          %510 = vst [vmem:[#allocation4 + $0xf8] sm:$0xff] %v478
        $region56: #{_lambda_.3} parent=43 // pred_fallthru
          _
        %p511 = scmp.gt.s32.totalorder %s26, 0
        %p512 = scmp.lt.s32.totalorder %s26, 0
        %s513 = ssub.s32 0, %s26
        %s514 = scalar_select %p512, %s513, %s26
        %s515 = sand.u32 %s514, 1
        %s516 = ssub.s32 0, %s515
        %s517 = scalar_select %p512, %s516, %s515
        %p518 = scmp.ne.s32.totalorder %s517, 0
        %p519 = scmp.lt.s32.totalorder %s517, 0
        %p520 = pnand %p519, %p518
        %p521 = pneg %p520
        %s522 = sadd.s32 %s517, 2
        %s523 = scalar_select %p521, %s522, %s517
        %p524 = scmp.eq.s32.totalorder %s523, 1
        %p525 = pnand %p511, %p524
        %p526 = pneg %p525
        // Predicated region
        $region57: #{_lambda_.3} parent=43 // pred_check
          _
        $region58: #{_lambda_.3} parent=43 // pred_check_branch
          %528 = sbr.rel (%p525) target = $region60
        $region59: #{_lambda_.3} parent=43 // pred_region
          %v529 = vld [vmem:[#allocation2] sm:$0xff]
          %v530 = vld [vmem:[#allocation2 + $0x8] sm:$0xff]
          %v531 = vld [vmem:[#allocation2 + $0x10] sm:$0xff]
          %v532 = vld [vmem:[#allocation2 + $0x18] sm:$0xff]
          %v533 = vld [vmem:[#allocation2 + $0x20] sm:$0xff]
          %v534 = vld [vmem:[#allocation2 + $0x28] sm:$0xff]
          %v535 = vld [vmem:[#allocation2 + $0x30] sm:$0xff]
          %v536 = vld [vmem:[#allocation2 + $0x38] sm:$0xff]
          %v537 = vld [vmem:[%s323] sm:$0xff]
          %v538 = vld [vmem:[%s323 + $0x8] sm:$0xff]
          %v539 = vld [vmem:[%s323 + $0x10] sm:$0xff]
          %v540 = vld [vmem:[%s323 + $0x18] sm:$0xff]
          %v541 = vld [vmem:[%s323 + $0x20] sm:$0xff]
          %v542 = vld [vmem:[%s323 + $0x28] sm:$0xff]
          %v543 = vld [vmem:[%s323 + $0x30] sm:$0xff]
          %v544 = vld [vmem:[%s323 + $0x38] sm:$0xff]
          %v545 = vld [vmem:[%s323 + $0x40] sm:$0xff]
          %v546 = vld [vmem:[%s323 + $0x48] sm:$0xff]
          %v547 = vld [vmem:[%s323 + $0x50] sm:$0xff]
          %v548 = vld [vmem:[%s323 + $0x58] sm:$0xff]
          %v549 = vld [vmem:[%s323 + $0x60] sm:$0xff]
          %v550 = vld [vmem:[%s323 + $0x68] sm:$0xff]
          %v551 = vld [vmem:[%s323 + $0x70] sm:$0xff]
          %v552 = vld [vmem:[%s323 + $0x78] sm:$0xff]
          %v553 = vld [vmem:[%s323 + $0x80] sm:$0xff]
          %v554 = vld [vmem:[%s323 + $0x88] sm:$0xff]
          %v555 = vld [vmem:[%s323 + $0x90] sm:$0xff]
          %v556 = vld [vmem:[%s323 + $0x98] sm:$0xff]
          %v557 = vld [vmem:[%s323 + $0xa0] sm:$0xff]
          %v558 = vld [vmem:[%s323 + $0xa8] sm:$0xff]
          %v559 = vld [vmem:[%s323 + $0xb0] sm:$0xff]
          %v560 = vld [vmem:[%s323 + $0xb8] sm:$0xff]
          %v561 = vld [vmem:[%s323 + $0xc0] sm:$0xff]
          %v562 = vld [vmem:[%s323 + $0xc8] sm:$0xff]
          %v563 = vld [vmem:[%s323 + $0xd0] sm:$0xff]
          %v564 = vld [vmem:[%s323 + $0xd8] sm:$0xff]
          %v565 = vld [vmem:[%s323 + $0xe0] sm:$0xff]
          %v566 = vld [vmem:[%s323 + $0xe8] sm:$0xff]
          %v567 = vld [vmem:[%s323 + $0xf0] sm:$0xff]
          %v568 = vld [vmem:[%s323 + $0xf8] sm:$0xff]
          %v569 = vld [vmem:[%s323 + $0x100] sm:$0xff]
          %v570 = vld [vmem:[%s323 + $0x108] sm:$0xff]
          %v571 = vld [vmem:[%s323 + $0x110] sm:$0xff]
          %v572 = vld [vmem:[%s323 + $0x118] sm:$0xff]
          %v573 = vld [vmem:[%s323 + $0x120] sm:$0xff]
          %v574 = vld [vmem:[%s323 + $0x128] sm:$0xff]
          %v575 = vld [vmem:[%s323 + $0x130] sm:$0xff]
          %v576 = vld [vmem:[%s323 + $0x138] sm:$0xff]
          %v577 = vld [vmem:[%s323 + $0x140] sm:$0xff]
          %v578 = vld [vmem:[%s323 + $0x148] sm:$0xff]
          %v579 = vld [vmem:[%s323 + $0x150] sm:$0xff]
          %v580 = vld [vmem:[%s323 + $0x158] sm:$0xff]
          %v581 = vld [vmem:[%s323 + $0x160] sm:$0xff]
          %v582 = vld [vmem:[%s323 + $0x168] sm:$0xff]
          %v583 = vld [vmem:[%s323 + $0x170] sm:$0xff]
          %v584 = vld [vmem:[%s323 + $0x178] sm:$0xff]
          %v585 = vld [vmem:[%s323 + $0x180] sm:$0xff]
          %v586 = vld [vmem:[%s323 + $0x188] sm:$0xff]
          %v587 = vld [vmem:[%s323 + $0x190] sm:$0xff]
          %v588 = vld [vmem:[%s323 + $0x198] sm:$0xff]
          %v589 = vld [vmem:[%s323 + $0x1a0] sm:$0xff]
          %v590 = vld [vmem:[%s323 + $0x1a8] sm:$0xff]
          %v591 = vld [vmem:[%s323 + $0x1b0] sm:$0xff]
          %v592 = vld [vmem:[%s323 + $0x1b8] sm:$0xff]
          %v593 = vld [vmem:[%s323 + $0x1c0] sm:$0xff]
          %v594 = vld [vmem:[%s323 + $0x1c8] sm:$0xff]
          %v595 = vld [vmem:[%s323 + $0x1d0] sm:$0xff]
          %v596 = vld [vmem:[%s323 + $0x1d8] sm:$0xff]
          %v597 = vld [vmem:[%s323 + $0x1e0] sm:$0xff]
          %v598 = vld [vmem:[%s323 + $0x1e8] sm:$0xff]
          %v599 = vld [vmem:[%s323 + $0x1f0] sm:$0xff]
          %v600 = vld [vmem:[%s323 + $0x1f8] sm:$0xff]
          %601 = vmatprep.subr.mxu0 %v538
          %602 = vmatpush1.msra.mxu0 %v537
          %603 = vmatprep.subr.mxu0 %v542
          %604 = vmatpush1.msra.mxu0 %v541
          %605 = vmatprep.subr.mxu0 %v546
          %606 = vmatpush1.msra.mxu0 %v545
          %607 = vmatprep.subr.mxu0 %v550
          %608 = vmatpush1.msra.mxu0 %v549
          %609 = vmatprep.subr.mxu0 %v554
          %610 = vmatpush1.msra.mxu0 %v553
          %611 = vmatprep.subr.mxu0 %v558
          %612 = vmatpush1.msra.mxu0 %v557
          %613 = vmatprep.subr.mxu0 %v562
          %614 = vmatpush1.msra.mxu0 %v561
          %615 = vmatprep.subr.mxu0 %v566
          %616 = vmatpush1.msra.mxu0 %v565
          %617 = vmatprep.subr.mxu0 %v570
          %618 = vmatpush1.msra.mxu0 %v569
          %619 = vmatprep.subr.mxu0 %v574
          %620 = vmatpush1.msra.mxu0 %v573
          %621 = vmatprep.subr.mxu0 %v578
          %622 = vmatpush1.msra.mxu0 %v577
          %623 = vmatprep.subr.mxu0 %v582
          %624 = vmatpush1.msra.mxu0 %v581
          %625 = vmatprep.subr.mxu0 %v586
          %626 = vmatpush1.msra.mxu0 %v585
          %627 = vmatprep.subr.mxu0 %v590
          %628 = vmatpush1.msra.mxu0 %v589
          %629 = vmatprep.subr.mxu0 %v594
          %630 = vmatpush1.msra.mxu0 %v593
          %631 = vmatprep.subr.mxu0 %v598
          %632 = vmatpush1.msra.mxu0 %v597
          %633 = vmatprep.subr.mxu0 0.0
          %634 = vmatpush1.msra.mxu0 0.0
          %635 = vmatprep.subr.mxu0 0.0
          %636 = vmatpush1.msra.mxu0 0.0
          %637 = vmatprep.subr.mxu0 0.0
          %638 = vmatpush1.msra.mxu0 0.0
          %639 = vmatprep.subr.mxu0 0.0
          %640 = vmatpush1.msra.mxu0 0.0
          %641 = vmatprep.subr.mxu0 0.0
          %642 = vmatpush1.msra.mxu0 0.0
          %643 = vmatprep.subr.mxu0 0.0
          %644 = vmatpush1.msra.mxu0 0.0
          %645 = vmatprep.subr.mxu0 0.0
          %646 = vmatpush1.msra.mxu0 0.0
          %647 = vmatprep.subr.mxu0 0.0
          %648 = vmatpush1.msra.mxu0 0.0
          %649 = vmatprep.subr.mxu0 0.0
          %650 = vmatpush1.msra.mxu0 0.0
          %651 = vmatprep.subr.mxu0 0.0
          %652 = vmatpush1.msra.mxu0 0.0
          %653 = vmatprep.subr.mxu0 0.0
          %654 = vmatpush1.msra.mxu0 0.0
          %655 = vmatprep.subr.mxu0 0.0
          %656 = vmatpush1.msra.mxu0 0.0
          %657 = vmatprep.subr.mxu0 0.0
          %658 = vmatpush1.msra.mxu0 0.0
          %659 = vmatprep.subr.mxu0 0.0
          %660 = vmatpush1.msra.mxu0 0.0
          %661 = vmatprep.subr.mxu0 0.0
          %662 = vmatpush1.msra.mxu0 0.0
          %663 = vmatprep.subr.mxu0 0.0
          %664 = vmatpush1.msra.mxu0 0.0
          %665 = vmatprep.mubr.f32.mxu0 0.0
          %666 = vmatmul.mubr.f32.gmra.mrb[0].mxu0 %v529
          %v667 = vpop.f32.mrb[0].mxu0
          %v668 = vadd.f32 0.0, %v667
          %v669 = vpop.f32.mrb[0].mxu0
          %v670 = vadd.f32 0.0, %v669
          %671 = vmatprep.mubr.f32.mxu0 0.0
          %672 = vmatmul.mubr.f32.gmra.mrb[0].mxu0 %v530
          %v673 = vpop.f32.mrb[0].mxu0
          %v674 = vadd.f32 0.0, %v673
          %v675 = vpop.f32.mrb[0].mxu0
          %v676 = vadd.f32 0.0, %v675
          %677 = vmatprep.mubr.f32.mxu0 0.0
          %678 = vmatmul.mubr.f32.gmra.mrb[0].mxu0 %v531
          %v679 = vpop.f32.mrb[0].mxu0
          %v680 = vadd.f32 0.0, %v679
          %v681 = vpop.f32.mrb[0].mxu0
          %v682 = vadd.f32 0.0, %v681
          %683 = vmatprep.mubr.f32.mxu0 0.0
          %684 = vmatmul.mubr.f32.gmra.mrb[0].mxu0 %v532
          %v685 = vpop.f32.mrb[0].mxu0
          %v686 = vadd.f32 0.0, %v685
          %v687 = vpop.f32.mrb[0].mxu0
          %v688 = vadd.f32 0.0, %v687
          %689 = vmatprep.mubr.f32.mxu0 0.0
          %690 = vmatmul.mubr.f32.gmra.mrb[0].mxu0 %v533
          %v691 = vpop.f32.mrb[0].mxu0
          %v692 = vadd.f32 0.0, %v691
          %v693 = vpop.f32.mrb[0].mxu0
          %v694 = vadd.f32 0.0, %v693
          %695 = vmatprep.mubr.f32.mxu0 0.0
          %696 = vmatmul.mubr.f32.gmra.mrb[0].mxu0 %v534
          %v697 = vpop.f32.mrb[0].mxu0
          %v698 = vadd.f32 0.0, %v697
          %v699 = vpop.f32.mrb[0].mxu0
          %v700 = vadd.f32 0.0, %v699
          %701 = vmatprep.mubr.f32.mxu0 0.0
          %702 = vmatmul.mubr.f32.gmra.mrb[0].mxu0 %v535
          %v703 = vpop.f32.mrb[0].mxu0
          %v704 = vadd.f32 0.0, %v703
          %v705 = vpop.f32.mrb[0].mxu0
          %v706 = vadd.f32 0.0, %v705
          %707 = vmatprep.mubr.f32.mxu0 0.0
          %708 = vmatmul.mubr.f32.gmra.mrb[0].mxu0 %v536
          %v709 = vpop.f32.mrb[0].mxu0
          %v710 = vadd.f32 0.0, %v709
          %v711 = vpop.f32.mrb[0].mxu0
          %v712 = vadd.f32 0.0, %v711
          %713 = vdwg.mxu0
          %714 = vmatprep.subr.mxu0 %v540
          %715 = vmatpush1.msra.mxu0 %v539
          %716 = vmatprep.subr.mxu0 %v544
          %717 = vmatpush1.msra.mxu0 %v543
          %718 = vmatprep.subr.mxu0 %v548
          %719 = vmatpush1.msra.mxu0 %v547
          %720 = vmatprep.subr.mxu0 %v552
          %721 = vmatpush1.msra.mxu0 %v551
          %722 = vmatprep.subr.mxu0 %v556
          %723 = vmatpush1.msra.mxu0 %v555
          %724 = vmatprep.subr.mxu0 %v560
          %725 = vmatpush1.msra.mxu0 %v559
          %726 = vmatprep.subr.mxu0 %v564
          %727 = vmatpush1.msra.mxu0 %v563
          %728 = vmatprep.subr.mxu0 %v568
          %729 = vmatpush1.msra.mxu0 %v567
          %730 = vmatprep.subr.mxu0 %v572
          %731 = vmatpush1.msra.mxu0 %v571
          %732 = vmatprep.subr.mxu0 %v576
          %733 = vmatpush1.msra.mxu0 %v575
          %734 = vmatprep.subr.mxu0 %v580
          %735 = vmatpush1.msra.mxu0 %v579
          %736 = vmatprep.subr.mxu0 %v584
          %737 = vmatpush1.msra.mxu0 %v583
          %738 = vmatprep.subr.mxu0 %v588
          %739 = vmatpush1.msra.mxu0 %v587
          %740 = vmatprep.subr.mxu0 %v592
          %741 = vmatpush1.msra.mxu0 %v591
          %742 = vmatprep.subr.mxu0 %v596
          %743 = vmatpush1.msra.mxu0 %v595
          %744 = vmatprep.subr.mxu0 %v600
          %745 = vmatpush1.msra.mxu0 %v599
          %746 = vmatprep.subr.mxu0 0.0
          %747 = vmatpush1.msra.mxu0 0.0
          %748 = vmatprep.subr.mxu0 0.0
          %749 = vmatpush1.msra.mxu0 0.0
          %750 = vmatprep.subr.mxu0 0.0
          %751 = vmatpush1.msra.mxu0 0.0
          %752 = vmatprep.subr.mxu0 0.0
          %753 = vmatpush1.msra.mxu0 0.0
          %754 = vmatprep.subr.mxu0 0.0
          %755 = vmatpush1.msra.mxu0 0.0
          %756 = vmatprep.subr.mxu0 0.0
          %757 = vmatpush1.msra.mxu0 0.0
          %758 = vmatprep.subr.mxu0 0.0
          %759 = vmatpush1.msra.mxu0 0.0
          %760 = vmatprep.subr.mxu0 0.0
          %761 = vmatpush1.msra.mxu0 0.0
          %762 = vmatprep.subr.mxu0 0.0
          %763 = vmatpush1.msra.mxu0 0.0
          %764 = vmatprep.subr.mxu0 0.0
          %765 = vmatpush1.msra.mxu0 0.0
          %766 = vmatprep.subr.mxu0 0.0
          %767 = vmatpush1.msra.mxu0 0.0
          %768 = vmatprep.subr.mxu0 0.0
          %769 = vmatpush1.msra.mxu0 0.0
          %770 = vmatprep.subr.mxu0 0.0
          %771 = vmatpush1.msra.mxu0 0.0
          %772 = vmatprep.subr.mxu0 0.0
          %773 = vmatpush1.msra.mxu0 0.0
          %774 = vmatprep.subr.mxu0 0.0
          %775 = vmatpush1.msra.mxu0 0.0
          %776 = vmatprep.subr.mxu0 0.0
          %777 = vmatpush1.msra.mxu0 0.0
          %778 = vmatprep.mubr.f32.mxu0 0.0
          %779 = vmatmul.mubr.f32.gmra.mrb[0].mxu0 %v529
          %v780 = vpop.f32.mrb[0].mxu0
          %v781 = vadd.f32 0.0, %v780
          %v782 = vpop.f32.mrb[0].mxu0
          %v783 = vadd.f32 0.0, %v782
          %784 = vmatprep.mubr.f32.mxu0 0.0
          %785 = vmatmul.mubr.f32.gmra.mrb[0].mxu0 %v530
          %v786 = vpop.f32.mrb[0].mxu0
          %v787 = vadd.f32 0.0, %v786
          %v788 = vpop.f32.mrb[0].mxu0
          %v789 = vadd.f32 0.0, %v788
          %790 = vmatprep.mubr.f32.mxu0 0.0
          %791 = vmatmul.mubr.f32.gmra.mrb[0].mxu0 %v531
          %v792 = vpop.f32.mrb[0].mxu0
          %v793 = vadd.f32 0.0, %v792
          %v794 = vpop.f32.mrb[0].mxu0
          %v795 = vadd.f32 0.0, %v794
          %796 = vmatprep.mubr.f32.mxu0 0.0
          %797 = vmatmul.mubr.f32.gmra.mrb[0].mxu0 %v532
          %v798 = vpop.f32.mrb[0].mxu0
          %v799 = vadd.f32 0.0, %v798
          %v800 = vpop.f32.mrb[0].mxu0
          %v801 = vadd.f32 0.0, %v800
          %802 = vmatprep.mubr.f32.mxu0 0.0
          %803 = vmatmul.mubr.f32.gmra.mrb[0].mxu0 %v533
          %v804 = vpop.f32.mrb[0].mxu0
          %v805 = vadd.f32 0.0, %v804
          %v806 = vpop.f32.mrb[0].mxu0
          %v807 = vadd.f32 0.0, %v806
          %808 = vmatprep.mubr.f32.mxu0 0.0
          %809 = vmatmul.mubr.f32.gmra.mrb[0].mxu0 %v534
          %v810 = vpop.f32.mrb[0].mxu0
          %v811 = vadd.f32 0.0, %v810
          %v812 = vpop.f32.mrb[0].mxu0
          %v813 = vadd.f32 0.0, %v812
          %814 = vmatprep.mubr.f32.mxu0 0.0
          %815 = vmatmul.mubr.f32.gmra.mrb[0].mxu0 %v535
          %v816 = vpop.f32.mrb[0].mxu0
          %v817 = vadd.f32 0.0, %v816
          %v818 = vpop.f32.mrb[0].mxu0
          %v819 = vadd.f32 0.0, %v818
          %820 = vmatprep.mubr.f32.mxu0 0.0
          %821 = vmatmul.mubr.f32.gmra.mrb[0].mxu0 %v536
          %v822 = vpop.f32.mrb[0].mxu0
          %v823 = vadd.f32 0.0, %v822
          %v824 = vpop.f32.mrb[0].mxu0
          %v825 = vadd.f32 0.0, %v824
          %826 = vdwg.mxu0
          %v827 = vld [vmem:[%s380] sm:$0xf]
          %v829 = vlaneseq
          %v830 = vshrl.u32 %v829, 7
          %v831 = vsub.s32 0, %v830
          %v832 = vrot.slane %v827, %v831
          %v833 = vlaneseq
          %v834 = vshrl.u32 %v833, 7
          %v835 = vsub.s32 1, %v834
          %v836 = vrot.slane %v827, %v835
          %v837 = vlaneseq
          %v838 = vshrl.u32 %v837, 7
          %v839 = vsub.s32 2, %v838
          %v840 = vrot.slane %v827, %v839
          %v841 = vlaneseq
          %v842 = vshrl.u32 %v841, 7
          %v843 = vsub.s32 3, %v842
          %v844 = vrot.slane %v827, %v843
          %v849 = vadd.f32 %v668, %v832
          %v850 = vadd.f32 %v670, %v836
          %v851 = vadd.f32 %v781, %v840
          %v852 = vadd.f32 %v783, %v844
          %v853 = vadd.f32 %v674, %v832
          %v854 = vadd.f32 %v676, %v836
          %v855 = vadd.f32 %v787, %v840
          %v856 = vadd.f32 %v789, %v844
          %v857 = vadd.f32 %v680, %v832
          %v858 = vadd.f32 %v682, %v836
          %v859 = vadd.f32 %v793, %v840
          %v860 = vadd.f32 %v795, %v844
          %v861 = vadd.f32 %v686, %v832
          %v862 = vadd.f32 %v688, %v836
          %v863 = vadd.f32 %v799, %v840
          %v864 = vadd.f32 %v801, %v844
          %v865 = vadd.f32 %v692, %v832
          %v866 = vadd.f32 %v694, %v836
          %v867 = vadd.f32 %v805, %v840
          %v868 = vadd.f32 %v807, %v844
          %v869 = vadd.f32 %v698, %v832
          %v870 = vadd.f32 %v700, %v836
          %v871 = vadd.f32 %v811, %v840
          %v872 = vadd.f32 %v813, %v844
          %v873 = vadd.f32 %v704, %v832
          %v874 = vadd.f32 %v706, %v836
          %v875 = vadd.f32 %v817, %v840
          %v876 = vadd.f32 %v819, %v844
          %v877 = vadd.f32 %v710, %v832
          %v878 = vadd.f32 %v712, %v836
          %v879 = vadd.f32 %v823, %v840
          %v880 = vadd.f32 %v825, %v844
          %881 = vst [vmem:[#allocation4] sm:$0xff] %v849
          %882 = vst [vmem:[#allocation4 + $0x8] sm:$0xff] %v850
          %883 = vst [vmem:[#allocation4 + $0x10] sm:$0xff] %v851
          %884 = vst [vmem:[#allocation4 + $0x18] sm:$0xff] %v852
          %885 = vst [vmem:[#allocation4 + $0x20] sm:$0xff] %v853
          %886 = vst [vmem:[#allocation4 + $0x28] sm:$0xff] %v854
          %887 = vst [vmem:[#allocation4 + $0x30] sm:$0xff] %v855
          %888 = vst [vmem:[#allocation4 + $0x38] sm:$0xff] %v856
          %889 = vst [vmem:[#allocation4 + $0x40] sm:$0xff] %v857
          %890 = vst [vmem:[#allocation4 + $0x48] sm:$0xff] %v858
          %891 = vst [vmem:[#allocation4 + $0x50] sm:$0xff] %v859
          %892 = vst [vmem:[#allocation4 + $0x58] sm:$0xff] %v860
          %893 = vst [vmem:[#allocation4 + $0x60] sm:$0xff] %v861
          %894 = vst [vmem:[#allocation4 + $0x68] sm:$0xff] %v862
          %895 = vst [vmem:[#allocation4 + $0x70] sm:$0xff] %v863
          %896 = vst [vmem:[#allocation4 + $0x78] sm:$0xff] %v864
          %897 = vst [vmem:[#allocation4 + $0x80] sm:$0xff] %v865
          %898 = vst [vmem:[#allocation4 + $0x88] sm:$0xff] %v866
          %899 = vst [vmem:[#allocation4 + $0x90] sm:$0xff] %v867
          %900 = vst [vmem:[#allocation4 + $0x98] sm:$0xff] %v868
          %901 = vst [vmem:[#allocation4 + $0xa0] sm:$0xff] %v869
          %902 = vst [vmem:[#allocation4 + $0xa8] sm:$0xff] %v870
          %903 = vst [vmem:[#allocation4 + $0xb0] sm:$0xff] %v871
          %904 = vst [vmem:[#allocation4 + $0xb8] sm:$0xff] %v872
          %905 = vst [vmem:[#allocation4 + $0xc0] sm:$0xff] %v873
          %906 = vst [vmem:[#allocation4 + $0xc8] sm:$0xff] %v874
          %907 = vst [vmem:[#allocation4 + $0xd0] sm:$0xff] %v875
          %908 = vst [vmem:[#allocation4 + $0xd8] sm:$0xff] %v876
          %909 = vst [vmem:[#allocation4 + $0xe0] sm:$0xff] %v877
          %910 = vst [vmem:[#allocation4 + $0xe8] sm:$0xff] %v878
          %911 = vst [vmem:[#allocation4 + $0xf0] sm:$0xff] %v879
          %912 = vst [vmem:[#allocation4 + $0xf8] sm:$0xff] %v880
        $region60: #{_lambda_.3} parent=43 // pred_fallthru
          _
        %p913 = scmp.eq.s32.totalorder %s523, 0
        %p914 = pnand %p511, %p913
        %p915 = pneg %p914
        // Predicated region
        $region61: #{_lambda_.3} parent=43 // pred_check
          _
        $region62: #{_lambda_.3} parent=43 // pred_check_branch
          %917 = sbr.rel (%p914) target = $region64
        $region63: #{_lambda_.3} parent=43 // pred_region
          %v918 = vld [vmem:[#allocation3] sm:$0xff]
          %v919 = vld [vmem:[#allocation3 + $0x8] sm:$0xff]
          %v920 = vld [vmem:[#allocation3 + $0x10] sm:$0xff]
          %v921 = vld [vmem:[#allocation3 + $0x18] sm:$0xff]
          %v922 = vld [vmem:[#allocation3 + $0x20] sm:$0xff]
          %v923 = vld [vmem:[#allocation3 + $0x28] sm:$0xff]
          %v924 = vld [vmem:[#allocation3 + $0x30] sm:$0xff]
          %v925 = vld [vmem:[#allocation3 + $0x38] sm:$0xff]
          %v926 = vld [vmem:[%s323] sm:$0xff]
          %v927 = vld [vmem:[%s323 + $0x8] sm:$0xff]
          %v928 = vld [vmem:[%s323 + $0x10] sm:$0xff]
          %v929 = vld [vmem:[%s323 + $0x18] sm:$0xff]
          %v930 = vld [vmem:[%s323 + $0x20] sm:$0xff]
          %v931 = vld [vmem:[%s323 + $0x28] sm:$0xff]
          %v932 = vld [vmem:[%s323 + $0x30] sm:$0xff]
          %v933 = vld [vmem:[%s323 + $0x38] sm:$0xff]
          %v934 = vld [vmem:[%s323 + $0x40] sm:$0xff]
          %v935 = vld [vmem:[%s323 + $0x48] sm:$0xff]
          %v936 = vld [vmem:[%s323 + $0x50] sm:$0xff]
          %v937 = vld [vmem:[%s323 + $0x58] sm:$0xff]
          %v938 = vld [vmem:[%s323 + $0x60] sm:$0xff]
          %v939 = vld [vmem:[%s323 + $0x68] sm:$0xff]
          %v940 = vld [vmem:[%s323 + $0x70] sm:$0xff]
          %v941 = vld [vmem:[%s323 + $0x78] sm:$0xff]
          %v942 = vld [vmem:[%s323 + $0x80] sm:$0xff]
          %v943 = vld [vmem:[%s323 + $0x88] sm:$0xff]
          %v944 = vld [vmem:[%s323 + $0x90] sm:$0xff]
          %v945 = vld [vmem:[%s323 + $0x98] sm:$0xff]
          %v946 = vld [vmem:[%s323 + $0xa0] sm:$0xff]
          %v947 = vld [vmem:[%s323 + $0xa8] sm:$0xff]
          %v948 = vld [vmem:[%s323 + $0xb0] sm:$0xff]
          %v949 = vld [vmem:[%s323 + $0xb8] sm:$0xff]
          %v950 = vld [vmem:[%s323 + $0xc0] sm:$0xff]
          %v951 = vld [vmem:[%s323 + $0xc8] sm:$0xff]
          %v952 = vld [vmem:[%s323 + $0xd0] sm:$0xff]
          %v953 = vld [vmem:[%s323 + $0xd8] sm:$0xff]
          %v954 = vld [vmem:[%s323 + $0xe0] sm:$0xff]
          %v955 = vld [vmem:[%s323 + $0xe8] sm:$0xff]
          %v956 = vld [vmem:[%s323 + $0xf0] sm:$0xff]
          %v957 = vld [vmem:[%s323 + $0xf8] sm:$0xff]
          %v958 = vld [vmem:[%s323 + $0x100] sm:$0xff]
          %v959 = vld [vmem:[%s323 + $0x108] sm:$0xff]
          %v960 = vld [vmem:[%s323 + $0x110] sm:$0xff]
          %v961 = vld [vmem:[%s323 + $0x118] sm:$0xff]
          %v962 = vld [vmem:[%s323 + $0x120] sm:$0xff]
          %v963 = vld [vmem:[%s323 + $0x128] sm:$0xff]
          %v964 = vld [vmem:[%s323 + $0x130] sm:$0xff]
          %v965 = vld [vmem:[%s323 + $0x138] sm:$0xff]
          %v966 = vld [vmem:[%s323 + $0x140] sm:$0xff]
          %v967 = vld [vmem:[%s323 + $0x148] sm:$0xff]
          %v968 = vld [vmem:[%s323 + $0x150] sm:$0xff]
          %v969 = vld [vmem:[%s323 + $0x158] sm:$0xff]
          %v970 = vld [vmem:[%s323 + $0x160] sm:$0xff]
          %v971 = vld [vmem:[%s323 + $0x168] sm:$0xff]
          %v972 = vld [vmem:[%s323 + $0x170] sm:$0xff]
          %v973 = vld [vmem:[%s323 + $0x178] sm:$0xff]
          %v974 = vld [vmem:[%s323 + $0x180] sm:$0xff]
          %v975 = vld [vmem:[%s323 + $0x188] sm:$0xff]
          %v976 = vld [vmem:[%s323 + $0x190] sm:$0xff]
          %v977 = vld [vmem:[%s323 + $0x198] sm:$0xff]
          %v978 = vld [vmem:[%s323 + $0x1a0] sm:$0xff]
          %v979 = vld [vmem:[%s323 + $0x1a8] sm:$0xff]
          %v980 = vld [vmem:[%s323 + $0x1b0] sm:$0xff]
          %v981 = vld [vmem:[%s323 + $0x1b8] sm:$0xff]
          %v982 = vld [vmem:[%s323 + $0x1c0] sm:$0xff]
          %v983 = vld [vmem:[%s323 + $0x1c8] sm:$0xff]
          %v984 = vld [vmem:[%s323 + $0x1d0] sm:$0xff]
          %v985 = vld [vmem:[%s323 + $0x1d8] sm:$0xff]
          %v986 = vld [vmem:[%s323 + $0x1e0] sm:$0xff]
          %v987 = vld [vmem:[%s323 + $0x1e8] sm:$0xff]
          %v988 = vld [vmem:[%s323 + $0x1f0] sm:$0xff]
          %v989 = vld [vmem:[%s323 + $0x1f8] sm:$0xff]
          %990 = vmatprep.subr.mxu0 %v927
          %991 = vmatpush1.msra.mxu0 %v926
          %992 = vmatprep.subr.mxu0 %v931
          %993 = vmatpush1.msra.mxu0 %v930
          %994 = vmatprep.subr.mxu0 %v935
          %995 = vmatpush1.msra.mxu0 %v934
          %996 = vmatprep.subr.mxu0 %v939
          %997 = vmatpush1.msra.mxu0 %v938
          %998 = vmatprep.subr.mxu0 %v943
          %999 = vmatpush1.msra.mxu0 %v942
          %1000 = vmatprep.subr.mxu0 %v947
          %1001 = vmatpush1.msra.mxu0 %v946
          %1002 = vmatprep.subr.mxu0 %v951
          %1003 = vmatpush1.msra.mxu0 %v950
          %1004 = vmatprep.subr.mxu0 %v955
          %1005 = vmatpush1.msra.mxu0 %v954
          %1006 = vmatprep.subr.mxu0 %v959
          %1007 = vmatpush1.msra.mxu0 %v958
          %1008 = vmatprep.subr.mxu0 %v963
          %1009 = vmatpush1.msra.mxu0 %v962
          %1010 = vmatprep.subr.mxu0 %v967
          %1011 = vmatpush1.msra.mxu0 %v966
          %1012 = vmatprep.subr.mxu0 %v971
          %1013 = vmatpush1.msra.mxu0 %v970
          %1014 = vmatprep.subr.mxu0 %v975
          %1015 = vmatpush1.msra.mxu0 %v974
          %1016 = vmatprep.subr.mxu0 %v979
          %1017 = vmatpush1.msra.mxu0 %v978
          %1018 = vmatprep.subr.mxu0 %v983
          %1019 = vmatpush1.msra.mxu0 %v982
          %1020 = vmatprep.subr.mxu0 %v987
          %1021 = vmatpush1.msra.mxu0 %v986
          %1022 = vmatprep.subr.mxu0 0.0
          %1023 = vmatpush1.msra.mxu0 0.0
          %1024 = vmatprep.subr.mxu0 0.0
          %1025 = vmatpush1.msra.mxu0 0.0
          %1026 = vmatprep.subr.mxu0 0.0
          %1027 = vmatpush1.msra.mxu0 0.0
          %1028 = vmatprep.subr.mxu0 0.0
          %1029 = vmatpush1.msra.mxu0 0.0
          %1030 = vmatprep.subr.mxu0 0.0
          %1031 = vmatpush1.msra.mxu0 0.0
          %1032 = vmatprep.subr.mxu0 0.0
          %1033 = vmatpush1.msra.mxu0 0.0
          %1034 = vmatprep.subr.mxu0 0.0
          %1035 = vmatpush1.msra.mxu0 0.0
          %1036 = vmatprep.subr.mxu0 0.0
          %1037 = vmatpush1.msra.mxu0 0.0
          %1038 = vmatprep.subr.mxu0 0.0
          %1039 = vmatpush1.msra.mxu0 0.0
          %1040 = vmatprep.subr.mxu0 0.0
          %1041 = vmatpush1.msra.mxu0 0.0
          %1042 = vmatprep.subr.mxu0 0.0
          %1043 = vmatpush1.msra.mxu0 0.0
          %1044 = vmatprep.subr.mxu0 0.0
          %1045 = vmatpush1.msra.mxu0 0.0
          %1046 = vmatprep.subr.mxu0 0.0
          %1047 = vmatpush1.msra.mxu0 0.0
          %1048 = vmatprep.subr.mxu0 0.0
          %1049 = vmatpush1.msra.mxu0 0.0
          %1050 = vmatprep.subr.mxu0 0.0
          %1051 = vmatpush1.msra.mxu0 0.0
          %1052 = vmatprep.subr.mxu0 0.0
          %1053 = vmatpush1.msra.mxu0 0.0
          %1054 = vmatprep.mubr.f32.mxu0 0.0
          %1055 = vmatmul.mubr.f32.gmra.mrb[0].mxu0 %v918
          %v1056 = vpop.f32.mrb[0].mxu0
          %v1057 = vadd.f32 0.0, %v1056
          %v1058 = vpop.f32.mrb[0].mxu0
          %v1059 = vadd.f32 0.0, %v1058
          %1060 = vmatprep.mubr.f32.mxu0 0.0
          %1061 = vmatmul.mubr.f32.gmra.mrb[0].mxu0 %v919
          %v1062 = vpop.f32.mrb[0].mxu0
          %v1063 = vadd.f32 0.0, %v1062
          %v1064 = vpop.f32.mrb[0].mxu0
          %v1065 = vadd.f32 0.0, %v1064
          %1066 = vmatprep.mubr.f32.mxu0 0.0
          %1067 = vmatmul.mubr.f32.gmra.mrb[0].mxu0 %v920
          %v1068 = vpop.f32.mrb[0].mxu0
          %v1069 = vadd.f32 0.0, %v1068
          %v1070 = vpop.f32.mrb[0].mxu0
          %v1071 = vadd.f32 0.0, %v1070
          %1072 = vmatprep.mubr.f32.mxu0 0.0
          %1073 = vmatmul.mubr.f32.gmra.mrb[0].mxu0 %v921
          %v1074 = vpop.f32.mrb[0].mxu0
          %v1075 = vadd.f32 0.0, %v1074
          %v1076 = vpop.f32.mrb[0].mxu0
          %v1077 = vadd.f32 0.0, %v1076
          %1078 = vmatprep.mubr.f32.mxu0 0.0
          %1079 = vmatmul.mubr.f32.gmra.mrb[0].mxu0 %v922
          %v1080 = vpop.f32.mrb[0].mxu0
          %v1081 = vadd.f32 0.0, %v1080
          %v1082 = vpop.f32.mrb[0].mxu0
          %v1083 = vadd.f32 0.0, %v1082
          %1084 = vmatprep.mubr.f32.mxu0 0.0
          %1085 = vmatmul.mubr.f32.gmra.mrb[0].mxu0 %v923
          %v1086 = vpop.f32.mrb[0].mxu0
          %v1087 = vadd.f32 0.0, %v1086
          %v1088 = vpop.f32.mrb[0].mxu0
          %v1089 = vadd.f32 0.0, %v1088
          %1090 = vmatprep.mubr.f32.mxu0 0.0
          %1091 = vmatmul.mubr.f32.gmra.mrb[0].mxu0 %v924
          %v1092 = vpop.f32.mrb[0].mxu0
          %v1093 = vadd.f32 0.0, %v1092
          %v1094 = vpop.f32.mrb[0].mxu0
          %v1095 = vadd.f32 0.0, %v1094
          %1096 = vmatprep.mubr.f32.mxu0 0.0
          %1097 = vmatmul.mubr.f32.gmra.mrb[0].mxu0 %v925
          %v1098 = vpop.f32.mrb[0].mxu0
          %v1099 = vadd.f32 0.0, %v1098
          %v1100 = vpop.f32.mrb[0].mxu0
          %v1101 = vadd.f32 0.0, %v1100
          %1102 = vdwg.mxu0
          %1103 = vmatprep.subr.mxu0 %v929
          %1104 = vmatpush1.msra.mxu0 %v928
          %1105 = vmatprep.subr.mxu0 %v933
          %1106 = vmatpush1.msra.mxu0 %v932
          %1107 = vmatprep.subr.mxu0 %v937
          %1108 = vmatpush1.msra.mxu0 %v936
          %1109 = vmatprep.subr.mxu0 %v941
          %1110 = vmatpush1.msra.mxu0 %v940
          %1111 = vmatprep.subr.mxu0 %v945
          %1112 = vmatpush1.msra.mxu0 %v944
          %1113 = vmatprep.subr.mxu0 %v949
          %1114 = vmatpush1.msra.mxu0 %v948
          %1115 = vmatprep.subr.mxu0 %v953
          %1116 = vmatpush1.msra.mxu0 %v952
          %1117 = vmatprep.subr.mxu0 %v957
          %1118 = vmatpush1.msra.mxu0 %v956
          %1119 = vmatprep.subr.mxu0 %v961
          %1120 = vmatpush1.msra.mxu0 %v960
          %1121 = vmatprep.subr.mxu0 %v965
          %1122 = vmatpush1.msra.mxu0 %v964
          %1123 = vmatprep.subr.mxu0 %v969
          %1124 = vmatpush1.msra.mxu0 %v968
          %1125 = vmatprep.subr.mxu0 %v973
          %1126 = vmatpush1.msra.mxu0 %v972
          %1127 = vmatprep.subr.mxu0 %v977
          %1128 = vmatpush1.msra.mxu0 %v976
          %1129 = vmatprep.subr.mxu0 %v981
          %1130 = vmatpush1.msra.mxu0 %v980
          %1131 = vmatprep.subr.mxu0 %v985
          %1132 = vmatpush1.msra.mxu0 %v984
          %1133 = vmatprep.subr.mxu0 %v989
          %1134 = vmatpush1.msra.mxu0 %v988
          %1135 = vmatprep.subr.mxu0 0.0
          %1136 = vmatpush1.msra.mxu0 0.0
          %1137 = vmatprep.subr.mxu0 0.0
          %1138 = vmatpush1.msra.mxu0 0.0
          %1139 = vmatprep.subr.mxu0 0.0
          %1140 = vmatpush1.msra.mxu0 0.0
          %1141 = vmatprep.subr.mxu0 0.0
          %1142 = vmatpush1.msra.mxu0 0.0
          %1143 = vmatprep.subr.mxu0 0.0
          %1144 = vmatpush1.msra.mxu0 0.0
          %1145 = vmatprep.subr.mxu0 0.0
          %1146 = vmatpush1.msra.mxu0 0.0
          %1147 = vmatprep.subr.mxu0 0.0
          %1148 = vmatpush1.msra.mxu0 0.0
          %1149 = vmatprep.subr.mxu0 0.0
          %1150 = vmatpush1.msra.mxu0 0.0
          %1151 = vmatprep.subr.mxu0 0.0
          %1152 = vmatpush1.msra.mxu0 0.0
          %1153 = vmatprep.subr.mxu0 0.0
          %1154 = vmatpush1.msra.mxu0 0.0
          %1155 = vmatprep.subr.mxu0 0.0
          %1156 = vmatpush1.msra.mxu0 0.0
          %1157 = vmatprep.subr.mxu0 0.0
          %1158 = vmatpush1.msra.mxu0 0.0
          %1159 = vmatprep.subr.mxu0 0.0
          %1160 = vmatpush1.msra.mxu0 0.0
          %1161 = vmatprep.subr.mxu0 0.0
          %1162 = vmatpush1.msra.mxu0 0.0
          %1163 = vmatprep.subr.mxu0 0.0
          %1164 = vmatpush1.msra.mxu0 0.0
          %1165 = vmatprep.subr.mxu0 0.0
          %1166 = vmatpush1.msra.mxu0 0.0
          %1167 = vmatprep.mubr.f32.mxu0 0.0
          %1168 = vmatmul.mubr.f32.gmra.mrb[0].mxu0 %v918
          %v1169 = vpop.f32.mrb[0].mxu0
          %v1170 = vadd.f32 0.0, %v1169
          %v1171 = vpop.f32.mrb[0].mxu0
          %v1172 = vadd.f32 0.0, %v1171
          %1173 = vmatprep.mubr.f32.mxu0 0.0
          %1174 = vmatmul.mubr.f32.gmra.mrb[0].mxu0 %v919
          %v1175 = vpop.f32.mrb[0].mxu0
          %v1176 = vadd.f32 0.0, %v1175
          %v1177 = vpop.f32.mrb[0].mxu0
          %v1178 = vadd.f32 0.0, %v1177
          %1179 = vmatprep.mubr.f32.mxu0 0.0
          %1180 = vmatmul.mubr.f32.gmra.mrb[0].mxu0 %v920
          %v1181 = vpop.f32.mrb[0].mxu0
          %v1182 = vadd.f32 0.0, %v1181
          %v1183 = vpop.f32.mrb[0].mxu0
          %v1184 = vadd.f32 0.0, %v1183
          %1185 = vmatprep.mubr.f32.mxu0 0.0
          %1186 = vmatmul.mubr.f32.gmra.mrb[0].mxu0 %v921
          %v1187 = vpop.f32.mrb[0].mxu0
          %v1188 = vadd.f32 0.0, %v1187
          %v1189 = vpop.f32.mrb[0].mxu0
          %v1190 = vadd.f32 0.0, %v1189
          %1191 = vmatprep.mubr.f32.mxu0 0.0
          %1192 = vmatmul.mubr.f32.gmra.mrb[0].mxu0 %v922
          %v1193 = vpop.f32.mrb[0].mxu0
          %v1194 = vadd.f32 0.0, %v1193
          %v1195 = vpop.f32.mrb[0].mxu0
          %v1196 = vadd.f32 0.0, %v1195
          %1197 = vmatprep.mubr.f32.mxu0 0.0
          %1198 = vmatmul.mubr.f32.gmra.mrb[0].mxu0 %v923
          %v1199 = vpop.f32.mrb[0].mxu0
          %v1200 = vadd.f32 0.0, %v1199
          %v1201 = vpop.f32.mrb[0].mxu0
          %v1202 = vadd.f32 0.0, %v1201
          %1203 = vmatprep.mubr.f32.mxu0 0.0
          %1204 = vmatmul.mubr.f32.gmra.mrb[0].mxu0 %v924
          %v1205 = vpop.f32.mrb[0].mxu0
          %v1206 = vadd.f32 0.0, %v1205
          %v1207 = vpop.f32.mrb[0].mxu0
          %v1208 = vadd.f32 0.0, %v1207
          %1209 = vmatprep.mubr.f32.mxu0 0.0
          %1210 = vmatmul.mubr.f32.gmra.mrb[0].mxu0 %v925
          %v1211 = vpop.f32.mrb[0].mxu0
          %v1212 = vadd.f32 0.0, %v1211
          %v1213 = vpop.f32.mrb[0].mxu0
          %v1214 = vadd.f32 0.0, %v1213
          %1215 = vdwg.mxu0
          %v1216 = vld [vmem:[%s380] sm:$0xf]
          %v1218 = vlaneseq
          %v1219 = vshrl.u32 %v1218, 7
          %v1220 = vsub.s32 0, %v1219
          %v1221 = vrot.slane %v1216, %v1220
          %v1222 = vlaneseq
          %v1223 = vshrl.u32 %v1222, 7
          %v1224 = vsub.s32 1, %v1223
          %v1225 = vrot.slane %v1216, %v1224
          %v1226 = vlaneseq
          %v1227 = vshrl.u32 %v1226, 7
          %v1228 = vsub.s32 2, %v1227
          %v1229 = vrot.slane %v1216, %v1228
          %v1230 = vlaneseq
          %v1231 = vshrl.u32 %v1230, 7
          %v1232 = vsub.s32 3, %v1231
          %v1233 = vrot.slane %v1216, %v1232
          %v1238 = vadd.f32 %v1057, %v1221
          %v1239 = vadd.f32 %v1059, %v1225
          %v1240 = vadd.f32 %v1170, %v1229
          %v1241 = vadd.f32 %v1172, %v1233
          %v1242 = vadd.f32 %v1063, %v1221
          %v1243 = vadd.f32 %v1065, %v1225
          %v1244 = vadd.f32 %v1176, %v1229
          %v1245 = vadd.f32 %v1178, %v1233
          %v1246 = vadd.f32 %v1069, %v1221
          %v1247 = vadd.f32 %v1071, %v1225
          %v1248 = vadd.f32 %v1182, %v1229
          %v1249 = vadd.f32 %v1184, %v1233
          %v1250 = vadd.f32 %v1075, %v1221
          %v1251 = vadd.f32 %v1077, %v1225
          %v1252 = vadd.f32 %v1188, %v1229
          %v1253 = vadd.f32 %v1190, %v1233
          %v1254 = vadd.f32 %v1081, %v1221
          %v1255 = vadd.f32 %v1083, %v1225
          %v1256 = vadd.f32 %v1194, %v1229
          %v1257 = vadd.f32 %v1196, %v1233
          %v1258 = vadd.f32 %v1087, %v1221
          %v1259 = vadd.f32 %v1089, %v1225
          %v1260 = vadd.f32 %v1200, %v1229
          %v1261 = vadd.f32 %v1202, %v1233
          %v1262 = vadd.f32 %v1093, %v1221
          %v1263 = vadd.f32 %v1095, %v1225
          %v1264 = vadd.f32 %v1206, %v1229
          %v1265 = vadd.f32 %v1208, %v1233
          %v1266 = vadd.f32 %v1099, %v1221
          %v1267 = vadd.f32 %v1101, %v1225
          %v1268 = vadd.f32 %v1212, %v1229
          %v1269 = vadd.f32 %v1214, %v1233
          %1270 = vst [vmem:[#allocation4] sm:$0xff] %v1238
          %1271 = vst [vmem:[#allocation4 + $0x8] sm:$0xff] %v1239
          %1272 = vst [vmem:[#allocation4 + $0x10] sm:$0xff] %v1240
          %1273 = vst [vmem:[#allocation4 + $0x18] sm:$0xff] %v1241
          %1274 = vst [vmem:[#allocation4 + $0x20] sm:$0xff] %v1242
          %1275 = vst [vmem:[#allocation4 + $0x28] sm:$0xff] %v1243
          %1276 = vst [vmem:[#allocation4 + $0x30] sm:$0xff] %v1244
          %1277 = vst [vmem:[#allocation4 + $0x38] sm:$0xff] %v1245
          %1278 = vst [vmem:[#allocation4 + $0x40] sm:$0xff] %v1246
          %1279 = vst [vmem:[#allocation4 + $0x48] sm:$0xff] %v1247
          %1280 = vst [vmem:[#allocation4 + $0x50] sm:$0xff] %v1248
          %1281 = vst [vmem:[#allocation4 + $0x58] sm:$0xff] %v1249
          %1282 = vst [vmem:[#allocation4 + $0x60] sm:$0xff] %v1250
          %1283 = vst [vmem:[#allocation4 + $0x68] sm:$0xff] %v1251
          %1284 = vst [vmem:[#allocation4 + $0x70] sm:$0xff] %v1252
          %1285 = vst [vmem:[#allocation4 + $0x78] sm:$0xff] %v1253
          %1286 = vst [vmem:[#allocation4 + $0x80] sm:$0xff] %v1254
          %1287 = vst [vmem:[#allocation4 + $0x88] sm:$0xff] %v1255
          %1288 = vst [vmem:[#allocation4 + $0x90] sm:$0xff] %v1256
          %1289 = vst [vmem:[#allocation4 + $0x98] sm:$0xff] %v1257
          %1290 = vst [vmem:[#allocation4 + $0xa0] sm:$0xff] %v1258
          %1291 = vst [vmem:[#allocation4 + $0xa8] sm:$0xff] %v1259
          %1292 = vst [vmem:[#allocation4 + $0xb0] sm:$0xff] %v1260
          %1293 = vst [vmem:[#allocation4 + $0xb8] sm:$0xff] %v1261
          %1294 = vst [vmem:[#allocation4 + $0xc0] sm:$0xff] %v1262
          %1295 = vst [vmem:[#allocation4 + $0xc8] sm:$0xff] %v1263
          %1296 = vst [vmem:[#allocation4 + $0xd0] sm:$0xff] %v1264
          %1297 = vst [vmem:[#allocation4 + $0xd8] sm:$0xff] %v1265
          %1298 = vst [vmem:[#allocation4 + $0xe0] sm:$0xff] %v1266
          %1299 = vst [vmem:[#allocation4 + $0xe8] sm:$0xff] %v1267
          %1300 = vst [vmem:[#allocation4 + $0xf0] sm:$0xff] %v1268
          %1301 = vst [vmem:[#allocation4 + $0xf8] sm:$0xff] %v1269
        $region64: #{_lambda_.3} parent=43 // pred_fallthru
          _
        // Predicated region
        $region65: #{_lambda_.3} parent=43 // pred_check
          %p1302 = pneg %p913
        $region66: #{_lambda_.3} parent=43 // pred_check_branch
          %1304 = sbr.rel (%p1302) target = $region68
        $region67: #{_lambda_.3} parent=43 // pred_region
          %v1305 = vld [vmem:[%s332] sm:$0xff]
          %v1306 = vld [vmem:[%s332 + $0x8] sm:$0xff]
          %v1307 = vld [vmem:[%s332 + $0x10] sm:$0xff]
          %v1308 = vld [vmem:[%s332 + $0x18] sm:$0xff]
          %v1309 = vld [vmem:[%s332 + $0x20] sm:$0xff]
          %v1310 = vld [vmem:[%s332 + $0x28] sm:$0xff]
          %v1311 = vld [vmem:[%s332 + $0x30] sm:$0xff]
          %v1312 = vld [vmem:[%s332 + $0x38] sm:$0xff]
          %v1313 = vld [vmem:[%s332 + $0x40] sm:$0xff]
          %v1314 = vld [vmem:[%s332 + $0x48] sm:$0xff]
          %v1315 = vld [vmem:[%s332 + $0x50] sm:$0xff]
          %v1316 = vld [vmem:[%s332 + $0x58] sm:$0xff]
          %v1317 = vld [vmem:[%s332 + $0x60] sm:$0xff]
          %v1318 = vld [vmem:[%s332 + $0x68] sm:$0xff]
          %v1319 = vld [vmem:[%s332 + $0x70] sm:$0xff]
          %v1320 = vld [vmem:[%s332 + $0x78] sm:$0xff]
          %v1321 = vld [vmem:[%s332 + $0x80] sm:$0xff]
          %v1322 = vld [vmem:[%s332 + $0x88] sm:$0xff]
          %v1323 = vld [vmem:[%s332 + $0x90] sm:$0xff]
          %v1324 = vld [vmem:[%s332 + $0x98] sm:$0xff]
          %v1325 = vld [vmem:[%s332 + $0xa0] sm:$0xff]
          %v1326 = vld [vmem:[%s332 + $0xa8] sm:$0xff]
          %v1327 = vld [vmem:[%s332 + $0xb0] sm:$0xff]
          %v1328 = vld [vmem:[%s332 + $0xb8] sm:$0xff]
          %v1329 = vld [vmem:[%s332 + $0xc0] sm:$0xff]
          %v1330 = vld [vmem:[%s332 + $0xc8] sm:$0xff]
          %v1331 = vld [vmem:[%s332 + $0xd0] sm:$0xff]
          %v1332 = vld [vmem:[%s332 + $0xd8] sm:$0xff]
          %v1333 = vld [vmem:[%s332 + $0xe0] sm:$0xff]
          %v1334 = vld [vmem:[%s332 + $0xe8] sm:$0xff]
          %v1335 = vld [vmem:[%s332 + $0xf0] sm:$0xff]
          %v1336 = vld [vmem:[%s332 + $0xf8] sm:$0xff]
          %v1337 = vld [vmem:[%s332 + $0x100] sm:$0xff]
          %v1338 = vld [vmem:[%s332 + $0x108] sm:$0xff]
          %v1339 = vld [vmem:[%s332 + $0x110] sm:$0xff]
          %v1340 = vld [vmem:[%s332 + $0x118] sm:$0xff]
          %v1341 = vld [vmem:[%s332 + $0x120] sm:$0xff]
          %v1342 = vld [vmem:[%s332 + $0x128] sm:$0xff]
          %v1343 = vld [vmem:[%s332 + $0x130] sm:$0xff]
          %v1344 = vld [vmem:[%s332 + $0x138] sm:$0xff]
          %v1345 = vld [vmem:[%s332 + $0x140] sm:$0xff]
          %v1346 = vld [vmem:[%s332 + $0x148] sm:$0xff]
          %v1347 = vld [vmem:[%s332 + $0x150] sm:$0xff]
          %v1348 = vld [vmem:[%s332 + $0x158] sm:$0xff]
          %v1349 = vld [vmem:[%s332 + $0x160] sm:$0xff]
          %v1350 = vld [vmem:[%s332 + $0x168] sm:$0xff]
          %v1351 = vld [vmem:[%s332 + $0x170] sm:$0xff]
          %v1352 = vld [vmem:[%s332 + $0x178] sm:$0xff]
          %v1353 = vld [vmem:[%s332 + $0x180] sm:$0xff]
          %v1354 = vld [vmem:[%s332 + $0x188] sm:$0xff]
          %v1355 = vld [vmem:[%s332 + $0x190] sm:$0xff]
          %v1356 = vld [vmem:[%s332 + $0x198] sm:$0xff]
          %v1357 = vld [vmem:[%s332 + $0x1a0] sm:$0xff]
          %v1358 = vld [vmem:[%s332 + $0x1a8] sm:$0xff]
          %v1359 = vld [vmem:[%s332 + $0x1b0] sm:$0xff]
          %v1360 = vld [vmem:[%s332 + $0x1b8] sm:$0xff]
          %v1361 = vld [vmem:[%s332 + $0x1c0] sm:$0xff]
          %v1362 = vld [vmem:[%s332 + $0x1c8] sm:$0xff]
          %v1363 = vld [vmem:[%s332 + $0x1d0] sm:$0xff]
          %v1364 = vld [vmem:[%s332 + $0x1d8] sm:$0xff]
          %v1365 = vld [vmem:[%s332 + $0x1e0] sm:$0xff]
          %v1366 = vld [vmem:[%s332 + $0x1e8] sm:$0xff]
          %v1367 = vld [vmem:[%s332 + $0x1f0] sm:$0xff]
          %v1368 = vld [vmem:[%s332 + $0x1f8] sm:$0xff]
          %v1369 = vld [vmem:[#allocation4] sm:$0xff]
          %v1370 = vld [vmem:[#allocation4 + $0x8] sm:$0xff]
          %v1371 = vld [vmem:[#allocation4 + $0x10] sm:$0xff]
          %v1372 = vld [vmem:[#allocation4 + $0x18] sm:$0xff]
          %1373 = vmatprep.subr.mxu0 %v1306
          %1374 = vmatpush1.msra.mxu0 %v1305
          %1375 = vmatprep.subr.mxu0 %v1310
          %1376 = vmatpush1.msra.mxu0 %v1309
          %1377 = vmatprep.subr.mxu0 %v1314
          %1378 = vmatpush1.msra.mxu0 %v1313
          %1379 = vmatprep.subr.mxu0 %v1318
          %1380 = vmatpush1.msra.mxu0 %v1317
          %1381 = vmatprep.subr.mxu0 %v1322
          %1382 = vmatpush1.msra.mxu0 %v1321
          %1383 = vmatprep.subr.mxu0 %v1326
          %1384 = vmatpush1.msra.mxu0 %v1325
          %1385 = vmatprep.subr.mxu0 %v1330
          %1386 = vmatpush1.msra.mxu0 %v1329
          %1387 = vmatprep.subr.mxu0 %v1334
          %1388 = vmatpush1.msra.mxu0 %v1333
          %1389 = vmatprep.subr.mxu0 %v1338
          %1390 = vmatpush1.msra.mxu0 %v1337
          %1391 = vmatprep.subr.mxu0 %v1342
          %1392 = vmatpush1.msra.mxu0 %v1341
          %1393 = vmatprep.subr.mxu0 %v1346
          %1394 = vmatpush1.msra.mxu0 %v1345
          %1395 = vmatprep.subr.mxu0 %v1350
          %1396 = vmatpush1.msra.mxu0 %v1349
          %1397 = vmatprep.subr.mxu0 %v1354
          %1398 = vmatpush1.msra.mxu0 %v1353
          %1399 = vmatprep.subr.mxu0 %v1358
          %1400 = vmatpush1.msra.mxu0 %v1357
          %1401 = vmatprep.subr.mxu0 %v1362
          %1402 = vmatpush1.msra.mxu0 %v1361
          %1403 = vmatprep.subr.mxu0 %v1366
          %1404 = vmatpush1.msra.mxu0 %v1365
          %1405 = vmatprep.subr.mxu0 0.0
          %1406 = vmatpush1.msra.mxu0 0.0
          %1407 = vmatprep.subr.mxu0 0.0
          %1408 = vmatpush1.msra.mxu0 0.0
          %1409 = vmatprep.subr.mxu0 0.0
          %1410 = vmatpush1.msra.mxu0 0.0
          %1411 = vmatprep.subr.mxu0 0.0
          %1412 = vmatpush1.msra.mxu0 0.0
          %1413 = vmatprep.subr.mxu0 0.0
          %1414 = vmatpush1.msra.mxu0 0.0
          %1415 = vmatprep.subr.mxu0 0.0
          %1416 = vmatpush1.msra.mxu0 0.0
          %1417 = vmatprep.subr.mxu0 0.0
          %1418 = vmatpush1.msra.mxu0 0.0
          %1419 = vmatprep.subr.mxu0 0.0
          %1420 = vmatpush1.msra.mxu0 0.0
          %1421 = vmatprep.subr.mxu0 0.0
          %1422 = vmatpush1.msra.mxu0 0.0
          %1423 = vmatprep.subr.mxu0 0.0
          %1424 = vmatpush1.msra.mxu0 0.0
          %1425 = vmatprep.subr.mxu0 0.0
          %1426 = vmatpush1.msra.mxu0 0.0
          %1427 = vmatprep.subr.mxu0 0.0
          %1428 = vmatpush1.msra.mxu0 0.0
          %1429 = vmatprep.subr.mxu0 0.0
          %1430 = vmatpush1.msra.mxu0 0.0
          %1431 = vmatprep.subr.mxu0 0.0
          %1432 = vmatpush1.msra.mxu0 0.0
          %1433 = vmatprep.subr.mxu0 0.0
          %1434 = vmatpush1.msra.mxu0 0.0
          %1435 = vmatprep.subr.mxu0 0.0
          %1436 = vmatpush1.msra.mxu0 0.0
          %1437 = vmatprep.mubr.f32.mxu0 0.0
          %1438 = vmatmul.mubr.f32.gmra.mrb[0].mxu0 0.0
          %v1439 = vpop.f32.mrb[0].mxu0
          %v1440 = vadd.f32 0.0, %v1439
          %v1441 = vpop.f32.mrb[0].mxu0
          %v1442 = vadd.f32 0.0, %v1441
          %1443 = vdwg.mxu0
          %1444 = vmatprep.subr.mxu0 %v1308
          %1445 = vmatpush1.msra.mxu0 %v1307
          %1446 = vmatprep.subr.mxu0 %v1312
          %1447 = vmatpush1.msra.mxu0 %v1311
          %1448 = vmatprep.subr.mxu0 %v1316
          %1449 = vmatpush1.msra.mxu0 %v1315
          %1450 = vmatprep.subr.mxu0 %v1320
          %1451 = vmatpush1.msra.mxu0 %v1319
          %1452 = vmatprep.subr.mxu0 %v1324
          %1453 = vmatpush1.msra.mxu0 %v1323
          %1454 = vmatprep.subr.mxu0 %v1328
          %1455 = vmatpush1.msra.mxu0 %v1327
          %1456 = vmatprep.subr.mxu0 %v1332
          %1457 = vmatpush1.msra.mxu0 %v1331
          %1458 = vmatprep.subr.mxu0 %v1336
          %1459 = vmatpush1.msra.mxu0 %v1335
          %1460 = vmatprep.subr.mxu0 %v1340
          %1461 = vmatpush1.msra.mxu0 %v1339
          %1462 = vmatprep.subr.mxu0 %v1344
          %1463 = vmatpush1.msra.mxu0 %v1343
          %1464 = vmatprep.subr.mxu0 %v1348
          %1465 = vmatpush1.msra.mxu0 %v1347
          %1466 = vmatprep.subr.mxu0 %v1352
          %1467 = vmatpush1.msra.mxu0 %v1351
          %1468 = vmatprep.subr.mxu0 %v1356
          %1469 = vmatpush1.msra.mxu0 %v1355
          %1470 = vmatprep.subr.mxu0 %v1360
          %1471 = vmatpush1.msra.mxu0 %v1359
          %1472 = vmatprep.subr.mxu0 %v1364
          %1473 = vmatpush1.msra.mxu0 %v1363
          %1474 = vmatprep.subr.mxu0 %v1368
          %1475 = vmatpush1.msra.mxu0 %v1367
          %1476 = vmatprep.subr.mxu0 0.0
          %1477 = vmatpush1.msra.mxu0 0.0
          %1478 = vmatprep.subr.mxu0 0.0
          %1479 = vmatpush1.msra.mxu0 0.0
          %1480 = vmatprep.subr.mxu0 0.0
          %1481 = vmatpush1.msra.mxu0 0.0
          %1482 = vmatprep.subr.mxu0 0.0
          %1483 = vmatpush1.msra.mxu0 0.0
          %1484 = vmatprep.subr.mxu0 0.0
          %1485 = vmatpush1.msra.mxu0 0.0
          %1486 = vmatprep.subr.mxu0 0.0
          %1487 = vmatpush1.msra.mxu0 0.0
          %1488 = vmatprep.subr.mxu0 0.0
          %1489 = vmatpush1.msra.mxu0 0.0
          %1490 = vmatprep.subr.mxu0 0.0
          %1491 = vmatpush1.msra.mxu0 0.0
          %1492 = vmatprep.subr.mxu0 0.0
          %1493 = vmatpush1.msra.mxu0 0.0
          %1494 = vmatprep.subr.mxu0 0.0
          %1495 = vmatpush1.msra.mxu0 0.0
          %1496 = vmatprep.subr.mxu0 0.0
          %1497 = vmatpush1.msra.mxu0 0.0
          %1498 = vmatprep.subr.mxu0 0.0
          %1499 = vmatpush1.msra.mxu0 0.0
          %1500 = vmatprep.subr.mxu0 0.0
          %1501 = vmatpush1.msra.mxu0 0.0
          %1502 = vmatprep.subr.mxu0 0.0
          %1503 = vmatpush1.msra.mxu0 0.0
          %1504 = vmatprep.subr.mxu0 0.0
          %1505 = vmatpush1.msra.mxu0 0.0
          %1506 = vmatprep.subr.mxu0 0.0
          %1507 = vmatpush1.msra.mxu0 0.0
          %1508 = vmatprep.mubr.f32.mxu0 0.0
          %1509 = vmatmul.mubr.f32.gmra.mrb[0].mxu0 0.0
          %v1510 = vpop.f32.mrb[0].mxu0
          %v1511 = vadd.f32 0.0, %v1510
          %v1512 = vpop.f32.mrb[0].mxu0
          %v1513 = vadd.f32 0.0, %v1512
          %1514 = vdwg.mxu0
          %v1515 = vadd.f32 %v1369, %v1440
          %v1516 = vadd.f32 %v1370, %v1442
          %v1517 = vadd.f32 %v1371, %v1511
          %v1518 = vadd.f32 %v1372, %v1513
          %v1519 = vxor.u32 %v1515, 2147483648
          %v1520 = vmul.f32 %v1519, 1.442695
          %v1521 = vpow.pop %v1520
          %v1522 = vadd.f32 %v1521, 1.0
          %v1523 = vrcp.pop %v1522
          %v1524 = vmul.f32 1.0, %v1523
          %v1525 = vxor.u32 %v1516, 2147483648
          %v1526 = vmul.f32 %v1525, 1.442695
          %v1527 = vpow.pop %v1526
          %v1528 = vadd.f32 %v1527, 1.0
          %v1529 = vrcp.pop %v1528
          %v1530 = vmul.f32 1.0, %v1529
          %v1531 = vtanh.pop %v1517
          %v1532 = vxor.u32 %v1518, 2147483648
          %v1533 = vmul.f32 %v1532, 1.442695
          %v1534 = vpow.pop %v1533
          %v1535 = vadd.f32 %v1534, 1.0
          %v1536 = vrcp.pop %v1535
          %v1537 = vmul.f32 1.0, %v1536
          %v1538 = vmul.f32 %v1530, 0.0
          %v1539 = vmul.f32 %v1524, %v1531
          %v1540 = vadd.f32 %v1538, %v1539
          %v1541 = vtanh.pop %v1540
          %v1542 = vmul.f32 %v1537, %v1541
          %1543 = vst [vmem:[#allocation2] sm:$0xff] %v1542
          %s1544 = scalar_lea.vmem [#allocation4], 32
          %v1545 = vld [vmem:[%s1544] sm:$0xff]
          %v1546 = vld [vmem:[%s1544 + $0x8] sm:$0xff]
          %v1547 = vld [vmem:[%s1544 + $0x10] sm:$0xff]
          %v1548 = vld [vmem:[%s1544 + $0x18] sm:$0xff]
          %1549 = vmatprep.subr.mxu0 %v1306
          %1550 = vmatpush1.msra.mxu0 %v1305
          %1551 = vmatprep.subr.mxu0 %v1310
          %1552 = vmatpush1.msra.mxu0 %v1309
          %1553 = vmatprep.subr.mxu0 %v1314
          %1554 = vmatpush1.msra.mxu0 %v1313
          %1555 = vmatprep.subr.mxu0 %v1318
          %1556 = vmatpush1.msra.mxu0 %v1317
          %1557 = vmatprep.subr.mxu0 %v1322
          %1558 = vmatpush1.msra.mxu0 %v1321
          %1559 = vmatprep.subr.mxu0 %v1326
          %1560 = vmatpush1.msra.mxu0 %v1325
          %1561 = vmatprep.subr.mxu0 %v1330
          %1562 = vmatpush1.msra.mxu0 %v1329
          %1563 = vmatprep.subr.mxu0 %v1334
          %1564 = vmatpush1.msra.mxu0 %v1333
          %1565 = vmatprep.subr.mxu0 %v1338
          %1566 = vmatpush1.msra.mxu0 %v1337
          %1567 = vmatprep.subr.mxu0 %v1342
          %1568 = vmatpush1.msra.mxu0 %v1341
          %1569 = vmatprep.subr.mxu0 %v1346
          %1570 = vmatpush1.msra.mxu0 %v1345
          %1571 = vmatprep.subr.mxu0 %v1350
          %1572 = vmatpush1.msra.mxu0 %v1349
          %1573 = vmatprep.subr.mxu0 %v1354
          %1574 = vmatpush1.msra.mxu0 %v1353
          %1575 = vmatprep.subr.mxu0 %v1358
          %1576 = vmatpush1.msra.mxu0 %v1357
          %1577 = vmatprep.subr.mxu0 %v1362
          %1578 = vmatpush1.msra.mxu0 %v1361
          %1579 = vmatprep.subr.mxu0 %v1366
          %1580 = vmatpush1.msra.mxu0 %v1365
          %1581 = vmatprep.subr.mxu0 0.0
          %1582 = vmatpush1.msra.mxu0 0.0
          %1583 = vmatprep.subr.mxu0 0.0
          %1584 = vmatpush1.msra.mxu0 0.0
          %1585 = vmatprep.subr.mxu0 0.0
          %1586 = vmatpush1.msra.mxu0 0.0
          %1587 = vmatprep.subr.mxu0 0.0
          %1588 = vmatpush1.msra.mxu0 0.0
          %1589 = vmatprep.subr.mxu0 0.0
          %1590 = vmatpush1.msra.mxu0 0.0
          %1591 = vmatprep.subr.mxu0 0.0
          %1592 = vmatpush1.msra.mxu0 0.0
          %1593 = vmatprep.subr.mxu0 0.0
          %1594 = vmatpush1.msra.mxu0 0.0
          %1595 = vmatprep.subr.mxu0 0.0
          %1596 = vmatpush1.msra.mxu0 0.0
          %1597 = vmatprep.subr.mxu0 0.0
          %1598 = vmatpush1.msra.mxu0 0.0
          %1599 = vmatprep.subr.mxu0 0.0
          %1600 = vmatpush1.msra.mxu0 0.0
          %1601 = vmatprep.subr.mxu0 0.0
          %1602 = vmatpush1.msra.mxu0 0.0
          %1603 = vmatprep.subr.mxu0 0.0
          %1604 = vmatpush1.msra.mxu0 0.0
          %1605 = vmatprep.subr.mxu0 0.0
          %1606 = vmatpush1.msra.mxu0 0.0
          %1607 = vmatprep.subr.mxu0 0.0
          %1608 = vmatpush1.msra.mxu0 0.0
          %1609 = vmatprep.subr.mxu0 0.0
          %1610 = vmatpush1.msra.mxu0 0.0
          %1611 = vmatprep.subr.mxu0 0.0
          %1612 = vmatpush1.msra.mxu0 0.0
          %1613 = vmatprep.mubr.f32.mxu0 0.0
          %1614 = vmatmul.mubr.f32.gmra.mrb[0].mxu0 %v1542
          %v1615 = vpop.f32.mrb[0].mxu0
          %v1616 = vadd.f32 0.0, %v1615
          %v1617 = vpop.f32.mrb[0].mxu0
          %v1618 = vadd.f32 0.0, %v1617
          %1619 = vdwg.mxu0
          %1620 = vmatprep.subr.mxu0 %v1308
          %1621 = vmatpush1.msra.mxu0 %v1307
          %1622 = vmatprep.subr.mxu0 %v1312
          %1623 = vmatpush1.msra.mxu0 %v1311
          %1624 = vmatprep.subr.mxu0 %v1316
          %1625 = vmatpush1.msra.mxu0 %v1315
          %1626 = vmatprep.subr.mxu0 %v1320
          %1627 = vmatpush1.msra.mxu0 %v1319
          %1628 = vmatprep.subr.mxu0 %v1324
          %1629 = vmatpush1.msra.mxu0 %v1323
          %1630 = vmatprep.subr.mxu0 %v1328
          %1631 = vmatpush1.msra.mxu0 %v1327
          %1632 = vmatprep.subr.mxu0 %v1332
          %1633 = vmatpush1.msra.mxu0 %v1331
          %1634 = vmatprep.subr.mxu0 %v1336
          %1635 = vmatpush1.msra.mxu0 %v1335
          %1636 = vmatprep.subr.mxu0 %v1340
          %1637 = vmatpush1.msra.mxu0 %v1339
          %1638 = vmatprep.subr.mxu0 %v1344
          %1639 = vmatpush1.msra.mxu0 %v1343
          %1640 = vmatprep.subr.mxu0 %v1348
          %1641 = vmatpush1.msra.mxu0 %v1347
          %1642 = vmatprep.subr.mxu0 %v1352
          %1643 = vmatpush1.msra.mxu0 %v1351
          %1644 = vmatprep.subr.mxu0 %v1356
          %1645 = vmatpush1.msra.mxu0 %v1355
          %1646 = vmatprep.subr.mxu0 %v1360
          %1647 = vmatpush1.msra.mxu0 %v1359
          %1648 = vmatprep.subr.mxu0 %v1364
          %1649 = vmatpush1.msra.mxu0 %v1363
          %1650 = vmatprep.subr.mxu0 %v1368
          %1651 = vmatpush1.msra.mxu0 %v1367
          %1652 = vmatprep.subr.mxu0 0.0
          %1653 = vmatpush1.msra.mxu0 0.0
          %1654 = vmatprep.subr.mxu0 0.0
          %1655 = vmatpush1.msra.mxu0 0.0
          %1656 = vmatprep.subr.mxu0 0.0
          %1657 = vmatpush1.msra.mxu0 0.0
          %1658 = vmatprep.subr.mxu0 0.0
          %1659 = vmatpush1.msra.mxu0 0.0
          %1660 = vmatprep.subr.mxu0 0.0
          %1661 = vmatpush1.msra.mxu0 0.0
          %1662 = vmatprep.subr.mxu0 0.0
          %1663 = vmatpush1.msra.mxu0 0.0
          %1664 = vmatprep.subr.mxu0 0.0
          %1665 = vmatpush1.msra.mxu0 0.0
          %1666 = vmatprep.subr.mxu0 0.0
          %1667 = vmatpush1.msra.mxu0 0.0
          %1668 = vmatprep.subr.mxu0 0.0
          %1669 = vmatpush1.msra.mxu0 0.0
          %1670 = vmatprep.subr.mxu0 0.0
          %1671 = vmatpush1.msra.mxu0 0.0
          %1672 = vmatprep.subr.mxu0 0.0
          %1673 = vmatpush1.msra.mxu0 0.0
          %1674 = vmatprep.subr.mxu0 0.0
          %1675 = vmatpush1.msra.mxu0 0.0
          %1676 = vmatprep.subr.mxu0 0.0
          %1677 = vmatpush1.msra.mxu0 0.0
          %1678 = vmatprep.subr.mxu0 0.0
          %1679 = vmatpush1.msra.mxu0 0.0
          %1680 = vmatprep.subr.mxu0 0.0
          %1681 = vmatpush1.msra.mxu0 0.0
          %1682 = vmatprep.subr.mxu0 0.0
          %1683 = vmatpush1.msra.mxu0 0.0
          %1684 = vmatprep.mubr.f32.mxu0 0.0
          %1685 = vmatmul.mubr.f32.gmra.mrb[0].mxu0 %v1542
          %v1686 = vpop.f32.mrb[0].mxu0
          %v1687 = vadd.f32 0.0, %v1686
          %v1688 = vpop.f32.mrb[0].mxu0
          %v1689 = vadd.f32 0.0, %v1688
          %1690 = vdwg.mxu0
          %v1691 = vadd.f32 %v1545, %v1616
          %v1692 = vadd.f32 %v1546, %v1618
          %v1693 = vadd.f32 %v1547, %v1687
          %v1694 = vadd.f32 %v1548, %v1689
          %v1695 = vxor.u32 %v1691, 2147483648
          %v1696 = vmul.f32 %v1695, 1.442695
          %v1697 = vpow.pop %v1696
          %v1698 = vadd.f32 %v1697, 1.0
          %v1699 = vrcp.pop %v1698
          %v1700 = vmul.f32 1.0, %v1699
          %v1701 = vxor.u32 %v1692, 2147483648
          %v1702 = vmul.f32 %v1701, 1.442695
          %v1703 = vpow.pop %v1702
          %v1704 = vadd.f32 %v1703, 1.0
          %v1705 = vrcp.pop %v1704
          %v1706 = vmul.f32 1.0, %v1705
          %v1707 = vtanh.pop %v1693
          %v1708 = vxor.u32 %v1694, 2147483648
          %v1709 = vmul.f32 %v1708, 1.442695
          %v1710 = vpow.pop %v1709
          %v1711 = vadd.f32 %v1710, 1.0
          %v1712 = vrcp.pop %v1711
          %v1713 = vmul.f32 1.0, %v1712
          %v1714 = vmul.f32 %v1706, %v1540
          %v1715 = vmul.f32 %v1700, %v1707
          %v1716 = vadd.f32 %v1714, %v1715
          %v1717 = vtanh.pop %v1716
          %v1718 = vmul.f32 %v1713, %v1717
          %s1719 = scalar_lea.vmem [#allocation2], 8
          %1720 = vst [vmem:[%s1719] sm:$0xff] %v1718
          %s1721 = scalar_lea.vmem [#allocation4], 64
          %v1722 = vld [vmem:[%s1721] sm:$0xff]
          %v1723 = vld [vmem:[%s1721 + $0x8] sm:$0xff]
          %v1724 = vld [vmem:[%s1721 + $0x10] sm:$0xff]
          %v1725 = vld [vmem:[%s1721 + $0x18] sm:$0xff]
          %1726 = vmatprep.subr.mxu0 %v1306
          %1727 = vmatpush1.msra.mxu0 %v1305
          %1728 = vmatprep.subr.mxu0 %v1310
          %1729 = vmatpush1.msra.mxu0 %v1309
          %1730 = vmatprep.subr.mxu0 %v1314
          %1731 = vmatpush1.msra.mxu0 %v1313
          %1732 = vmatprep.subr.mxu0 %v1318
          %1733 = vmatpush1.msra.mxu0 %v1317
          %1734 = vmatprep.subr.mxu0 %v1322
          %1735 = vmatpush1.msra.mxu0 %v1321
          %1736 = vmatprep.subr.mxu0 %v1326
          %1737 = vmatpush1.msra.mxu0 %v1325
          %1738 = vmatprep.subr.mxu0 %v1330
          %1739 = vmatpush1.msra.mxu0 %v1329
          %1740 = vmatprep.subr.mxu0 %v1334
          %1741 = vmatpush1.msra.mxu0 %v1333
          %1742 = vmatprep.subr.mxu0 %v1338
          %1743 = vmatpush1.msra.mxu0 %v1337
          %1744 = vmatprep.subr.mxu0 %v1342
          %1745 = vmatpush1.msra.mxu0 %v1341
          %1746 = vmatprep.subr.mxu0 %v1346
          %1747 = vmatpush1.msra.mxu0 %v1345
          %1748 = vmatprep.subr.mxu0 %v1350
          %1749 = vmatpush1.msra.mxu0 %v1349
          %1750 = vmatprep.subr.mxu0 %v1354
          %1751 = vmatpush1.msra.mxu0 %v1353
          %1752 = vmatprep.subr.mxu0 %v1358
          %1753 = vmatpush1.msra.mxu0 %v1357
          %1754 = vmatprep.subr.mxu0 %v1362
          %1755 = vmatpush1.msra.mxu0 %v1361
          %1756 = vmatprep.subr.mxu0 %v1366
          %1757 = vmatpush1.msra.mxu0 %v1365
          %1758 = vmatprep.subr.mxu0 0.0
          %1759 = vmatpush1.msra.mxu0 0.0
          %1760 = vmatprep.subr.mxu0 0.0
          %1761 = vmatpush1.msra.mxu0 0.0
          %1762 = vmatprep.subr.mxu0 0.0
          %1763 = vmatpush1.msra.mxu0 0.0
          %1764 = vmatprep.subr.mxu0 0.0
          %1765 = vmatpush1.msra.mxu0 0.0
          %1766 = vmatprep.subr.mxu0 0.0
          %1767 = vmatpush1.msra.mxu0 0.0
          %1768 = vmatprep.subr.mxu0 0.0
          %1769 = vmatpush1.msra.mxu0 0.0
          %1770 = vmatprep.subr.mxu0 0.0
          %1771 = vmatpush1.msra.mxu0 0.0
          %1772 = vmatprep.subr.mxu0 0.0
          %1773 = vmatpush1.msra.mxu0 0.0
          %1774 = vmatprep.subr.mxu0 0.0
          %1775 = vmatpush1.msra.mxu0 0.0
          %1776 = vmatprep.subr.mxu0 0.0
          %1777 = vmatpush1.msra.mxu0 0.0
          %1778 = vmatprep.subr.mxu0 0.0
          %1779 = vmatpush1.msra.mxu0 0.0
          %1780 = vmatprep.subr.mxu0 0.0
          %1781 = vmatpush1.msra.mxu0 0.0
          %1782 = vmatprep.subr.mxu0 0.0
          %1783 = vmatpush1.msra.mxu0 0.0
          %1784 = vmatprep.subr.mxu0 0.0
          %1785 = vmatpush1.msra.mxu0 0.0
          %1786 = vmatprep.subr.mxu0 0.0
          %1787 = vmatpush1.msra.mxu0 0.0
          %1788 = vmatprep.subr.mxu0 0.0
          %1789 = vmatpush1.msra.mxu0 0.0
          %1790 = vmatprep.mubr.f32.mxu0 0.0
          %1791 = vmatmul.mubr.f32.gmra.mrb[0].mxu0 %v1718
          %v1792 = vpop.f32.mrb[0].mxu0
          %v1793 = vadd.f32 0.0, %v1792
          %v1794 = vpop.f32.mrb[0].mxu0
          %v1795 = vadd.f32 0.0, %v1794
          %1796 = vdwg.mxu0
          %1797 = vmatprep.subr.mxu0 %v1308
          %1798 = vmatpush1.msra.mxu0 %v1307
          %1799 = vmatprep.subr.mxu0 %v1312
          %1800 = vmatpush1.msra.mxu0 %v1311
          %1801 = vmatprep.subr.mxu0 %v1316
          %1802 = vmatpush1.msra.mxu0 %v1315
          %1803 = vmatprep.subr.mxu0 %v1320
          %1804 = vmatpush1.msra.mxu0 %v1319
          %1805 = vmatprep.subr.mxu0 %v1324
          %1806 = vmatpush1.msra.mxu0 %v1323
          %1807 = vmatprep.subr.mxu0 %v1328
          %1808 = vmatpush1.msra.mxu0 %v1327
          %1809 = vmatprep.subr.mxu0 %v1332
          %1810 = vmatpush1.msra.mxu0 %v1331
          %1811 = vmatprep.subr.mxu0 %v1336
          %1812 = vmatpush1.msra.mxu0 %v1335
          %1813 = vmatprep.subr.mxu0 %v1340
          %1814 = vmatpush1.msra.mxu0 %v1339
          %1815 = vmatprep.subr.mxu0 %v1344
          %1816 = vmatpush1.msra.mxu0 %v1343
          %1817 = vmatprep.subr.mxu0 %v1348
          %1818 = vmatpush1.msra.mxu0 %v1347
          %1819 = vmatprep.subr.mxu0 %v1352
          %1820 = vmatpush1.msra.mxu0 %v1351
          %1821 = vmatprep.subr.mxu0 %v1356
          %1822 = vmatpush1.msra.mxu0 %v1355
          %1823 = vmatprep.subr.mxu0 %v1360
          %1824 = vmatpush1.msra.mxu0 %v1359
          %1825 = vmatprep.subr.mxu0 %v1364
          %1826 = vmatpush1.msra.mxu0 %v1363
          %1827 = vmatprep.subr.mxu0 %v1368
          %1828 = vmatpush1.msra.mxu0 %v1367
          %1829 = vmatprep.subr.mxu0 0.0
          %1830 = vmatpush1.msra.mxu0 0.0
          %1831 = vmatprep.subr.mxu0 0.0
          %1832 = vmatpush1.msra.mxu0 0.0
          %1833 = vmatprep.subr.mxu0 0.0
          %1834 = vmatpush1.msra.mxu0 0.0
          %1835 = vmatprep.subr.mxu0 0.0
          %1836 = vmatpush1.msra.mxu0 0.0
          %1837 = vmatprep.subr.mxu0 0.0
          %1838 = vmatpush1.msra.mxu0 0.0
          %1839 = vmatprep.subr.mxu0 0.0
          %1840 = vmatpush1.msra.mxu0 0.0
          %1841 = vmatprep.subr.mxu0 0.0
          %1842 = vmatpush1.msra.mxu0 0.0
          %1843 = vmatprep.subr.mxu0 0.0
          %1844 = vmatpush1.msra.mxu0 0.0
          %1845 = vmatprep.subr.mxu0 0.0
          %1846 = vmatpush1.msra.mxu0 0.0
          %1847 = vmatprep.subr.mxu0 0.0
          %1848 = vmatpush1.msra.mxu0 0.0
          %1849 = vmatprep.subr.mxu0 0.0
          %1850 = vmatpush1.msra.mxu0 0.0
          %1851 = vmatprep.subr.mxu0 0.0
          %1852 = vmatpush1.msra.mxu0 0.0
          %1853 = vmatprep.subr.mxu0 0.0
          %1854 = vmatpush1.msra.mxu0 0.0
          %1855 = vmatprep.subr.mxu0 0.0
          %1856 = vmatpush1.msra.mxu0 0.0
          %1857 = vmatprep.subr.mxu0 0.0
          %1858 = vmatpush1.msra.mxu0 0.0
          %1859 = vmatprep.subr.mxu0 0.0
          %1860 = vmatpush1.msra.mxu0 0.0
          %1861 = vmatprep.mubr.f32.mxu0 0.0
          %1862 = vmatmul.mubr.f32.gmra.mrb[0].mxu0 %v1718
          %v1863 = vpop.f32.mrb[0].mxu0
          %v1864 = vadd.f32 0.0, %v1863
          %v1865 = vpop.f32.mrb[0].mxu0
          %v1866 = vadd.f32 0.0, %v1865
          %1867 = vdwg.mxu0
          %v1868 = vadd.f32 %v1722, %v1793
          %v1869 = vadd.f32 %v1723, %v1795
          %v1870 = vadd.f32 %v1724, %v1864
          %v1871 = vadd.f32 %v1725, %v1866
          %v1872 = vxor.u32 %v1868, 2147483648
          %v1873 = vmul.f32 %v1872, 1.442695
          %v1874 = vpow.pop %v1873
          %v1875 = vadd.f32 %v1874, 1.0
          %v1876 = vrcp.pop %v1875
          %v1877 = vmul.f32 1.0, %v1876
          %v1878 = vxor.u32 %v1869, 2147483648
          %v1879 = vmul.f32 %v1878, 1.442695
          %v1880 = vpow.pop %v1879
          %v1881 = vadd.f32 %v1880, 1.0
          %v1882 = vrcp.pop %v1881
          %v1883 = vmul.f32 1.0, %v1882
          %v1884 = vtanh.pop %v1870
          %v1885 = vxor.u32 %v1871, 2147483648
          %v1886 = vmul.f32 %v1885, 1.442695
          %v1887 = vpow.pop %v1886
          %v1888 = vadd.f32 %v1887, 1.0
          %v1889 = vrcp.pop %v1888
          %v1890 = vmul.f32 1.0, %v1889
          %v1891 = vmul.f32 %v1883, %v1716
          %v1892 = vmul.f32 %v1877, %v1884
          %v1893 = vadd.f32 %v1891, %v1892
          %v1894 = vtanh.pop %v1893
          %v1895 = vmul.f32 %v1890, %v1894
          %s1896 = scalar_lea.vmem [#allocation2], 16
          %1897 = vst [vmem:[%s1896] sm:$0xff] %v1895
          %s1898 = scalar_lea.vmem [#allocation4], 96
          %v1899 = vld [vmem:[%s1898] sm:$0xff]
          %v1900 = vld [vmem:[%s1898 + $0x8] sm:$0xff]
          %v1901 = vld [vmem:[%s1898 + $0x10] sm:$0xff]
          %v1902 = vld [vmem:[%s1898 + $0x18] sm:$0xff]
          %1903 = vmatprep.subr.mxu0 %v1306
          %1904 = vmatpush1.msra.mxu0 %v1305
          %1905 = vmatprep.subr.mxu0 %v1310
          %1906 = vmatpush1.msra.mxu0 %v1309
          %1907 = vmatprep.subr.mxu0 %v1314
          %1908 = vmatpush1.msra.mxu0 %v1313
          %1909 = vmatprep.subr.mxu0 %v1318
          %1910 = vmatpush1.msra.mxu0 %v1317
          %1911 = vmatprep.subr.mxu0 %v1322
          %1912 = vmatpush1.msra.mxu0 %v1321
          %1913 = vmatprep.subr.mxu0 %v1326
          %1914 = vmatpush1.msra.mxu0 %v1325
          %1915 = vmatprep.subr.mxu0 %v1330
          %1916 = vmatpush1.msra.mxu0 %v1329
          %1917 = vmatprep.subr.mxu0 %v1334
          %1918 = vmatpush1.msra.mxu0 %v1333
          %1919 = vmatprep.subr.mxu0 %v1338
          %1920 = vmatpush1.msra.mxu0 %v1337
          %1921 = vmatprep.subr.mxu0 %v1342
          %1922 = vmatpush1.msra.mxu0 %v1341
          %1923 = vmatprep.subr.mxu0 %v1346
          %1924 = vmatpush1.msra.mxu0 %v1345
          %1925 = vmatprep.subr.mxu0 %v1350
          %1926 = vmatpush1.msra.mxu0 %v1349
          %1927 = vmatprep.subr.mxu0 %v1354
          %1928 = vmatpush1.msra.mxu0 %v1353
          %1929 = vmatprep.subr.mxu0 %v1358
          %1930 = vmatpush1.msra.mxu0 %v1357
          %1931 = vmatprep.subr.mxu0 %v1362
          %1932 = vmatpush1.msra.mxu0 %v1361
          %1933 = vmatprep.subr.mxu0 %v1366
          %1934 = vmatpush1.msra.mxu0 %v1365
          %1935 = vmatprep.subr.mxu0 0.0
          %1936 = vmatpush1.msra.mxu0 0.0
          %1937 = vmatprep.subr.mxu0 0.0
          %1938 = vmatpush1.msra.mxu0 0.0
          %1939 = vmatprep.subr.mxu0 0.0
          %1940 = vmatpush1.msra.mxu0 0.0
          %1941 = vmatprep.subr.mxu0 0.0
          %1942 = vmatpush1.msra.mxu0 0.0
          %1943 = vmatprep.subr.mxu0 0.0
          %1944 = vmatpush1.msra.mxu0 0.0
          %1945 = vmatprep.subr.mxu0 0.0
          %1946 = vmatpush1.msra.mxu0 0.0
          %1947 = vmatprep.subr.mxu0 0.0
          %1948 = vmatpush1.msra.mxu0 0.0
          %1949 = vmatprep.subr.mxu0 0.0
          %1950 = vmatpush1.msra.mxu0 0.0
          %1951 = vmatprep.subr.mxu0 0.0
          %1952 = vmatpush1.msra.mxu0 0.0
          %1953 = vmatprep.subr.mxu0 0.0
          %1954 = vmatpush1.msra.mxu0 0.0
          %1955 = vmatprep.subr.mxu0 0.0
          %1956 = vmatpush1.msra.mxu0 0.0
          %1957 = vmatprep.subr.mxu0 0.0
          %1958 = vmatpush1.msra.mxu0 0.0
          %1959 = vmatprep.subr.mxu0 0.0
          %1960 = vmatpush1.msra.mxu0 0.0
          %1961 = vmatprep.subr.mxu0 0.0
          %1962 = vmatpush1.msra.mxu0 0.0
          %1963 = vmatprep.subr.mxu0 0.0
          %1964 = vmatpush1.msra.mxu0 0.0
          %1965 = vmatprep.subr.mxu0 0.0
          %1966 = vmatpush1.msra.mxu0 0.0
          %1967 = vmatprep.mubr.f32.mxu0 0.0
          %1968 = vmatmul.mubr.f32.gmra.mrb[0].mxu0 %v1895
          %v1969 = vpop.f32.mrb[0].mxu0
          %v1970 = vadd.f32 0.0, %v1969
          %v1971 = vpop.f32.mrb[0].mxu0
          %v1972 = vadd.f32 0.0, %v1971
          %1973 = vdwg.mxu0
          %1974 = vmatprep.subr.mxu0 %v1308
          %1975 = vmatpush1.msra.mxu0 %v1307
          %1976 = vmatprep.subr.mxu0 %v1312
          %1977 = vmatpush1.msra.mxu0 %v1311
          %1978 = vmatprep.subr.mxu0 %v1316
          %1979 = vmatpush1.msra.mxu0 %v1315
          %1980 = vmatprep.subr.mxu0 %v1320
          %1981 = vmatpush1.msra.mxu0 %v1319
          %1982 = vmatprep.subr.mxu0 %v1324
          %1983 = vmatpush1.msra.mxu0 %v1323
          %1984 = vmatprep.subr.mxu0 %v1328
          %1985 = vmatpush1.msra.mxu0 %v1327
          %1986 = vmatprep.subr.mxu0 %v1332
          %1987 = vmatpush1.msra.mxu0 %v1331
          %1988 = vmatprep.subr.mxu0 %v1336
          %1989 = vmatpush1.msra.mxu0 %v1335
          %1990 = vmatprep.subr.mxu0 %v1340
          %1991 = vmatpush1.msra.mxu0 %v1339
          %1992 = vmatprep.subr.mxu0 %v1344
          %1993 = vmatpush1.msra.mxu0 %v1343
          %1994 = vmatprep.subr.mxu0 %v1348
          %1995 = vmatpush1.msra.mxu0 %v1347
          %1996 = vmatprep.subr.mxu0 %v1352
          %1997 = vmatpush1.msra.mxu0 %v1351
          %1998 = vmatprep.subr.mxu0 %v1356
          %1999 = vmatpush1.msra.mxu0 %v1355
          %2000 = vmatprep.subr.mxu0 %v1360
          %2001 = vmatpush1.msra.mxu0 %v1359
          %2002 = vmatprep.subr.mxu0 %v1364
          %2003 = vmatpush1.msra.mxu0 %v1363
          %2004 = vmatprep.subr.mxu0 %v1368
          %2005 = vmatpush1.msra.mxu0 %v1367
          %2006 = vmatprep.subr.mxu0 0.0
          %2007 = vmatpush1.msra.mxu0 0.0
          %2008 = vmatprep.subr.mxu0 0.0
          %2009 = vmatpush1.msra.mxu0 0.0
          %2010 = vmatprep.subr.mxu0 0.0
          %2011 = vmatpush1.msra.mxu0 0.0
          %2012 = vmatprep.subr.mxu0 0.0
          %2013 = vmatpush1.msra.mxu0 0.0
          %2014 = vmatprep.subr.mxu0 0.0
          %2015 = vmatpush1.msra.mxu0 0.0
          %2016 = vmatprep.subr.mxu0 0.0
          %2017 = vmatpush1.msra.mxu0 0.0
          %2018 = vmatprep.subr.mxu0 0.0
          %2019 = vmatpush1.msra.mxu0 0.0
          %2020 = vmatprep.subr.mxu0 0.0
          %2021 = vmatpush1.msra.mxu0 0.0
          %2022 = vmatprep.subr.mxu0 0.0
          %2023 = vmatpush1.msra.mxu0 0.0
          %2024 = vmatprep.subr.mxu0 0.0
          %2025 = vmatpush1.msra.mxu0 0.0
          %2026 = vmatprep.subr.mxu0 0.0
          %2027 = vmatpush1.msra.mxu0 0.0
          %2028 = vmatprep.subr.mxu0 0.0
          %2029 = vmatpush1.msra.mxu0 0.0
          %2030 = vmatprep.subr.mxu0 0.0
          %2031 = vmatpush1.msra.mxu0 0.0
          %2032 = vmatprep.subr.mxu0 0.0
          %2033 = vmatpush1.msra.mxu0 0.0
          %2034 = vmatprep.subr.mxu0 0.0
          %2035 = vmatpush1.msra.mxu0 0.0
          %2036 = vmatprep.subr.mxu0 0.0
          %2037 = vmatpush1.msra.mxu0 0.0
          %2038 = vmatprep.mubr.f32.mxu0 0.0
          %2039 = vmatmul.mubr.f32.gmra.mrb[0].mxu0 %v1895
          %v2040 = vpop.f32.mrb[0].mxu0
          %v2041 = vadd.f32 0.0, %v2040
          %v2042 = vpop.f32.mrb[0].mxu0
          %v2043 = vadd.f32 0.0, %v2042
          %2044 = vdwg.mxu0
          %v2045 = vadd.f32 %v1899, %v1970
          %v2046 = vadd.f32 %v1900, %v1972
          %v2047 = vadd.f32 %v1901, %v2041
          %v2048 = vadd.f32 %v1902, %v2043
          %v2049 = vxor.u32 %v2045, 2147483648
          %v2050 = vmul.f32 %v2049, 1.442695
          %v2051 = vpow.pop %v2050
          %v2052 = vadd.f32 %v2051, 1.0
          %v2053 = vrcp.pop %v2052
          %v2054 = vmul.f32 1.0, %v2053
          %v2055 = vxor.u32 %v2046, 2147483648
          %v2056 = vmul.f32 %v2055, 1.442695
          %v2057 = vpow.pop %v2056
          %v2058 = vadd.f32 %v2057, 1.0
          %v2059 = vrcp.pop %v2058
          %v2060 = vmul.f32 1.0, %v2059
          %v2061 = vtanh.pop %v2047
          %v2062 = vxor.u32 %v2048, 2147483648
          %v2063 = vmul.f32 %v2062, 1.442695
          %v2064 = vpow.pop %v2063
          %v2065 = vadd.f32 %v2064, 1.0
          %v2066 = vrcp.pop %v2065
          %v2067 = vmul.f32 1.0, %v2066
          %v2068 = vmul.f32 %v2060, %v1893
          %v2069 = vmul.f32 %v2054, %v2061
          %v2070 = vadd.f32 %v2068, %v2069
          %v2071 = vtanh.pop %v2070
          %v2072 = vmul.f32 %v2067, %v2071
          %s2073 = scalar_lea.vmem [#allocation2], 24
          %2074 = vst [vmem:[%s2073] sm:$0xff] %v2072
          %s2075 = scalar_lea.vmem [#allocation4], 128
          %v2076 = vld [vmem:[%s2075] sm:$0xff]
          %v2077 = vld [vmem:[%s2075 + $0x8] sm:$0xff]
          %v2078 = vld [vmem:[%s2075 + $0x10] sm:$0xff]
          %v2079 = vld [vmem:[%s2075 + $0x18] sm:$0xff]
          %2080 = vmatprep.subr.mxu0 %v1306
          %2081 = vmatpush1.msra.mxu0 %v1305
          %2082 = vmatprep.subr.mxu0 %v1310
          %2083 = vmatpush1.msra.mxu0 %v1309
          %2084 = vmatprep.subr.mxu0 %v1314
          %2085 = vmatpush1.msra.mxu0 %v1313
          %2086 = vmatprep.subr.mxu0 %v1318
          %2087 = vmatpush1.msra.mxu0 %v1317
          %2088 = vmatprep.subr.mxu0 %v1322
          %2089 = vmatpush1.msra.mxu0 %v1321
          %2090 = vmatprep.subr.mxu0 %v1326
          %2091 = vmatpush1.msra.mxu0 %v1325
          %2092 = vmatprep.subr.mxu0 %v1330
          %2093 = vmatpush1.msra.mxu0 %v1329
          %2094 = vmatprep.subr.mxu0 %v1334
          %2095 = vmatpush1.msra.mxu0 %v1333
          %2096 = vmatprep.subr.mxu0 %v1338
          %2097 = vmatpush1.msra.mxu0 %v1337
          %2098 = vmatprep.subr.mxu0 %v1342
          %2099 = vmatpush1.msra.mxu0 %v1341
          %2100 = vmatprep.subr.mxu0 %v1346
          %2101 = vmatpush1.msra.mxu0 %v1345
          %2102 = vmatprep.subr.mxu0 %v1350
          %2103 = vmatpush1.msra.mxu0 %v1349
          %2104 = vmatprep.subr.mxu0 %v1354
          %2105 = vmatpush1.msra.mxu0 %v1353
          %2106 = vmatprep.subr.mxu0 %v1358
          %2107 = vmatpush1.msra.mxu0 %v1357
          %2108 = vmatprep.subr.mxu0 %v1362
          %2109 = vmatpush1.msra.mxu0 %v1361
          %2110 = vmatprep.subr.mxu0 %v1366
          %2111 = vmatpush1.msra.mxu0 %v1365
          %2112 = vmatprep.subr.mxu0 0.0
          %2113 = vmatpush1.msra.mxu0 0.0
          %2114 = vmatprep.subr.mxu0 0.0
          %2115 = vmatpush1.msra.mxu0 0.0
          %2116 = vmatprep.subr.mxu0 0.0
          %2117 = vmatpush1.msra.mxu0 0.0
          %2118 = vmatprep.subr.mxu0 0.0
          %2119 = vmatpush1.msra.mxu0 0.0
          %2120 = vmatprep.subr.mxu0 0.0
          %2121 = vmatpush1.msra.mxu0 0.0
          %2122 = vmatprep.subr.mxu0 0.0
          %2123 = vmatpush1.msra.mxu0 0.0
          %2124 = vmatprep.subr.mxu0 0.0
          %2125 = vmatpush1.msra.mxu0 0.0
          %2126 = vmatprep.subr.mxu0 0.0
          %2127 = vmatpush1.msra.mxu0 0.0
          %2128 = vmatprep.subr.mxu0 0.0
          %2129 = vmatpush1.msra.mxu0 0.0
          %2130 = vmatprep.subr.mxu0 0.0
          %2131 = vmatpush1.msra.mxu0 0.0
          %2132 = vmatprep.subr.mxu0 0.0
          %2133 = vmatpush1.msra.mxu0 0.0
          %2134 = vmatprep.subr.mxu0 0.0
          %2135 = vmatpush1.msra.mxu0 0.0
          %2136 = vmatprep.subr.mxu0 0.0
          %2137 = vmatpush1.msra.mxu0 0.0
          %2138 = vmatprep.subr.mxu0 0.0
          %2139 = vmatpush1.msra.mxu0 0.0
          %2140 = vmatprep.subr.mxu0 0.0
          %2141 = vmatpush1.msra.mxu0 0.0
          %2142 = vmatprep.subr.mxu0 0.0
          %2143 = vmatpush1.msra.mxu0 0.0
          %2144 = vmatprep.mubr.f32.mxu0 0.0
          %2145 = vmatmul.mubr.f32.gmra.mrb[0].mxu0 %v2072
          %v2146 = vpop.f32.mrb[0].mxu0
          %v2147 = vadd.f32 0.0, %v2146
          %v2148 = vpop.f32.mrb[0].mxu0
          %v2149 = vadd.f32 0.0, %v2148
          %2150 = vdwg.mxu0
          %2151 = vmatprep.subr.mxu0 %v1308
          %2152 = vmatpush1.msra.mxu0 %v1307
          %2153 = vmatprep.subr.mxu0 %v1312
          %2154 = vmatpush1.msra.mxu0 %v1311
          %2155 = vmatprep.subr.mxu0 %v1316
          %2156 = vmatpush1.msra.mxu0 %v1315
          %2157 = vmatprep.subr.mxu0 %v1320
          %2158 = vmatpush1.msra.mxu0 %v1319
          %2159 = vmatprep.subr.mxu0 %v1324
          %2160 = vmatpush1.msra.mxu0 %v1323
          %2161 = vmatprep.subr.mxu0 %v1328
          %2162 = vmatpush1.msra.mxu0 %v1327
          %2163 = vmatprep.subr.mxu0 %v1332
          %2164 = vmatpush1.msra.mxu0 %v1331
          %2165 = vmatprep.subr.mxu0 %v1336
          %2166 = vmatpush1.msra.mxu0 %v1335
          %2167 = vmatprep.subr.mxu0 %v1340
          %2168 = vmatpush1.msra.mxu0 %v1339
          %2169 = vmatprep.subr.mxu0 %v1344
          %2170 = vmatpush1.msra.mxu0 %v1343
          %2171 = vmatprep.subr.mxu0 %v1348
          %2172 = vmatpush1.msra.mxu0 %v1347
          %2173 = vmatprep.subr.mxu0 %v1352
          %2174 = vmatpush1.msra.mxu0 %v1351
          %2175 = vmatprep.subr.mxu0 %v1356
          %2176 = vmatpush1.msra.mxu0 %v1355
          %2177 = vmatprep.subr.mxu0 %v1360
          %2178 = vmatpush1.msra.mxu0 %v1359
          %2179 = vmatprep.subr.mxu0 %v1364
          %2180 = vmatpush1.msra.mxu0 %v1363
          %2181 = vmatprep.subr.mxu0 %v1368
          %2182 = vmatpush1.msra.mxu0 %v1367
          %2183 = vmatprep.subr.mxu0 0.0
          %2184 = vmatpush1.msra.mxu0 0.0
          %2185 = vmatprep.subr.mxu0 0.0
          %2186 = vmatpush1.msra.mxu0 0.0
          %2187 = vmatprep.subr.mxu0 0.0
          %2188 = vmatpush1.msra.mxu0 0.0
          %2189 = vmatprep.subr.mxu0 0.0
          %2190 = vmatpush1.msra.mxu0 0.0
          %2191 = vmatprep.subr.mxu0 0.0
          %2192 = vmatpush1.msra.mxu0 0.0
          %2193 = vmatprep.subr.mxu0 0.0
          %2194 = vmatpush1.msra.mxu0 0.0
          %2195 = vmatprep.subr.mxu0 0.0
          %2196 = vmatpush1.msra.mxu0 0.0
          %2197 = vmatprep.subr.mxu0 0.0
          %2198 = vmatpush1.msra.mxu0 0.0
          %2199 = vmatprep.subr.mxu0 0.0
          %2200 = vmatpush1.msra.mxu0 0.0
          %2201 = vmatprep.subr.mxu0 0.0
          %2202 = vmatpush1.msra.mxu0 0.0
          %2203 = vmatprep.subr.mxu0 0.0
          %2204 = vmatpush1.msra.mxu0 0.0
          %2205 = vmatprep.subr.mxu0 0.0
          %2206 = vmatpush1.msra.mxu0 0.0
          %2207 = vmatprep.subr.mxu0 0.0
          %2208 = vmatpush1.msra.mxu0 0.0
          %2209 = vmatprep.subr.mxu0 0.0
          %2210 = vmatpush1.msra.mxu0 0.0
          %2211 = vmatprep.subr.mxu0 0.0
          %2212 = vmatpush1.msra.mxu0 0.0
          %2213 = vmatprep.subr.mxu0 0.0
          %2214 = vmatpush1.msra.mxu0 0.0
          %2215 = vmatprep.mubr.f32.mxu0 0.0
          %2216 = vmatmul.mubr.f32.gmra.mrb[0].mxu0 %v2072
          %v2217 = vpop.f32.mrb[0].mxu0
          %v2218 = vadd.f32 0.0, %v2217
          %v2219 = vpop.f32.mrb[0].mxu0
          %v2220 = vadd.f32 0.0, %v2219
          %2221 = vdwg.mxu0
          %v2222 = vadd.f32 %v2076, %v2147
          %v2223 = vadd.f32 %v2077, %v2149
          %v2224 = vadd.f32 %v2078, %v2218
          %v2225 = vadd.f32 %v2079, %v2220
          %v2226 = vxor.u32 %v2222, 2147483648
          %v2227 = vmul.f32 %v2226, 1.442695
          %v2228 = vpow.pop %v2227
          %v2229 = vadd.f32 %v2228, 1.0
          %v2230 = vrcp.pop %v2229
          %v2231 = vmul.f32 1.0, %v2230
          %v2232 = vxor.u32 %v2223, 2147483648
          %v2233 = vmul.f32 %v2232, 1.442695
          %v2234 = vpow.pop %v2233
          %v2235 = vadd.f32 %v2234, 1.0
          %v2236 = vrcp.pop %v2235
          %v2237 = vmul.f32 1.0, %v2236
          %v2238 = vtanh.pop %v2224
          %v2239 = vxor.u32 %v2225, 2147483648
          %v2240 = vmul.f32 %v2239, 1.442695
          %v2241 = vpow.pop %v2240
          %v2242 = vadd.f32 %v2241, 1.0
          %v2243 = vrcp.pop %v2242
          %v2244 = vmul.f32 1.0, %v2243
          %v2245 = vmul.f32 %v2237, %v2070
          %v2246 = vmul.f32 %v2231, %v2238
          %v2247 = vadd.f32 %v2245, %v2246
          %v2248 = vtanh.pop %v2247
          %v2249 = vmul.f32 %v2244, %v2248
          %s2250 = scalar_lea.vmem [#allocation2], 32
          %2251 = vst [vmem:[%s2250] sm:$0xff] %v2249
          %s2252 = scalar_lea.vmem [#allocation4], 160
          %v2253 = vld [vmem:[%s2252] sm:$0xff]
          %v2254 = vld [vmem:[%s2252 + $0x8] sm:$0xff]
          %v2255 = vld [vmem:[%s2252 + $0x10] sm:$0xff]
          %v2256 = vld [vmem:[%s2252 + $0x18] sm:$0xff]
          %2257 = vmatprep.subr.mxu0 %v1306
          %2258 = vmatpush1.msra.mxu0 %v1305
          %2259 = vmatprep.subr.mxu0 %v1310
          %2260 = vmatpush1.msra.mxu0 %v1309
          %2261 = vmatprep.subr.mxu0 %v1314
          %2262 = vmatpush1.msra.mxu0 %v1313
          %2263 = vmatprep.subr.mxu0 %v1318
          %2264 = vmatpush1.msra.mxu0 %v1317
          %2265 = vmatprep.subr.mxu0 %v1322
          %2266 = vmatpush1.msra.mxu0 %v1321
          %2267 = vmatprep.subr.mxu0 %v1326
          %2268 = vmatpush1.msra.mxu0 %v1325
          %2269 = vmatprep.subr.mxu0 %v1330
          %2270 = vmatpush1.msra.mxu0 %v1329
          %2271 = vmatprep.subr.mxu0 %v1334
          %2272 = vmatpush1.msra.mxu0 %v1333
          %2273 = vmatprep.subr.mxu0 %v1338
          %2274 = vmatpush1.msra.mxu0 %v1337
          %2275 = vmatprep.subr.mxu0 %v1342
          %2276 = vmatpush1.msra.mxu0 %v1341
          %2277 = vmatprep.subr.mxu0 %v1346
          %2278 = vmatpush1.msra.mxu0 %v1345
          %2279 = vmatprep.subr.mxu0 %v1350
          %2280 = vmatpush1.msra.mxu0 %v1349
          %2281 = vmatprep.subr.mxu0 %v1354
          %2282 = vmatpush1.msra.mxu0 %v1353
          %2283 = vmatprep.subr.mxu0 %v1358
          %2284 = vmatpush1.msra.mxu0 %v1357
          %2285 = vmatprep.subr.mxu0 %v1362
          %2286 = vmatpush1.msra.mxu0 %v1361
          %2287 = vmatprep.subr.mxu0 %v1366
          %2288 = vmatpush1.msra.mxu0 %v1365
          %2289 = vmatprep.subr.mxu0 0.0
          %2290 = vmatpush1.msra.mxu0 0.0
          %2291 = vmatprep.subr.mxu0 0.0
          %2292 = vmatpush1.msra.mxu0 0.0
          %2293 = vmatprep.subr.mxu0 0.0
          %2294 = vmatpush1.msra.mxu0 0.0
          %2295 = vmatprep.subr.mxu0 0.0
          %2296 = vmatpush1.msra.mxu0 0.0
          %2297 = vmatprep.subr.mxu0 0.0
          %2298 = vmatpush1.msra.mxu0 0.0
          %2299 = vmatprep.subr.mxu0 0.0
          %2300 = vmatpush1.msra.mxu0 0.0
          %2301 = vmatprep.subr.mxu0 0.0
          %2302 = vmatpush1.msra.mxu0 0.0
          %2303 = vmatprep.subr.mxu0 0.0
          %2304 = vmatpush1.msra.mxu0 0.0
          %2305 = vmatprep.subr.mxu0 0.0
          %2306 = vmatpush1.msra.mxu0 0.0
          %2307 = vmatprep.subr.mxu0 0.0
          %2308 = vmatpush1.msra.mxu0 0.0
          %2309 = vmatprep.subr.mxu0 0.0
          %2310 = vmatpush1.msra.mxu0 0.0
          %2311 = vmatprep.subr.mxu0 0.0
          %2312 = vmatpush1.msra.mxu0 0.0
          %2313 = vmatprep.subr.mxu0 0.0
          %2314 = vmatpush1.msra.mxu0 0.0
          %2315 = vmatprep.subr.mxu0 0.0
          %2316 = vmatpush1.msra.mxu0 0.0
          %2317 = vmatprep.subr.mxu0 0.0
          %2318 = vmatpush1.msra.mxu0 0.0
          %2319 = vmatprep.subr.mxu0 0.0
          %2320 = vmatpush1.msra.mxu0 0.0
          %2321 = vmatprep.mubr.f32.mxu0 0.0
          %2322 = vmatmul.mubr.f32.gmra.mrb[0].mxu0 %v2249
          %v2323 = vpop.f32.mrb[0].mxu0
          %v2324 = vadd.f32 0.0, %v2323
          %v2325 = vpop.f32.mrb[0].mxu0
          %v2326 = vadd.f32 0.0, %v2325
          %2327 = vdwg.mxu0
          %2328 = vmatprep.subr.mxu0 %v1308
          %2329 = vmatpush1.msra.mxu0 %v1307
          %2330 = vmatprep.subr.mxu0 %v1312
          %2331 = vmatpush1.msra.mxu0 %v1311
          %2332 = vmatprep.subr.mxu0 %v1316
          %2333 = vmatpush1.msra.mxu0 %v1315
          %2334 = vmatprep.subr.mxu0 %v1320
          %2335 = vmatpush1.msra.mxu0 %v1319
          %2336 = vmatprep.subr.mxu0 %v1324
          %2337 = vmatpush1.msra.mxu0 %v1323
          %2338 = vmatprep.subr.mxu0 %v1328
          %2339 = vmatpush1.msra.mxu0 %v1327
          %2340 = vmatprep.subr.mxu0 %v1332
          %2341 = vmatpush1.msra.mxu0 %v1331
          %2342 = vmatprep.subr.mxu0 %v1336
          %2343 = vmatpush1.msra.mxu0 %v1335
          %2344 = vmatprep.subr.mxu0 %v1340
          %2345 = vmatpush1.msra.mxu0 %v1339
          %2346 = vmatprep.subr.mxu0 %v1344
          %2347 = vmatpush1.msra.mxu0 %v1343
          %2348 = vmatprep.subr.mxu0 %v1348
          %2349 = vmatpush1.msra.mxu0 %v1347
          %2350 = vmatprep.subr.mxu0 %v1352
          %2351 = vmatpush1.msra.mxu0 %v1351
          %2352 = vmatprep.subr.mxu0 %v1356
          %2353 = vmatpush1.msra.mxu0 %v1355
          %2354 = vmatprep.subr.mxu0 %v1360
          %2355 = vmatpush1.msra.mxu0 %v1359
          %2356 = vmatprep.subr.mxu0 %v1364
          %2357 = vmatpush1.msra.mxu0 %v1363
          %2358 = vmatprep.subr.mxu0 %v1368
          %2359 = vmatpush1.msra.mxu0 %v1367
          %2360 = vmatprep.subr.mxu0 0.0
          %2361 = vmatpush1.msra.mxu0 0.0
          %2362 = vmatprep.subr.mxu0 0.0
          %2363 = vmatpush1.msra.mxu0 0.0
          %2364 = vmatprep.subr.mxu0 0.0
          %2365 = vmatpush1.msra.mxu0 0.0
          %2366 = vmatprep.subr.mxu0 0.0
          %2367 = vmatpush1.msra.mxu0 0.0
          %2368 = vmatprep.subr.mxu0 0.0
          %2369 = vmatpush1.msra.mxu0 0.0
          %2370 = vmatprep.subr.mxu0 0.0
          %2371 = vmatpush1.msra.mxu0 0.0
          %2372 = vmatprep.subr.mxu0 0.0
          %2373 = vmatpush1.msra.mxu0 0.0
          %2374 = vmatprep.subr.mxu0 0.0
          %2375 = vmatpush1.msra.mxu0 0.0
          %2376 = vmatprep.subr.mxu0 0.0
          %2377 = vmatpush1.msra.mxu0 0.0
          %2378 = vmatprep.subr.mxu0 0.0
          %2379 = vmatpush1.msra.mxu0 0.0
          %2380 = vmatprep.subr.mxu0 0.0
          %2381 = vmatpush1.msra.mxu0 0.0
          %2382 = vmatprep.subr.mxu0 0.0
          %2383 = vmatpush1.msra.mxu0 0.0
          %2384 = vmatprep.subr.mxu0 0.0
          %2385 = vmatpush1.msra.mxu0 0.0
          %2386 = vmatprep.subr.mxu0 0.0
          %2387 = vmatpush1.msra.mxu0 0.0
          %2388 = vmatprep.subr.mxu0 0.0
          %2389 = vmatpush1.msra.mxu0 0.0
          %2390 = vmatprep.subr.mxu0 0.0
          %2391 = vmatpush1.msra.mxu0 0.0
          %2392 = vmatprep.mubr.f32.mxu0 0.0
          %2393 = vmatmul.mubr.f32.gmra.mrb[0].mxu0 %v2249
          %v2394 = vpop.f32.mrb[0].mxu0
          %v2395 = vadd.f32 0.0, %v2394
          %v2396 = vpop.f32.mrb[0].mxu0
          %v2397 = vadd.f32 0.0, %v2396
          %2398 = vdwg.mxu0
          %v2399 = vadd.f32 %v2253, %v2324
          %v2400 = vadd.f32 %v2254, %v2326
          %v2401 = vadd.f32 %v2255, %v2395
          %v2402 = vadd.f32 %v2256, %v2397
          %v2403 = vxor.u32 %v2399, 2147483648
          %v2404 = vmul.f32 %v2403, 1.442695
          %v2405 = vpow.pop %v2404
          %v2406 = vadd.f32 %v2405, 1.0
          %v2407 = vrcp.pop %v2406
          %v2408 = vmul.f32 1.0, %v2407
          %v2409 = vxor.u32 %v2400, 2147483648
          %v2410 = vmul.f32 %v2409, 1.442695
          %v2411 = vpow.pop %v2410
          %v2412 = vadd.f32 %v2411, 1.0
          %v2413 = vrcp.pop %v2412
          %v2414 = vmul.f32 1.0, %v2413
          %v2415 = vtanh.pop %v2401
          %v2416 = vxor.u32 %v2402, 2147483648
          %v2417 = vmul.f32 %v2416, 1.442695
          %v2418 = vpow.pop %v2417
          %v2419 = vadd.f32 %v2418, 1.0
          %v2420 = vrcp.pop %v2419
          %v2421 = vmul.f32 1.0, %v2420
          %v2422 = vmul.f32 %v2414, %v2247
          %v2423 = vmul.f32 %v2408, %v2415
          %v2424 = vadd.f32 %v2422, %v2423
          %v2425 = vtanh.pop %v2424
          %v2426 = vmul.f32 %v2421, %v2425
          %s2427 = scalar_lea.vmem [#allocation2], 40
          %2428 = vst [vmem:[%s2427] sm:$0xff] %v2426
          %s2429 = scalar_lea.vmem [#allocation4], 192
          %v2430 = vld [vmem:[%s2429] sm:$0xff]
          %v2431 = vld [vmem:[%s2429 + $0x8] sm:$0xff]
          %v2432 = vld [vmem:[%s2429 + $0x10] sm:$0xff]
          %v2433 = vld [vmem:[%s2429 + $0x18] sm:$0xff]
          %2434 = vmatprep.subr.mxu0 %v1306
          %2435 = vmatpush1.msra.mxu0 %v1305
          %2436 = vmatprep.subr.mxu0 %v1310
          %2437 = vmatpush1.msra.mxu0 %v1309
          %2438 = vmatprep.subr.mxu0 %v1314
          %2439 = vmatpush1.msra.mxu0 %v1313
          %2440 = vmatprep.subr.mxu0 %v1318
          %2441 = vmatpush1.msra.mxu0 %v1317
          %2442 = vmatprep.subr.mxu0 %v1322
          %2443 = vmatpush1.msra.mxu0 %v1321
          %2444 = vmatprep.subr.mxu0 %v1326
          %2445 = vmatpush1.msra.mxu0 %v1325
          %2446 = vmatprep.subr.mxu0 %v1330
          %2447 = vmatpush1.msra.mxu0 %v1329
          %2448 = vmatprep.subr.mxu0 %v1334
          %2449 = vmatpush1.msra.mxu0 %v1333
          %2450 = vmatprep.subr.mxu0 %v1338
          %2451 = vmatpush1.msra.mxu0 %v1337
          %2452 = vmatprep.subr.mxu0 %v1342
          %2453 = vmatpush1.msra.mxu0 %v1341
          %2454 = vmatprep.subr.mxu0 %v1346
          %2455 = vmatpush1.msra.mxu0 %v1345
          %2456 = vmatprep.subr.mxu0 %v1350
          %2457 = vmatpush1.msra.mxu0 %v1349
          %2458 = vmatprep.subr.mxu0 %v1354
          %2459 = vmatpush1.msra.mxu0 %v1353
          %2460 = vmatprep.subr.mxu0 %v1358
          %2461 = vmatpush1.msra.mxu0 %v1357
          %2462 = vmatprep.subr.mxu0 %v1362
          %2463 = vmatpush1.msra.mxu0 %v1361
          %2464 = vmatprep.subr.mxu0 %v1366
          %2465 = vmatpush1.msra.mxu0 %v1365
          %2466 = vmatprep.subr.mxu0 0.0
          %2467 = vmatpush1.msra.mxu0 0.0
          %2468 = vmatprep.subr.mxu0 0.0
          %2469 = vmatpush1.msra.mxu0 0.0
          %2470 = vmatprep.subr.mxu0 0.0
          %2471 = vmatpush1.msra.mxu0 0.0
          %2472 = vmatprep.subr.mxu0 0.0
          %2473 = vmatpush1.msra.mxu0 0.0
          %2474 = vmatprep.subr.mxu0 0.0
          %2475 = vmatpush1.msra.mxu0 0.0
          %2476 = vmatprep.subr.mxu0 0.0
          %2477 = vmatpush1.msra.mxu0 0.0
          %2478 = vmatprep.subr.mxu0 0.0
          %2479 = vmatpush1.msra.mxu0 0.0
          %2480 = vmatprep.subr.mxu0 0.0
          %2481 = vmatpush1.msra.mxu0 0.0
          %2482 = vmatprep.subr.mxu0 0.0
          %2483 = vmatpush1.msra.mxu0 0.0
          %2484 = vmatprep.subr.mxu0 0.0
          %2485 = vmatpush1.msra.mxu0 0.0
          %2486 = vmatprep.subr.mxu0 0.0
          %2487 = vmatpush1.msra.mxu0 0.0
          %2488 = vmatprep.subr.mxu0 0.0
          %2489 = vmatpush1.msra.mxu0 0.0
          %2490 = vmatprep.subr.mxu0 0.0
          %2491 = vmatpush1.msra.mxu0 0.0
          %2492 = vmatprep.subr.mxu0 0.0
          %2493 = vmatpush1.msra.mxu0 0.0
          %2494 = vmatprep.subr.mxu0 0.0
          %2495 = vmatpush1.msra.mxu0 0.0
          %2496 = vmatprep.subr.mxu0 0.0
          %2497 = vmatpush1.msra.mxu0 0.0
          %2498 = vmatprep.mubr.f32.mxu0 0.0
          %2499 = vmatmul.mubr.f32.gmra.mrb[0].mxu0 %v2426
          %v2500 = vpop.f32.mrb[0].mxu0
          %v2501 = vadd.f32 0.0, %v2500
          %v2502 = vpop.f32.mrb[0].mxu0
          %v2503 = vadd.f32 0.0, %v2502
          %2504 = vdwg.mxu0
          %2505 = vmatprep.subr.mxu0 %v1308
          %2506 = vmatpush1.msra.mxu0 %v1307
          %2507 = vmatprep.subr.mxu0 %v1312
          %2508 = vmatpush1.msra.mxu0 %v1311
          %2509 = vmatprep.subr.mxu0 %v1316
          %2510 = vmatpush1.msra.mxu0 %v1315
          %2511 = vmatprep.subr.mxu0 %v1320
          %2512 = vmatpush1.msra.mxu0 %v1319
          %2513 = vmatprep.subr.mxu0 %v1324
          %2514 = vmatpush1.msra.mxu0 %v1323
          %2515 = vmatprep.subr.mxu0 %v1328
          %2516 = vmatpush1.msra.mxu0 %v1327
          %2517 = vmatprep.subr.mxu0 %v1332
          %2518 = vmatpush1.msra.mxu0 %v1331
          %2519 = vmatprep.subr.mxu0 %v1336
          %2520 = vmatpush1.msra.mxu0 %v1335
          %2521 = vmatprep.subr.mxu0 %v1340
          %2522 = vmatpush1.msra.mxu0 %v1339
          %2523 = vmatprep.subr.mxu0 %v1344
          %2524 = vmatpush1.msra.mxu0 %v1343
          %2525 = vmatprep.subr.mxu0 %v1348
          %2526 = vmatpush1.msra.mxu0 %v1347
          %2527 = vmatprep.subr.mxu0 %v1352
          %2528 = vmatpush1.msra.mxu0 %v1351
          %2529 = vmatprep.subr.mxu0 %v1356
          %2530 = vmatpush1.msra.mxu0 %v1355
          %2531 = vmatprep.subr.mxu0 %v1360
          %2532 = vmatpush1.msra.mxu0 %v1359
          %2533 = vmatprep.subr.mxu0 %v1364
          %2534 = vmatpush1.msra.mxu0 %v1363
          %2535 = vmatprep.subr.mxu0 %v1368
          %2536 = vmatpush1.msra.mxu0 %v1367
          %2537 = vmatprep.subr.mxu0 0.0
          %2538 = vmatpush1.msra.mxu0 0.0
          %2539 = vmatprep.subr.mxu0 0.0
          %2540 = vmatpush1.msra.mxu0 0.0
          %2541 = vmatprep.subr.mxu0 0.0
          %2542 = vmatpush1.msra.mxu0 0.0
          %2543 = vmatprep.subr.mxu0 0.0
          %2544 = vmatpush1.msra.mxu0 0.0
          %2545 = vmatprep.subr.mxu0 0.0
          %2546 = vmatpush1.msra.mxu0 0.0
          %2547 = vmatprep.subr.mxu0 0.0
          %2548 = vmatpush1.msra.mxu0 0.0
          %2549 = vmatprep.subr.mxu0 0.0
          %2550 = vmatpush1.msra.mxu0 0.0
          %2551 = vmatprep.subr.mxu0 0.0
          %2552 = vmatpush1.msra.mxu0 0.0
          %2553 = vmatprep.subr.mxu0 0.0
          %2554 = vmatpush1.msra.mxu0 0.0
          %2555 = vmatprep.subr.mxu0 0.0
          %2556 = vmatpush1.msra.mxu0 0.0
          %2557 = vmatprep.subr.mxu0 0.0
          %2558 = vmatpush1.msra.mxu0 0.0
          %2559 = vmatprep.subr.mxu0 0.0
          %2560 = vmatpush1.msra.mxu0 0.0
          %2561 = vmatprep.subr.mxu0 0.0
          %2562 = vmatpush1.msra.mxu0 0.0
          %2563 = vmatprep.subr.mxu0 0.0
          %2564 = vmatpush1.msra.mxu0 0.0
          %2565 = vmatprep.subr.mxu0 0.0
          %2566 = vmatpush1.msra.mxu0 0.0
          %2567 = vmatprep.subr.mxu0 0.0
          %2568 = vmatpush1.msra.mxu0 0.0
          %2569 = vmatprep.mubr.f32.mxu0 0.0
          %2570 = vmatmul.mubr.f32.gmra.mrb[0].mxu0 %v2426
          %v2571 = vpop.f32.mrb[0].mxu0
          %v2572 = vadd.f32 0.0, %v2571
          %v2573 = vpop.f32.mrb[0].mxu0
          %v2574 = vadd.f32 0.0, %v2573
          %2575 = vdwg.mxu0
          %v2576 = vadd.f32 %v2430, %v2501
          %v2577 = vadd.f32 %v2431, %v2503
          %v2578 = vadd.f32 %v2432, %v2572
          %v2579 = vadd.f32 %v2433, %v2574
          %v2580 = vxor.u32 %v2576, 2147483648
          %v2581 = vmul.f32 %v2580, 1.442695
          %v2582 = vpow.pop %v2581
          %v2583 = vadd.f32 %v2582, 1.0
          %v2584 = vrcp.pop %v2583
          %v2585 = vmul.f32 1.0, %v2584
          %v2586 = vxor.u32 %v2577, 2147483648
          %v2587 = vmul.f32 %v2586, 1.442695
          %v2588 = vpow.pop %v2587
          %v2589 = vadd.f32 %v2588, 1.0
          %v2590 = vrcp.pop %v2589
          %v2591 = vmul.f32 1.0, %v2590
          %v2592 = vtanh.pop %v2578
          %v2593 = vxor.u32 %v2579, 2147483648
          %v2594 = vmul.f32 %v2593, 1.442695
          %v2595 = vpow.pop %v2594
          %v2596 = vadd.f32 %v2595, 1.0
          %v2597 = vrcp.pop %v2596
          %v2598 = vmul.f32 1.0, %v2597
          %v2599 = vmul.f32 %v2591, %v2424
          %v2600 = vmul.f32 %v2585, %v2592
          %v2601 = vadd.f32 %v2599, %v2600
          %v2602 = vtanh.pop %v2601
          %v2603 = vmul.f32 %v2598, %v2602
          %s2604 = scalar_lea.vmem [#allocation2], 48
          %2605 = vst [vmem:[%s2604] sm:$0xff] %v2603
          %s2606 = scalar_lea.vmem [#allocation4], 224
          %v2607 = vld [vmem:[%s2606] sm:$0xff]
          %v2608 = vld [vmem:[%s2606 + $0x8] sm:$0xff]
          %v2609 = vld [vmem:[%s2606 + $0x10] sm:$0xff]
          %v2610 = vld [vmem:[%s2606 + $0x18] sm:$0xff]
          %2611 = vmatprep.subr.mxu0 %v1306
          %2612 = vmatpush1.msra.mxu0 %v1305
          %2613 = vmatprep.subr.mxu0 %v1310
          %2614 = vmatpush1.msra.mxu0 %v1309
          %2615 = vmatprep.subr.mxu0 %v1314
          %2616 = vmatpush1.msra.mxu0 %v1313
          %2617 = vmatprep.subr.mxu0 %v1318
          %2618 = vmatpush1.msra.mxu0 %v1317
          %2619 = vmatprep.subr.mxu0 %v1322
          %2620 = vmatpush1.msra.mxu0 %v1321
          %2621 = vmatprep.subr.mxu0 %v1326
          %2622 = vmatpush1.msra.mxu0 %v1325
          %2623 = vmatprep.subr.mxu0 %v1330
          %2624 = vmatpush1.msra.mxu0 %v1329
          %2625 = vmatprep.subr.mxu0 %v1334
          %2626 = vmatpush1.msra.mxu0 %v1333
          %2627 = vmatprep.subr.mxu0 %v1338
          %2628 = vmatpush1.msra.mxu0 %v1337
          %2629 = vmatprep.subr.mxu0 %v1342
          %2630 = vmatpush1.msra.mxu0 %v1341
          %2631 = vmatprep.subr.mxu0 %v1346
          %2632 = vmatpush1.msra.mxu0 %v1345
          %2633 = vmatprep.subr.mxu0 %v1350
          %2634 = vmatpush1.msra.mxu0 %v1349
          %2635 = vmatprep.subr.mxu0 %v1354
          %2636 = vmatpush1.msra.mxu0 %v1353
          %2637 = vmatprep.subr.mxu0 %v1358
          %2638 = vmatpush1.msra.mxu0 %v1357
          %2639 = vmatprep.subr.mxu0 %v1362
          %2640 = vmatpush1.msra.mxu0 %v1361
          %2641 = vmatprep.subr.mxu0 %v1366
          %2642 = vmatpush1.msra.mxu0 %v1365
          %2643 = vmatprep.subr.mxu0 0.0
          %2644 = vmatpush1.msra.mxu0 0.0
          %2645 = vmatprep.subr.mxu0 0.0
          %2646 = vmatpush1.msra.mxu0 0.0
          %2647 = vmatprep.subr.mxu0 0.0
          %2648 = vmatpush1.msra.mxu0 0.0
          %2649 = vmatprep.subr.mxu0 0.0
          %2650 = vmatpush1.msra.mxu0 0.0
          %2651 = vmatprep.subr.mxu0 0.0
          %2652 = vmatpush1.msra.mxu0 0.0
          %2653 = vmatprep.subr.mxu0 0.0
          %2654 = vmatpush1.msra.mxu0 0.0
          %2655 = vmatprep.subr.mxu0 0.0
          %2656 = vmatpush1.msra.mxu0 0.0
          %2657 = vmatprep.subr.mxu0 0.0
          %2658 = vmatpush1.msra.mxu0 0.0
          %2659 = vmatprep.subr.mxu0 0.0
          %2660 = vmatpush1.msra.mxu0 0.0
          %2661 = vmatprep.subr.mxu0 0.0
          %2662 = vmatpush1.msra.mxu0 0.0
          %2663 = vmatprep.subr.mxu0 0.0
          %2664 = vmatpush1.msra.mxu0 0.0
          %2665 = vmatprep.subr.mxu0 0.0
          %2666 = vmatpush1.msra.mxu0 0.0
          %2667 = vmatprep.subr.mxu0 0.0
          %2668 = vmatpush1.msra.mxu0 0.0
          %2669 = vmatprep.subr.mxu0 0.0
          %2670 = vmatpush1.msra.mxu0 0.0
          %2671 = vmatprep.subr.mxu0 0.0
          %2672 = vmatpush1.msra.mxu0 0.0
          %2673 = vmatprep.subr.mxu0 0.0
          %2674 = vmatpush1.msra.mxu0 0.0
          %2675 = vmatprep.mubr.f32.mxu0 0.0
          %2676 = vmatmul.mubr.f32.gmra.mrb[0].mxu0 %v2603
          %v2677 = vpop.f32.mrb[0].mxu0
          %v2678 = vadd.f32 0.0, %v2677
          %v2679 = vpop.f32.mrb[0].mxu0
          %v2680 = vadd.f32 0.0, %v2679
          %2681 = vdwg.mxu0
          %2682 = vmatprep.subr.mxu0 %v1308
          %2683 = vmatpush1.msra.mxu0 %v1307
          %2684 = vmatprep.subr.mxu0 %v1312
          %2685 = vmatpush1.msra.mxu0 %v1311
          %2686 = vmatprep.subr.mxu0 %v1316
          %2687 = vmatpush1.msra.mxu0 %v1315
          %2688 = vmatprep.subr.mxu0 %v1320
          %2689 = vmatpush1.msra.mxu0 %v1319
          %2690 = vmatprep.subr.mxu0 %v1324
          %2691 = vmatpush1.msra.mxu0 %v1323
          %2692 = vmatprep.subr.mxu0 %v1328
          %2693 = vmatpush1.msra.mxu0 %v1327
          %2694 = vmatprep.subr.mxu0 %v1332
          %2695 = vmatpush1.msra.mxu0 %v1331
          %2696 = vmatprep.subr.mxu0 %v1336
          %2697 = vmatpush1.msra.mxu0 %v1335
          %2698 = vmatprep.subr.mxu0 %v1340
          %2699 = vmatpush1.msra.mxu0 %v1339
          %2700 = vmatprep.subr.mxu0 %v1344
          %2701 = vmatpush1.msra.mxu0 %v1343
          %2702 = vmatprep.subr.mxu0 %v1348
          %2703 = vmatpush1.msra.mxu0 %v1347
          %2704 = vmatprep.subr.mxu0 %v1352
          %2705 = vmatpush1.msra.mxu0 %v1351
          %2706 = vmatprep.subr.mxu0 %v1356
          %2707 = vmatpush1.msra.mxu0 %v1355
          %2708 = vmatprep.subr.mxu0 %v1360
          %2709 = vmatpush1.msra.mxu0 %v1359
          %2710 = vmatprep.subr.mxu0 %v1364
          %2711 = vmatpush1.msra.mxu0 %v1363
          %2712 = vmatprep.subr.mxu0 %v1368
          %2713 = vmatpush1.msra.mxu0 %v1367
          %2714 = vmatprep.subr.mxu0 0.0
          %2715 = vmatpush1.msra.mxu0 0.0
          %2716 = vmatprep.subr.mxu0 0.0
          %2717 = vmatpush1.msra.mxu0 0.0
          %2718 = vmatprep.subr.mxu0 0.0
          %2719 = vmatpush1.msra.mxu0 0.0
          %2720 = vmatprep.subr.mxu0 0.0
          %2721 = vmatpush1.msra.mxu0 0.0
          %2722 = vmatprep.subr.mxu0 0.0
          %2723 = vmatpush1.msra.mxu0 0.0
          %2724 = vmatprep.subr.mxu0 0.0
          %2725 = vmatpush1.msra.mxu0 0.0
          %2726 = vmatprep.subr.mxu0 0.0
          %2727 = vmatpush1.msra.mxu0 0.0
          %2728 = vmatprep.subr.mxu0 0.0
          %2729 = vmatpush1.msra.mxu0 0.0
          %2730 = vmatprep.subr.mxu0 0.0
          %2731 = vmatpush1.msra.mxu0 0.0
          %2732 = vmatprep.subr.mxu0 0.0
          %2733 = vmatpush1.msra.mxu0 0.0
          %2734 = vmatprep.subr.mxu0 0.0
          %2735 = vmatpush1.msra.mxu0 0.0
          %2736 = vmatprep.subr.mxu0 0.0
          %2737 = vmatpush1.msra.mxu0 0.0
          %2738 = vmatprep.subr.mxu0 0.0
          %2739 = vmatpush1.msra.mxu0 0.0
          %2740 = vmatprep.subr.mxu0 0.0
          %2741 = vmatpush1.msra.mxu0 0.0
          %2742 = vmatprep.subr.mxu0 0.0
          %2743 = vmatpush1.msra.mxu0 0.0
          %2744 = vmatprep.subr.mxu0 0.0
          %2745 = vmatpush1.msra.mxu0 0.0
          %2746 = vmatprep.mubr.f32.mxu0 0.0
          %2747 = vmatmul.mubr.f32.gmra.mrb[0].mxu0 %v2603
          %v2748 = vpop.f32.mrb[0].mxu0
          %v2749 = vadd.f32 0.0, %v2748
          %v2750 = vpop.f32.mrb[0].mxu0
          %v2751 = vadd.f32 0.0, %v2750
          %2752 = vdwg.mxu0
          %v2753 = vadd.f32 %v2607, %v2678
          %v2754 = vadd.f32 %v2608, %v2680
          %v2755 = vadd.f32 %v2609, %v2749
          %v2756 = vadd.f32 %v2610, %v2751
          %v2757 = vxor.u32 %v2753, 2147483648
          %v2758 = vmul.f32 %v2757, 1.442695
          %v2759 = vpow.pop %v2758
          %v2760 = vadd.f32 %v2759, 1.0
          %v2761 = vrcp.pop %v2760
          %v2762 = vmul.f32 1.0, %v2761
          %v2763 = vxor.u32 %v2754, 2147483648
          %v2764 = vmul.f32 %v2763, 1.442695
          %v2765 = vpow.pop %v2764
          %v2766 = vadd.f32 %v2765, 1.0
          %v2767 = vrcp.pop %v2766
          %v2768 = vmul.f32 1.0, %v2767
          %v2769 = vtanh.pop %v2755
          %v2770 = vxor.u32 %v2756, 2147483648
          %v2771 = vmul.f32 %v2770, 1.442695
          %v2772 = vpow.pop %v2771
          %v2773 = vadd.f32 %v2772, 1.0
          %v2774 = vrcp.pop %v2773
          %v2775 = vmul.f32 1.0, %v2774
          %v2776 = vmul.f32 %v2768, %v2601
          %v2777 = vmul.f32 %v2762, %v2769
          %v2778 = vadd.f32 %v2776, %v2777
          %v2779 = vtanh.pop %v2778
          %v2780 = vmul.f32 %v2775, %v2779
          %s2781 = scalar_lea.vmem [#allocation2], 56
          %2782 = vst [vmem:[%s2781] sm:$0xff] %v2780
          %2783 = vst [vmem:[%s384] sm:$0xff] %v2780
          %2784 = vst [vmem:[%s388] sm:$0xff] %v2778
        $region68: #{_lambda_.3} parent=43 // pred_fallthru
          _
        // Predicated region
        $region69: #{_lambda_.3} parent=43 // pred_check
          %p2785 = pneg %p524
        $region70: #{_lambda_.3} parent=43 // pred_check_branch
          %2787 = sbr.rel (%p2785) target = $region72
        $region71: #{_lambda_.3} parent=43 // pred_region
          %v2788 = vld [vmem:[%s332] sm:$0xff]
          %v2789 = vld [vmem:[%s332 + $0x8] sm:$0xff]
          %v2790 = vld [vmem:[%s332 + $0x10] sm:$0xff]
          %v2791 = vld [vmem:[%s332 + $0x18] sm:$0xff]
          %v2792 = vld [vmem:[%s332 + $0x20] sm:$0xff]
          %v2793 = vld [vmem:[%s332 + $0x28] sm:$0xff]
          %v2794 = vld [vmem:[%s332 + $0x30] sm:$0xff]
          %v2795 = vld [vmem:[%s332 + $0x38] sm:$0xff]
          %v2796 = vld [vmem:[%s332 + $0x40] sm:$0xff]
          %v2797 = vld [vmem:[%s332 + $0x48] sm:$0xff]
          %v2798 = vld [vmem:[%s332 + $0x50] sm:$0xff]
          %v2799 = vld [vmem:[%s332 + $0x58] sm:$0xff]
          %v2800 = vld [vmem:[%s332 + $0x60] sm:$0xff]
          %v2801 = vld [vmem:[%s332 + $0x68] sm:$0xff]
          %v2802 = vld [vmem:[%s332 + $0x70] sm:$0xff]
          %v2803 = vld [vmem:[%s332 + $0x78] sm:$0xff]
          %v2804 = vld [vmem:[%s332 + $0x80] sm:$0xff]
          %v2805 = vld [vmem:[%s332 + $0x88] sm:$0xff]
          %v2806 = vld [vmem:[%s332 + $0x90] sm:$0xff]
          %v2807 = vld [vmem:[%s332 + $0x98] sm:$0xff]
          %v2808 = vld [vmem:[%s332 + $0xa0] sm:$0xff]
          %v2809 = vld [vmem:[%s332 + $0xa8] sm:$0xff]
          %v2810 = vld [vmem:[%s332 + $0xb0] sm:$0xff]
          %v2811 = vld [vmem:[%s332 + $0xb8] sm:$0xff]
          %v2812 = vld [vmem:[%s332 + $0xc0] sm:$0xff]
          %v2813 = vld [vmem:[%s332 + $0xc8] sm:$0xff]
          %v2814 = vld [vmem:[%s332 + $0xd0] sm:$0xff]
          %v2815 = vld [vmem:[%s332 + $0xd8] sm:$0xff]
          %v2816 = vld [vmem:[%s332 + $0xe0] sm:$0xff]
          %v2817 = vld [vmem:[%s332 + $0xe8] sm:$0xff]
          %v2818 = vld [vmem:[%s332 + $0xf0] sm:$0xff]
          %v2819 = vld [vmem:[%s332 + $0xf8] sm:$0xff]
          %v2820 = vld [vmem:[%s332 + $0x100] sm:$0xff]
          %v2821 = vld [vmem:[%s332 + $0x108] sm:$0xff]
          %v2822 = vld [vmem:[%s332 + $0x110] sm:$0xff]
          %v2823 = vld [vmem:[%s332 + $0x118] sm:$0xff]
          %v2824 = vld [vmem:[%s332 + $0x120] sm:$0xff]
          %v2825 = vld [vmem:[%s332 + $0x128] sm:$0xff]
          %v2826 = vld [vmem:[%s332 + $0x130] sm:$0xff]
          %v2827 = vld [vmem:[%s332 + $0x138] sm:$0xff]
          %v2828 = vld [vmem:[%s332 + $0x140] sm:$0xff]
          %v2829 = vld [vmem:[%s332 + $0x148] sm:$0xff]
          %v2830 = vld [vmem:[%s332 + $0x150] sm:$0xff]
          %v2831 = vld [vmem:[%s332 + $0x158] sm:$0xff]
          %v2832 = vld [vmem:[%s332 + $0x160] sm:$0xff]
          %v2833 = vld [vmem:[%s332 + $0x168] sm:$0xff]
          %v2834 = vld [vmem:[%s332 + $0x170] sm:$0xff]
          %v2835 = vld [vmem:[%s332 + $0x178] sm:$0xff]
          %v2836 = vld [vmem:[%s332 + $0x180] sm:$0xff]
          %v2837 = vld [vmem:[%s332 + $0x188] sm:$0xff]
          %v2838 = vld [vmem:[%s332 + $0x190] sm:$0xff]
          %v2839 = vld [vmem:[%s332 + $0x198] sm:$0xff]
          %v2840 = vld [vmem:[%s332 + $0x1a0] sm:$0xff]
          %v2841 = vld [vmem:[%s332 + $0x1a8] sm:$0xff]
          %v2842 = vld [vmem:[%s332 + $0x1b0] sm:$0xff]
          %v2843 = vld [vmem:[%s332 + $0x1b8] sm:$0xff]
          %v2844 = vld [vmem:[%s332 + $0x1c0] sm:$0xff]
          %v2845 = vld [vmem:[%s332 + $0x1c8] sm:$0xff]
          %v2846 = vld [vmem:[%s332 + $0x1d0] sm:$0xff]
          %v2847 = vld [vmem:[%s332 + $0x1d8] sm:$0xff]
          %v2848 = vld [vmem:[%s332 + $0x1e0] sm:$0xff]
          %v2849 = vld [vmem:[%s332 + $0x1e8] sm:$0xff]
          %v2850 = vld [vmem:[%s332 + $0x1f0] sm:$0xff]
          %v2851 = vld [vmem:[%s332 + $0x1f8] sm:$0xff]
          %v2852 = vld [vmem:[#allocation4] sm:$0xff]
          %v2853 = vld [vmem:[#allocation4 + $0x8] sm:$0xff]
          %v2854 = vld [vmem:[#allocation4 + $0x10] sm:$0xff]
          %v2855 = vld [vmem:[#allocation4 + $0x18] sm:$0xff]
          %2856 = vmatprep.subr.mxu0 %v2789
          %2857 = vmatpush1.msra.mxu0 %v2788
          %2858 = vmatprep.subr.mxu0 %v2793
          %2859 = vmatpush1.msra.mxu0 %v2792
          %2860 = vmatprep.subr.mxu0 %v2797
          %2861 = vmatpush1.msra.mxu0 %v2796
          %2862 = vmatprep.subr.mxu0 %v2801
          %2863 = vmatpush1.msra.mxu0 %v2800
          %2864 = vmatprep.subr.mxu0 %v2805
          %2865 = vmatpush1.msra.mxu0 %v2804
          %2866 = vmatprep.subr.mxu0 %v2809
          %2867 = vmatpush1.msra.mxu0 %v2808
          %2868 = vmatprep.subr.mxu0 %v2813
          %2869 = vmatpush1.msra.mxu0 %v2812
          %2870 = vmatprep.subr.mxu0 %v2817
          %2871 = vmatpush1.msra.mxu0 %v2816
          %2872 = vmatprep.subr.mxu0 %v2821
          %2873 = vmatpush1.msra.mxu0 %v2820
          %2874 = vmatprep.subr.mxu0 %v2825
          %2875 = vmatpush1.msra.mxu0 %v2824
          %2876 = vmatprep.subr.mxu0 %v2829
          %2877 = vmatpush1.msra.mxu0 %v2828
          %2878 = vmatprep.subr.mxu0 %v2833
          %2879 = vmatpush1.msra.mxu0 %v2832
          %2880 = vmatprep.subr.mxu0 %v2837
          %2881 = vmatpush1.msra.mxu0 %v2836
          %2882 = vmatprep.subr.mxu0 %v2841
          %2883 = vmatpush1.msra.mxu0 %v2840
          %2884 = vmatprep.subr.mxu0 %v2845
          %2885 = vmatpush1.msra.mxu0 %v2844
          %2886 = vmatprep.subr.mxu0 %v2849
          %2887 = vmatpush1.msra.mxu0 %v2848
          %2888 = vmatprep.subr.mxu0 0.0
          %2889 = vmatpush1.msra.mxu0 0.0
          %2890 = vmatprep.subr.mxu0 0.0
          %2891 = vmatpush1.msra.mxu0 0.0
          %2892 = vmatprep.subr.mxu0 0.0
          %2893 = vmatpush1.msra.mxu0 0.0
          %2894 = vmatprep.subr.mxu0 0.0
          %2895 = vmatpush1.msra.mxu0 0.0
          %2896 = vmatprep.subr.mxu0 0.0
          %2897 = vmatpush1.msra.mxu0 0.0
          %2898 = vmatprep.subr.mxu0 0.0
          %2899 = vmatpush1.msra.mxu0 0.0
          %2900 = vmatprep.subr.mxu0 0.0
          %2901 = vmatpush1.msra.mxu0 0.0
          %2902 = vmatprep.subr.mxu0 0.0
          %2903 = vmatpush1.msra.mxu0 0.0
          %2904 = vmatprep.subr.mxu0 0.0
          %2905 = vmatpush1.msra.mxu0 0.0
          %2906 = vmatprep.subr.mxu0 0.0
          %2907 = vmatpush1.msra.mxu0 0.0
          %2908 = vmatprep.subr.mxu0 0.0
          %2909 = vmatpush1.msra.mxu0 0.0
          %2910 = vmatprep.subr.mxu0 0.0
          %2911 = vmatpush1.msra.mxu0 0.0
          %2912 = vmatprep.subr.mxu0 0.0
          %2913 = vmatpush1.msra.mxu0 0.0
          %2914 = vmatprep.subr.mxu0 0.0
          %2915 = vmatpush1.msra.mxu0 0.0
          %2916 = vmatprep.subr.mxu0 0.0
          %2917 = vmatpush1.msra.mxu0 0.0
          %2918 = vmatprep.subr.mxu0 0.0
          %2919 = vmatpush1.msra.mxu0 0.0
          %2920 = vmatprep.mubr.f32.mxu0 0.0
          %2921 = vmatmul.mubr.f32.gmra.mrb[0].mxu0 0.0
          %v2922 = vpop.f32.mrb[0].mxu0
          %v2923 = vadd.f32 0.0, %v2922
          %v2924 = vpop.f32.mrb[0].mxu0
          %v2925 = vadd.f32 0.0, %v2924
          %2926 = vdwg.mxu0
          %2927 = vmatprep.subr.mxu0 %v2791
          %2928 = vmatpush1.msra.mxu0 %v2790
          %2929 = vmatprep.subr.mxu0 %v2795
          %2930 = vmatpush1.msra.mxu0 %v2794
          %2931 = vmatprep.subr.mxu0 %v2799
          %2932 = vmatpush1.msra.mxu0 %v2798
          %2933 = vmatprep.subr.mxu0 %v2803
          %2934 = vmatpush1.msra.mxu0 %v2802
          %2935 = vmatprep.subr.mxu0 %v2807
          %2936 = vmatpush1.msra.mxu0 %v2806
          %2937 = vmatprep.subr.mxu0 %v2811
          %2938 = vmatpush1.msra.mxu0 %v2810
          %2939 = vmatprep.subr.mxu0 %v2815
          %2940 = vmatpush1.msra.mxu0 %v2814
          %2941 = vmatprep.subr.mxu0 %v2819
          %2942 = vmatpush1.msra.mxu0 %v2818
          %2943 = vmatprep.subr.mxu0 %v2823
          %2944 = vmatpush1.msra.mxu0 %v2822
          %2945 = vmatprep.subr.mxu0 %v2827
          %2946 = vmatpush1.msra.mxu0 %v2826
          %2947 = vmatprep.subr.mxu0 %v2831
          %2948 = vmatpush1.msra.mxu0 %v2830
          %2949 = vmatprep.subr.mxu0 %v2835
          %2950 = vmatpush1.msra.mxu0 %v2834
          %2951 = vmatprep.subr.mxu0 %v2839
          %2952 = vmatpush1.msra.mxu0 %v2838
          %2953 = vmatprep.subr.mxu0 %v2843
          %2954 = vmatpush1.msra.mxu0 %v2842
          %2955 = vmatprep.subr.mxu0 %v2847
          %2956 = vmatpush1.msra.mxu0 %v2846
          %2957 = vmatprep.subr.mxu0 %v2851
          %2958 = vmatpush1.msra.mxu0 %v2850
          %2959 = vmatprep.subr.mxu0 0.0
          %2960 = vmatpush1.msra.mxu0 0.0
          %2961 = vmatprep.subr.mxu0 0.0
          %2962 = vmatpush1.msra.mxu0 0.0
          %2963 = vmatprep.subr.mxu0 0.0
          %2964 = vmatpush1.msra.mxu0 0.0
          %2965 = vmatprep.subr.mxu0 0.0
          %2966 = vmatpush1.msra.mxu0 0.0
          %2967 = vmatprep.subr.mxu0 0.0
          %2968 = vmatpush1.msra.mxu0 0.0
          %2969 = vmatprep.subr.mxu0 0.0
          %2970 = vmatpush1.msra.mxu0 0.0
          %2971 = vmatprep.subr.mxu0 0.0
          %2972 = vmatpush1.msra.mxu0 0.0
          %2973 = vmatprep.subr.mxu0 0.0
          %2974 = vmatpush1.msra.mxu0 0.0
          %2975 = vmatprep.subr.mxu0 0.0
          %2976 = vmatpush1.msra.mxu0 0.0
          %2977 = vmatprep.subr.mxu0 0.0
          %2978 = vmatpush1.msra.mxu0 0.0
          %2979 = vmatprep.subr.mxu0 0.0
          %2980 = vmatpush1.msra.mxu0 0.0
          %2981 = vmatprep.subr.mxu0 0.0
          %2982 = vmatpush1.msra.mxu0 0.0
          %2983 = vmatprep.subr.mxu0 0.0
          %2984 = vmatpush1.msra.mxu0 0.0
          %2985 = vmatprep.subr.mxu0 0.0
          %2986 = vmatpush1.msra.mxu0 0.0
          %2987 = vmatprep.subr.mxu0 0.0
          %2988 = vmatpush1.msra.mxu0 0.0
          %2989 = vmatprep.subr.mxu0 0.0
          %2990 = vmatpush1.msra.mxu0 0.0
          %2991 = vmatprep.mubr.f32.mxu0 0.0
          %2992 = vmatmul.mubr.f32.gmra.mrb[0].mxu0 0.0
          %v2993 = vpop.f32.mrb[0].mxu0
          %v2994 = vadd.f32 0.0, %v2993
          %v2995 = vpop.f32.mrb[0].mxu0
          %v2996 = vadd.f32 0.0, %v2995
          %2997 = vdwg.mxu0
          %v2998 = vadd.f32 %v2852, %v2923
          %v2999 = vadd.f32 %v2853, %v2925
          %v3000 = vadd.f32 %v2854, %v2994
          %v3001 = vadd.f32 %v2855, %v2996
          %v3002 = vxor.u32 %v2998, 2147483648
          %v3003 = vmul.f32 %v3002, 1.442695
          %v3004 = vpow.pop %v3003
          %v3005 = vadd.f32 %v3004, 1.0
          %v3006 = vrcp.pop %v3005
          %v3007 = vmul.f32 1.0, %v3006
          %v3008 = vxor.u32 %v2999, 2147483648
          %v3009 = vmul.f32 %v3008, 1.442695
          %v3010 = vpow.pop %v3009
          %v3011 = vadd.f32 %v3010, 1.0
          %v3012 = vrcp.pop %v3011
          %v3013 = vmul.f32 1.0, %v3012
          %v3014 = vtanh.pop %v3000
          %v3015 = vxor.u32 %v3001, 2147483648
          %v3016 = vmul.f32 %v3015, 1.442695
          %v3017 = vpow.pop %v3016
          %v3018 = vadd.f32 %v3017, 1.0
          %v3019 = vrcp.pop %v3018
          %v3020 = vmul.f32 1.0, %v3019
          %v3021 = vmul.f32 %v3013, 0.0
          %v3022 = vmul.f32 %v3007, %v3014
          %v3023 = vadd.f32 %v3021, %v3022
          %v3024 = vtanh.pop %v3023
          %v3025 = vmul.f32 %v3020, %v3024
          %3026 = vst [vmem:[#allocation3] sm:$0xff] %v3025
          %s3027 = scalar_lea.vmem [#allocation4], 32
          %v3028 = vld [vmem:[%s3027] sm:$0xff]
          %v3029 = vld [vmem:[%s3027 + $0x8] sm:$0xff]
          %v3030 = vld [vmem:[%s3027 + $0x10] sm:$0xff]
          %v3031 = vld [vmem:[%s3027 + $0x18] sm:$0xff]
          %3032 = vmatprep.subr.mxu0 %v2789
          %3033 = vmatpush1.msra.mxu0 %v2788
          %3034 = vmatprep.subr.mxu0 %v2793
          %3035 = vmatpush1.msra.mxu0 %v2792
          %3036 = vmatprep.subr.mxu0 %v2797
          %3037 = vmatpush1.msra.mxu0 %v2796
          %3038 = vmatprep.subr.mxu0 %v2801
          %3039 = vmatpush1.msra.mxu0 %v2800
          %3040 = vmatprep.subr.mxu0 %v2805
          %3041 = vmatpush1.msra.mxu0 %v2804
          %3042 = vmatprep.subr.mxu0 %v2809
          %3043 = vmatpush1.msra.mxu0 %v2808
          %3044 = vmatprep.subr.mxu0 %v2813
          %3045 = vmatpush1.msra.mxu0 %v2812
          %3046 = vmatprep.subr.mxu0 %v2817
          %3047 = vmatpush1.msra.mxu0 %v2816
          %3048 = vmatprep.subr.mxu0 %v2821
          %3049 = vmatpush1.msra.mxu0 %v2820
          %3050 = vmatprep.subr.mxu0 %v2825
          %3051 = vmatpush1.msra.mxu0 %v2824
          %3052 = vmatprep.subr.mxu0 %v2829
          %3053 = vmatpush1.msra.mxu0 %v2828
          %3054 = vmatprep.subr.mxu0 %v2833
          %3055 = vmatpush1.msra.mxu0 %v2832
          %3056 = vmatprep.subr.mxu0 %v2837
          %3057 = vmatpush1.msra.mxu0 %v2836
          %3058 = vmatprep.subr.mxu0 %v2841
          %3059 = vmatpush1.msra.mxu0 %v2840
          %3060 = vmatprep.subr.mxu0 %v2845
          %3061 = vmatpush1.msra.mxu0 %v2844
          %3062 = vmatprep.subr.mxu0 %v2849
          %3063 = vmatpush1.msra.mxu0 %v2848
          %3064 = vmatprep.subr.mxu0 0.0
          %3065 = vmatpush1.msra.mxu0 0.0
          %3066 = vmatprep.subr.mxu0 0.0
          %3067 = vmatpush1.msra.mxu0 0.0
          %3068 = vmatprep.subr.mxu0 0.0
          %3069 = vmatpush1.msra.mxu0 0.0
          %3070 = vmatprep.subr.mxu0 0.0
          %3071 = vmatpush1.msra.mxu0 0.0
          %3072 = vmatprep.subr.mxu0 0.0
          %3073 = vmatpush1.msra.mxu0 0.0
          %3074 = vmatprep.subr.mxu0 0.0
          %3075 = vmatpush1.msra.mxu0 0.0
          %3076 = vmatprep.subr.mxu0 0.0
          %3077 = vmatpush1.msra.mxu0 0.0
          %3078 = vmatprep.subr.mxu0 0.0
          %3079 = vmatpush1.msra.mxu0 0.0
          %3080 = vmatprep.subr.mxu0 0.0
          %3081 = vmatpush1.msra.mxu0 0.0
          %3082 = vmatprep.subr.mxu0 0.0
          %3083 = vmatpush1.msra.mxu0 0.0
          %3084 = vmatprep.subr.mxu0 0.0
          %3085 = vmatpush1.msra.mxu0 0.0
          %3086 = vmatprep.subr.mxu0 0.0
          %3087 = vmatpush1.msra.mxu0 0.0
          %3088 = vmatprep.subr.mxu0 0.0
          %3089 = vmatpush1.msra.mxu0 0.0
          %3090 = vmatprep.subr.mxu0 0.0
          %3091 = vmatpush1.msra.mxu0 0.0
          %3092 = vmatprep.subr.mxu0 0.0
          %3093 = vmatpush1.msra.mxu0 0.0
          %3094 = vmatprep.subr.mxu0 0.0
          %3095 = vmatpush1.msra.mxu0 0.0
          %3096 = vmatprep.mubr.f32.mxu0 0.0
          %3097 = vmatmul.mubr.f32.gmra.mrb[0].mxu0 %v3025
          %v3098 = vpop.f32.mrb[0].mxu0
          %v3099 = vadd.f32 0.0, %v3098
          %v3100 = vpop.f32.mrb[0].mxu0
          %v3101 = vadd.f32 0.0, %v3100
          %3102 = vdwg.mxu0
          %3103 = vmatprep.subr.mxu0 %v2791
          %3104 = vmatpush1.msra.mxu0 %v2790
          %3105 = vmatprep.subr.mxu0 %v2795
          %3106 = vmatpush1.msra.mxu0 %v2794
          %3107 = vmatprep.subr.mxu0 %v2799
          %3108 = vmatpush1.msra.mxu0 %v2798
          %3109 = vmatprep.subr.mxu0 %v2803
          %3110 = vmatpush1.msra.mxu0 %v2802
          %3111 = vmatprep.subr.mxu0 %v2807
          %3112 = vmatpush1.msra.mxu0 %v2806
          %3113 = vmatprep.subr.mxu0 %v2811
          %3114 = vmatpush1.msra.mxu0 %v2810
          %3115 = vmatprep.subr.mxu0 %v2815
          %3116 = vmatpush1.msra.mxu0 %v2814
          %3117 = vmatprep.subr.mxu0 %v2819
          %3118 = vmatpush1.msra.mxu0 %v2818
          %3119 = vmatprep.subr.mxu0 %v2823
          %3120 = vmatpush1.msra.mxu0 %v2822
          %3121 = vmatprep.subr.mxu0 %v2827
          %3122 = vmatpush1.msra.mxu0 %v2826
          %3123 = vmatprep.subr.mxu0 %v2831
          %3124 = vmatpush1.msra.mxu0 %v2830
          %3125 = vmatprep.subr.mxu0 %v2835
          %3126 = vmatpush1.msra.mxu0 %v2834
          %3127 = vmatprep.subr.mxu0 %v2839
          %3128 = vmatpush1.msra.mxu0 %v2838
          %3129 = vmatprep.subr.mxu0 %v2843
          %3130 = vmatpush1.msra.mxu0 %v2842
          %3131 = vmatprep.subr.mxu0 %v2847
          %3132 = vmatpush1.msra.mxu0 %v2846
          %3133 = vmatprep.subr.mxu0 %v2851
          %3134 = vmatpush1.msra.mxu0 %v2850
          %3135 = vmatprep.subr.mxu0 0.0
          %3136 = vmatpush1.msra.mxu0 0.0
          %3137 = vmatprep.subr.mxu0 0.0
          %3138 = vmatpush1.msra.mxu0 0.0
          %3139 = vmatprep.subr.mxu0 0.0
          %3140 = vmatpush1.msra.mxu0 0.0
          %3141 = vmatprep.subr.mxu0 0.0
          %3142 = vmatpush1.msra.mxu0 0.0
          %3143 = vmatprep.subr.mxu0 0.0
          %3144 = vmatpush1.msra.mxu0 0.0
          %3145 = vmatprep.subr.mxu0 0.0
          %3146 = vmatpush1.msra.mxu0 0.0
          %3147 = vmatprep.subr.mxu0 0.0
          %3148 = vmatpush1.msra.mxu0 0.0
          %3149 = vmatprep.subr.mxu0 0.0
          %3150 = vmatpush1.msra.mxu0 0.0
          %3151 = vmatprep.subr.mxu0 0.0
          %3152 = vmatpush1.msra.mxu0 0.0
          %3153 = vmatprep.subr.mxu0 0.0
          %3154 = vmatpush1.msra.mxu0 0.0
          %3155 = vmatprep.subr.mxu0 0.0
          %3156 = vmatpush1.msra.mxu0 0.0
          %3157 = vmatprep.subr.mxu0 0.0
          %3158 = vmatpush1.msra.mxu0 0.0
          %3159 = vmatprep.subr.mxu0 0.0
          %3160 = vmatpush1.msra.mxu0 0.0
          %3161 = vmatprep.subr.mxu0 0.0
          %3162 = vmatpush1.msra.mxu0 0.0
          %3163 = vmatprep.subr.mxu0 0.0
          %3164 = vmatpush1.msra.mxu0 0.0
          %3165 = vmatprep.subr.mxu0 0.0
          %3166 = vmatpush1.msra.mxu0 0.0
          %3167 = vmatprep.mubr.f32.mxu0 0.0
          %3168 = vmatmul.mubr.f32.gmra.mrb[0].mxu0 %v3025
          %v3169 = vpop.f32.mrb[0].mxu0
          %v3170 = vadd.f32 0.0, %v3169
          %v3171 = vpop.f32.mrb[0].mxu0
          %v3172 = vadd.f32 0.0, %v3171
          %3173 = vdwg.mxu0
          %v3174 = vadd.f32 %v3028, %v3099
          %v3175 = vadd.f32 %v3029, %v3101
          %v3176 = vadd.f32 %v3030, %v3170
          %v3177 = vadd.f32 %v3031, %v3172
          %v3178 = vxor.u32 %v3174, 2147483648
          %v3179 = vmul.f32 %v3178, 1.442695
          %v3180 = vpow.pop %v3179
          %v3181 = vadd.f32 %v3180, 1.0
          %v3182 = vrcp.pop %v3181
          %v3183 = vmul.f32 1.0, %v3182
          %v3184 = vxor.u32 %v3175, 2147483648
          %v3185 = vmul.f32 %v3184, 1.442695
          %v3186 = vpow.pop %v3185
          %v3187 = vadd.f32 %v3186, 1.0
          %v3188 = vrcp.pop %v3187
          %v3189 = vmul.f32 1.0, %v3188
          %v3190 = vtanh.pop %v3176
          %v3191 = vxor.u32 %v3177, 2147483648
          %v3192 = vmul.f32 %v3191, 1.442695
          %v3193 = vpow.pop %v3192
          %v3194 = vadd.f32 %v3193, 1.0
          %v3195 = vrcp.pop %v3194
          %v3196 = vmul.f32 1.0, %v3195
          %v3197 = vmul.f32 %v3189, %v3023
          %v3198 = vmul.f32 %v3183, %v3190
          %v3199 = vadd.f32 %v3197, %v3198
          %v3200 = vtanh.pop %v3199
          %v3201 = vmul.f32 %v3196, %v3200
          %s3202 = scalar_lea.vmem [#allocation3], 8
          %3203 = vst [vmem:[%s3202] sm:$0xff] %v3201
          %s3204 = scalar_lea.vmem [#allocation4], 64
          %v3205 = vld [vmem:[%s3204] sm:$0xff]
          %v3206 = vld [vmem:[%s3204 + $0x8] sm:$0xff]
          %v3207 = vld [vmem:[%s3204 + $0x10] sm:$0xff]
          %v3208 = vld [vmem:[%s3204 + $0x18] sm:$0xff]
          %3209 = vmatprep.subr.mxu0 %v2789
          %3210 = vmatpush1.msra.mxu0 %v2788
          %3211 = vmatprep.subr.mxu0 %v2793
          %3212 = vmatpush1.msra.mxu0 %v2792
          %3213 = vmatprep.subr.mxu0 %v2797
          %3214 = vmatpush1.msra.mxu0 %v2796
          %3215 = vmatprep.subr.mxu0 %v2801
          %3216 = vmatpush1.msra.mxu0 %v2800
          %3217 = vmatprep.subr.mxu0 %v2805
          %3218 = vmatpush1.msra.mxu0 %v2804
          %3219 = vmatprep.subr.mxu0 %v2809
          %3220 = vmatpush1.msra.mxu0 %v2808
          %3221 = vmatprep.subr.mxu0 %v2813
          %3222 = vmatpush1.msra.mxu0 %v2812
          %3223 = vmatprep.subr.mxu0 %v2817
          %3224 = vmatpush1.msra.mxu0 %v2816
          %3225 = vmatprep.subr.mxu0 %v2821
          %3226 = vmatpush1.msra.mxu0 %v2820
          %3227 = vmatprep.subr.mxu0 %v2825
          %3228 = vmatpush1.msra.mxu0 %v2824
          %3229 = vmatprep.subr.mxu0 %v2829
          %3230 = vmatpush1.msra.mxu0 %v2828
          %3231 = vmatprep.subr.mxu0 %v2833
          %3232 = vmatpush1.msra.mxu0 %v2832
          %3233 = vmatprep.subr.mxu0 %v2837
          %3234 = vmatpush1.msra.mxu0 %v2836
          %3235 = vmatprep.subr.mxu0 %v2841
          %3236 = vmatpush1.msra.mxu0 %v2840
          %3237 = vmatprep.subr.mxu0 %v2845
          %3238 = vmatpush1.msra.mxu0 %v2844
          %3239 = vmatprep.subr.mxu0 %v2849
          %3240 = vmatpush1.msra.mxu0 %v2848
          %3241 = vmatprep.subr.mxu0 0.0
          %3242 = vmatpush1.msra.mxu0 0.0
          %3243 = vmatprep.subr.mxu0 0.0
          %3244 = vmatpush1.msra.mxu0 0.0
          %3245 = vmatprep.subr.mxu0 0.0
          %3246 = vmatpush1.msra.mxu0 0.0
          %3247 = vmatprep.subr.mxu0 0.0
          %3248 = vmatpush1.msra.mxu0 0.0
          %3249 = vmatprep.subr.mxu0 0.0
          %3250 = vmatpush1.msra.mxu0 0.0
          %3251 = vmatprep.subr.mxu0 0.0
          %3252 = vmatpush1.msra.mxu0 0.0
          %3253 = vmatprep.subr.mxu0 0.0
          %3254 = vmatpush1.msra.mxu0 0.0
          %3255 = vmatprep.subr.mxu0 0.0
          %3256 = vmatpush1.msra.mxu0 0.0
          %3257 = vmatprep.subr.mxu0 0.0
          %3258 = vmatpush1.msra.mxu0 0.0
          %3259 = vmatprep.subr.mxu0 0.0
          %3260 = vmatpush1.msra.mxu0 0.0
          %3261 = vmatprep.subr.mxu0 0.0
          %3262 = vmatpush1.msra.mxu0 0.0
          %3263 = vmatprep.subr.mxu0 0.0
          %3264 = vmatpush1.msra.mxu0 0.0
          %3265 = vmatprep.subr.mxu0 0.0
          %3266 = vmatpush1.msra.mxu0 0.0
          %3267 = vmatprep.subr.mxu0 0.0
          %3268 = vmatpush1.msra.mxu0 0.0
          %3269 = vmatprep.subr.mxu0 0.0
          %3270 = vmatpush1.msra.mxu0 0.0
          %3271 = vmatprep.subr.mxu0 0.0
          %3272 = vmatpush1.msra.mxu0 0.0
          %3273 = vmatprep.mubr.f32.mxu0 0.0
          %3274 = vmatmul.mubr.f32.gmra.mrb[0].mxu0 %v3201
          %v3275 = vpop.f32.mrb[0].mxu0
          %v3276 = vadd.f32 0.0, %v3275
          %v3277 = vpop.f32.mrb[0].mxu0
          %v3278 = vadd.f32 0.0, %v3277
          %3279 = vdwg.mxu0
          %3280 = vmatprep.subr.mxu0 %v2791
          %3281 = vmatpush1.msra.mxu0 %v2790
          %3282 = vmatprep.subr.mxu0 %v2795
          %3283 = vmatpush1.msra.mxu0 %v2794
          %3284 = vmatprep.subr.mxu0 %v2799
          %3285 = vmatpush1.msra.mxu0 %v2798
          %3286 = vmatprep.subr.mxu0 %v2803
          %3287 = vmatpush1.msra.mxu0 %v2802
          %3288 = vmatprep.subr.mxu0 %v2807
          %3289 = vmatpush1.msra.mxu0 %v2806
          %3290 = vmatprep.subr.mxu0 %v2811
          %3291 = vmatpush1.msra.mxu0 %v2810
          %3292 = vmatprep.subr.mxu0 %v2815
          %3293 = vmatpush1.msra.mxu0 %v2814
          %3294 = vmatprep.subr.mxu0 %v2819
          %3295 = vmatpush1.msra.mxu0 %v2818
          %3296 = vmatprep.subr.mxu0 %v2823
          %3297 = vmatpush1.msra.mxu0 %v2822
          %3298 = vmatprep.subr.mxu0 %v2827
          %3299 = vmatpush1.msra.mxu0 %v2826
          %3300 = vmatprep.subr.mxu0 %v2831
          %3301 = vmatpush1.msra.mxu0 %v2830
          %3302 = vmatprep.subr.mxu0 %v2835
          %3303 = vmatpush1.msra.mxu0 %v2834
          %3304 = vmatprep.subr.mxu0 %v2839
          %3305 = vmatpush1.msra.mxu0 %v2838
          %3306 = vmatprep.subr.mxu0 %v2843
          %3307 = vmatpush1.msra.mxu0 %v2842
          %3308 = vmatprep.subr.mxu0 %v2847
          %3309 = vmatpush1.msra.mxu0 %v2846
          %3310 = vmatprep.subr.mxu0 %v2851
          %3311 = vmatpush1.msra.mxu0 %v2850
          %3312 = vmatprep.subr.mxu0 0.0
          %3313 = vmatpush1.msra.mxu0 0.0
          %3314 = vmatprep.subr.mxu0 0.0
          %3315 = vmatpush1.msra.mxu0 0.0
          %3316 = vmatprep.subr.mxu0 0.0
          %3317 = vmatpush1.msra.mxu0 0.0
          %3318 = vmatprep.subr.mxu0 0.0
          %3319 = vmatpush1.msra.mxu0 0.0
          %3320 = vmatprep.subr.mxu0 0.0
          %3321 = vmatpush1.msra.mxu0 0.0
          %3322 = vmatprep.subr.mxu0 0.0
          %3323 = vmatpush1.msra.mxu0 0.0
          %3324 = vmatprep.subr.mxu0 0.0
          %3325 = vmatpush1.msra.mxu0 0.0
          %3326 = vmatprep.subr.mxu0 0.0
          %3327 = vmatpush1.msra.mxu0 0.0
          %3328 = vmatprep.subr.mxu0 0.0
          %3329 = vmatpush1.msra.mxu0 0.0
          %3330 = vmatprep.subr.mxu0 0.0
          %3331 = vmatpush1.msra.mxu0 0.0
          %3332 = vmatprep.subr.mxu0 0.0
          %3333 = vmatpush1.msra.mxu0 0.0
          %3334 = vmatprep.subr.mxu0 0.0
          %3335 = vmatpush1.msra.mxu0 0.0
          %3336 = vmatprep.subr.mxu0 0.0
          %3337 = vmatpush1.msra.mxu0 0.0
          %3338 = vmatprep.subr.mxu0 0.0
          %3339 = vmatpush1.msra.mxu0 0.0
          %3340 = vmatprep.subr.mxu0 0.0
          %3341 = vmatpush1.msra.mxu0 0.0
          %3342 = vmatprep.subr.mxu0 0.0
          %3343 = vmatpush1.msra.mxu0 0.0
          %3344 = vmatprep.mubr.f32.mxu0 0.0
          %3345 = vmatmul.mubr.f32.gmra.mrb[0].mxu0 %v3201
          %v3346 = vpop.f32.mrb[0].mxu0
          %v3347 = vadd.f32 0.0, %v3346
          %v3348 = vpop.f32.mrb[0].mxu0
          %v3349 = vadd.f32 0.0, %v3348
          %3350 = vdwg.mxu0
          %v3351 = vadd.f32 %v3205, %v3276
          %v3352 = vadd.f32 %v3206, %v3278
          %v3353 = vadd.f32 %v3207, %v3347
          %v3354 = vadd.f32 %v3208, %v3349
          %v3355 = vxor.u32 %v3351, 2147483648
          %v3356 = vmul.f32 %v3355, 1.442695
          %v3357 = vpow.pop %v3356
          %v3358 = vadd.f32 %v3357, 1.0
          %v3359 = vrcp.pop %v3358
          %v3360 = vmul.f32 1.0, %v3359
          %v3361 = vxor.u32 %v3352, 2147483648
          %v3362 = vmul.f32 %v3361, 1.442695
          %v3363 = vpow.pop %v3362
          %v3364 = vadd.f32 %v3363, 1.0
          %v3365 = vrcp.pop %v3364
          %v3366 = vmul.f32 1.0, %v3365
          %v3367 = vtanh.pop %v3353
          %v3368 = vxor.u32 %v3354, 2147483648
          %v3369 = vmul.f32 %v3368, 1.442695
          %v3370 = vpow.pop %v3369
          %v3371 = vadd.f32 %v3370, 1.0
          %v3372 = vrcp.pop %v3371
          %v3373 = vmul.f32 1.0, %v3372
          %v3374 = vmul.f32 %v3366, %v3199
          %v3375 = vmul.f32 %v3360, %v3367
          %v3376 = vadd.f32 %v3374, %v3375
          %v3377 = vtanh.pop %v3376
          %v3378 = vmul.f32 %v3373, %v3377
          %s3379 = scalar_lea.vmem [#allocation3], 16
          %3380 = vst [vmem:[%s3379] sm:$0xff] %v3378
          %s3381 = scalar_lea.vmem [#allocation4], 96
          %v3382 = vld [vmem:[%s3381] sm:$0xff]
          %v3383 = vld [vmem:[%s3381 + $0x8] sm:$0xff]
          %v3384 = vld [vmem:[%s3381 + $0x10] sm:$0xff]
          %v3385 = vld [vmem:[%s3381 + $0x18] sm:$0xff]
          %3386 = vmatprep.subr.mxu0 %v2789
          %3387 = vmatpush1.msra.mxu0 %v2788
          %3388 = vmatprep.subr.mxu0 %v2793
          %3389 = vmatpush1.msra.mxu0 %v2792
          %3390 = vmatprep.subr.mxu0 %v2797
          %3391 = vmatpush1.msra.mxu0 %v2796
          %3392 = vmatprep.subr.mxu0 %v2801
          %3393 = vmatpush1.msra.mxu0 %v2800
          %3394 = vmatprep.subr.mxu0 %v2805
          %3395 = vmatpush1.msra.mxu0 %v2804
          %3396 = vmatprep.subr.mxu0 %v2809
          %3397 = vmatpush1.msra.mxu0 %v2808
          %3398 = vmatprep.subr.mxu0 %v2813
          %3399 = vmatpush1.msra.mxu0 %v2812
          %3400 = vmatprep.subr.mxu0 %v2817
          %3401 = vmatpush1.msra.mxu0 %v2816
          %3402 = vmatprep.subr.mxu0 %v2821
          %3403 = vmatpush1.msra.mxu0 %v2820
          %3404 = vmatprep.subr.mxu0 %v2825
          %3405 = vmatpush1.msra.mxu0 %v2824
          %3406 = vmatprep.subr.mxu0 %v2829
          %3407 = vmatpush1.msra.mxu0 %v2828
          %3408 = vmatprep.subr.mxu0 %v2833
          %3409 = vmatpush1.msra.mxu0 %v2832
          %3410 = vmatprep.subr.mxu0 %v2837
          %3411 = vmatpush1.msra.mxu0 %v2836
          %3412 = vmatprep.subr.mxu0 %v2841
          %3413 = vmatpush1.msra.mxu0 %v2840
          %3414 = vmatprep.subr.mxu0 %v2845
          %3415 = vmatpush1.msra.mxu0 %v2844
          %3416 = vmatprep.subr.mxu0 %v2849
          %3417 = vmatpush1.msra.mxu0 %v2848
          %3418 = vmatprep.subr.mxu0 0.0
          %3419 = vmatpush1.msra.mxu0 0.0
          %3420 = vmatprep.subr.mxu0 0.0
          %3421 = vmatpush1.msra.mxu0 0.0
          %3422 = vmatprep.subr.mxu0 0.0
          %3423 = vmatpush1.msra.mxu0 0.0
          %3424 = vmatprep.subr.mxu0 0.0
          %3425 = vmatpush1.msra.mxu0 0.0
          %3426 = vmatprep.subr.mxu0 0.0
          %3427 = vmatpush1.msra.mxu0 0.0
          %3428 = vmatprep.subr.mxu0 0.0
          %3429 = vmatpush1.msra.mxu0 0.0
          %3430 = vmatprep.subr.mxu0 0.0
          %3431 = vmatpush1.msra.mxu0 0.0
          %3432 = vmatprep.subr.mxu0 0.0
          %3433 = vmatpush1.msra.mxu0 0.0
          %3434 = vmatprep.subr.mxu0 0.0
          %3435 = vmatpush1.msra.mxu0 0.0
          %3436 = vmatprep.subr.mxu0 0.0
          %3437 = vmatpush1.msra.mxu0 0.0
          %3438 = vmatprep.subr.mxu0 0.0
          %3439 = vmatpush1.msra.mxu0 0.0
          %3440 = vmatprep.subr.mxu0 0.0
          %3441 = vmatpush1.msra.mxu0 0.0
          %3442 = vmatprep.subr.mxu0 0.0
          %3443 = vmatpush1.msra.mxu0 0.0
          %3444 = vmatprep.subr.mxu0 0.0
          %3445 = vmatpush1.msra.mxu0 0.0
          %3446 = vmatprep.subr.mxu0 0.0
          %3447 = vmatpush1.msra.mxu0 0.0
          %3448 = vmatprep.subr.mxu0 0.0
          %3449 = vmatpush1.msra.mxu0 0.0
          %3450 = vmatprep.mubr.f32.mxu0 0.0
          %3451 = vmatmul.mubr.f32.gmra.mrb[0].mxu0 %v3378
          %v3452 = vpop.f32.mrb[0].mxu0
          %v3453 = vadd.f32 0.0, %v3452
          %v3454 = vpop.f32.mrb[0].mxu0
          %v3455 = vadd.f32 0.0, %v3454
          %3456 = vdwg.mxu0
          %3457 = vmatprep.subr.mxu0 %v2791
          %3458 = vmatpush1.msra.mxu0 %v2790
          %3459 = vmatprep.subr.mxu0 %v2795
          %3460 = vmatpush1.msra.mxu0 %v2794
          %3461 = vmatprep.subr.mxu0 %v2799
          %3462 = vmatpush1.msra.mxu0 %v2798
          %3463 = vmatprep.subr.mxu0 %v2803
          %3464 = vmatpush1.msra.mxu0 %v2802
          %3465 = vmatprep.subr.mxu0 %v2807
          %3466 = vmatpush1.msra.mxu0 %v2806
          %3467 = vmatprep.subr.mxu0 %v2811
          %3468 = vmatpush1.msra.mxu0 %v2810
          %3469 = vmatprep.subr.mxu0 %v2815
          %3470 = vmatpush1.msra.mxu0 %v2814
          %3471 = vmatprep.subr.mxu0 %v2819
          %3472 = vmatpush1.msra.mxu0 %v2818
          %3473 = vmatprep.subr.mxu0 %v2823
          %3474 = vmatpush1.msra.mxu0 %v2822
          %3475 = vmatprep.subr.mxu0 %v2827
          %3476 = vmatpush1.msra.mxu0 %v2826
          %3477 = vmatprep.subr.mxu0 %v2831
          %3478 = vmatpush1.msra.mxu0 %v2830
          %3479 = vmatprep.subr.mxu0 %v2835
          %3480 = vmatpush1.msra.mxu0 %v2834
          %3481 = vmatprep.subr.mxu0 %v2839
          %3482 = vmatpush1.msra.mxu0 %v2838
          %3483 = vmatprep.subr.mxu0 %v2843
          %3484 = vmatpush1.msra.mxu0 %v2842
          %3485 = vmatprep.subr.mxu0 %v2847
          %3486 = vmatpush1.msra.mxu0 %v2846
          %3487 = vmatprep.subr.mxu0 %v2851
          %3488 = vmatpush1.msra.mxu0 %v2850
          %3489 = vmatprep.subr.mxu0 0.0
          %3490 = vmatpush1.msra.mxu0 0.0
          %3491 = vmatprep.subr.mxu0 0.0
          %3492 = vmatpush1.msra.mxu0 0.0
          %3493 = vmatprep.subr.mxu0 0.0
          %3494 = vmatpush1.msra.mxu0 0.0
          %3495 = vmatprep.subr.mxu0 0.0
          %3496 = vmatpush1.msra.mxu0 0.0
          %3497 = vmatprep.subr.mxu0 0.0
          %3498 = vmatpush1.msra.mxu0 0.0
          %3499 = vmatprep.subr.mxu0 0.0
          %3500 = vmatpush1.msra.mxu0 0.0
          %3501 = vmatprep.subr.mxu0 0.0
          %3502 = vmatpush1.msra.mxu0 0.0
          %3503 = vmatprep.subr.mxu0 0.0
          %3504 = vmatpush1.msra.mxu0 0.0
          %3505 = vmatprep.subr.mxu0 0.0
          %3506 = vmatpush1.msra.mxu0 0.0
          %3507 = vmatprep.subr.mxu0 0.0
          %3508 = vmatpush1.msra.mxu0 0.0
          %3509 = vmatprep.subr.mxu0 0.0
          %3510 = vmatpush1.msra.mxu0 0.0
          %3511 = vmatprep.subr.mxu0 0.0
          %3512 = vmatpush1.msra.mxu0 0.0
          %3513 = vmatprep.subr.mxu0 0.0
          %3514 = vmatpush1.msra.mxu0 0.0
          %3515 = vmatprep.subr.mxu0 0.0
          %3516 = vmatpush1.msra.mxu0 0.0
          %3517 = vmatprep.subr.mxu0 0.0
          %3518 = vmatpush1.msra.mxu0 0.0
          %3519 = vmatprep.subr.mxu0 0.0
          %3520 = vmatpush1.msra.mxu0 0.0
          %3521 = vmatprep.mubr.f32.mxu0 0.0
          %3522 = vmatmul.mubr.f32.gmra.mrb[0].mxu0 %v3378
          %v3523 = vpop.f32.mrb[0].mxu0
          %v3524 = vadd.f32 0.0, %v3523
          %v3525 = vpop.f32.mrb[0].mxu0
          %v3526 = vadd.f32 0.0, %v3525
          %3527 = vdwg.mxu0
          %v3528 = vadd.f32 %v3382, %v3453
          %v3529 = vadd.f32 %v3383, %v3455
          %v3530 = vadd.f32 %v3384, %v3524
          %v3531 = vadd.f32 %v3385, %v3526
          %v3532 = vxor.u32 %v3528, 2147483648
          %v3533 = vmul.f32 %v3532, 1.442695
          %v3534 = vpow.pop %v3533
          %v3535 = vadd.f32 %v3534, 1.0
          %v3536 = vrcp.pop %v3535
          %v3537 = vmul.f32 1.0, %v3536
          %v3538 = vxor.u32 %v3529, 2147483648
          %v3539 = vmul.f32 %v3538, 1.442695
          %v3540 = vpow.pop %v3539
          %v3541 = vadd.f32 %v3540, 1.0
          %v3542 = vrcp.pop %v3541
          %v3543 = vmul.f32 1.0, %v3542
          %v3544 = vtanh.pop %v3530
          %v3545 = vxor.u32 %v3531, 2147483648
          %v3546 = vmul.f32 %v3545, 1.442695
          %v3547 = vpow.pop %v3546
          %v3548 = vadd.f32 %v3547, 1.0
          %v3549 = vrcp.pop %v3548
          %v3550 = vmul.f32 1.0, %v3549
          %v3551 = vmul.f32 %v3543, %v3376
          %v3552 = vmul.f32 %v3537, %v3544
          %v3553 = vadd.f32 %v3551, %v3552
          %v3554 = vtanh.pop %v3553
          %v3555 = vmul.f32 %v3550, %v3554
          %s3556 = scalar_lea.vmem [#allocation3], 24
          %3557 = vst [vmem:[%s3556] sm:$0xff] %v3555
          %s3558 = scalar_lea.vmem [#allocation4], 128
          %v3559 = vld [vmem:[%s3558] sm:$0xff]
          %v3560 = vld [vmem:[%s3558 + $0x8] sm:$0xff]
          %v3561 = vld [vmem:[%s3558 + $0x10] sm:$0xff]
          %v3562 = vld [vmem:[%s3558 + $0x18] sm:$0xff]
          %3563 = vmatprep.subr.mxu0 %v2789
          %3564 = vmatpush1.msra.mxu0 %v2788
          %3565 = vmatprep.subr.mxu0 %v2793
          %3566 = vmatpush1.msra.mxu0 %v2792
          %3567 = vmatprep.subr.mxu0 %v2797
          %3568 = vmatpush1.msra.mxu0 %v2796
          %3569 = vmatprep.subr.mxu0 %v2801
          %3570 = vmatpush1.msra.mxu0 %v2800
          %3571 = vmatprep.subr.mxu0 %v2805
          %3572 = vmatpush1.msra.mxu0 %v2804
          %3573 = vmatprep.subr.mxu0 %v2809
          %3574 = vmatpush1.msra.mxu0 %v2808
          %3575 = vmatprep.subr.mxu0 %v2813
          %3576 = vmatpush1.msra.mxu0 %v2812
          %3577 = vmatprep.subr.mxu0 %v2817
          %3578 = vmatpush1.msra.mxu0 %v2816
          %3579 = vmatprep.subr.mxu0 %v2821
          %3580 = vmatpush1.msra.mxu0 %v2820
          %3581 = vmatprep.subr.mxu0 %v2825
          %3582 = vmatpush1.msra.mxu0 %v2824
          %3583 = vmatprep.subr.mxu0 %v2829
          %3584 = vmatpush1.msra.mxu0 %v2828
          %3585 = vmatprep.subr.mxu0 %v2833
          %3586 = vmatpush1.msra.mxu0 %v2832
          %3587 = vmatprep.subr.mxu0 %v2837
          %3588 = vmatpush1.msra.mxu0 %v2836
          %3589 = vmatprep.subr.mxu0 %v2841
          %3590 = vmatpush1.msra.mxu0 %v2840
          %3591 = vmatprep.subr.mxu0 %v2845
          %3592 = vmatpush1.msra.mxu0 %v2844
          %3593 = vmatprep.subr.mxu0 %v2849
          %3594 = vmatpush1.msra.mxu0 %v2848
          %3595 = vmatprep.subr.mxu0 0.0
          %3596 = vmatpush1.msra.mxu0 0.0
          %3597 = vmatprep.subr.mxu0 0.0
          %3598 = vmatpush1.msra.mxu0 0.0
          %3599 = vmatprep.subr.mxu0 0.0
          %3600 = vmatpush1.msra.mxu0 0.0
          %3601 = vmatprep.subr.mxu0 0.0
          %3602 = vmatpush1.msra.mxu0 0.0
          %3603 = vmatprep.subr.mxu0 0.0
          %3604 = vmatpush1.msra.mxu0 0.0
          %3605 = vmatprep.subr.mxu0 0.0
          %3606 = vmatpush1.msra.mxu0 0.0
          %3607 = vmatprep.subr.mxu0 0.0
          %3608 = vmatpush1.msra.mxu0 0.0
          %3609 = vmatprep.subr.mxu0 0.0
          %3610 = vmatpush1.msra.mxu0 0.0
          %3611 = vmatprep.subr.mxu0 0.0
          %3612 = vmatpush1.msra.mxu0 0.0
          %3613 = vmatprep.subr.mxu0 0.0
          %3614 = vmatpush1.msra.mxu0 0.0
          %3615 = vmatprep.subr.mxu0 0.0
          %3616 = vmatpush1.msra.mxu0 0.0
          %3617 = vmatprep.subr.mxu0 0.0
          %3618 = vmatpush1.msra.mxu0 0.0
          %3619 = vmatprep.subr.mxu0 0.0
          %3620 = vmatpush1.msra.mxu0 0.0
          %3621 = vmatprep.subr.mxu0 0.0
          %3622 = vmatpush1.msra.mxu0 0.0
          %3623 = vmatprep.subr.mxu0 0.0
          %3624 = vmatpush1.msra.mxu0 0.0
          %3625 = vmatprep.subr.mxu0 0.0
          %3626 = vmatpush1.msra.mxu0 0.0
          %3627 = vmatprep.mubr.f32.mxu0 0.0
          %3628 = vmatmul.mubr.f32.gmra.mrb[0].mxu0 %v3555
          %v3629 = vpop.f32.mrb[0].mxu0
          %v3630 = vadd.f32 0.0, %v3629
          %v3631 = vpop.f32.mrb[0].mxu0
          %v3632 = vadd.f32 0.0, %v3631
          %3633 = vdwg.mxu0
          %3634 = vmatprep.subr.mxu0 %v2791
          %3635 = vmatpush1.msra.mxu0 %v2790
          %3636 = vmatprep.subr.mxu0 %v2795
          %3637 = vmatpush1.msra.mxu0 %v2794
          %3638 = vmatprep.subr.mxu0 %v2799
          %3639 = vmatpush1.msra.mxu0 %v2798
          %3640 = vmatprep.subr.mxu0 %v2803
          %3641 = vmatpush1.msra.mxu0 %v2802
          %3642 = vmatprep.subr.mxu0 %v2807
          %3643 = vmatpush1.msra.mxu0 %v2806
          %3644 = vmatprep.subr.mxu0 %v2811
          %3645 = vmatpush1.msra.mxu0 %v2810
          %3646 = vmatprep.subr.mxu0 %v2815
          %3647 = vmatpush1.msra.mxu0 %v2814
          %3648 = vmatprep.subr.mxu0 %v2819
          %3649 = vmatpush1.msra.mxu0 %v2818
          %3650 = vmatprep.subr.mxu0 %v2823
          %3651 = vmatpush1.msra.mxu0 %v2822
          %3652 = vmatprep.subr.mxu0 %v2827
          %3653 = vmatpush1.msra.mxu0 %v2826
          %3654 = vmatprep.subr.mxu0 %v2831
          %3655 = vmatpush1.msra.mxu0 %v2830
          %3656 = vmatprep.subr.mxu0 %v2835
          %3657 = vmatpush1.msra.mxu0 %v2834
          %3658 = vmatprep.subr.mxu0 %v2839
          %3659 = vmatpush1.msra.mxu0 %v2838
          %3660 = vmatprep.subr.mxu0 %v2843
          %3661 = vmatpush1.msra.mxu0 %v2842
          %3662 = vmatprep.subr.mxu0 %v2847
          %3663 = vmatpush1.msra.mxu0 %v2846
          %3664 = vmatprep.subr.mxu0 %v2851
          %3665 = vmatpush1.msra.mxu0 %v2850
          %3666 = vmatprep.subr.mxu0 0.0
          %3667 = vmatpush1.msra.mxu0 0.0
          %3668 = vmatprep.subr.mxu0 0.0
          %3669 = vmatpush1.msra.mxu0 0.0
          %3670 = vmatprep.subr.mxu0 0.0
          %3671 = vmatpush1.msra.mxu0 0.0
          %3672 = vmatprep.subr.mxu0 0.0
          %3673 = vmatpush1.msra.mxu0 0.0
          %3674 = vmatprep.subr.mxu0 0.0
          %3675 = vmatpush1.msra.mxu0 0.0
          %3676 = vmatprep.subr.mxu0 0.0
          %3677 = vmatpush1.msra.mxu0 0.0
          %3678 = vmatprep.subr.mxu0 0.0
          %3679 = vmatpush1.msra.mxu0 0.0
          %3680 = vmatprep.subr.mxu0 0.0
          %3681 = vmatpush1.msra.mxu0 0.0
          %3682 = vmatprep.subr.mxu0 0.0
          %3683 = vmatpush1.msra.mxu0 0.0
          %3684 = vmatprep.subr.mxu0 0.0
          %3685 = vmatpush1.msra.mxu0 0.0
          %3686 = vmatprep.subr.mxu0 0.0
          %3687 = vmatpush1.msra.mxu0 0.0
          %3688 = vmatprep.subr.mxu0 0.0
          %3689 = vmatpush1.msra.mxu0 0.0
          %3690 = vmatprep.subr.mxu0 0.0
          %3691 = vmatpush1.msra.mxu0 0.0
          %3692 = vmatprep.subr.mxu0 0.0
          %3693 = vmatpush1.msra.mxu0 0.0
          %3694 = vmatprep.subr.mxu0 0.0
          %3695 = vmatpush1.msra.mxu0 0.0
          %3696 = vmatprep.subr.mxu0 0.0
          %3697 = vmatpush1.msra.mxu0 0.0
          %3698 = vmatprep.mubr.f32.mxu0 0.0
          %3699 = vmatmul.mubr.f32.gmra.mrb[0].mxu0 %v3555
          %v3700 = vpop.f32.mrb[0].mxu0
          %v3701 = vadd.f32 0.0, %v3700
          %v3702 = vpop.f32.mrb[0].mxu0
          %v3703 = vadd.f32 0.0, %v3702
          %3704 = vdwg.mxu0
          %v3705 = vadd.f32 %v3559, %v3630
          %v3706 = vadd.f32 %v3560, %v3632
          %v3707 = vadd.f32 %v3561, %v3701
          %v3708 = vadd.f32 %v3562, %v3703
          %v3709 = vxor.u32 %v3705, 2147483648
          %v3710 = vmul.f32 %v3709, 1.442695
          %v3711 = vpow.pop %v3710
          %v3712 = vadd.f32 %v3711, 1.0
          %v3713 = vrcp.pop %v3712
          %v3714 = vmul.f32 1.0, %v3713
          %v3715 = vxor.u32 %v3706, 2147483648
          %v3716 = vmul.f32 %v3715, 1.442695
          %v3717 = vpow.pop %v3716
          %v3718 = vadd.f32 %v3717, 1.0
          %v3719 = vrcp.pop %v3718
          %v3720 = vmul.f32 1.0, %v3719
          %v3721 = vtanh.pop %v3707
          %v3722 = vxor.u32 %v3708, 2147483648
          %v3723 = vmul.f32 %v3722, 1.442695
          %v3724 = vpow.pop %v3723
          %v3725 = vadd.f32 %v3724, 1.0
          %v3726 = vrcp.pop %v3725
          %v3727 = vmul.f32 1.0, %v3726
          %v3728 = vmul.f32 %v3720, %v3553
          %v3729 = vmul.f32 %v3714, %v3721
          %v3730 = vadd.f32 %v3728, %v3729
          %v3731 = vtanh.pop %v3730
          %v3732 = vmul.f32 %v3727, %v3731
          %s3733 = scalar_lea.vmem [#allocation3], 32
          %3734 = vst [vmem:[%s3733] sm:$0xff] %v3732
          %s3735 = scalar_lea.vmem [#allocation4], 160
          %v3736 = vld [vmem:[%s3735] sm:$0xff]
          %v3737 = vld [vmem:[%s3735 + $0x8] sm:$0xff]
          %v3738 = vld [vmem:[%s3735 + $0x10] sm:$0xff]
          %v3739 = vld [vmem:[%s3735 + $0x18] sm:$0xff]
          %3740 = vmatprep.subr.mxu0 %v2789
          %3741 = vmatpush1.msra.mxu0 %v2788
          %3742 = vmatprep.subr.mxu0 %v2793
          %3743 = vmatpush1.msra.mxu0 %v2792
          %3744 = vmatprep.subr.mxu0 %v2797
          %3745 = vmatpush1.msra.mxu0 %v2796
          %3746 = vmatprep.subr.mxu0 %v2801
          %3747 = vmatpush1.msra.mxu0 %v2800
          %3748 = vmatprep.subr.mxu0 %v2805
          %3749 = vmatpush1.msra.mxu0 %v2804
          %3750 = vmatprep.subr.mxu0 %v2809
          %3751 = vmatpush1.msra.mxu0 %v2808
          %3752 = vmatprep.subr.mxu0 %v2813
          %3753 = vmatpush1.msra.mxu0 %v2812
          %3754 = vmatprep.subr.mxu0 %v2817
          %3755 = vmatpush1.msra.mxu0 %v2816
          %3756 = vmatprep.subr.mxu0 %v2821
          %3757 = vmatpush1.msra.mxu0 %v2820
          %3758 = vmatprep.subr.mxu0 %v2825
          %3759 = vmatpush1.msra.mxu0 %v2824
          %3760 = vmatprep.subr.mxu0 %v2829
          %3761 = vmatpush1.msra.mxu0 %v2828
          %3762 = vmatprep.subr.mxu0 %v2833
          %3763 = vmatpush1.msra.mxu0 %v2832
          %3764 = vmatprep.subr.mxu0 %v2837
          %3765 = vmatpush1.msra.mxu0 %v2836
          %3766 = vmatprep.subr.mxu0 %v2841
          %3767 = vmatpush1.msra.mxu0 %v2840
          %3768 = vmatprep.subr.mxu0 %v2845
          %3769 = vmatpush1.msra.mxu0 %v2844
          %3770 = vmatprep.subr.mxu0 %v2849
          %3771 = vmatpush1.msra.mxu0 %v2848
          %3772 = vmatprep.subr.mxu0 0.0
          %3773 = vmatpush1.msra.mxu0 0.0
          %3774 = vmatprep.subr.mxu0 0.0
          %3775 = vmatpush1.msra.mxu0 0.0
          %3776 = vmatprep.subr.mxu0 0.0
          %3777 = vmatpush1.msra.mxu0 0.0
          %3778 = vmatprep.subr.mxu0 0.0
          %3779 = vmatpush1.msra.mxu0 0.0
          %3780 = vmatprep.subr.mxu0 0.0
          %3781 = vmatpush1.msra.mxu0 0.0
          %3782 = vmatprep.subr.mxu0 0.0
          %3783 = vmatpush1.msra.mxu0 0.0
          %3784 = vmatprep.subr.mxu0 0.0
          %3785 = vmatpush1.msra.mxu0 0.0
          %3786 = vmatprep.subr.mxu0 0.0
          %3787 = vmatpush1.msra.mxu0 0.0
          %3788 = vmatprep.subr.mxu0 0.0
          %3789 = vmatpush1.msra.mxu0 0.0
          %3790 = vmatprep.subr.mxu0 0.0
          %3791 = vmatpush1.msra.mxu0 0.0
          %3792 = vmatprep.subr.mxu0 0.0
          %3793 = vmatpush1.msra.mxu0 0.0
          %3794 = vmatprep.subr.mxu0 0.0
          %3795 = vmatpush1.msra.mxu0 0.0
          %3796 = vmatprep.subr.mxu0 0.0
          %3797 = vmatpush1.msra.mxu0 0.0
          %3798 = vmatprep.subr.mxu0 0.0
          %3799 = vmatpush1.msra.mxu0 0.0
          %3800 = vmatprep.subr.mxu0 0.0
          %3801 = vmatpush1.msra.mxu0 0.0
          %3802 = vmatprep.subr.mxu0 0.0
          %3803 = vmatpush1.msra.mxu0 0.0
          %3804 = vmatprep.mubr.f32.mxu0 0.0
          %3805 = vmatmul.mubr.f32.gmra.mrb[0].mxu0 %v3732
          %v3806 = vpop.f32.mrb[0].mxu0
          %v3807 = vadd.f32 0.0, %v3806
          %v3808 = vpop.f32.mrb[0].mxu0
          %v3809 = vadd.f32 0.0, %v3808
          %3810 = vdwg.mxu0
          %3811 = vmatprep.subr.mxu0 %v2791
          %3812 = vmatpush1.msra.mxu0 %v2790
          %3813 = vmatprep.subr.mxu0 %v2795
          %3814 = vmatpush1.msra.mxu0 %v2794
          %3815 = vmatprep.subr.mxu0 %v2799
          %3816 = vmatpush1.msra.mxu0 %v2798
          %3817 = vmatprep.subr.mxu0 %v2803
          %3818 = vmatpush1.msra.mxu0 %v2802
          %3819 = vmatprep.subr.mxu0 %v2807
          %3820 = vmatpush1.msra.mxu0 %v2806
          %3821 = vmatprep.subr.mxu0 %v2811
          %3822 = vmatpush1.msra.mxu0 %v2810
          %3823 = vmatprep.subr.mxu0 %v2815
          %3824 = vmatpush1.msra.mxu0 %v2814
          %3825 = vmatprep.subr.mxu0 %v2819
          %3826 = vmatpush1.msra.mxu0 %v2818
          %3827 = vmatprep.subr.mxu0 %v2823
          %3828 = vmatpush1.msra.mxu0 %v2822
          %3829 = vmatprep.subr.mxu0 %v2827
          %3830 = vmatpush1.msra.mxu0 %v2826
          %3831 = vmatprep.subr.mxu0 %v2831
          %3832 = vmatpush1.msra.mxu0 %v2830
          %3833 = vmatprep.subr.mxu0 %v2835
          %3834 = vmatpush1.msra.mxu0 %v2834
          %3835 = vmatprep.subr.mxu0 %v2839
          %3836 = vmatpush1.msra.mxu0 %v2838
          %3837 = vmatprep.subr.mxu0 %v2843
          %3838 = vmatpush1.msra.mxu0 %v2842
          %3839 = vmatprep.subr.mxu0 %v2847
          %3840 = vmatpush1.msra.mxu0 %v2846
          %3841 = vmatprep.subr.mxu0 %v2851
          %3842 = vmatpush1.msra.mxu0 %v2850
          %3843 = vmatprep.subr.mxu0 0.0
          %3844 = vmatpush1.msra.mxu0 0.0
          %3845 = vmatprep.subr.mxu0 0.0
          %3846 = vmatpush1.msra.mxu0 0.0
          %3847 = vmatprep.subr.mxu0 0.0
          %3848 = vmatpush1.msra.mxu0 0.0
          %3849 = vmatprep.subr.mxu0 0.0
          %3850 = vmatpush1.msra.mxu0 0.0
          %3851 = vmatprep.subr.mxu0 0.0
          %3852 = vmatpush1.msra.mxu0 0.0
          %3853 = vmatprep.subr.mxu0 0.0
          %3854 = vmatpush1.msra.mxu0 0.0
          %3855 = vmatprep.subr.mxu0 0.0
          %3856 = vmatpush1.msra.mxu0 0.0
          %3857 = vmatprep.subr.mxu0 0.0
          %3858 = vmatpush1.msra.mxu0 0.0
          %3859 = vmatprep.subr.mxu0 0.0
          %3860 = vmatpush1.msra.mxu0 0.0
          %3861 = vmatprep.subr.mxu0 0.0
          %3862 = vmatpush1.msra.mxu0 0.0
          %3863 = vmatprep.subr.mxu0 0.0
          %3864 = vmatpush1.msra.mxu0 0.0
          %3865 = vmatprep.subr.mxu0 0.0
          %3866 = vmatpush1.msra.mxu0 0.0
          %3867 = vmatprep.subr.mxu0 0.0
          %3868 = vmatpush1.msra.mxu0 0.0
          %3869 = vmatprep.subr.mxu0 0.0
          %3870 = vmatpush1.msra.mxu0 0.0
          %3871 = vmatprep.subr.mxu0 0.0
          %3872 = vmatpush1.msra.mxu0 0.0
          %3873 = vmatprep.subr.mxu0 0.0
          %3874 = vmatpush1.msra.mxu0 0.0
          %3875 = vmatprep.mubr.f32.mxu0 0.0
          %3876 = vmatmul.mubr.f32.gmra.mrb[0].mxu0 %v3732
          %v3877 = vpop.f32.mrb[0].mxu0
          %v3878 = vadd.f32 0.0, %v3877
          %v3879 = vpop.f32.mrb[0].mxu0
          %v3880 = vadd.f32 0.0, %v3879
          %3881 = vdwg.mxu0
          %v3882 = vadd.f32 %v3736, %v3807
          %v3883 = vadd.f32 %v3737, %v3809
          %v3884 = vadd.f32 %v3738, %v3878
          %v3885 = vadd.f32 %v3739, %v3880
          %v3886 = vxor.u32 %v3882, 2147483648
          %v3887 = vmul.f32 %v3886, 1.442695
          %v3888 = vpow.pop %v3887
          %v3889 = vadd.f32 %v3888, 1.0
          %v3890 = vrcp.pop %v3889
          %v3891 = vmul.f32 1.0, %v3890
          %v3892 = vxor.u32 %v3883, 2147483648
          %v3893 = vmul.f32 %v3892, 1.442695
          %v3894 = vpow.pop %v3893
          %v3895 = vadd.f32 %v3894, 1.0
          %v3896 = vrcp.pop %v3895
          %v3897 = vmul.f32 1.0, %v3896
          %v3898 = vtanh.pop %v3884
          %v3899 = vxor.u32 %v3885, 2147483648
          %v3900 = vmul.f32 %v3899, 1.442695
          %v3901 = vpow.pop %v3900
          %v3902 = vadd.f32 %v3901, 1.0
          %v3903 = vrcp.pop %v3902
          %v3904 = vmul.f32 1.0, %v3903
          %v3905 = vmul.f32 %v3897, %v3730
          %v3906 = vmul.f32 %v3891, %v3898
          %v3907 = vadd.f32 %v3905, %v3906
          %v3908 = vtanh.pop %v3907
          %v3909 = vmul.f32 %v3904, %v3908
          %s3910 = scalar_lea.vmem [#allocation3], 40
          %3911 = vst [vmem:[%s3910] sm:$0xff] %v3909
          %s3912 = scalar_lea.vmem [#allocation4], 192
          %v3913 = vld [vmem:[%s3912] sm:$0xff]
          %v3914 = vld [vmem:[%s3912 + $0x8] sm:$0xff]
          %v3915 = vld [vmem:[%s3912 + $0x10] sm:$0xff]
          %v3916 = vld [vmem:[%s3912 + $0x18] sm:$0xff]
          %3917 = vmatprep.subr.mxu0 %v2789
          %3918 = vmatpush1.msra.mxu0 %v2788
          %3919 = vmatprep.subr.mxu0 %v2793
          %3920 = vmatpush1.msra.mxu0 %v2792
          %3921 = vmatprep.subr.mxu0 %v2797
          %3922 = vmatpush1.msra.mxu0 %v2796
          %3923 = vmatprep.subr.mxu0 %v2801
          %3924 = vmatpush1.msra.mxu0 %v2800
          %3925 = vmatprep.subr.mxu0 %v2805
          %3926 = vmatpush1.msra.mxu0 %v2804
          %3927 = vmatprep.subr.mxu0 %v2809
          %3928 = vmatpush1.msra.mxu0 %v2808
          %3929 = vmatprep.subr.mxu0 %v2813
          %3930 = vmatpush1.msra.mxu0 %v2812
          %3931 = vmatprep.subr.mxu0 %v2817
          %3932 = vmatpush1.msra.mxu0 %v2816
          %3933 = vmatprep.subr.mxu0 %v2821
          %3934 = vmatpush1.msra.mxu0 %v2820
          %3935 = vmatprep.subr.mxu0 %v2825
          %3936 = vmatpush1.msra.mxu0 %v2824
          %3937 = vmatprep.subr.mxu0 %v2829
          %3938 = vmatpush1.msra.mxu0 %v2828
          %3939 = vmatprep.subr.mxu0 %v2833
          %3940 = vmatpush1.msra.mxu0 %v2832
          %3941 = vmatprep.subr.mxu0 %v2837
          %3942 = vmatpush1.msra.mxu0 %v2836
          %3943 = vmatprep.subr.mxu0 %v2841
          %3944 = vmatpush1.msra.mxu0 %v2840
          %3945 = vmatprep.subr.mxu0 %v2845
          %3946 = vmatpush1.msra.mxu0 %v2844
          %3947 = vmatprep.subr.mxu0 %v2849
          %3948 = vmatpush1.msra.mxu0 %v2848
          %3949 = vmatprep.subr.mxu0 0.0
          %3950 = vmatpush1.msra.mxu0 0.0
          %3951 = vmatprep.subr.mxu0 0.0
          %3952 = vmatpush1.msra.mxu0 0.0
          %3953 = vmatprep.subr.mxu0 0.0
          %3954 = vmatpush1.msra.mxu0 0.0
          %3955 = vmatprep.subr.mxu0 0.0
          %3956 = vmatpush1.msra.mxu0 0.0
          %3957 = vmatprep.subr.mxu0 0.0
          %3958 = vmatpush1.msra.mxu0 0.0
          %3959 = vmatprep.subr.mxu0 0.0
          %3960 = vmatpush1.msra.mxu0 0.0
          %3961 = vmatprep.subr.mxu0 0.0
          %3962 = vmatpush1.msra.mxu0 0.0
          %3963 = vmatprep.subr.mxu0 0.0
          %3964 = vmatpush1.msra.mxu0 0.0
          %3965 = vmatprep.subr.mxu0 0.0
          %3966 = vmatpush1.msra.mxu0 0.0
          %3967 = vmatprep.subr.mxu0 0.0
          %3968 = vmatpush1.msra.mxu0 0.0
          %3969 = vmatprep.subr.mxu0 0.0
          %3970 = vmatpush1.msra.mxu0 0.0
          %3971 = vmatprep.subr.mxu0 0.0
          %3972 = vmatpush1.msra.mxu0 0.0
          %3973 = vmatprep.subr.mxu0 0.0
          %3974 = vmatpush1.msra.mxu0 0.0
          %3975 = vmatprep.subr.mxu0 0.0
          %3976 = vmatpush1.msra.mxu0 0.0
          %3977 = vmatprep.subr.mxu0 0.0
          %3978 = vmatpush1.msra.mxu0 0.0
          %3979 = vmatprep.subr.mxu0 0.0
          %3980 = vmatpush1.msra.mxu0 0.0
          %3981 = vmatprep.mubr.f32.mxu0 0.0
          %3982 = vmatmul.mubr.f32.gmra.mrb[0].mxu0 %v3909
          %v3983 = vpop.f32.mrb[0].mxu0
          %v3984 = vadd.f32 0.0, %v3983
          %v3985 = vpop.f32.mrb[0].mxu0
          %v3986 = vadd.f32 0.0, %v3985
          %3987 = vdwg.mxu0
          %3988 = vmatprep.subr.mxu0 %v2791
          %3989 = vmatpush1.msra.mxu0 %v2790
          %3990 = vmatprep.subr.mxu0 %v2795
          %3991 = vmatpush1.msra.mxu0 %v2794
          %3992 = vmatprep.subr.mxu0 %v2799
          %3993 = vmatpush1.msra.mxu0 %v2798
          %3994 = vmatprep.subr.mxu0 %v2803
          %3995 = vmatpush1.msra.mxu0 %v2802
          %3996 = vmatprep.subr.mxu0 %v2807
          %3997 = vmatpush1.msra.mxu0 %v2806
          %3998 = vmatprep.subr.mxu0 %v2811
          %3999 = vmatpush1.msra.mxu0 %v2810
          %4000 = vmatprep.subr.mxu0 %v2815
          %4001 = vmatpush1.msra.mxu0 %v2814
          %4002 = vmatprep.subr.mxu0 %v2819
          %4003 = vmatpush1.msra.mxu0 %v2818
          %4004 = vmatprep.subr.mxu0 %v2823
          %4005 = vmatpush1.msra.mxu0 %v2822
          %4006 = vmatprep.subr.mxu0 %v2827
          %4007 = vmatpush1.msra.mxu0 %v2826
          %4008 = vmatprep.subr.mxu0 %v2831
          %4009 = vmatpush1.msra.mxu0 %v2830
          %4010 = vmatprep.subr.mxu0 %v2835
          %4011 = vmatpush1.msra.mxu0 %v2834
          %4012 = vmatprep.subr.mxu0 %v2839
          %4013 = vmatpush1.msra.mxu0 %v2838
          %4014 = vmatprep.subr.mxu0 %v2843
          %4015 = vmatpush1.msra.mxu0 %v2842
          %4016 = vmatprep.subr.mxu0 %v2847
          %4017 = vmatpush1.msra.mxu0 %v2846
          %4018 = vmatprep.subr.mxu0 %v2851
          %4019 = vmatpush1.msra.mxu0 %v2850
          %4020 = vmatprep.subr.mxu0 0.0
          %4021 = vmatpush1.msra.mxu0 0.0
          %4022 = vmatprep.subr.mxu0 0.0
          %4023 = vmatpush1.msra.mxu0 0.0
          %4024 = vmatprep.subr.mxu0 0.0
          %4025 = vmatpush1.msra.mxu0 0.0
          %4026 = vmatprep.subr.mxu0 0.0
          %4027 = vmatpush1.msra.mxu0 0.0
          %4028 = vmatprep.subr.mxu0 0.0
          %4029 = vmatpush1.msra.mxu0 0.0
          %4030 = vmatprep.subr.mxu0 0.0
          %4031 = vmatpush1.msra.mxu0 0.0
          %4032 = vmatprep.subr.mxu0 0.0
          %4033 = vmatpush1.msra.mxu0 0.0
          %4034 = vmatprep.subr.mxu0 0.0
          %4035 = vmatpush1.msra.mxu0 0.0
          %4036 = vmatprep.subr.mxu0 0.0
          %4037 = vmatpush1.msra.mxu0 0.0
          %4038 = vmatprep.subr.mxu0 0.0
          %4039 = vmatpush1.msra.mxu0 0.0
          %4040 = vmatprep.subr.mxu0 0.0
          %4041 = vmatpush1.msra.mxu0 0.0
          %4042 = vmatprep.subr.mxu0 0.0
          %4043 = vmatpush1.msra.mxu0 0.0
          %4044 = vmatprep.subr.mxu0 0.0
          %4045 = vmatpush1.msra.mxu0 0.0
          %4046 = vmatprep.subr.mxu0 0.0
          %4047 = vmatpush1.msra.mxu0 0.0
          %4048 = vmatprep.subr.mxu0 0.0
          %4049 = vmatpush1.msra.mxu0 0.0
          %4050 = vmatprep.subr.mxu0 0.0
          %4051 = vmatpush1.msra.mxu0 0.0
          %4052 = vmatprep.mubr.f32.mxu0 0.0
          %4053 = vmatmul.mubr.f32.gmra.mrb[0].mxu0 %v3909
          %v4054 = vpop.f32.mrb[0].mxu0
          %v4055 = vadd.f32 0.0, %v4054
          %v4056 = vpop.f32.mrb[0].mxu0
          %v4057 = vadd.f32 0.0, %v4056
          %4058 = vdwg.mxu0
          %v4059 = vadd.f32 %v3913, %v3984
          %v4060 = vadd.f32 %v3914, %v3986
          %v4061 = vadd.f32 %v3915, %v4055
          %v4062 = vadd.f32 %v3916, %v4057
          %v4063 = vxor.u32 %v4059, 2147483648
          %v4064 = vmul.f32 %v4063, 1.442695
          %v4065 = vpow.pop %v4064
          %v4066 = vadd.f32 %v4065, 1.0
          %v4067 = vrcp.pop %v4066
          %v4068 = vmul.f32 1.0, %v4067
          %v4069 = vxor.u32 %v4060, 2147483648
          %v4070 = vmul.f32 %v4069, 1.442695
          %v4071 = vpow.pop %v4070
          %v4072 = vadd.f32 %v4071, 1.0
          %v4073 = vrcp.pop %v4072
          %v4074 = vmul.f32 1.0, %v4073
          %v4075 = vtanh.pop %v4061
          %v4076 = vxor.u32 %v4062, 2147483648
          %v4077 = vmul.f32 %v4076, 1.442695
          %v4078 = vpow.pop %v4077
          %v4079 = vadd.f32 %v4078, 1.0
          %v4080 = vrcp.pop %v4079
          %v4081 = vmul.f32 1.0, %v4080
          %v4082 = vmul.f32 %v4074, %v3907
          %v4083 = vmul.f32 %v4068, %v4075
          %v4084 = vadd.f32 %v4082, %v4083
          %v4085 = vtanh.pop %v4084
          %v4086 = vmul.f32 %v4081, %v4085
          %s4087 = scalar_lea.vmem [#allocation3], 48
          %4088 = vst [vmem:[%s4087] sm:$0xff] %v4086
          %s4089 = scalar_lea.vmem [#allocation4], 224
          %v4090 = vld [vmem:[%s4089] sm:$0xff]
          %v4091 = vld [vmem:[%s4089 + $0x8] sm:$0xff]
          %v4092 = vld [vmem:[%s4089 + $0x10] sm:$0xff]
          %v4093 = vld [vmem:[%s4089 + $0x18] sm:$0xff]
          %4094 = vmatprep.subr.mxu0 %v2789
          %4095 = vmatpush1.msra.mxu0 %v2788
          %4096 = vmatprep.subr.mxu0 %v2793
          %4097 = vmatpush1.msra.mxu0 %v2792
          %4098 = vmatprep.subr.mxu0 %v2797
          %4099 = vmatpush1.msra.mxu0 %v2796
          %4100 = vmatprep.subr.mxu0 %v2801
          %4101 = vmatpush1.msra.mxu0 %v2800
          %4102 = vmatprep.subr.mxu0 %v2805
          %4103 = vmatpush1.msra.mxu0 %v2804
          %4104 = vmatprep.subr.mxu0 %v2809
          %4105 = vmatpush1.msra.mxu0 %v2808
          %4106 = vmatprep.subr.mxu0 %v2813
          %4107 = vmatpush1.msra.mxu0 %v2812
          %4108 = vmatprep.subr.mxu0 %v2817
          %4109 = vmatpush1.msra.mxu0 %v2816
          %4110 = vmatprep.subr.mxu0 %v2821
          %4111 = vmatpush1.msra.mxu0 %v2820
          %4112 = vmatprep.subr.mxu0 %v2825
          %4113 = vmatpush1.msra.mxu0 %v2824
          %4114 = vmatprep.subr.mxu0 %v2829
          %4115 = vmatpush1.msra.mxu0 %v2828
          %4116 = vmatprep.subr.mxu0 %v2833
          %4117 = vmatpush1.msra.mxu0 %v2832
          %4118 = vmatprep.subr.mxu0 %v2837
          %4119 = vmatpush1.msra.mxu0 %v2836
          %4120 = vmatprep.subr.mxu0 %v2841
          %4121 = vmatpush1.msra.mxu0 %v2840
          %4122 = vmatprep.subr.mxu0 %v2845
          %4123 = vmatpush1.msra.mxu0 %v2844
          %4124 = vmatprep.subr.mxu0 %v2849
          %4125 = vmatpush1.msra.mxu0 %v2848
          %4126 = vmatprep.subr.mxu0 0.0
          %4127 = vmatpush1.msra.mxu0 0.0
          %4128 = vmatprep.subr.mxu0 0.0
          %4129 = vmatpush1.msra.mxu0 0.0
          %4130 = vmatprep.subr.mxu0 0.0
          %4131 = vmatpush1.msra.mxu0 0.0
          %4132 = vmatprep.subr.mxu0 0.0
          %4133 = vmatpush1.msra.mxu0 0.0
          %4134 = vmatprep.subr.mxu0 0.0
          %4135 = vmatpush1.msra.mxu0 0.0
          %4136 = vmatprep.subr.mxu0 0.0
          %4137 = vmatpush1.msra.mxu0 0.0
          %4138 = vmatprep.subr.mxu0 0.0
          %4139 = vmatpush1.msra.mxu0 0.0
          %4140 = vmatprep.subr.mxu0 0.0
          %4141 = vmatpush1.msra.mxu0 0.0
          %4142 = vmatprep.subr.mxu0 0.0
          %4143 = vmatpush1.msra.mxu0 0.0
          %4144 = vmatprep.subr.mxu0 0.0
          %4145 = vmatpush1.msra.mxu0 0.0
          %4146 = vmatprep.subr.mxu0 0.0
          %4147 = vmatpush1.msra.mxu0 0.0
          %4148 = vmatprep.subr.mxu0 0.0
          %4149 = vmatpush1.msra.mxu0 0.0
          %4150 = vmatprep.subr.mxu0 0.0
          %4151 = vmatpush1.msra.mxu0 0.0
          %4152 = vmatprep.subr.mxu0 0.0
          %4153 = vmatpush1.msra.mxu0 0.0
          %4154 = vmatprep.subr.mxu0 0.0
          %4155 = vmatpush1.msra.mxu0 0.0
          %4156 = vmatprep.subr.mxu0 0.0
          %4157 = vmatpush1.msra.mxu0 0.0
          %4158 = vmatprep.mubr.f32.mxu0 0.0
          %4159 = vmatmul.mubr.f32.gmra.mrb[0].mxu0 %v4086
          %v4160 = vpop.f32.mrb[0].mxu0
          %v4161 = vadd.f32 0.0, %v4160
          %v4162 = vpop.f32.mrb[0].mxu0
          %v4163 = vadd.f32 0.0, %v4162
          %4164 = vdwg.mxu0
          %4165 = vmatprep.subr.mxu0 %v2791
          %4166 = vmatpush1.msra.mxu0 %v2790
          %4167 = vmatprep.subr.mxu0 %v2795
          %4168 = vmatpush1.msra.mxu0 %v2794
          %4169 = vmatprep.subr.mxu0 %v2799
          %4170 = vmatpush1.msra.mxu0 %v2798
          %4171 = vmatprep.subr.mxu0 %v2803
          %4172 = vmatpush1.msra.mxu0 %v2802
          %4173 = vmatprep.subr.mxu0 %v2807
          %4174 = vmatpush1.msra.mxu0 %v2806
          %4175 = vmatprep.subr.mxu0 %v2811
          %4176 = vmatpush1.msra.mxu0 %v2810
          %4177 = vmatprep.subr.mxu0 %v2815
          %4178 = vmatpush1.msra.mxu0 %v2814
          %4179 = vmatprep.subr.mxu0 %v2819
          %4180 = vmatpush1.msra.mxu0 %v2818
          %4181 = vmatprep.subr.mxu0 %v2823
          %4182 = vmatpush1.msra.mxu0 %v2822
          %4183 = vmatprep.subr.mxu0 %v2827
          %4184 = vmatpush1.msra.mxu0 %v2826
          %4185 = vmatprep.subr.mxu0 %v2831
          %4186 = vmatpush1.msra.mxu0 %v2830
          %4187 = vmatprep.subr.mxu0 %v2835
          %4188 = vmatpush1.msra.mxu0 %v2834
          %4189 = vmatprep.subr.mxu0 %v2839
          %4190 = vmatpush1.msra.mxu0 %v2838
          %4191 = vmatprep.subr.mxu0 %v2843
          %4192 = vmatpush1.msra.mxu0 %v2842
          %4193 = vmatprep.subr.mxu0 %v2847
          %4194 = vmatpush1.msra.mxu0 %v2846
          %4195 = vmatprep.subr.mxu0 %v2851
          %4196 = vmatpush1.msra.mxu0 %v2850
          %4197 = vmatprep.subr.mxu0 0.0
          %4198 = vmatpush1.msra.mxu0 0.0
          %4199 = vmatprep.subr.mxu0 0.0
          %4200 = vmatpush1.msra.mxu0 0.0
          %4201 = vmatprep.subr.mxu0 0.0
          %4202 = vmatpush1.msra.mxu0 0.0
          %4203 = vmatprep.subr.mxu0 0.0
          %4204 = vmatpush1.msra.mxu0 0.0
          %4205 = vmatprep.subr.mxu0 0.0
          %4206 = vmatpush1.msra.mxu0 0.0
          %4207 = vmatprep.subr.mxu0 0.0
          %4208 = vmatpush1.msra.mxu0 0.0
          %4209 = vmatprep.subr.mxu0 0.0
          %4210 = vmatpush1.msra.mxu0 0.0
          %4211 = vmatprep.subr.mxu0 0.0
          %4212 = vmatpush1.msra.mxu0 0.0
          %4213 = vmatprep.subr.mxu0 0.0
          %4214 = vmatpush1.msra.mxu0 0.0
          %4215 = vmatprep.subr.mxu0 0.0
          %4216 = vmatpush1.msra.mxu0 0.0
          %4217 = vmatprep.subr.mxu0 0.0
          %4218 = vmatpush1.msra.mxu0 0.0
          %4219 = vmatprep.subr.mxu0 0.0
          %4220 = vmatpush1.msra.mxu0 0.0
          %4221 = vmatprep.subr.mxu0 0.0
          %4222 = vmatpush1.msra.mxu0 0.0
          %4223 = vmatprep.subr.mxu0 0.0
          %4224 = vmatpush1.msra.mxu0 0.0
          %4225 = vmatprep.subr.mxu0 0.0
          %4226 = vmatpush1.msra.mxu0 0.0
          %4227 = vmatprep.subr.mxu0 0.0
          %4228 = vmatpush1.msra.mxu0 0.0
          %4229 = vmatprep.mubr.f32.mxu0 0.0
          %4230 = vmatmul.mubr.f32.gmra.mrb[0].mxu0 %v4086
          %v4231 = vpop.f32.mrb[0].mxu0
          %v4232 = vadd.f32 0.0, %v4231
          %v4233 = vpop.f32.mrb[0].mxu0
          %v4234 = vadd.f32 0.0, %v4233
          %4235 = vdwg.mxu0
          %v4236 = vadd.f32 %v4090, %v4161
          %v4237 = vadd.f32 %v4091, %v4163
          %v4238 = vadd.f32 %v4092, %v4232
          %v4239 = vadd.f32 %v4093, %v4234
          %v4240 = vxor.u32 %v4236, 2147483648
          %v4241 = vmul.f32 %v4240, 1.442695
          %v4242 = vpow.pop %v4241
          %v4243 = vadd.f32 %v4242, 1.0
          %v4244 = vrcp.pop %v4243
          %v4245 = vmul.f32 1.0, %v4244
          %v4246 = vxor.u32 %v4237, 2147483648
          %v4247 = vmul.f32 %v4246, 1.442695
          %v4248 = vpow.pop %v4247
          %v4249 = vadd.f32 %v4248, 1.0
          %v4250 = vrcp.pop %v4249
          %v4251 = vmul.f32 1.0, %v4250
          %v4252 = vtanh.pop %v4238
          %v4253 = vxor.u32 %v4239, 2147483648
          %v4254 = vmul.f32 %v4253, 1.442695
          %v4255 = vpow.pop %v4254
          %v4256 = vadd.f32 %v4255, 1.0
          %v4257 = vrcp.pop %v4256
          %v4258 = vmul.f32 1.0, %v4257
          %v4259 = vmul.f32 %v4251, %v4084
          %v4260 = vmul.f32 %v4245, %v4252
          %v4261 = vadd.f32 %v4259, %v4260
          %v4262 = vtanh.pop %v4261
          %v4263 = vmul.f32 %v4258, %v4262
          %s4264 = scalar_lea.vmem [#allocation3], 56
          %4265 = vst [vmem:[%s4264] sm:$0xff] %v4263
          %4266 = vst [vmem:[%s384] sm:$0xff] %v4263
          %4267 = vst [vmem:[%s388] sm:$0xff] %v4261
        $region72: #{_lambda_.3} parent=43 // pred_fallthru
          _
        %p4268 = scmp.eq.s32.totalorder %s26, 2
        // Predicated region
        $region73: #{_lambda_.3} parent=43 // pred_check
          %p4269 = pneg %p4268
        $region74: #{_lambda_.3} parent=43 // pred_check_branch
          %4271 = sbr.rel (%p4269) target = $region76
        $region75: #{_lambda_.3} parent=43 // pred_region
          %v4272 = vld [vmem:[#allocation2] sm:$0xff]
          %v4273 = vld [vmem:[#allocation2 + $0x8] sm:$0xff]
          %v4274 = vld [vmem:[#allocation2 + $0x10] sm:$0xff]
          %v4275 = vld [vmem:[#allocation2 + $0x18] sm:$0xff]
          %v4276 = vld [vmem:[#allocation2 + $0x20] sm:$0xff]
          %v4277 = vld [vmem:[#allocation2 + $0x28] sm:$0xff]
          %v4278 = vld [vmem:[#allocation2 + $0x30] sm:$0xff]
          %v4279 = vld [vmem:[#allocation2 + $0x38] sm:$0xff]
          %v4280 = vld [vmem:[%s4] sm:$0xff]
          %v4281 = vld [vmem:[%s4 + $0x8] sm:$0xff]
          %v4282 = vld [vmem:[%s4 + $0x10] sm:$0xff]
          %v4283 = vld [vmem:[%s4 + $0x18] sm:$0xff]
          %v4284 = vld [vmem:[%s4 + $0x20] sm:$0xff]
          %v4285 = vld [vmem:[%s4 + $0x28] sm:$0xff]
          %v4286 = vld [vmem:[%s4 + $0x30] sm:$0xff]
          %v4287 = vld [vmem:[%s4 + $0x38] sm:$0xff]
          %v4288 = vld [vmem:[%s4 + $0x40] sm:$0xff]
          %v4289 = vld [vmem:[%s4 + $0x48] sm:$0xff]
          %v4290 = vld [vmem:[%s4 + $0x50] sm:$0xff]
          %v4291 = vld [vmem:[%s4 + $0x58] sm:$0xff]
          %v4292 = vld [vmem:[%s4 + $0x60] sm:$0xff]
          %v4293 = vld [vmem:[%s4 + $0x68] sm:$0xff]
          %v4294 = vld [vmem:[%s4 + $0x70] sm:$0xff]
          %v4295 = vld [vmem:[%s4 + $0x78] sm:$0xff]
          %v4296 = vld [vmem:[%s5] sm:$0x1]
          %v4298 = vlaneseq
          %v4299 = vshrl.u32 %v4298, 7
          %v4300 = vsub.s32 0, %v4299
          %v4301 = vrot.slane %v4296, %v4300
          %4303 = vmatprep.subr.mxu0 0.0
          %4304 = vmatpush1.msra.mxu0 %v4280
          %4305 = vmatprep.subr.mxu0 0.0
          %4306 = vmatpush1.msra.mxu0 %v4281
          %4307 = vmatprep.subr.mxu0 0.0
          %4308 = vmatpush1.msra.mxu0 %v4282
          %4309 = vmatprep.subr.mxu0 0.0
          %4310 = vmatpush1.msra.mxu0 %v4283
          %4311 = vmatprep.subr.mxu0 0.0
          %4312 = vmatpush1.msra.mxu0 %v4284
          %4313 = vmatprep.subr.mxu0 0.0
          %4314 = vmatpush1.msra.mxu0 %v4285
          %4315 = vmatprep.subr.mxu0 0.0
          %4316 = vmatpush1.msra.mxu0 %v4286
          %4317 = vmatprep.subr.mxu0 0.0
          %4318 = vmatpush1.msra.mxu0 %v4287
          %4319 = vmatprep.subr.mxu0 0.0
          %4320 = vmatpush1.msra.mxu0 %v4288
          %4321 = vmatprep.subr.mxu0 0.0
          %4322 = vmatpush1.msra.mxu0 %v4289
          %4323 = vmatprep.subr.mxu0 0.0
          %4324 = vmatpush1.msra.mxu0 %v4290
          %4325 = vmatprep.subr.mxu0 0.0
          %4326 = vmatpush1.msra.mxu0 %v4291
          %4327 = vmatprep.subr.mxu0 0.0
          %4328 = vmatpush1.msra.mxu0 %v4292
          %4329 = vmatprep.subr.mxu0 0.0
          %4330 = vmatpush1.msra.mxu0 %v4293
          %4331 = vmatprep.subr.mxu0 0.0
          %4332 = vmatpush1.msra.mxu0 %v4294
          %4333 = vmatprep.subr.mxu0 0.0
          %4334 = vmatpush1.msra.mxu0 %v4295
          %4335 = vmatprep.subr.mxu0 0.0
          %4336 = vmatpush1.msra.mxu0 0.0
          %4337 = vmatprep.subr.mxu0 0.0
          %4338 = vmatpush1.msra.mxu0 0.0
          %4339 = vmatprep.subr.mxu0 0.0
          %4340 = vmatpush1.msra.mxu0 0.0
          %4341 = vmatprep.subr.mxu0 0.0
          %4342 = vmatpush1.msra.mxu0 0.0
          %4343 = vmatprep.subr.mxu0 0.0
          %4344 = vmatpush1.msra.mxu0 0.0
          %4345 = vmatprep.subr.mxu0 0.0
          %4346 = vmatpush1.msra.mxu0 0.0
          %4347 = vmatprep.subr.mxu0 0.0
          %4348 = vmatpush1.msra.mxu0 0.0
          %4349 = vmatprep.subr.mxu0 0.0
          %4350 = vmatpush1.msra.mxu0 0.0
          %4351 = vmatprep.subr.mxu0 0.0
          %4352 = vmatpush1.msra.mxu0 0.0
          %4353 = vmatprep.subr.mxu0 0.0
          %4354 = vmatpush1.msra.mxu0 0.0
          %4355 = vmatprep.subr.mxu0 0.0
          %4356 = vmatpush1.msra.mxu0 0.0
          %4357 = vmatprep.subr.mxu0 0.0
          %4358 = vmatpush1.msra.mxu0 0.0
          %4359 = vmatprep.subr.mxu0 0.0
          %4360 = vmatpush1.msra.mxu0 0.0
          %4361 = vmatprep.subr.mxu0 0.0
          %4362 = vmatpush1.msra.mxu0 0.0
          %4363 = vmatprep.subr.mxu0 0.0
          %4364 = vmatpush1.msra.mxu0 0.0
          %4365 = vmatprep.subr.mxu0 0.0
          %4366 = vmatpush1.msra.mxu0 0.0
          %4367 = vmatprep.mubr.f32.mxu0 0.0
          %4368 = vmatmul.mubr.f32.gmra.mrb[0].mxu0 %v4272
          %v4369 = vpop.f32.mrb[0].mxu0
          %v4370 = vadd.f32 %v4301, %v4369
          %v4371 = vpop.f32.mrb[0].mxu0
          %4372 = vmatprep.mubr.f32.mxu0 0.0
          %4373 = vmatmul.mubr.f32.gmra.mrb[0].mxu0 %v4273
          %v4374 = vpop.f32.mrb[0].mxu0
          %v4375 = vadd.f32 %v4301, %v4374
          %v4376 = vpop.f32.mrb[0].mxu0
          %4377 = vmatprep.mubr.f32.mxu0 0.0
          %4378 = vmatmul.mubr.f32.gmra.mrb[0].mxu0 %v4274
          %v4379 = vpop.f32.mrb[0].mxu0
          %v4380 = vadd.f32 %v4301, %v4379
          %v4381 = vpop.f32.mrb[0].mxu0
          %4382 = vmatprep.mubr.f32.mxu0 0.0
          %4383 = vmatmul.mubr.f32.gmra.mrb[0].mxu0 %v4275
          %v4384 = vpop.f32.mrb[0].mxu0
          %v4385 = vadd.f32 %v4301, %v4384
          %v4386 = vpop.f32.mrb[0].mxu0
          %4387 = vmatprep.mubr.f32.mxu0 0.0
          %4388 = vmatmul.mubr.f32.gmra.mrb[0].mxu0 %v4276
          %v4389 = vpop.f32.mrb[0].mxu0
          %v4390 = vadd.f32 %v4301, %v4389
          %v4391 = vpop.f32.mrb[0].mxu0
          %4392 = vmatprep.mubr.f32.mxu0 0.0
          %4393 = vmatmul.mubr.f32.gmra.mrb[0].mxu0 %v4277
          %v4394 = vpop.f32.mrb[0].mxu0
          %v4395 = vadd.f32 %v4301, %v4394
          %v4396 = vpop.f32.mrb[0].mxu0
          %4397 = vmatprep.mubr.f32.mxu0 0.0
          %4398 = vmatmul.mubr.f32.gmra.mrb[0].mxu0 %v4278
          %v4399 = vpop.f32.mrb[0].mxu0
          %v4400 = vadd.f32 %v4301, %v4399
          %v4401 = vpop.f32.mrb[0].mxu0
          %4402 = vmatprep.mubr.f32.mxu0 0.0
          %4403 = vmatmul.mubr.f32.gmra.mrb[0].mxu0 %v4279
          %v4404 = vpop.f32.mrb[0].mxu0
          %v4405 = vadd.f32 %v4301, %v4404
          %v4406 = vpop.f32.mrb[0].mxu0
          %4407 = vdwg.mxu0
          %4408 = vst [vmem:[%s6] sm:$0xff] %v4370
          %4409 = vst [vmem:[%s6 + $0x8] sm:$0xff] %v4375
          %4410 = vst [vmem:[%s6 + $0x10] sm:$0xff] %v4380
          %4411 = vst [vmem:[%s6 + $0x18] sm:$0xff] %v4385
          %4412 = vst [vmem:[%s6 + $0x20] sm:$0xff] %v4390
          %4413 = vst [vmem:[%s6 + $0x28] sm:$0xff] %v4395
          %4414 = vst [vmem:[%s6 + $0x30] sm:$0xff] %v4400
          %4415 = vst [vmem:[%s6 + $0x38] sm:$0xff] %v4405
        $region76: #{_lambda_.3} parent=43 // pred_fallthru
          _
        %p4416 = scmp.lt.s32.totalorder %s26, 2
        %s4417 = scalar_select %p4416, %s26, 2
        %s4418 = smul.addr %s4417, 8
        %s4419 = scalar_lea.vmem %s7, %s4418
        %p4420 = scmp.lt.s32.totalorder %s26, 2
        %s4421 = scalar_select %p4420, %s26, 2
        %s4422 = smul.addr %s4421, 8
        %s4423 = scalar_lea.vmem %s8, %s4422
        // Predicated region
        $region77: #{_lambda_.3} parent=43 // pred_check
          %p4424 = pneg %p180
        $region78: #{_lambda_.3} parent=43 // pred_check_branch
          %4426 = sbr.rel (%p4424) target = $region80
        $region79: #{_lambda_.3} parent=43 // pred_region
          _
        $region80: #{_lambda_.3} parent=43 // pred_fallthru
          _
        // Predicated region
        $region81: #{_lambda_.3} parent=43 // pred_check
          %p4427 = pneg %p206
        $region82: #{_lambda_.3} parent=43 // pred_check_branch
          %4429 = sbr.rel (%p4427) target = $region84
        $region83: #{_lambda_.3} parent=43 // pred_region
          _
        $region84: #{_lambda_.3} parent=43 // pred_fallthru
          _
        // Predicated region
        $region85: #{_lambda_.3} parent=43 // pred_check
          %p4430 = pneg %p232
        $region86: #{_lambda_.3} parent=43 // pred_check_branch
          %4432 = sbr.rel (%p4430) target = $region88
        $region87: #{_lambda_.3} parent=43 // pred_region
          _
        $region88: #{_lambda_.3} parent=43 // pred_fallthru
          _
        // Predicated region
        $region89: #{_lambda_.3} parent=43 // pred_check
          %p4433 = pneg %p180
        $region90: #{_lambda_.3} parent=43 // pred_check_branch
          %4435 = sbr.rel (%p4433) target = $region92
        $region91: #{_lambda_.3} parent=43 // pred_region
          _
        $region92: #{_lambda_.3} parent=43 // pred_fallthru
          _
      $region44: #{_lambda_.3} parent=5 // pred_fallthru
        _
      %p4436 = scmp.le.s32.totalorder 2, %s21
      // Predicated region
      $region93: #{_lambda_.3} parent=5 // pred_check
        %p4437 = pneg %p4436
      $region94: #{_lambda_.3} parent=5 // pred_check_branch
        %4439 = sbr.rel (%p4437) target = $region96
      $region95: #{_lambda_.3} parent=5 // pred_region
        %s4440 = ssub.s32 %s21, 2
        // Predicated region
        $region97: #{_lambda_.3} parent=95 // pred_check
          %p4441 = pneg %p212
        $region98: #{_lambda_.3} parent=95 // pred_check_branch
          %4443 = sbr.rel (%p4441) target = $region100
        $region99: #{_lambda_.3} parent=95 // pred_region
          %p4444 = scmp.lt.s32.totalorder %s27, 2
          %s4445 = scalar_select %p4444, %s27, 2
          %s4446 = smul.addr %s4445, 8
          %s4447 = scalar_lea.vmem %s7, %s4446
        $region100: #{_lambda_.3} parent=95 // pred_fallthru
          _
        // Predicated region
        $region101: #{_lambda_.3} parent=95 // pred_check
          %p4448 = pneg %p238
        $region102: #{_lambda_.3} parent=95 // pred_check_branch
          %4450 = sbr.rel (%p4448) target = $region104
        $region103: #{_lambda_.3} parent=95 // pred_region
          %p4451 = scmp.lt.s32.totalorder %s27, 2
          %s4452 = scalar_select %p4451, %s27, 2
          %s4453 = smul.addr %s4452, 8
          %s4454 = scalar_lea.vmem %s8, %s4453
        $region104: #{_lambda_.3} parent=95 // pred_fallthru
          _
      $region96: #{_lambda_.3} parent=5 // pred_fallthru
        _
    $region6: #{_lambda_.3} parent=1 // loop_footer
      %s25 = sadd.s32 1, %s21
    $region7: #{_lambda_.3} parent=1 // loop_footer_branch
      %20 = sbr.rel target = $region3
    $region8: #{_lambda_.3} parent=1 // loop_exit
      _
    %4455 = vsyncpa [#allocation6], 1
    %s4456 = scalar_lea.sflag [#allocation6], 1
    %4457 = vsyncpa %s4456, 1
    %4458 = vsyncpa [#allocation8], 1
    %s4459 = scalar_lea.sflag [#allocation8], 1
    %4460 = vsyncpa %s4459, 1

</llo_original>
